<compile_context>
chip_gen: v7x
topology: tpu7x:2x2x1
jax: 0.10.0
libtpu: 0.0.40
codegen_flags: <defaults>
</compile_context>

<pallas_src>
import functools

import jax
import jax.numpy as jnp
from jax.experimental import pallas as pl
from jax.experimental.pallas import tpu as pltpu

# ---- module hyper-parameters (small, deterministic) ----
N, H, W = 2, 16, 16
CHANNELS = 64          # input channels
OUT_CHANNELS = 64      # out_channels defaults to channels  -> skip = Identity
EMB_CHANNELS = 32      # timestep-embedding channels
NUM_GROUPS = 32        # openai group_norm(channels) == GroupNorm(32, channels)
EPS = 1e-5
LANES = 128
K_PAD = 5 * LANES      # 9*C = 576 padded to 640 so slab stores / MXU K are 128-aligned


def _silu(v):
    return v * jax.nn.sigmoid(v)


def _resblock_kernel(nb, mask_bf16,
                     x_ref, emb_ref, mask_ref, avg_ref,
                     g1_ref, b1_ref, w1_ref, cb1_ref,
                     lw_ref, lb_ref,
                     g2_ref, b2_ref, w2_ref, cb2_ref,
                     out_ref, slab_ref):
    rows = nb * H * W

    def group_norm(v2, gamma, beta):
        # Per-sample group statistics via one tiny MXU dot against the host-built
        # block-diagonal group-averaging matrix; affine fused into scale/shift.
        c = v2.shape[-1]
        v3 = v2.reshape(nb, H * W, c)
        s = jnp.sum(v3, axis=1)                               # (nb, c)
        ss = jnp.sum(v3 * v3, axis=1)                         # (nb, c)
        stats = jnp.dot(jnp.concatenate([s, ss], axis=0), avg_ref[...],
                        preferred_element_type=jnp.float32)   # (2*nb, c)
        mean = stats[:nb]
        var = jnp.maximum(stats[nb:] - mean * mean, 0.0)      # guard cancellation
        inv = jax.lax.rsqrt(var + EPS)
        a = inv * gamma                                       # (nb, c)
        b = beta - mean * a                                   # (nb, c)
        return (v3 * a[:, None, :] + b[:, None, :]).reshape(rows, c)

    def conv3x3(v2, w_ref_, bias):
        # roll-based im2col; taps written in pairs -> one unmasked 128-lane bf16
        # store per pair; out-of-image taps zeroed by pre-broadcast host masks.
        def tap(k):
            dy, dx = k // 3 - 1, k % 3 - 1
            off = dy * W + dx
            if off == 0:
                return v2                                     # centre tap
            return pltpu.roll(v2, shift=(-off) % rows, axis=0)

        for j in range(5):
            k0, k1 = 2 * j, 2 * j + 1
            p0 = tap(k0)
            p1 = tap(k1) if k1 < 9 else p0    # pair 4: upper 64 lanes masked to zero
            pair = jnp.concatenate([p0, p1], axis=-1)         # (rows, 128) f32
            if mask_bf16:
                pair = pair.astype(jnp.bfloat16) * mask_ref[j]
            else:                              # f32 VALU path (preferred on v5e)
                pair = (pair * mask_ref[j]).astype(jnp.bfloat16)
            slab_ref[:, j * LANES:(j + 1) * LANES] = pair
        return jnp.dot(slab_ref[...], w_ref_[...],
                       preferred_element_type=jnp.float32) + bias

    # in_layers: GroupNorm -> SiLU -> Conv3x3 (C -> CO)
    h = conv3x3(_silu(group_norm(x_ref[...].astype(jnp.float32),
                                 g1_ref[...], b1_ref[...])),
                w1_ref, cb1_ref[...])

    # embedding_layers: SiLU -> Linear(E -> CO); broadcast over spatial positions
    e = _silu(emb_ref[...][:, 0, :].astype(jnp.float32))      # (nb, E)
    emb_out = jnp.dot(e.astype(jnp.bfloat16), lw_ref[...],
                      preferred_element_type=jnp.float32) + lb_ref[...]   # (nb, CO)
    h = (h.reshape(nb, H * W, OUT_CHANNELS) + emb_out[:, None, :]).reshape(
        rows, OUT_CHANNELS)

    # out_layers: GroupNorm -> SiLU -> Dropout(identity) -> Conv3x3 (zero_module init)
    h = conv3x3(_silu(group_norm(h, g2_ref[...], b2_ref[...])),
                w2_ref, cb2_ref[...])

    # skip_connection = Identity; re-read x only here (no long live range)
    out_ref[...] = (x_ref[...].astype(jnp.float32) + h).astype(out_ref.dtype)


# ---- host-side constant builders (run once per make_resblock_fn) ----
def _conv_pair_masks(nb, dtype):
    """(5, nb*H*W, 128) masks: pair j covers taps 2j / 2j+1; pair 4 upper half = 0."""
    hw = H * W
    h_idx = jnp.arange(hw) // W
    w_idx = jnp.arange(hw) % W
    taps = []
    for k in range(9):
        dy, dx = k // 3 - 1, k % 3 - 1
        taps.append(((h_idx + dy >= 0) & (h_idx + dy < H) &
                     (w_idx + dx >= 0) & (w_idx + dx < W)).astype(jnp.float32))
    m = jnp.stack(taps)                                       # (9, HW)
    m = jnp.tile(m, (1, nb))                                  # (9, nb*HW)
    m = jnp.broadcast_to(m[:, :, None], (9, nb * hw, CHANNELS))   # pre-broadcast lanes
    zero = jnp.zeros_like(m[0])
    pairs = [jnp.concatenate(
        [m[2 * j], m[2 * j + 1] if 2 * j + 1 < 9 else zero], axis=-1)
        for j in range(5)]
    return jnp.stack(pairs).astype(dtype)                     # (5, nb*HW, 128)


def _group_avg_matrix(c):
    """(C, C) block-diagonal matrix averaging each channel over its group."""
    cg = c // NUM_GROUPS
    gid = jnp.arange(c) // cg
    return (gid[:, None] == gid[None, :]).astype(jnp.float32) / float(H * W * cg)


def _pad_k(w2d):
    """Zero-pad the contraction dim (9*C) up to K_PAD (multiple of 128)."""
    k, co = w2d.shape
    return jnp.concatenate([w2d, jnp.zeros((K_PAD - k, co), w2d.dtype)], axis=0)


def make_resblock_fn(p, n, fold_batch=True, mask_bf16=True):
    """Pre-convert weights/masks to kernel layout ONCE; return a jitted
    NHWC -> NHWC forward fn with no per-call transposes or weight conversion.

    fold_batch=True folds the whole batch into one grid step (best for tiny
    batches / 1-TC chips); set False for a batch-parallel grid.
    mask_bf16=True does the boundary-mask multiply in bf16 (v6e/v7x); set False
    to keep it in f32 (preferred on v5e, which has no bf16 VALU).
    """
    assert OUT_CHANNELS == CHANNELS and CHANNELS == LANES // 2  # pairing needs C == 64
    C, CO, E = CHANNELS, OUT_CHANNELS, EMB_CHANNELS
    nb = n if fold_batch else 1
    nblk = n // nb
    rows = nb * H * W

    # conv weights: OIHW -> HWIO -> (9*Cin, Cout) -> zero-pad K to K_PAD; bf16 operands.
    w1 = _pad_k(jnp.transpose(p["conv1_w"], (2, 3, 1, 0)).reshape(9 * C, CO)
                ).astype(jnp.bfloat16)
    w2 = _pad_k(jnp.transpose(p["conv2_w"], (2, 3, 1, 0)).reshape(9 * CO, CO)
                ).astype(jnp.bfloat16)
    lw = p["lin_w"].T.astype(jnp.bfloat16)                    # (E, CO)

    masks = _conv_pair_masks(nb, jnp.bfloat16 if mask_bf16 else jnp.float32)
    avg_mat = _group_avg_matrix(C)

    consts = (
        masks, avg_mat,
        p["gn1_w"].reshape(1, C).astype(jnp.float32),
        p["gn1_b"].reshape(1, C).astype(jnp.float32),
        w1, p["conv1_b"].reshape(1, CO).astype(jnp.float32),
        lw, p["lin_b"].reshape(1, CO).astype(jnp.float32),
        p["gn2_w"].reshape(1, CO).astype(jnp.float32),
        p["gn2_b"].reshape(1, CO).astype(jnp.float32),
        w2, p["conv2_b"].reshape(1, CO).astype(jnp.float32),
    )

    # Constant-index weight/mask inputs are not re-DMA'd across grid steps.
    in_specs = [
        pl.BlockSpec((rows, C), lambda i: (i, 0)),            # x slab
        pl.BlockSpec((nb, 1, E), lambda i: (i, 0, 0)),        # timestep embedding
        pl.BlockSpec((5, rows, LANES), lambda i: (0, 0, 0)),  # pre-broadcast pair masks
        pl.BlockSpec((C, C), lambda i: (0, 0)),               # group-avg matrix
        pl.BlockSpec((1, C), lambda i: (0, 0)),               # gn1 gamma
        pl.BlockSpec((1, C), lambda i: (0, 0)),               # gn1 beta
        pl.BlockSpec((K_PAD, CO), lambda i: (0, 0)),          # conv1 weight (padded)
        pl.BlockSpec((1, CO), lambda i: (0, 0)),              # conv1 bias
        pl.BlockSpec((E, CO), lambda i: (0, 0)),              # linear weight
        pl.BlockSpec((1, CO), lambda i: (0, 0)),              # linear bias
        pl.BlockSpec((1, CO), lambda i: (0, 0)),              # gn2 gamma
        pl.BlockSpec((1, CO), lambda i: (0, 0)),              # gn2 beta
        pl.BlockSpec((K_PAD, CO), lambda i: (0, 0)),          # conv2 weight (padded)
        pl.BlockSpec((1, CO), lambda i: (0, 0)),              # conv2 bias
    ]

    flops = 2 * n * H * W * K_PAD * CO * 2 + 2 * n * E * CO + 2 * 4 * n * C * C
    transcendentals = n * H * W * (C + CO) + n * E + 4 * n * C
    bytes_accessed = (2 * n * H * W * C) * 4 \
        + (w1.size + w2.size + lw.size + masks.size) * 2 \
        + avg_mat.size * 4 + 16 * CO * 4

    call = pl.pallas_call(
        functools.partial(_resblock_kernel, nb, mask_bf16),
        out_shape=jax.ShapeDtypeStruct((n * H * W, CO), jnp.float32),
        grid_spec=pltpu.PrefetchScalarGridSpec(
            num_scalar_prefetch=0,
            grid=(nblk,),
            in_specs=in_specs,
            out_specs=pl.BlockSpec((rows, CO), lambda i: (i, 0)),
            scratch_shapes=[pltpu.VMEM((rows, K_PAD), jnp.bfloat16)],  # im2col slab
        ),
        compiler_params=pltpu.CompilerParams(
            dimension_semantics=("arbitrary",) if nblk == 1 else ("parallel",)),
        cost_estimate=pl.CostEstimate(flops=int(flops),
                                      transcendentals=int(transcendentals),
                                      bytes_accessed=int(bytes_accessed)),
    )

    @jax.jit
    def forward_nhwc(x_nhwc, emb):
        # reshape only (no transpose): NHWC -> (N*H*W, C) lane-major slab
        x2 = x_nhwc.reshape(n * H * W, C).astype(jnp.float32)
        emb3 = emb.reshape(n, 1, E).astype(jnp.float32)
        out2 = call(x2, emb3, *consts)
        return out2.reshape(n, H, W, CO)

    return forward_nhwc


def resblock_pallas(x_nchw, emb, p, fold_batch=True, mask_bf16=True):
    """NCHW convenience wrapper (demo).  For best performance keep the surrounding
    network in NHWC and call make_resblock_fn(...) once, reusing the returned fn."""
    fn = make_resblock_fn(p, x_nchw.shape[0], fold_batch=fold_batch,
                          mask_bf16=mask_bf16)
    x_nhwc = jnp.transpose(x_nchw, (0, 2, 3, 1))
    out_nhwc = fn(x_nhwc, emb)
    return jnp.transpose(out_nhwc, (0, 3, 1, 2))


# ---- pure-JAX reference (mirrors the PyTorch forward, full f32) ----
def resblock_ref(x, emb, p):
    def gn(v, gamma, beta):
        n_, c_, h_, w_ = v.shape
        vg = v.reshape(n_, NUM_GROUPS, (c_ // NUM_GROUPS) * h_ * w_)
        mean = vg.mean(axis=2, keepdims=True)
        var = jnp.mean((vg - mean) ** 2, axis=2, keepdims=True)
        vn = ((vg - mean) / jnp.sqrt(var + EPS)).reshape(n_, c_, h_, w_)
        return vn * gamma[None, :, None, None] + beta[None, :, None, None]

    def conv(v, w, b):
        y = jax.lax.conv_general_dilated(v, w, (1, 1), ((1, 1), (1, 1)),
                                         dimension_numbers=("NCHW", "OIHW", "NCHW"))
        return y + b[None, :, None, None]

    h = conv(jax.nn.silu(gn(x, p["gn1_w"], p["gn1_b"])), p["conv1_w"], p["conv1_b"])
    e = jax.nn.silu(emb) @ p["lin_w"].T + p["lin_b"]
    h = h + e[:, :, None, None]
    h = conv(jax.nn.silu(gn(h, p["gn2_w"], p["gn2_b"])), p["conv2_w"], p["conv2_b"])
    return x + h


def init_params(key):
    ks = jax.random.split(key, 8)
    return {
        "gn1_w": 1.0 + 0.1 * jax.random.normal(ks[0], (CHANNELS,), jnp.float32),
        "gn1_b": 0.1 * jax.random.normal(ks[1], (CHANNELS,), jnp.float32),
        "conv1_w": 0.1 * jax.random.normal(ks[2], (OUT_CHANNELS, CHANNELS, 3, 3), jnp.float32),
        "conv1_b": 0.1 * jax.random.normal(ks[3], (OUT_CHANNELS,), jnp.float32),
        "lin_w": 0.1 * jax.random.normal(ks[4], (OUT_CHANNELS, EMB_CHANNELS), jnp.float32),
        "lin_b": 0.1 * jax.random.normal(ks[5], (OUT_CHANNELS,), jnp.float32),
        "gn2_w": 1.0 + 0.1 * jax.random.normal(ks[6], (OUT_CHANNELS,), jnp.float32),
        "gn2_b": 0.1 * jax.random.normal(ks[7], (OUT_CHANNELS,), jnp.float32),
        # zero_module(): final conv starts with zero weights & bias
        "conv2_w": jnp.zeros((OUT_CHANNELS, OUT_CHANNELS, 3, 3), jnp.float32),
        "conv2_b": jnp.zeros((OUT_CHANNELS,), jnp.float32),
    }


if __name__ == "__main__":
    key = jax.random.PRNGKey(0)
    kx, ke, kp, kv = jax.random.split(key, 4)
    x = jax.random.normal(kx, (N, CHANNELS, H, W), jnp.float32)
    emb = jax.random.normal(ke, (N, EMB_CHANNELS), jnp.float32)
    params = init_params(kp)

    # Numerical self-check with a NON-zero final conv so every code path is exercised.
    # Conv/linear matmuls use bf16 MXU operands (f32 accumulate), so compare against
    # the pure-f32 reference at a bf16-appropriate tolerance.
    check = dict(params)
    check["conv2_w"] = 0.1 * jax.random.normal(kv, (OUT_CHANNELS, OUT_CHANNELS, 3, 3), jnp.float32)
    check["conv2_b"] = 0.05 * jnp.ones((OUT_CHANNELS,), jnp.float32)

    got = jax.block_until_ready(resblock_pallas(x, emb, check, fold_batch=True))
    want = resblock_ref(x, emb, check)
    max_err = float(jnp.max(jnp.abs(got - want)))
    assert jnp.allclose(got, want, atol=5e-2, rtol=5e-2), f"max abs err {max_err}"

    # Also exercise the non-folded (batch-parallel grid) path.
    got2 = jax.block_until_ready(resblock_pallas(x, emb, check, fold_batch=False))
    assert jnp.allclose(got2, want, atol=5e-2, rtol=5e-2)

    # Faithful ResBlock run (zero_module final conv, skip_connection = Identity).
    out = jax.block_until_ready(resblock_pallas(x, emb, params))
    assert out.shape == (N, OUT_CHANNELS, H, W)
    print("KERNEL_OK")
</pallas_src>

<mosaic_0001>
module attributes {stable_mosaic.version = 11 : i64} {
  func.func @_resblock_kernel(%arg0: i32, %arg1: memref<512x64xf32, #tpu.memory_space<vmem>>, %arg2: memref<2x1x32xf32, #tpu.memory_space<vmem>>, %arg3: memref<5x512x128xbf16, #tpu.memory_space<vmem>>, %arg4: memref<64x64xf32, #tpu.memory_space<vmem>>, %arg5: memref<1x64xf32, #tpu.memory_space<vmem>>, %arg6: memref<1x64xf32, #tpu.memory_space<vmem>>, %arg7: memref<640x64xbf16, #tpu.memory_space<vmem>>, %arg8: memref<1x64xf32, #tpu.memory_space<vmem>>, %arg9: memref<32x64xbf16, #tpu.memory_space<vmem>>, %arg10: memref<1x64xf32, #tpu.memory_space<vmem>>, %arg11: memref<1x64xf32, #tpu.memory_space<vmem>>, %arg12: memref<1x64xf32, #tpu.memory_space<vmem>>, %arg13: memref<640x64xbf16, #tpu.memory_space<vmem>>, %arg14: memref<1x64xf32, #tpu.memory_space<vmem>>, %arg15: memref<512x64xf32, #tpu.memory_space<vmem>>, %arg16: memref<512x640xbf16, #tpu.memory_space<vmem>>) attributes {dimension_semantics = [#tpu.dimension_semantics<arbitrary>], iteration_bounds = array<i64: 1>, scalar_prefetch = 0 : i64, scratch_operands = 1 : i64, tpu.core_type = #tpu.core_type<tc>, window_params = [{transform_indices = @transform_0, window_bounds = array<i64: 512, 64>}, {transform_indices = @transform_1, window_bounds = array<i64: 2, 1, 32>}, {pipeline_mode = #tpu.pipeline_mode<synchronous>, transform_indices = @transform_2, window_bounds = array<i64: 5, 512, 128>}, {pipeline_mode = #tpu.pipeline_mode<synchronous>, transform_indices = @transform_3, window_bounds = array<i64: 64, 64>}, {pipeline_mode = #tpu.pipeline_mode<synchronous>, transform_indices = @transform_4, window_bounds = array<i64: 1, 64>}, {pipeline_mode = #tpu.pipeline_mode<synchronous>, transform_indices = @transform_5, window_bounds = array<i64: 1, 64>}, {pipeline_mode = #tpu.pipeline_mode<synchronous>, transform_indices = @transform_6, window_bounds = array<i64: 640, 64>}, {pipeline_mode = #tpu.pipeline_mode<synchronous>, transform_indices = @transform_7, window_bounds = array<i64: 1, 64>}, {pipeline_mode = #tpu.pipeline_mode<synchronous>, transform_indices = @transform_8, window_bounds = array<i64: 32, 64>}, {pipeline_mode = #tpu.pipeline_mode<synchronous>, transform_indices = @transform_9, window_bounds = array<i64: 1, 64>}, {pipeline_mode = #tpu.pipeline_mode<synchronous>, transform_indices = @transform_10, window_bounds = array<i64: 1, 64>}, {pipeline_mode = #tpu.pipeline_mode<synchronous>, transform_indices = @transform_11, window_bounds = array<i64: 1, 64>}, {pipeline_mode = #tpu.pipeline_mode<synchronous>, transform_indices = @transform_12, window_bounds = array<i64: 640, 64>}, {pipeline_mode = #tpu.pipeline_mode<synchronous>, transform_indices = @transform_13, window_bounds = array<i64: 1, 64>}, {transform_indices = @transform_14, window_bounds = array<i64: 512, 64>}]} {
    %c0 = arith.constant 0 : index
    %c0_0 = arith.constant 0 : index
    %0 = vector.load %arg1[%c0, %c0_0] : memref<512x64xf32, #tpu.memory_space<vmem>>, vector<512x64xf32>
    %c0_1 = arith.constant 0 : index
    %c0_2 = arith.constant 0 : index
    %1 = vector.load %arg5[%c0_1, %c0_2] : memref<1x64xf32, #tpu.memory_space<vmem>>, vector<1x64xf32>
    %c0_3 = arith.constant 0 : index
    %c0_4 = arith.constant 0 : index
    %2 = vector.load %arg6[%c0_3, %c0_4] : memref<1x64xf32, #tpu.memory_space<vmem>>, vector<1x64xf32>
    %3 = vector.shape_cast %0 : vector<512x64xf32> to vector<2x256x64xf32>
    %cst = arith.constant dense<0.000000e+00> : vector<2x64xf32>
    %4 = vector.multi_reduction <add>, %3, %cst [1] : vector<2x256x64xf32> to vector<2x64xf32>
    %5 = arith.mulf %3, %3 : vector<2x256x64xf32>
    %cst_5 = arith.constant dense<0.000000e+00> : vector<2x64xf32>
    %6 = vector.multi_reduction <add>, %5, %cst_5 [1] : vector<2x256x64xf32> to vector<2x64xf32>
    %7 = tpu.concatenate %4, %6 in 0 : vector<2x64xf32>, vector<2x64xf32> -> vector<4x64xf32>
    %c0_6 = arith.constant 0 : index
    %c0_7 = arith.constant 0 : index
    %8 = vector.load %arg4[%c0_6, %c0_7] : memref<64x64xf32, #tpu.memory_space<vmem>>, vector<64x64xf32>
    %cst_8 = arith.constant dense<0.000000e+00> : vector<4x64xf32>
    %9 = tpu.matmul %7, %8, %cst_8 {dimension_numbers = #tpu.dot_dimension_numbers<[1], [0], [0], [1], [0, 0, 1, 1], [], []>} : vector<4x64xf32>, vector<64x64xf32>, vector<4x64xf32> -> vector<4x64xf32>
    %10 = vector.extract_strided_slice %9 {offsets = [0, 0], sizes = [2, 64], strides = [1, 1]} : vector<4x64xf32> to vector<2x64xf32>
    %11 = vector.extract_strided_slice %9 {offsets = [2, 0], sizes = [2, 64], strides = [1, 1]} : vector<4x64xf32> to vector<2x64xf32>
    %12 = arith.mulf %10, %10 : vector<2x64xf32>
    %13 = arith.subf %11, %12 : vector<2x64xf32>
    %cst_9 = arith.constant 0.000000e+00 : f32
    %14 = vector.broadcast %cst_9 : f32 to vector<2x64xf32>
    %15 = arith.maximumf %13, %14 : vector<2x64xf32>
    %cst_10 = arith.constant 9.99999974E-6 : f32
    %16 = vector.broadcast %cst_10 : f32 to vector<2x64xf32>
    %17 = arith.addf %15, %16 : vector<2x64xf32>
    %18 = math.rsqrt %17 : vector<2x64xf32>
    %19 = vector.broadcast %1 : vector<1x64xf32> to vector<2x64xf32>
    %20 = arith.mulf %18, %19 : vector<2x64xf32>
    %21 = arith.mulf %10, %20 : vector<2x64xf32>
    %22 = vector.broadcast %2 : vector<1x64xf32> to vector<2x64xf32>
    %23 = arith.subf %22, %21 : vector<2x64xf32>
    %24 = vector.shape_cast %20 : vector<2x64xf32> to vector<2x1x64xf32>
    %25 = vector.broadcast %24 : vector<2x1x64xf32> to vector<2x256x64xf32>
    %26 = arith.mulf %3, %25 : vector<2x256x64xf32>
    %27 = vector.shape_cast %23 : vector<2x64xf32> to vector<2x1x64xf32>
    %28 = vector.broadcast %27 : vector<2x1x64xf32> to vector<2x256x64xf32>
    %29 = arith.addf %26, %28 : vector<2x256x64xf32>
    %30 = vector.shape_cast %29 : vector<2x256x64xf32> to vector<512x64xf32>
    %31 = arith.negf %30 : vector<512x64xf32>
    %32 = math.exp %31 : vector<512x64xf32>
    %cst_11 = arith.constant 1.000000e+00 : f32
    %33 = vector.broadcast %cst_11 : f32 to vector<512x64xf32>
    %34 = arith.addf %33, %32 : vector<512x64xf32>
    %35 = arith.divf %33, %34 : vector<512x64xf32>
    %36 = arith.mulf %30, %35 : vector<512x64xf32>
    %c0_12 = arith.constant 0 : index
    %c0_13 = arith.constant 0 : index
    %37 = vector.load %arg8[%c0_12, %c0_13] : memref<1x64xf32, #tpu.memory_space<vmem>>, vector<1x64xf32>
    %c17_i32 = arith.constant 17 : i32
    %38 = tpu.dynamic_rotate %36 by %c17_i32 dim 0 : vector<512x64xf32>, i32 -> vector<512x64xf32>
    %c16_i32 = arith.constant 16 : i32
    %39 = tpu.dynamic_rotate %36 by %c16_i32 dim 0 : vector<512x64xf32>, i32 -> vector<512x64xf32>
    %40 = tpu.concatenate %38, %39 in 1 : vector<512x64xf32>, vector<512x64xf32> -> vector<512x128xf32>
    %41 = arith.truncf %40 : vector<512x128xf32> to vector<512x128xbf16>
    %c0_14 = arith.constant 0 : index
    %c0_15 = arith.constant 0 : index
    %c0_16 = arith.constant 0 : index
    %42 = vector.load %arg3[%c0_14, %c0_15, %c0_16] : memref<5x512x128xbf16, #tpu.memory_space<vmem>>, vector<1x512x128xbf16>
    %43 = vector.shape_cast %42 : vector<1x512x128xbf16> to vector<512x128xbf16>
    %44 = arith.mulf %41, %43 : vector<512x128xbf16>
    %c0_17 = arith.constant 0 : index
    %c0_18 = arith.constant 0 : index
    %45 = vector.load %arg16[%c0_17, %c0_18] : memref<512x640xbf16, #tpu.memory_space<vmem>>, vector<512x128xbf16>
    tpu.vector_store %arg16[%c0_17, %c0_18], %44 {strides = array<i32>} : memref<512x640xbf16, #tpu.memory_space<vmem>>, vector<512x128xbf16>,
    %c15_i32 = arith.constant 15 : i32
    %46 = tpu.dynamic_rotate %36 by %c15_i32 dim 0 : vector<512x64xf32>, i32 -> vector<512x64xf32>
    %c1_i32 = arith.constant 1 : i32
    %47 = tpu.dynamic_rotate %36 by %c1_i32 dim 0 : vector<512x64xf32>, i32 -> vector<512x64xf32>
    %48 = tpu.concatenate %46, %47 in 1 : vector<512x64xf32>, vector<512x64xf32> -> vector<512x128xf32>
    %49 = arith.truncf %48 : vector<512x128xf32> to vector<512x128xbf16>
    %c1 = arith.constant 1 : index
    %c0_19 = arith.constant 0 : index
    %c0_20 = arith.constant 0 : index
    %50 = vector.load %arg3[%c1, %c0_19, %c0_20] : memref<5x512x128xbf16, #tpu.memory_space<vmem>>, vector<1x512x128xbf16>
    %51 = vector.shape_cast %50 : vector<1x512x128xbf16> to vector<512x128xbf16>
    %52 = arith.mulf %49, %51 : vector<512x128xbf16>
    %c0_21 = arith.constant 0 : index
    %c128 = arith.constant 128 : index
    %53 = vector.load %arg16[%c0_21, %c128] : memref<512x640xbf16, #tpu.memory_space<vmem>>, vector<512x128xbf16>
    tpu.vector_store %arg16[%c0_21, %c128], %52 {strides = array<i32>} : memref<512x640xbf16, #tpu.memory_space<vmem>>, vector<512x128xbf16>,
    %c511_i32 = arith.constant 511 : i32
    %54 = tpu.dynamic_rotate %36 by %c511_i32 dim 0 : vector<512x64xf32>, i32 -> vector<512x64xf32>
    %55 = tpu.concatenate %36, %54 in 1 : vector<512x64xf32>, vector<512x64xf32> -> vector<512x128xf32>
    %56 = arith.truncf %55 : vector<512x128xf32> to vector<512x128xbf16>
    %c2 = arith.constant 2 : index
    %c0_22 = arith.constant 0 : index
    %c0_23 = arith.constant 0 : index
    %57 = vector.load %arg3[%c2, %c0_22, %c0_23] : memref<5x512x128xbf16, #tpu.memory_space<vmem>>, vector<1x512x128xbf16>
    %58 = vector.shape_cast %57 : vector<1x512x128xbf16> to vector<512x128xbf16>
    %59 = arith.mulf %56, %58 : vector<512x128xbf16>
    %c0_24 = arith.constant 0 : index
    %c256 = arith.constant 256 : index
    %60 = vector.load %arg16[%c0_24, %c256] : memref<512x640xbf16, #tpu.memory_space<vmem>>, vector<512x128xbf16>
    tpu.vector_store %arg16[%c0_24, %c256], %59 {strides = array<i32>} : memref<512x640xbf16, #tpu.memory_space<vmem>>, vector<512x128xbf16>,
    %c497_i32 = arith.constant 497 : i32
    %61 = tpu.dynamic_rotate %36 by %c497_i32 dim 0 : vector<512x64xf32>, i32 -> vector<512x64xf32>
    %c496_i32 = arith.constant 496 : i32
    %62 = tpu.dynamic_rotate %36 by %c496_i32 dim 0 : vector<512x64xf32>, i32 -> vector<512x64xf32>
    %63 = tpu.concatenate %61, %62 in 1 : vector<512x64xf32>, vector<512x64xf32> -> vector<512x128xf32>
    %64 = arith.truncf %63 : vector<512x128xf32> to vector<512x128xbf16>
    %c3 = arith.constant 3 : index
    %c0_25 = arith.constant 0 : index
    %c0_26 = arith.constant 0 : index
    %65 = vector.load %arg3[%c3, %c0_25, %c0_26] : memref<5x512x128xbf16, #tpu.memory_space<vmem>>, vector<1x512x128xbf16>
    %66 = vector.shape_cast %65 : vector<1x512x128xbf16> to vector<512x128xbf16>
    %67 = arith.mulf %64, %66 : vector<512x128xbf16>
    %c0_27 = arith.constant 0 : index
    %c384 = arith.constant 384 : index
    %68 = vector.load %arg16[%c0_27, %c384] : memref<512x640xbf16, #tpu.memory_space<vmem>>, vector<512x128xbf16>
    tpu.vector_store %arg16[%c0_27, %c384], %67 {strides = array<i32>} : memref<512x640xbf16, #tpu.memory_space<vmem>>, vector<512x128xbf16>,
    %c495_i32 = arith.constant 495 : i32
    %69 = tpu.dynamic_rotate %36 by %c495_i32 dim 0 : vector<512x64xf32>, i32 -> vector<512x64xf32>
    %70 = tpu.concatenate %69, %69 in 1 : vector<512x64xf32>, vector<512x64xf32> -> vector<512x128xf32>
    %71 = arith.truncf %70 : vector<512x128xf32> to vector<512x128xbf16>
    %c4 = arith.constant 4 : index
    %c0_28 = arith.constant 0 : index
    %c0_29 = arith.constant 0 : index
    %72 = vector.load %arg3[%c4, %c0_28, %c0_29] : memref<5x512x128xbf16, #tpu.memory_space<vmem>>, vector<1x512x128xbf16>
    %73 = vector.shape_cast %72 : vector<1x512x128xbf16> to vector<512x128xbf16>
    %74 = arith.mulf %71, %73 : vector<512x128xbf16>
    %c0_30 = arith.constant 0 : index
    %c512 = arith.constant 512 : index
    %75 = vector.load %arg16[%c0_30, %c512] : memref<512x640xbf16, #tpu.memory_space<vmem>>, vector<512x128xbf16>
    tpu.vector_store %arg16[%c0_30, %c512], %74 {strides = array<i32>} : memref<512x640xbf16, #tpu.memory_space<vmem>>, vector<512x128xbf16>,
    %c0_31 = arith.constant 0 : index
    %c0_32 = arith.constant 0 : index
    %76 = vector.load %arg16[%c0_31, %c0_32] : memref<512x640xbf16, #tpu.memory_space<vmem>>, vector<512x640xbf16>
    %c0_33 = arith.constant 0 : index
    %c0_34 = arith.constant 0 : index
    %77 = vector.load %arg7[%c0_33, %c0_34] : memref<640x64xbf16, #tpu.memory_space<vmem>>, vector<640x64xbf16>
    %cst_35 = arith.constant dense<0.000000e+00> : vector<512x64xf32>
    %78 = tpu.matmul %76, %77, %cst_35 {dimension_numbers = #tpu.dot_dimension_numbers<[1], [0], [0], [1], [0, 0, 1, 1], [], []>} : vector<512x640xbf16>, vector<640x64xbf16>, vector<512x64xf32> -> vector<512x64xf32>
    %79 = vector.broadcast %37 : vector<1x64xf32> to vector<512x64xf32>
    %80 = arith.addf %78, %79 : vector<512x64xf32>
    %c0_36 = arith.constant 0 : index
    %c0_37 = arith.constant 0 : index
    %c0_38 = arith.constant 0 : index
    %81 = vector.load %arg2[%c0_36, %c0_37, %c0_38] : memref<2x1x32xf32, #tpu.memory_space<vmem>>, vector<2x1x32xf32>
    %82 = vector.shape_cast %81 : vector<2x1x32xf32> to vector<2x32xf32>
    %83 = arith.negf %82 : vector<2x32xf32>
    %84 = math.exp %83 : vector<2x32xf32>
    %cst_39 = arith.constant 1.000000e+00 : f32
    %85 = vector.broadcast %cst_39 : f32 to vector<2x32xf32>
    %86 = arith.addf %85, %84 : vector<2x32xf32>
    %87 = arith.divf %85, %86 : vector<2x32xf32>
    %88 = arith.mulf %82, %87 : vector<2x32xf32>
    %89 = arith.truncf %88 : vector<2x32xf32> to vector<2x32xbf16>
    %c0_40 = arith.constant 0 : index
    %c0_41 = arith.constant 0 : index
    %90 = vector.load %arg9[%c0_40, %c0_41] : memref<32x64xbf16, #tpu.memory_space<vmem>>, vector<32x64xbf16>
    %cst_42 = arith.constant dense<0.000000e+00> : vector<2x64xf32>
    %91 = tpu.matmul %89, %90, %cst_42 {dimension_numbers = #tpu.dot_dimension_numbers<[1], [0], [0], [1], [0, 0, 1, 1], [], []>} : vector<2x32xbf16>, vector<32x64xbf16>, vector<2x64xf32> -> vector<2x64xf32>
    %c0_43 = arith.constant 0 : index
    %c0_44 = arith.constant 0 : index
    %92 = vector.load %arg10[%c0_43, %c0_44] : memref<1x64xf32, #tpu.memory_space<vmem>>, vector<1x64xf32>
    %93 = vector.broadcast %92 : vector<1x64xf32> to vector<2x64xf32>
    %94 = arith.addf %91, %93 : vector<2x64xf32>
    %95 = vector.shape_cast %80 : vector<512x64xf32> to vector<2x256x64xf32>
    %96 = vector.shape_cast %94 : vector<2x64xf32> to vector<2x1x64xf32>
    %97 = vector.broadcast %96 : vector<2x1x64xf32> to vector<2x256x64xf32>
    %98 = arith.addf %95, %97 : vector<2x256x64xf32>
    %99 = vector.shape_cast %98 : vector<2x256x64xf32> to vector<512x64xf32>
    %c0_45 = arith.constant 0 : index
    %c0_46 = arith.constant 0 : index
    %100 = vector.load %arg11[%c0_45, %c0_46] : memref<1x64xf32, #tpu.memory_space<vmem>>, vector<1x64xf32>
    %c0_47 = arith.constant 0 : index
    %c0_48 = arith.constant 0 : index
    %101 = vector.load %arg12[%c0_47, %c0_48] : memref<1x64xf32, #tpu.memory_space<vmem>>, vector<1x64xf32>
    %102 = vector.shape_cast %99 : vector<512x64xf32> to vector<2x256x64xf32>
    %cst_49 = arith.constant dense<0.000000e+00> : vector<2x64xf32>
    %103 = vector.multi_reduction <add>, %102, %cst_49 [1] : vector<2x256x64xf32> to vector<2x64xf32>
    %104 = arith.mulf %102, %102 : vector<2x256x64xf32>
    %cst_50 = arith.constant dense<0.000000e+00> : vector<2x64xf32>
    %105 = vector.multi_reduction <add>, %104, %cst_50 [1] : vector<2x256x64xf32> to vector<2x64xf32>
    %106 = tpu.concatenate %103, %105 in 0 : vector<2x64xf32>, vector<2x64xf32> -> vector<4x64xf32>
    %c0_51 = arith.constant 0 : index
    %c0_52 = arith.constant 0 : index
    %107 = vector.load %arg4[%c0_51, %c0_52] : memref<64x64xf32, #tpu.memory_space<vmem>>, vector<64x64xf32>
    %cst_53 = arith.constant dense<0.000000e+00> : vector<4x64xf32>
    %108 = tpu.matmul %106, %107, %cst_53 {dimension_numbers = #tpu.dot_dimension_numbers<[1], [0], [0], [1], [0, 0, 1, 1], [], []>} : vector<4x64xf32>, vector<64x64xf32>, vector<4x64xf32> -> vector<4x64xf32>
    %109 = vector.extract_strided_slice %108 {offsets = [0, 0], sizes = [2, 64], strides = [1, 1]} : vector<4x64xf32> to vector<2x64xf32>
    %110 = vector.extract_strided_slice %108 {offsets = [2, 0], sizes = [2, 64], strides = [1, 1]} : vector<4x64xf32> to vector<2x64xf32>
    %111 = arith.mulf %109, %109 : vector<2x64xf32>
    %112 = arith.subf %110, %111 : vector<2x64xf32>
    %cst_54 = arith.constant 0.000000e+00 : f32
    %113 = vector.broadcast %cst_54 : f32 to vector<2x64xf32>
    %114 = arith.maximumf %112, %113 : vector<2x64xf32>
    %cst_55 = arith.constant 9.99999974E-6 : f32
    %115 = vector.broadcast %cst_55 : f32 to vector<2x64xf32>
    %116 = arith.addf %114, %115 : vector<2x64xf32>
    %117 = math.rsqrt %116 : vector<2x64xf32>
    %118 = vector.broadcast %100 : vector<1x64xf32> to vector<2x64xf32>
    %119 = arith.mulf %117, %118 : vector<2x64xf32>
    %120 = arith.mulf %109, %119 : vector<2x64xf32>
    %121 = vector.broadcast %101 : vector<1x64xf32> to vector<2x64xf32>
    %122 = arith.subf %121, %120 : vector<2x64xf32>
    %123 = vector.shape_cast %119 : vector<2x64xf32> to vector<2x1x64xf32>
    %124 = vector.broadcast %123 : vector<2x1x64xf32> to vector<2x256x64xf32>
    %125 = arith.mulf %102, %124 : vector<2x256x64xf32>
    %126 = vector.shape_cast %122 : vector<2x64xf32> to vector<2x1x64xf32>
    %127 = vector.broadcast %126 : vector<2x1x64xf32> to vector<2x256x64xf32>
    %128 = arith.addf %125, %127 : vector<2x256x64xf32>
    %129 = vector.shape_cast %128 : vector<2x256x64xf32> to vector<512x64xf32>
    %130 = arith.negf %129 : vector<512x64xf32>
    %131 = math.exp %130 : vector<512x64xf32>
    %cst_56 = arith.constant 1.000000e+00 : f32
    %132 = vector.broadcast %cst_56 : f32 to vector<512x64xf32>
    %133 = arith.addf %132, %131 : vector<512x64xf32>
    %134 = arith.divf %132, %133 : vector<512x64xf32>
    %135 = arith.mulf %129, %134 : vector<512x64xf32>
    %c0_57 = arith.constant 0 : index
    %c0_58 = arith.constant 0 : index
    %136 = vector.load %arg14[%c0_57, %c0_58] : memref<1x64xf32, #tpu.memory_space<vmem>>, vector<1x64xf32>
    %c17_i32_59 = arith.constant 17 : i32
    %137 = tpu.dynamic_rotate %135 by %c17_i32_59 dim 0 : vector<512x64xf32>, i32 -> vector<512x64xf32>
    %c16_i32_60 = arith.constant 16 : i32
    %138 = tpu.dynamic_rotate %135 by %c16_i32_60 dim 0 : vector<512x64xf32>, i32 -> vector<512x64xf32>
    %139 = tpu.concatenate %137, %138 in 1 : vector<512x64xf32>, vector<512x64xf32> -> vector<512x128xf32>
    %140 = arith.truncf %139 : vector<512x128xf32> to vector<512x128xbf16>
    %c0_61 = arith.constant 0 : index
    %c0_62 = arith.constant 0 : index
    %c0_63 = arith.constant 0 : index
    %141 = vector.load %arg3[%c0_61, %c0_62, %c0_63] : memref<5x512x128xbf16, #tpu.memory_space<vmem>>, vector<1x512x128xbf16>
    %142 = vector.shape_cast %141 : vector<1x512x128xbf16> to vector<512x128xbf16>
    %143 = arith.mulf %140, %142 : vector<512x128xbf16>
    %c0_64 = arith.constant 0 : index
    %c0_65 = arith.constant 0 : index
    %144 = vector.load %arg16[%c0_64, %c0_65] : memref<512x640xbf16, #tpu.memory_space<vmem>>, vector<512x128xbf16>
    tpu.vector_store %arg16[%c0_64, %c0_65], %143 {strides = array<i32>} : memref<512x640xbf16, #tpu.memory_space<vmem>>, vector<512x128xbf16>,
    %c15_i32_66 = arith.constant 15 : i32
    %145 = tpu.dynamic_rotate %135 by %c15_i32_66 dim 0 : vector<512x64xf32>, i32 -> vector<512x64xf32>
    %c1_i32_67 = arith.constant 1 : i32
    %146 = tpu.dynamic_rotate %135 by %c1_i32_67 dim 0 : vector<512x64xf32>, i32 -> vector<512x64xf32>
    %147 = tpu.concatenate %145, %146 in 1 : vector<512x64xf32>, vector<512x64xf32> -> vector<512x128xf32>
    %148 = arith.truncf %147 : vector<512x128xf32> to vector<512x128xbf16>
    %c1_68 = arith.constant 1 : index
    %c0_69 = arith.constant 0 : index
    %c0_70 = arith.constant 0 : index
    %149 = vector.load %arg3[%c1_68, %c0_69, %c0_70] : memref<5x512x128xbf16, #tpu.memory_space<vmem>>, vector<1x512x128xbf16>
    %150 = vector.shape_cast %149 : vector<1x512x128xbf16> to vector<512x128xbf16>
    %151 = arith.mulf %148, %150 : vector<512x128xbf16>
    %c0_71 = arith.constant 0 : index
    %c128_72 = arith.constant 128 : index
    %152 = vector.load %arg16[%c0_71, %c128_72] : memref<512x640xbf16, #tpu.memory_space<vmem>>, vector<512x128xbf16>
    tpu.vector_store %arg16[%c0_71, %c128_72], %151 {strides = array<i32>} : memref<512x640xbf16, #tpu.memory_space<vmem>>, vector<512x128xbf16>,
    %c511_i32_73 = arith.constant 511 : i32
    %153 = tpu.dynamic_rotate %135 by %c511_i32_73 dim 0 : vector<512x64xf32>, i32 -> vector<512x64xf32>
    %154 = tpu.concatenate %135, %153 in 1 : vector<512x64xf32>, vector<512x64xf32> -> vector<512x128xf32>
    %155 = arith.truncf %154 : vector<512x128xf32> to vector<512x128xbf16>
    %c2_74 = arith.constant 2 : index
    %c0_75 = arith.constant 0 : index
    %c0_76 = arith.constant 0 : index
    %156 = vector.load %arg3[%c2_74, %c0_75, %c0_76] : memref<5x512x128xbf16, #tpu.memory_space<vmem>>, vector<1x512x128xbf16>
    %157 = vector.shape_cast %156 : vector<1x512x128xbf16> to vector<512x128xbf16>
    %158 = arith.mulf %155, %157 : vector<512x128xbf16>
    %c0_77 = arith.constant 0 : index
    %c256_78 = arith.constant 256 : index
    %159 = vector.load %arg16[%c0_77, %c256_78] : memref<512x640xbf16, #tpu.memory_space<vmem>>, vector<512x128xbf16>
    tpu.vector_store %arg16[%c0_77, %c256_78], %158 {strides = array<i32>} : memref<512x640xbf16, #tpu.memory_space<vmem>>, vector<512x128xbf16>,
    %c497_i32_79 = arith.constant 497 : i32
    %160 = tpu.dynamic_rotate %135 by %c497_i32_79 dim 0 : vector<512x64xf32>, i32 -> vector<512x64xf32>
    %c496_i32_80 = arith.constant 496 : i32
    %161 = tpu.dynamic_rotate %135 by %c496_i32_80 dim 0 : vector<512x64xf32>, i32 -> vector<512x64xf32>
    %162 = tpu.concatenate %160, %161 in 1 : vector<512x64xf32>, vector<512x64xf32> -> vector<512x128xf32>
    %163 = arith.truncf %162 : vector<512x128xf32> to vector<512x128xbf16>
    %c3_81 = arith.constant 3 : index
    %c0_82 = arith.constant 0 : index
    %c0_83 = arith.constant 0 : index
    %164 = vector.load %arg3[%c3_81, %c0_82, %c0_83] : memref<5x512x128xbf16, #tpu.memory_space<vmem>>, vector<1x512x128xbf16>
    %165 = vector.shape_cast %164 : vector<1x512x128xbf16> to vector<512x128xbf16>
    %166 = arith.mulf %163, %165 : vector<512x128xbf16>
    %c0_84 = arith.constant 0 : index
    %c384_85 = arith.constant 384 : index
    %167 = vector.load %arg16[%c0_84, %c384_85] : memref<512x640xbf16, #tpu.memory_space<vmem>>, vector<512x128xbf16>
    tpu.vector_store %arg16[%c0_84, %c384_85], %166 {strides = array<i32>} : memref<512x640xbf16, #tpu.memory_space<vmem>>, vector<512x128xbf16>,
    %c495_i32_86 = arith.constant 495 : i32
    %168 = tpu.dynamic_rotate %135 by %c495_i32_86 dim 0 : vector<512x64xf32>, i32 -> vector<512x64xf32>
    %169 = tpu.concatenate %168, %168 in 1 : vector<512x64xf32>, vector<512x64xf32> -> vector<512x128xf32>
    %170 = arith.truncf %169 : vector<512x128xf32> to vector<512x128xbf16>
    %c4_87 = arith.constant 4 : index
    %c0_88 = arith.constant 0 : index
    %c0_89 = arith.constant 0 : index
    %171 = vector.load %arg3[%c4_87, %c0_88, %c0_89] : memref<5x512x128xbf16, #tpu.memory_space<vmem>>, vector<1x512x128xbf16>
    %172 = vector.shape_cast %171 : vector<1x512x128xbf16> to vector<512x128xbf16>
    %173 = arith.mulf %170, %172 : vector<512x128xbf16>
    %c0_90 = arith.constant 0 : index
    %c512_91 = arith.constant 512 : index
    %174 = vector.load %arg16[%c0_90, %c512_91] : memref<512x640xbf16, #tpu.memory_space<vmem>>, vector<512x128xbf16>
    tpu.vector_store %arg16[%c0_90, %c512_91], %173 {strides = array<i32>} : memref<512x640xbf16, #tpu.memory_space<vmem>>, vector<512x128xbf16>,
    %c0_92 = arith.constant 0 : index
    %c0_93 = arith.constant 0 : index
    %175 = vector.load %arg16[%c0_92, %c0_93] : memref<512x640xbf16, #tpu.memory_space<vmem>>, vector<512x640xbf16>
    %c0_94 = arith.constant 0 : index
    %c0_95 = arith.constant 0 : index
    %176 = vector.load %arg13[%c0_94, %c0_95] : memref<640x64xbf16, #tpu.memory_space<vmem>>, vector<640x64xbf16>
    %cst_96 = arith.constant dense<0.000000e+00> : vector<512x64xf32>
    %177 = tpu.matmul %175, %176, %cst_96 {dimension_numbers = #tpu.dot_dimension_numbers<[1], [0], [0], [1], [0, 0, 1, 1], [], []>} : vector<512x640xbf16>, vector<640x64xbf16>, vector<512x64xf32> -> vector<512x64xf32>
    %178 = vector.broadcast %136 : vector<1x64xf32> to vector<512x64xf32>
    %179 = arith.addf %177, %178 : vector<512x64xf32>
    %c0_97 = arith.constant 0 : index
    %c0_98 = arith.constant 0 : index
    %180 = vector.load %arg1[%c0_97, %c0_98] : memref<512x64xf32, #tpu.memory_space<vmem>>, vector<512x64xf32>
    %181 = arith.addf %180, %179 : vector<512x64xf32>
    %c0_99 = arith.constant 0 : index
    %c0_100 = arith.constant 0 : index
    %182 = vector.load %arg15[%c0_99, %c0_100] : memref<512x64xf32, #tpu.memory_space<vmem>>, vector<512x64xf32>
    tpu.vector_store %arg15[%c0_99, %c0_100], %181 {strides = array<i32>} : memref<512x64xf32, #tpu.memory_space<vmem>>, vector<512x64xf32>,
    return
  }
  func.func @transform_0(%arg0: i32) -> (i32, i32) {
    %c0_i32 = arith.constant 0 : i32
    %c0_i32_0 = arith.constant 0 : i32
    return %arg0, %c0_i32 : i32, i32
  }
  func.func @transform_1(%arg0: i32) -> (i32, i32, i32) {
    %c0_i32 = arith.constant 0 : i32
    %c0_i32_0 = arith.constant 0 : i32
    %c0_i32_1 = arith.constant 0 : i32
    return %arg0, %c0_i32, %c0_i32_0 : i32, i32, i32
  }
  func.func @transform_2(%arg0: i32) -> (i32, i32, i32) {
    %c0_i32 = arith.constant 0 : i32
    %c0_i32_0 = arith.constant 0 : i32
    %c0_i32_1 = arith.constant 0 : i32
    %c0_i32_2 = arith.constant 0 : i32
    return %c0_i32, %c0_i32_0, %c0_i32_1 : i32, i32, i32
  }
  func.func @transform_3(%arg0: i32) -> (i32, i32) {
    %c0_i32 = arith.constant 0 : i32
    %c0_i32_0 = arith.constant 0 : i32
    %c0_i32_1 = arith.constant 0 : i32
    return %c0_i32, %c0_i32_0 : i32, i32
  }
  func.func @transform_4(%arg0: i32) -> (i32, i32) {
    %c0_i32 = arith.constant 0 : i32
    %c0_i32_0 = arith.constant 0 : i32
    %c0_i32_1 = arith.constant 0 : i32
    return %c0_i32, %c0_i32_0 : i32, i32
  }
  func.func @transform_5(%arg0: i32) -> (i32, i32) {
    %c0_i32 = arith.constant 0 : i32
    %c0_i32_0 = arith.constant 0 : i32
    %c0_i32_1 = arith.constant 0 : i32
    return %c0_i32, %c0_i32_0 : i32, i32
  }
  func.func @transform_6(%arg0: i32) -> (i32, i32) {
    %c0_i32 = arith.constant 0 : i32
    %c0_i32_0 = arith.constant 0 : i32
    %c0_i32_1 = arith.constant 0 : i32
    return %c0_i32, %c0_i32_0 : i32, i32
  }
  func.func @transform_7(%arg0: i32) -> (i32, i32) {
    %c0_i32 = arith.constant 0 : i32
    %c0_i32_0 = arith.constant 0 : i32
    %c0_i32_1 = arith.constant 0 : i32
    return %c0_i32, %c0_i32_0 : i32, i32
  }
  func.func @transform_8(%arg0: i32) -> (i32, i32) {
    %c0_i32 = arith.constant 0 : i32
    %c0_i32_0 = arith.constant 0 : i32
    %c0_i32_1 = arith.constant 0 : i32
    return %c0_i32, %c0_i32_0 : i32, i32
  }
  func.func @transform_9(%arg0: i32) -> (i32, i32) {
    %c0_i32 = arith.constant 0 : i32
    %c0_i32_0 = arith.constant 0 : i32
    %c0_i32_1 = arith.constant 0 : i32
    return %c0_i32, %c0_i32_0 : i32, i32
  }
  func.func @transform_10(%arg0: i32) -> (i32, i32) {
    %c0_i32 = arith.constant 0 : i32
    %c0_i32_0 = arith.constant 0 : i32
    %c0_i32_1 = arith.constant 0 : i32
    return %c0_i32, %c0_i32_0 : i32, i32
  }
  func.func @transform_11(%arg0: i32) -> (i32, i32) {
    %c0_i32 = arith.constant 0 : i32
    %c0_i32_0 = arith.constant 0 : i32
    %c0_i32_1 = arith.constant 0 : i32
    return %c0_i32, %c0_i32_0 : i32, i32
  }
  func.func @transform_12(%arg0: i32) -> (i32, i32) {
    %c0_i32 = arith.constant 0 : i32
    %c0_i32_0 = arith.constant 0 : i32
    %c0_i32_1 = arith.constant 0 : i32
    return %c0_i32, %c0_i32_0 : i32, i32
  }
  func.func @transform_13(%arg0: i32) -> (i32, i32) {
    %c0_i32 = arith.constant 0 : i32
    %c0_i32_0 = arith.constant 0 : i32
    %c0_i32_1 = arith.constant 0 : i32
    return %c0_i32, %c0_i32_0 : i32, i32
  }
  func.func @transform_14(%arg0: i32) -> (i32, i32) {
    %c0_i32 = arith.constant 0 : i32
    %c0_i32_0 = arith.constant 0 : i32
    return %arg0, %c0_i32 : i32, i32
  }
}

</mosaic_0001>

<llo_original>
// kernel: forward_nhwc.1
$region0: #{forward_nhwc.1}
  #allocation0 [shape = 'u32[]', space=smem, size = 0x4, offset = 0x4, fixed_abs, tag = 'smem constant byte address 0x4 - core index']
  #allocation1 [shape = 'u32[144,128]{1,0:T(1,128)}', space=vmem, size = 0x12000, scoped, tag = 'internal scratch']
  #allocation2 [shape = 'bf16[512,640]{1,0:T(16,128)(2,1)}', space=vmem, size = 0xa0000, scoped, tag = 'scratch operand']
  %s0 = inlined_call_operand.hbm [shape: f32[512,64], index: 0, kind: input, shape index: {}]
  %s1 = inlined_call_operand.vmem [shape: f32[2,1,32], index: 1, kind: input, shape index: {}]
  %s2 = inlined_call_operand.hbm [shape: bf16[5,512,128], index: 2, kind: input, shape index: {}]
  %s3 = inlined_call_operand.hbm [shape: f32[64,64], index: 3, kind: input, shape index: {}]
  %s4 = inlined_call_operand.vmem [shape: f32[1,64], index: 4, kind: input, shape index: {}]
  %s5 = inlined_call_operand.vmem [shape: f32[1,64], index: 5, kind: input, shape index: {}]
  %s6 = inlined_call_operand.hbm [shape: bf16[640,64], index: 6, kind: input, shape index: {}]
  %s7 = inlined_call_operand.vmem [shape: f32[1,64], index: 7, kind: input, shape index: {}]
  %s8 = inlined_call_operand.vmem [shape: bf16[32,64], index: 8, kind: input, shape index: {}]
  %s9 = inlined_call_operand.vmem [shape: f32[1,64], index: 9, kind: input, shape index: {}]
  %s10 = inlined_call_operand.vmem [shape: f32[1,64], index: 10, kind: input, shape index: {}]
  %s11 = inlined_call_operand.vmem [shape: f32[1,64], index: 11, kind: input, shape index: {}]
  %s12 = inlined_call_operand.hbm [shape: bf16[640,64], index: 12, kind: input, shape index: {}]
  %s13 = inlined_call_operand.vmem [shape: f32[1,64], index: 13, kind: input, shape index: {}]
  %s14 = inlined_call_operand.hbm [shape: f32[512,64], index: 14, kind: output, shape index: {}]
  %s15 = sld [smem:[#allocation0]]
  $region86: #{forward_nhwc.1} parent=0
    _
  %s17 = ssub.s32 1, %s15
  %s18 = scalar_select 0, %s17, %s15
  $region1: #{forward_nhwc.1} parent=0
    #allocation3 [shape = 'u8[262144]{0}', space=vmem, size = 0x40000, scoped, tag = 'input window, operand 0, single buffered']
    #allocation4 [shape = 's32[1]{0}', space=sflag, size = 0x4, scoped, tag = 'scoped memory for forward_nhwc.1']
    #allocation5 [shape = 's32[1]{0}', space=sflag, size = 0x4, scoped, tag = 'scoped memory for forward_nhwc.1']
    #allocation6 [shape = 'u8[655360]{0}', space=vmem, size = 0xa0000, scoped, tag = 'input window, operand 2, single buffered']
    #allocation7 [shape = 's32[1]{0}', space=sflag, size = 0x4, scoped, tag = 'scoped memory for forward_nhwc.1']
    #allocation8 [shape = 'u8[32768]{0}', space=vmem, size = 0x8000, scoped, tag = 'input window, operand 3, single buffered']
    #allocation9 [shape = 'u8[163840]{0}', space=vmem, size = 0x28000, scoped, tag = 'input window, operand 6, single buffered']
    #allocation10 [shape = 's32[1]{0}', space=sflag, size = 0x4, scoped, tag = 'scoped memory for forward_nhwc.1']
    #allocation11 [shape = 'u8[163840]{0}', space=vmem, size = 0x28000, scoped, tag = 'input window, operand 12, single buffered']
    #allocation12 [shape = 'u8[262144]{0}', space=vmem, size = 0x40000, scoped, tag = 'output window, operand 0, single buffered']
    %19 = vsyncpa [#allocation4], 0
    %20 = vsyncpa [#allocation7], 0
    %21 = vsyncpa [#allocation10], 0
    %22 = vsyncpa [#allocation5], 0
    // Predicated region
    $region2: #{forward_nhwc.1} parent=1 // pred_check
      _
    $region3: #{forward_nhwc.1} parent=1 // pred_check_branch
      %24 = sbr.rel (0) target = $region5
    $region4: #{forward_nhwc.1} parent=1 // pred_region
      %s26 = ssub.s32 8192, 8192
      %27 = vsyncadd [#allocation4], %s26
      %s28 = sshll.u32 [#allocation3], 4
      %s29 = int_to_ptr.vmem [resolvable:$true] %s28
      %34 = dma.hbm_to_vmem [thread:$0]  %s0, 8192, %s29, [#allocation4], 128, 128, 8
    $region5: #{forward_nhwc.1} parent=1 // pred_fallthru
      _
    // Predicated region
    $region6: #{forward_nhwc.1} parent=1 // pred_check
      _
    $region7: #{forward_nhwc.1} parent=1 // pred_check_branch
      %36 = sbr.rel (0) target = $region9
    $region8: #{forward_nhwc.1} parent=1 // pred_region
      _
    $region9: #{forward_nhwc.1} parent=1 // pred_fallthru
      _
    // Predicated region
    $region10: #{forward_nhwc.1} parent=1 // pred_check
      _
    $region11: #{forward_nhwc.1} parent=1 // pred_check_branch
      %38 = sbr.rel (0) target = $region13
    $region12: #{forward_nhwc.1} parent=1 // pred_region
      %s40 = ssub.s32 20480, 20480
      %41 = vsyncadd [#allocation7], %s40
      %s42 = sshll.u32 [#allocation6], 4
      %s43 = int_to_ptr.vmem [resolvable:$true] %s42
      %48 = dma.hbm_to_vmem [thread:$0]  %s2, 20480, %s43, [#allocation7], 64, 64, 4
    $region13: #{forward_nhwc.1} parent=1 // pred_fallthru
      _
    // Predicated region
    $region14: #{forward_nhwc.1} parent=1 // pred_check
      _
    $region15: #{forward_nhwc.1} parent=1 // pred_check_branch
      %50 = sbr.rel (0) target = $region17
    $region16: #{forward_nhwc.1} parent=1 // pred_region
      %s52 = ssub.s32 1024, 1024
      %53 = vsyncadd [#allocation7], %s52
      %s54 = sshll.u32 [#allocation8], 4
      %s55 = int_to_ptr.vmem [resolvable:$true] %s54
      %60 = dma.hbm_to_vmem [thread:$0]  %s3, 1024, %s55, [#allocation7], 128, 128, 8
    $region17: #{forward_nhwc.1} parent=1 // pred_fallthru
      _
    // Predicated region
    $region18: #{forward_nhwc.1} parent=1 // pred_check
      _
    $region19: #{forward_nhwc.1} parent=1 // pred_check_branch
      %62 = sbr.rel (0) target = $region21
    $region20: #{forward_nhwc.1} parent=1 // pred_region
      _
    $region21: #{forward_nhwc.1} parent=1 // pred_fallthru
      _
    // Predicated region
    $region22: #{forward_nhwc.1} parent=1 // pred_check
      _
    $region23: #{forward_nhwc.1} parent=1 // pred_check_branch
      %64 = sbr.rel (0) target = $region25
    $region24: #{forward_nhwc.1} parent=1 // pred_region
      _
    $region25: #{forward_nhwc.1} parent=1 // pred_fallthru
      _
    // Predicated region
    $region26: #{forward_nhwc.1} parent=1 // pred_check
      _
    $region27: #{forward_nhwc.1} parent=1 // pred_check_branch
      %66 = sbr.rel (0) target = $region29
    $region28: #{forward_nhwc.1} parent=1 // pred_region
      %s68 = ssub.s32 5120, 5120
      %69 = vsyncadd [#allocation10], %s68
      %s70 = sshll.u32 [#allocation9], 4
      %s71 = int_to_ptr.vmem [resolvable:$true] %s70
      %76 = dma.hbm_to_vmem [thread:$0]  %s6, 5120, %s71, [#allocation10], 64, 64, 4
    $region29: #{forward_nhwc.1} parent=1 // pred_fallthru
      _
    // Predicated region
    $region30: #{forward_nhwc.1} parent=1 // pred_check
      _
    $region31: #{forward_nhwc.1} parent=1 // pred_check_branch
      %78 = sbr.rel (0) target = $region33
    $region32: #{forward_nhwc.1} parent=1 // pred_region
      _
    $region33: #{forward_nhwc.1} parent=1 // pred_fallthru
      _
    // Predicated region
    $region34: #{forward_nhwc.1} parent=1 // pred_check
      _
    $region35: #{forward_nhwc.1} parent=1 // pred_check_branch
      %80 = sbr.rel (0) target = $region37
    $region36: #{forward_nhwc.1} parent=1 // pred_region
      _
    $region37: #{forward_nhwc.1} parent=1 // pred_fallthru
      _
    // Predicated region
    $region38: #{forward_nhwc.1} parent=1 // pred_check
      _
    $region39: #{forward_nhwc.1} parent=1 // pred_check_branch
      %82 = sbr.rel (0) target = $region41
    $region40: #{forward_nhwc.1} parent=1 // pred_region
      _
    $region41: #{forward_nhwc.1} parent=1 // pred_fallthru
      _
    // Predicated region
    $region42: #{forward_nhwc.1} parent=1 // pred_check
      _
    $region43: #{forward_nhwc.1} parent=1 // pred_check_branch
      %84 = sbr.rel (0) target = $region45
    $region44: #{forward_nhwc.1} parent=1 // pred_region
      _
    $region45: #{forward_nhwc.1} parent=1 // pred_fallthru
      _
    // Predicated region
    $region46: #{forward_nhwc.1} parent=1 // pred_check
      _
    $region47: #{forward_nhwc.1} parent=1 // pred_check_branch
      %86 = sbr.rel (0) target = $region49
    $region48: #{forward_nhwc.1} parent=1 // pred_region
      _
    $region49: #{forward_nhwc.1} parent=1 // pred_fallthru
      _
    // Predicated region
    $region50: #{forward_nhwc.1} parent=1 // pred_check
      _
    $region51: #{forward_nhwc.1} parent=1 // pred_check_branch
      %88 = sbr.rel (0) target = $region53
    $region52: #{forward_nhwc.1} parent=1 // pred_region
      %s90 = ssub.s32 5120, 5120
      %91 = vsyncadd [#allocation10], %s90
      %s92 = sshll.u32 [#allocation11], 4
      %s93 = int_to_ptr.vmem [resolvable:$true] %s92
      %98 = dma.hbm_to_vmem [thread:$0]  %s12, 5120, %s93, [#allocation10], 64, 64, 4
    $region53: #{forward_nhwc.1} parent=1 // pred_fallthru
      _
    // Predicated region
    $region54: #{forward_nhwc.1} parent=1 // pred_check
      _
    $region55: #{forward_nhwc.1} parent=1 // pred_check_branch
      %100 = sbr.rel (0) target = $region57
    $region56: #{forward_nhwc.1} parent=1 // pred_region
      _
    $region57: #{forward_nhwc.1} parent=1 // pred_fallthru
      _
    // Predicated region
    $region58: #{forward_nhwc.1} parent=1 // pred_check
      _
    $region59: #{forward_nhwc.1} parent=1 // pred_check_branch
      %102 = sbr.rel (0) target = $region61
    $region60: #{forward_nhwc.1} parent=1 // pred_region
      %103 = dma.done [#allocation4], 8192
    $region61: #{forward_nhwc.1} parent=1 // pred_fallthru
      _
    // Predicated region
    $region62: #{forward_nhwc.1} parent=1 // pred_check
      _
    $region63: #{forward_nhwc.1} parent=1 // pred_check_branch
      %105 = sbr.rel (0) target = $region65
    $region64: #{forward_nhwc.1} parent=1 // pred_region
      %106 = dma.done [#allocation7], 20480
    $region65: #{forward_nhwc.1} parent=1 // pred_fallthru
      _
    // Predicated region
    $region66: #{forward_nhwc.1} parent=1 // pred_check
      _
    $region67: #{forward_nhwc.1} parent=1 // pred_check_branch
      %108 = sbr.rel (0) target = $region69
    $region68: #{forward_nhwc.1} parent=1 // pred_region
      %109 = dma.done [#allocation7], 1024
    $region69: #{forward_nhwc.1} parent=1 // pred_fallthru
      _
    // Predicated region
    $region70: #{forward_nhwc.1} parent=1 // pred_check
      _
    $region71: #{forward_nhwc.1} parent=1 // pred_check_branch
      %111 = sbr.rel (0) target = $region73
    $region72: #{forward_nhwc.1} parent=1 // pred_region
      %112 = dma.done [#allocation10], 5120
    $region73: #{forward_nhwc.1} parent=1 // pred_fallthru
      _
    // Predicated region
    $region74: #{forward_nhwc.1} parent=1 // pred_check
      _
    $region75: #{forward_nhwc.1} parent=1 // pred_check_branch
      %114 = sbr.rel (0) target = $region77
    $region76: #{forward_nhwc.1} parent=1 // pred_region
      %115 = dma.done [#allocation10], 5120
    $region77: #{forward_nhwc.1} parent=1 // pred_fallthru
      _
    %v117 = vld [vmem:[#allocation3] sm:$0xff]
    %v118 = vld [vmem:[#allocation3 + $0x8] sm:$0xff]
    %v119 = vld [vmem:[#allocation3 + $0x10] sm:$0xff]
    %v120 = vld [vmem:[#allocation3 + $0x18] sm:$0xff]
    %v121 = vld [vmem:[#allocation3 + $0x20] sm:$0xff]
    %v122 = vld [vmem:[#allocation3 + $0x28] sm:$0xff]
    %v123 = vld [vmem:[#allocation3 + $0x30] sm:$0xff]
    %v124 = vld [vmem:[#allocation3 + $0x38] sm:$0xff]
    %v125 = vld [vmem:[#allocation3 + $0x40] sm:$0xff]
    %v126 = vld [vmem:[#allocation3 + $0x48] sm:$0xff]
    %v127 = vld [vmem:[#allocation3 + $0x50] sm:$0xff]
    %v128 = vld [vmem:[#allocation3 + $0x58] sm:$0xff]
    %v129 = vld [vmem:[#allocation3 + $0x60] sm:$0xff]
    %v130 = vld [vmem:[#allocation3 + $0x68] sm:$0xff]
    %v131 = vld [vmem:[#allocation3 + $0x70] sm:$0xff]
    %v132 = vld [vmem:[#allocation3 + $0x78] sm:$0xff]
    %v133 = vld [vmem:[#allocation3 + $0x80] sm:$0xff]
    %v134 = vld [vmem:[#allocation3 + $0x88] sm:$0xff]
    %v135 = vld [vmem:[#allocation3 + $0x90] sm:$0xff]
    %v136 = vld [vmem:[#allocation3 + $0x98] sm:$0xff]
    %v137 = vld [vmem:[#allocation3 + $0xa0] sm:$0xff]
    %v138 = vld [vmem:[#allocation3 + $0xa8] sm:$0xff]
    %v139 = vld [vmem:[#allocation3 + $0xb0] sm:$0xff]
    %v140 = vld [vmem:[#allocation3 + $0xb8] sm:$0xff]
    %v141 = vld [vmem:[#allocation3 + $0xc0] sm:$0xff]
    %v142 = vld [vmem:[#allocation3 + $0xc8] sm:$0xff]
    %v143 = vld [vmem:[#allocation3 + $0xd0] sm:$0xff]
    %v144 = vld [vmem:[#allocation3 + $0xd8] sm:$0xff]
    %v145 = vld [vmem:[#allocation3 + $0xe0] sm:$0xff]
    %v146 = vld [vmem:[#allocation3 + $0xe8] sm:$0xff]
    %v147 = vld [vmem:[#allocation3 + $0xf0] sm:$0xff]
    %v148 = vld [vmem:[#allocation3 + $0xf8] sm:$0xff]
    %v149 = vld [vmem:[#allocation3 + $0x100] sm:$0xff]
    %v150 = vld [vmem:[#allocation3 + $0x108] sm:$0xff]
    %v151 = vld [vmem:[#allocation3 + $0x110] sm:$0xff]
    %v152 = vld [vmem:[#allocation3 + $0x118] sm:$0xff]
    %v153 = vld [vmem:[#allocation3 + $0x120] sm:$0xff]
    %v154 = vld [vmem:[#allocation3 + $0x128] sm:$0xff]
    %v155 = vld [vmem:[#allocation3 + $0x130] sm:$0xff]
    %v156 = vld [vmem:[#allocation3 + $0x138] sm:$0xff]
    %v157 = vld [vmem:[#allocation3 + $0x140] sm:$0xff]
    %v158 = vld [vmem:[#allocation3 + $0x148] sm:$0xff]
    %v159 = vld [vmem:[#allocation3 + $0x150] sm:$0xff]
    %v160 = vld [vmem:[#allocation3 + $0x158] sm:$0xff]
    %v161 = vld [vmem:[#allocation3 + $0x160] sm:$0xff]
    %v162 = vld [vmem:[#allocation3 + $0x168] sm:$0xff]
    %v163 = vld [vmem:[#allocation3 + $0x170] sm:$0xff]
    %v164 = vld [vmem:[#allocation3 + $0x178] sm:$0xff]
    %v165 = vld [vmem:[#allocation3 + $0x180] sm:$0xff]
    %v166 = vld [vmem:[#allocation3 + $0x188] sm:$0xff]
    %v167 = vld [vmem:[#allocation3 + $0x190] sm:$0xff]
    %v168 = vld [vmem:[#allocation3 + $0x198] sm:$0xff]
    %v169 = vld [vmem:[#allocation3 + $0x1a0] sm:$0xff]
    %v170 = vld [vmem:[#allocation3 + $0x1a8] sm:$0xff]
    %v171 = vld [vmem:[#allocation3 + $0x1b0] sm:$0xff]
    %v172 = vld [vmem:[#allocation3 + $0x1b8] sm:$0xff]
    %v173 = vld [vmem:[#allocation3 + $0x1c0] sm:$0xff]
    %v174 = vld [vmem:[#allocation3 + $0x1c8] sm:$0xff]
    %v175 = vld [vmem:[#allocation3 + $0x1d0] sm:$0xff]
    %v176 = vld [vmem:[#allocation3 + $0x1d8] sm:$0xff]
    %v177 = vld [vmem:[#allocation3 + $0x1e0] sm:$0xff]
    %v178 = vld [vmem:[#allocation3 + $0x1e8] sm:$0xff]
    %v179 = vld [vmem:[#allocation3 + $0x1f0] sm:$0xff]
    %v180 = vld [vmem:[#allocation3 + $0x1f8] sm:$0xff]
    %v181 = vld [vmem:[%s4] sm:$0x1]
    %v182 = vld [vmem:[%s5] sm:$0x1]
    %vm183 = vcmask 523264
    %v184 = vsel %vm183, %v117, 0.0
    %v185 = vsel %vm183, %v118, 0.0
    %v186 = vadd.f32 %v184, %v185
    %v187 = vsel %vm183, %v119, 0.0
    %v188 = vadd.f32 %v186, %v187
    %v189 = vsel %vm183, %v120, 0.0
    %v190 = vadd.f32 %v188, %v189
    %v191 = vsel %vm183, %v121, 0.0
    %v192 = vadd.f32 %v190, %v191
    %v193 = vsel %vm183, %v122, 0.0
    %v194 = vadd.f32 %v192, %v193
    %v195 = vsel %vm183, %v123, 0.0
    %v196 = vadd.f32 %v194, %v195
    %v197 = vsel %vm183, %v124, 0.0
    %v198 = vadd.f32 %v196, %v197
    %v199 = vsel %vm183, %v125, 0.0
    %v200 = vadd.f32 %v198, %v199
    %v201 = vsel %vm183, %v126, 0.0
    %v202 = vadd.f32 %v200, %v201
    %v203 = vsel %vm183, %v127, 0.0
    %v204 = vadd.f32 %v202, %v203
    %v205 = vsel %vm183, %v128, 0.0
    %v206 = vadd.f32 %v204, %v205
    %v207 = vsel %vm183, %v129, 0.0
    %v208 = vadd.f32 %v206, %v207
    %v209 = vsel %vm183, %v130, 0.0
    %v210 = vadd.f32 %v208, %v209
    %v211 = vsel %vm183, %v131, 0.0
    %v212 = vadd.f32 %v210, %v211
    %v213 = vsel %vm183, %v132, 0.0
    %v214 = vadd.f32 %v212, %v213
    %v215 = vsel %vm183, %v133, 0.0
    %v216 = vadd.f32 %v214, %v215
    %v217 = vsel %vm183, %v134, 0.0
    %v218 = vadd.f32 %v216, %v217
    %v219 = vsel %vm183, %v135, 0.0
    %v220 = vadd.f32 %v218, %v219
    %v221 = vsel %vm183, %v136, 0.0
    %v222 = vadd.f32 %v220, %v221
    %v223 = vsel %vm183, %v137, 0.0
    %v224 = vadd.f32 %v222, %v223
    %v225 = vsel %vm183, %v138, 0.0
    %v226 = vadd.f32 %v224, %v225
    %v227 = vsel %vm183, %v139, 0.0
    %v228 = vadd.f32 %v226, %v227
    %v229 = vsel %vm183, %v140, 0.0
    %v230 = vadd.f32 %v228, %v229
    %v231 = vsel %vm183, %v141, 0.0
    %v232 = vadd.f32 %v230, %v231
    %v233 = vsel %vm183, %v142, 0.0
    %v234 = vadd.f32 %v232, %v233
    %v235 = vsel %vm183, %v143, 0.0
    %v236 = vadd.f32 %v234, %v235
    %v237 = vsel %vm183, %v144, 0.0
    %v238 = vadd.f32 %v236, %v237
    %v239 = vsel %vm183, %v145, 0.0
    %v240 = vadd.f32 %v238, %v239
    %v241 = vsel %vm183, %v146, 0.0
    %v242 = vadd.f32 %v240, %v241
    %v243 = vsel %vm183, %v147, 0.0
    %v244 = vadd.f32 %v242, %v243
    %v245 = vsel %vm183, %v148, 0.0
    %v246 = vadd.f32 %v244, %v245
    %v247 = vrot.slane %v246, 4
    %v248 = vadd.f32 %v246, %v247
    %v249 = vrot.slane %v248, 2
    %v250 = vadd.f32 %v248, %v249
    %v251 = vrot.slane %v250, 1
    %v252 = vadd.f32 %v250, %v251
    %v253 = vsel %vm183, %v149, 0.0
    %v254 = vsel %vm183, %v150, 0.0
    %v255 = vadd.f32 %v253, %v254
    %v256 = vsel %vm183, %v151, 0.0
    %v257 = vadd.f32 %v255, %v256
    %v258 = vsel %vm183, %v152, 0.0
    %v259 = vadd.f32 %v257, %v258
    %v260 = vsel %vm183, %v153, 0.0
    %v261 = vadd.f32 %v259, %v260
    %v262 = vsel %vm183, %v154, 0.0
    %v263 = vadd.f32 %v261, %v262
    %v264 = vsel %vm183, %v155, 0.0
    %v265 = vadd.f32 %v263, %v264
    %v266 = vsel %vm183, %v156, 0.0
    %v267 = vadd.f32 %v265, %v266
    %v268 = vsel %vm183, %v157, 0.0
    %v269 = vadd.f32 %v267, %v268
    %v270 = vsel %vm183, %v158, 0.0
    %v271 = vadd.f32 %v269, %v270
    %v272 = vsel %vm183, %v159, 0.0
    %v273 = vadd.f32 %v271, %v272
    %v274 = vsel %vm183, %v160, 0.0
    %v275 = vadd.f32 %v273, %v274
    %v276 = vsel %vm183, %v161, 0.0
    %v277 = vadd.f32 %v275, %v276
    %v278 = vsel %vm183, %v162, 0.0
    %v279 = vadd.f32 %v277, %v278
    %v280 = vsel %vm183, %v163, 0.0
    %v281 = vadd.f32 %v279, %v280
    %v282 = vsel %vm183, %v164, 0.0
    %v283 = vadd.f32 %v281, %v282
    %v284 = vsel %vm183, %v165, 0.0
    %v285 = vadd.f32 %v283, %v284
    %v286 = vsel %vm183, %v166, 0.0
    %v287 = vadd.f32 %v285, %v286
    %v288 = vsel %vm183, %v167, 0.0
    %v289 = vadd.f32 %v287, %v288
    %v290 = vsel %vm183, %v168, 0.0
    %v291 = vadd.f32 %v289, %v290
    %v292 = vsel %vm183, %v169, 0.0
    %v293 = vadd.f32 %v291, %v292
    %v294 = vsel %vm183, %v170, 0.0
    %v295 = vadd.f32 %v293, %v294
    %v296 = vsel %vm183, %v171, 0.0
    %v297 = vadd.f32 %v295, %v296
    %v298 = vsel %vm183, %v172, 0.0
    %v299 = vadd.f32 %v297, %v298
    %v300 = vsel %vm183, %v173, 0.0
    %v301 = vadd.f32 %v299, %v300
    %v302 = vsel %vm183, %v174, 0.0
    %v303 = vadd.f32 %v301, %v302
    %v304 = vsel %vm183, %v175, 0.0
    %v305 = vadd.f32 %v303, %v304
    %v306 = vsel %vm183, %v176, 0.0
    %v307 = vadd.f32 %v305, %v306
    %v308 = vsel %vm183, %v177, 0.0
    %v309 = vadd.f32 %v307, %v308
    %v310 = vsel %vm183, %v178, 0.0
    %v311 = vadd.f32 %v309, %v310
    %v312 = vsel %vm183, %v179, 0.0
    %v313 = vadd.f32 %v311, %v312
    %v314 = vsel %vm183, %v180, 0.0
    %v315 = vadd.f32 %v313, %v314
    %v316 = vrot.slane %v315, 4
    %v317 = vadd.f32 %v315, %v316
    %v318 = vrot.slane %v317, 2
    %v319 = vadd.f32 %v317, %v318
    %v320 = vrot.slane %v319, 1
    %v321 = vadd.f32 %v319, %v320
    %v322 = vmul.f32 %v117, %v117
    %v323 = vmul.f32 %v118, %v118
    %v324 = vmul.f32 %v119, %v119
    %v325 = vmul.f32 %v120, %v120
    %v326 = vmul.f32 %v121, %v121
    %v327 = vmul.f32 %v122, %v122
    %v328 = vmul.f32 %v123, %v123
    %v329 = vmul.f32 %v124, %v124
    %v330 = vmul.f32 %v125, %v125
    %v331 = vmul.f32 %v126, %v126
    %v332 = vmul.f32 %v127, %v127
    %v333 = vmul.f32 %v128, %v128
    %v334 = vmul.f32 %v129, %v129
    %v335 = vmul.f32 %v130, %v130
    %v336 = vmul.f32 %v131, %v131
    %v337 = vmul.f32 %v132, %v132
    %v338 = vmul.f32 %v133, %v133
    %v339 = vmul.f32 %v134, %v134
    %v340 = vmul.f32 %v135, %v135
    %v341 = vmul.f32 %v136, %v136
    %v342 = vmul.f32 %v137, %v137
    %v343 = vmul.f32 %v138, %v138
    %v344 = vmul.f32 %v139, %v139
    %v345 = vmul.f32 %v140, %v140
    %v346 = vmul.f32 %v141, %v141
    %v347 = vmul.f32 %v142, %v142
    %v348 = vmul.f32 %v143, %v143
    %v349 = vmul.f32 %v144, %v144
    %v350 = vmul.f32 %v145, %v145
    %v351 = vmul.f32 %v146, %v146
    %v352 = vmul.f32 %v147, %v147
    %v353 = vmul.f32 %v148, %v148
    %v354 = vmul.f32 %v149, %v149
    %v355 = vmul.f32 %v150, %v150
    %v356 = vmul.f32 %v151, %v151
    %v357 = vmul.f32 %v152, %v152
    %v358 = vmul.f32 %v153, %v153
    %v359 = vmul.f32 %v154, %v154
    %v360 = vmul.f32 %v155, %v155
    %v361 = vmul.f32 %v156, %v156
    %v362 = vmul.f32 %v157, %v157
    %v363 = vmul.f32 %v158, %v158
    %v364 = vmul.f32 %v159, %v159
    %v365 = vmul.f32 %v160, %v160
    %v366 = vmul.f32 %v161, %v161
    %v367 = vmul.f32 %v162, %v162
    %v368 = vmul.f32 %v163, %v163
    %v369 = vmul.f32 %v164, %v164
    %v370 = vmul.f32 %v165, %v165
    %v371 = vmul.f32 %v166, %v166
    %v372 = vmul.f32 %v167, %v167
    %v373 = vmul.f32 %v168, %v168
    %v374 = vmul.f32 %v169, %v169
    %v375 = vmul.f32 %v170, %v170
    %v376 = vmul.f32 %v171, %v171
    %v377 = vmul.f32 %v172, %v172
    %v378 = vmul.f32 %v173, %v173
    %v379 = vmul.f32 %v174, %v174
    %v380 = vmul.f32 %v175, %v175
    %v381 = vmul.f32 %v176, %v176
    %v382 = vmul.f32 %v177, %v177
    %v383 = vmul.f32 %v178, %v178
    %v384 = vmul.f32 %v179, %v179
    %v385 = vmul.f32 %v180, %v180
    %v386 = vsel %vm183, %v322, 0.0
    %v387 = vsel %vm183, %v323, 0.0
    %v388 = vadd.f32 %v386, %v387
    %v389 = vsel %vm183, %v324, 0.0
    %v390 = vadd.f32 %v388, %v389
    %v391 = vsel %vm183, %v325, 0.0
    %v392 = vadd.f32 %v390, %v391
    %v393 = vsel %vm183, %v326, 0.0
    %v394 = vadd.f32 %v392, %v393
    %v395 = vsel %vm183, %v327, 0.0
    %v396 = vadd.f32 %v394, %v395
    %v397 = vsel %vm183, %v328, 0.0
    %v398 = vadd.f32 %v396, %v397
    %v399 = vsel %vm183, %v329, 0.0
    %v400 = vadd.f32 %v398, %v399
    %v401 = vsel %vm183, %v330, 0.0
    %v402 = vadd.f32 %v400, %v401
    %v403 = vsel %vm183, %v331, 0.0
    %v404 = vadd.f32 %v402, %v403
    %v405 = vsel %vm183, %v332, 0.0
    %v406 = vadd.f32 %v404, %v405
    %v407 = vsel %vm183, %v333, 0.0
    %v408 = vadd.f32 %v406, %v407
    %v409 = vsel %vm183, %v334, 0.0
    %v410 = vadd.f32 %v408, %v409
    %v411 = vsel %vm183, %v335, 0.0
    %v412 = vadd.f32 %v410, %v411
    %v413 = vsel %vm183, %v336, 0.0
    %v414 = vadd.f32 %v412, %v413
    %v415 = vsel %vm183, %v337, 0.0
    %v416 = vadd.f32 %v414, %v415
    %v417 = vsel %vm183, %v338, 0.0
    %v418 = vadd.f32 %v416, %v417
    %v419 = vsel %vm183, %v339, 0.0
    %v420 = vadd.f32 %v418, %v419
    %v421 = vsel %vm183, %v340, 0.0
    %v422 = vadd.f32 %v420, %v421
    %v423 = vsel %vm183, %v341, 0.0
    %v424 = vadd.f32 %v422, %v423
    %v425 = vsel %vm183, %v342, 0.0
    %v426 = vadd.f32 %v424, %v425
    %v427 = vsel %vm183, %v343, 0.0
    %v428 = vadd.f32 %v426, %v427
    %v429 = vsel %vm183, %v344, 0.0
    %v430 = vadd.f32 %v428, %v429
    %v431 = vsel %vm183, %v345, 0.0
    %v432 = vadd.f32 %v430, %v431
    %v433 = vsel %vm183, %v346, 0.0
    %v434 = vadd.f32 %v432, %v433
    %v435 = vsel %vm183, %v347, 0.0
    %v436 = vadd.f32 %v434, %v435
    %v437 = vsel %vm183, %v348, 0.0
    %v438 = vadd.f32 %v436, %v437
    %v439 = vsel %vm183, %v349, 0.0
    %v440 = vadd.f32 %v438, %v439
    %v441 = vsel %vm183, %v350, 0.0
    %v442 = vadd.f32 %v440, %v441
    %v443 = vsel %vm183, %v351, 0.0
    %v444 = vadd.f32 %v442, %v443
    %v445 = vsel %vm183, %v352, 0.0
    %v446 = vadd.f32 %v444, %v445
    %v447 = vsel %vm183, %v353, 0.0
    %v448 = vadd.f32 %v446, %v447
    %v449 = vrot.slane %v448, 4
    %v450 = vadd.f32 %v448, %v449
    %v451 = vrot.slane %v450, 2
    %v452 = vadd.f32 %v450, %v451
    %v453 = vrot.slane %v452, 1
    %v454 = vadd.f32 %v452, %v453
    %v455 = vsel %vm183, %v354, 0.0
    %v456 = vsel %vm183, %v355, 0.0
    %v457 = vadd.f32 %v455, %v456
    %v458 = vsel %vm183, %v356, 0.0
    %v459 = vadd.f32 %v457, %v458
    %v460 = vsel %vm183, %v357, 0.0
    %v461 = vadd.f32 %v459, %v460
    %v462 = vsel %vm183, %v358, 0.0
    %v463 = vadd.f32 %v461, %v462
    %v464 = vsel %vm183, %v359, 0.0
    %v465 = vadd.f32 %v463, %v464
    %v466 = vsel %vm183, %v360, 0.0
    %v467 = vadd.f32 %v465, %v466
    %v468 = vsel %vm183, %v361, 0.0
    %v469 = vadd.f32 %v467, %v468
    %v470 = vsel %vm183, %v362, 0.0
    %v471 = vadd.f32 %v469, %v470
    %v472 = vsel %vm183, %v363, 0.0
    %v473 = vadd.f32 %v471, %v472
    %v474 = vsel %vm183, %v364, 0.0
    %v475 = vadd.f32 %v473, %v474
    %v476 = vsel %vm183, %v365, 0.0
    %v477 = vadd.f32 %v475, %v476
    %v478 = vsel %vm183, %v366, 0.0
    %v479 = vadd.f32 %v477, %v478
    %v480 = vsel %vm183, %v367, 0.0
    %v481 = vadd.f32 %v479, %v480
    %v482 = vsel %vm183, %v368, 0.0
    %v483 = vadd.f32 %v481, %v482
    %v484 = vsel %vm183, %v369, 0.0
    %v485 = vadd.f32 %v483, %v484
    %v486 = vsel %vm183, %v370, 0.0
    %v487 = vadd.f32 %v485, %v486
    %v488 = vsel %vm183, %v371, 0.0
    %v489 = vadd.f32 %v487, %v488
    %v490 = vsel %vm183, %v372, 0.0
    %v491 = vadd.f32 %v489, %v490
    %v492 = vsel %vm183, %v373, 0.0
    %v493 = vadd.f32 %v491, %v492
    %v494 = vsel %vm183, %v374, 0.0
    %v495 = vadd.f32 %v493, %v494
    %v496 = vsel %vm183, %v375, 0.0
    %v497 = vadd.f32 %v495, %v496
    %v498 = vsel %vm183, %v376, 0.0
    %v499 = vadd.f32 %v497, %v498
    %v500 = vsel %vm183, %v377, 0.0
    %v501 = vadd.f32 %v499, %v500
    %v502 = vsel %vm183, %v378, 0.0
    %v503 = vadd.f32 %v501, %v502
    %v504 = vsel %vm183, %v379, 0.0
    %v505 = vadd.f32 %v503, %v504
    %v506 = vsel %vm183, %v380, 0.0
    %v507 = vadd.f32 %v505, %v506
    %v508 = vsel %vm183, %v381, 0.0
    %v509 = vadd.f32 %v507, %v508
    %v510 = vsel %vm183, %v382, 0.0
    %v511 = vadd.f32 %v509, %v510
    %v512 = vsel %vm183, %v383, 0.0
    %v513 = vadd.f32 %v511, %v512
    %v514 = vsel %vm183, %v384, 0.0
    %v515 = vadd.f32 %v513, %v514
    %v516 = vsel %vm183, %v385, 0.0
    %v517 = vadd.f32 %v515, %v516
    %v518 = vrot.slane %v517, 4
    %v519 = vadd.f32 %v517, %v518
    %v520 = vrot.slane %v519, 2
    %v521 = vadd.f32 %v519, %v520
    %v522 = vrot.slane %v521, 1
    %v523 = vadd.f32 %v521, %v522
    %vm526 = vcmask 1041409
    %v527 = vsel %vm526, %v321, %v252
    %vm531 = vcmask 1043459
    %v532 = vsel %vm531, %v523, %v454
    %vm534 = vcmask 1041408
    %v535 = vsel %vm534, %v527, %v532
    %v536 = vld [vmem:[#allocation8] sm:$0xff]
    %v537 = vld [vmem:[#allocation8 + $0x8] sm:$0xff]
    %v538 = vld [vmem:[#allocation8 + $0x10] sm:$0xff]
    %v539 = vld [vmem:[#allocation8 + $0x18] sm:$0xff]
    %v540 = vld [vmem:[#allocation8 + $0x20] sm:$0xff]
    %v541 = vld [vmem:[#allocation8 + $0x28] sm:$0xff]
    %v542 = vld [vmem:[#allocation8 + $0x30] sm:$0xff]
    %v543 = vld [vmem:[#allocation8 + $0x38] sm:$0xff]
    %v545 = vsel %vm183, %v535, 0
    %547 = vmatprep.subr.mxu0 0.0
    %548 = vmatpush1.msra.mxu0 %v536
    %549 = vmatprep.subr.mxu0 0.0
    %550 = vmatpush1.msra.mxu0 %v537
    %551 = vmatprep.subr.mxu0 0.0
    %552 = vmatpush1.msra.mxu0 %v538
    %553 = vmatprep.subr.mxu0 0.0
    %554 = vmatpush1.msra.mxu0 %v539
    %555 = vmatprep.subr.mxu0 0.0
    %556 = vmatpush1.msra.mxu0 %v540
    %557 = vmatprep.subr.mxu0 0.0
    %558 = vmatpush1.msra.mxu0 %v541
    %559 = vmatprep.subr.mxu0 0.0
    %560 = vmatpush1.msra.mxu0 %v542
    %561 = vmatprep.subr.mxu0 0.0
    %562 = vmatpush1.msra.mxu0 %v543
    %563 = vmatprep.subr.mxu0 0.0
    %564 = vmatpush1.msra.mxu0 0.0
    %565 = vmatprep.subr.mxu0 0.0
    %566 = vmatpush1.msra.mxu0 0.0
    %567 = vmatprep.subr.mxu0 0.0
    %568 = vmatpush1.msra.mxu0 0.0
    %569 = vmatprep.subr.mxu0 0.0
    %570 = vmatpush1.msra.mxu0 0.0
    %571 = vmatprep.subr.mxu0 0.0
    %572 = vmatpush1.msra.mxu0 0.0
    %573 = vmatprep.subr.mxu0 0.0
    %574 = vmatpush1.msra.mxu0 0.0
    %575 = vmatprep.subr.mxu0 0.0
    %576 = vmatpush1.msra.mxu0 0.0
    %577 = vmatprep.subr.mxu0 0.0
    %578 = vmatpush1.msra.mxu0 0.0
    %579 = vmatprep.subr.mxu0 0.0
    %580 = vmatpush1.msra.mxu0 0.0
    %581 = vmatprep.subr.mxu0 0.0
    %582 = vmatpush1.msra.mxu0 0.0
    %583 = vmatprep.subr.mxu0 0.0
    %584 = vmatpush1.msra.mxu0 0.0
    %585 = vmatprep.subr.mxu0 0.0
    %586 = vmatpush1.msra.mxu0 0.0
    %587 = vmatprep.subr.mxu0 0.0
    %588 = vmatpush1.msra.mxu0 0.0
    %589 = vmatprep.subr.mxu0 0.0
    %590 = vmatpush1.msra.mxu0 0.0
    %591 = vmatprep.subr.mxu0 0.0
    %592 = vmatpush1.msra.mxu0 0.0
    %593 = vmatprep.subr.mxu0 0.0
    %594 = vmatpush1.msra.mxu0 0.0
    %595 = vmatprep.subr.mxu0 0.0
    %596 = vmatpush1.msra.mxu0 0.0
    %597 = vmatprep.subr.mxu0 0.0
    %598 = vmatpush1.msra.mxu0 0.0
    %599 = vmatprep.subr.mxu0 0.0
    %600 = vmatpush1.msra.mxu0 0.0
    %601 = vmatprep.subr.mxu0 0.0
    %602 = vmatpush1.msra.mxu0 0.0
    %603 = vmatprep.subr.mxu0 0.0
    %604 = vmatpush1.msra.mxu0 0.0
    %605 = vmatprep.subr.mxu0 0.0
    %606 = vmatpush1.msra.mxu0 0.0
    %607 = vmatprep.subr.mxu0 0.0
    %608 = vmatpush1.msra.mxu0 0.0
    %609 = vmatprep.subr.mxu0 0.0
    %610 = vmatpush1.msra.mxu0 0.0
    %611 = vmatprep.mubr.f32.mxu0 0.0
    %612 = vmatmul.mubr.f32.gmra.mrb[0].mxu0 %v545
    %v613 = vpop.f32.mrb[0].mxu0
    %v614 = vadd.f32 0.0, %v613
    %v615 = vpop.f32.mrb[0].mxu0
    %616 = vdwg.mxu0
    %v617 = vmul.f32 %v614, %v614
    %v619 = vrot.slane %v617, 6
    %v621 = vsub.f32 %v614, %v619
    %v622 = vmax.f32 %v621, 0.0
    %v623 = vadd.f32 %v622, 1e-05
    %v624 = vrsqrt.pop %v623
    %v626 = vlaneseq
    %v627 = vshrl.u32 %v626, 7
    %v628 = vsub.s32 0, %v627
    %v629 = vrot.slane %v181, %v628
    %v631 = vmul.f32 %v624, %v629
    %v633 = vrot.slane %v631, 2
    %v635 = vmul.f32 %v614, %v633
    %v637 = vlaneseq
    %v638 = vshrl.u32 %v637, 7
    %v639 = vsub.s32 0, %v638
    %v640 = vrot.slane %v182, %v639
    %v642 = vsub.f32 %v640, %v635
    %v644 = vunpack.c.l.s4 1966171168
    %v645 = vunpack.c.0.s8 %v644
    %v646 = vlaneseq
    %v647 = vshrl.u32 %v646, 7
    %v648 = vsub.s32 %v645, %v647
    %v649 = vrot.slane %v631, %v648
    %v650 = vcombine.high %v649, %v649
    %v652 = vunpack.c.l.s4 1966171168
    %v653 = vunpack.c.0.s8 %v652
    %v654 = vlaneseq
    %v655 = vshrl.u32 %v654, 7
    %v656 = vsub.s32 %v653, %v655
    %v657 = vrot.slane %v649, %v656
    %v659 = vunpack.c.l.s4 1966171168
    %v660 = vunpack.c.0.s8 %v659
    %v661 = vlaneseq
    %v662 = vshrl.u32 %v661, 7
    %v663 = vsub.s32 %v660, %v662
    %v664 = vrot.slane %v650, %v663
    %v665 = vcombine.high %v657, %v657
    %v666 = vcombine.high %v664, %v664
    %v667 = vlaneseq
    %v668 = vshrl.u32 %v667, 7
    %v669 = vsub.s32 0, %v668
    %v670 = vrot.slane %v665, %v669
    %v671 = vlaneseq
    %v672 = vshrl.u32 %v671, 7
    %v673 = vsub.s32 0, %v672
    %v674 = vrot.slane %v666, %v673
    %v677 = vmul.f32 %v117, %v670
    %v678 = vmul.f32 %v118, %v670
    %v679 = vmul.f32 %v119, %v670
    %v680 = vmul.f32 %v120, %v670
    %v681 = vmul.f32 %v121, %v670
    %v682 = vmul.f32 %v122, %v670
    %v683 = vmul.f32 %v123, %v670
    %v684 = vmul.f32 %v124, %v670
    %v685 = vmul.f32 %v125, %v670
    %v686 = vmul.f32 %v126, %v670
    %v687 = vmul.f32 %v127, %v670
    %v688 = vmul.f32 %v128, %v670
    %v689 = vmul.f32 %v129, %v670
    %v690 = vmul.f32 %v130, %v670
    %v691 = vmul.f32 %v131, %v670
    %v692 = vmul.f32 %v132, %v670
    %v693 = vmul.f32 %v133, %v670
    %v694 = vmul.f32 %v134, %v670
    %v695 = vmul.f32 %v135, %v670
    %v696 = vmul.f32 %v136, %v670
    %v697 = vmul.f32 %v137, %v670
    %v698 = vmul.f32 %v138, %v670
    %v699 = vmul.f32 %v139, %v670
    %v700 = vmul.f32 %v140, %v670
    %v701 = vmul.f32 %v141, %v670
    %v702 = vmul.f32 %v142, %v670
    %v703 = vmul.f32 %v143, %v670
    %v704 = vmul.f32 %v144, %v670
    %v705 = vmul.f32 %v145, %v670
    %v706 = vmul.f32 %v146, %v670
    %v707 = vmul.f32 %v147, %v670
    %v708 = vmul.f32 %v148, %v670
    %v709 = vmul.f32 %v149, %v674
    %v710 = vmul.f32 %v150, %v674
    %v711 = vmul.f32 %v151, %v674
    %v712 = vmul.f32 %v152, %v674
    %v713 = vmul.f32 %v153, %v674
    %v714 = vmul.f32 %v154, %v674
    %v715 = vmul.f32 %v155, %v674
    %v716 = vmul.f32 %v156, %v674
    %v717 = vmul.f32 %v157, %v674
    %v718 = vmul.f32 %v158, %v674
    %v719 = vmul.f32 %v159, %v674
    %v720 = vmul.f32 %v160, %v674
    %v721 = vmul.f32 %v161, %v674
    %v722 = vmul.f32 %v162, %v674
    %v723 = vmul.f32 %v163, %v674
    %v724 = vmul.f32 %v164, %v674
    %v725 = vmul.f32 %v165, %v674
    %v726 = vmul.f32 %v166, %v674
    %v727 = vmul.f32 %v167, %v674
    %v728 = vmul.f32 %v168, %v674
    %v729 = vmul.f32 %v169, %v674
    %v730 = vmul.f32 %v170, %v674
    %v731 = vmul.f32 %v171, %v674
    %v732 = vmul.f32 %v172, %v674
    %v733 = vmul.f32 %v173, %v674
    %v734 = vmul.f32 %v174, %v674
    %v735 = vmul.f32 %v175, %v674
    %v736 = vmul.f32 %v176, %v674
    %v737 = vmul.f32 %v177, %v674
    %v738 = vmul.f32 %v178, %v674
    %v739 = vmul.f32 %v179, %v674
    %v740 = vmul.f32 %v180, %v674
    %v743 = vunpack.c.l.s4 1966171168
    %v744 = vunpack.c.0.s8 %v743
    %v745 = vlaneseq
    %v746 = vshrl.u32 %v745, 7
    %v747 = vsub.s32 %v744, %v746
    %v748 = vrot.slane %v642, %v747
    %v749 = vcombine.high %v748, %v748
    %v751 = vunpack.c.l.s4 1966171168
    %v752 = vunpack.c.0.s8 %v751
    %v753 = vlaneseq
    %v754 = vshrl.u32 %v753, 7
    %v755 = vsub.s32 %v752, %v754
    %v756 = vrot.slane %v748, %v755
    %v758 = vunpack.c.l.s4 1966171168
    %v759 = vunpack.c.0.s8 %v758
    %v760 = vlaneseq
    %v761 = vshrl.u32 %v760, 7
    %v762 = vsub.s32 %v759, %v761
    %v763 = vrot.slane %v749, %v762
    %v764 = vlaneseq
    %v765 = vshrl.u32 %v764, 7
    %v766 = vsub.s32 0, %v765
    %v767 = vrot.slane %v756, %v766
    %v768 = vlaneseq
    %v769 = vshrl.u32 %v768, 7
    %v770 = vsub.s32 0, %v769
    %v771 = vrot.slane %v763, %v770
    %v774 = vadd.f32 %v677, %v767
    %v775 = vadd.f32 %v678, %v767
    %v776 = vadd.f32 %v679, %v767
    %v777 = vadd.f32 %v680, %v767
    %v778 = vadd.f32 %v681, %v767
    %v779 = vadd.f32 %v682, %v767
    %v780 = vadd.f32 %v683, %v767
    %v781 = vadd.f32 %v684, %v767
    %v782 = vadd.f32 %v685, %v767
    %v783 = vadd.f32 %v686, %v767
    %v784 = vadd.f32 %v687, %v767
    %v785 = vadd.f32 %v688, %v767
    %v786 = vadd.f32 %v689, %v767
    %v787 = vadd.f32 %v690, %v767
    %v788 = vadd.f32 %v691, %v767
    %v789 = vadd.f32 %v692, %v767
    %v790 = vadd.f32 %v693, %v767
    %v791 = vadd.f32 %v694, %v767
    %v792 = vadd.f32 %v695, %v767
    %v793 = vadd.f32 %v696, %v767
    %v794 = vadd.f32 %v697, %v767
    %v795 = vadd.f32 %v698, %v767
    %v796 = vadd.f32 %v699, %v767
    %v797 = vadd.f32 %v700, %v767
    %v798 = vadd.f32 %v701, %v767
    %v799 = vadd.f32 %v702, %v767
    %v800 = vadd.f32 %v703, %v767
    %v801 = vadd.f32 %v704, %v767
    %v802 = vadd.f32 %v705, %v767
    %v803 = vadd.f32 %v706, %v767
    %v804 = vadd.f32 %v707, %v767
    %v805 = vadd.f32 %v708, %v767
    %v806 = vadd.f32 %v709, %v771
    %v807 = vadd.f32 %v710, %v771
    %v808 = vadd.f32 %v711, %v771
    %v809 = vadd.f32 %v712, %v771
    %v810 = vadd.f32 %v713, %v771
    %v811 = vadd.f32 %v714, %v771
    %v812 = vadd.f32 %v715, %v771
    %v813 = vadd.f32 %v716, %v771
    %v814 = vadd.f32 %v717, %v771
    %v815 = vadd.f32 %v718, %v771
    %v816 = vadd.f32 %v719, %v771
    %v817 = vadd.f32 %v720, %v771
    %v818 = vadd.f32 %v721, %v771
    %v819 = vadd.f32 %v722, %v771
    %v820 = vadd.f32 %v723, %v771
    %v821 = vadd.f32 %v724, %v771
    %v822 = vadd.f32 %v725, %v771
    %v823 = vadd.f32 %v726, %v771
    %v824 = vadd.f32 %v727, %v771
    %v825 = vadd.f32 %v728, %v771
    %v826 = vadd.f32 %v729, %v771
    %v827 = vadd.f32 %v730, %v771
    %v828 = vadd.f32 %v731, %v771
    %v829 = vadd.f32 %v732, %v771
    %v830 = vadd.f32 %v733, %v771
    %v831 = vadd.f32 %v734, %v771
    %v832 = vadd.f32 %v735, %v771
    %v833 = vadd.f32 %v736, %v771
    %v834 = vadd.f32 %v737, %v771
    %v835 = vadd.f32 %v738, %v771
    %v836 = vadd.f32 %v739, %v771
    %v837 = vadd.f32 %v740, %v771
    %v838 = vxor.u32 %v774, 2147483648
    %v839 = vxor.u32 %v775, 2147483648
    %v840 = vxor.u32 %v776, 2147483648
    %v841 = vxor.u32 %v777, 2147483648
    %v842 = vxor.u32 %v778, 2147483648
    %v843 = vxor.u32 %v779, 2147483648
    %v844 = vxor.u32 %v780, 2147483648
    %v845 = vxor.u32 %v781, 2147483648
    %v846 = vxor.u32 %v782, 2147483648
    %v847 = vxor.u32 %v783, 2147483648
    %v848 = vxor.u32 %v784, 2147483648
    %v849 = vxor.u32 %v785, 2147483648
    %v850 = vxor.u32 %v786, 2147483648
    %v851 = vxor.u32 %v787, 2147483648
    %v852 = vxor.u32 %v788, 2147483648
    %v853 = vxor.u32 %v789, 2147483648
    %v854 = vxor.u32 %v790, 2147483648
    %v855 = vxor.u32 %v791, 2147483648
    %v856 = vxor.u32 %v792, 2147483648
    %v857 = vxor.u32 %v793, 2147483648
    %v858 = vxor.u32 %v794, 2147483648
    %v859 = vxor.u32 %v795, 2147483648
    %v860 = vxor.u32 %v796, 2147483648
    %v861 = vxor.u32 %v797, 2147483648
    %v862 = vxor.u32 %v798, 2147483648
    %v863 = vxor.u32 %v799, 2147483648
    %v864 = vxor.u32 %v800, 2147483648
    %v865 = vxor.u32 %v801, 2147483648
    %v866 = vxor.u32 %v802, 2147483648
    %v867 = vxor.u32 %v803, 2147483648
    %v868 = vxor.u32 %v804, 2147483648
    %v869 = vxor.u32 %v805, 2147483648
    %v870 = vxor.u32 %v806, 2147483648
    %v871 = vxor.u32 %v807, 2147483648
    %v872 = vxor.u32 %v808, 2147483648
    %v873 = vxor.u32 %v809, 2147483648
    %v874 = vxor.u32 %v810, 2147483648
    %v875 = vxor.u32 %v811, 2147483648
    %v876 = vxor.u32 %v812, 2147483648
    %v877 = vxor.u32 %v813, 2147483648
    %v878 = vxor.u32 %v814, 2147483648
    %v879 = vxor.u32 %v815, 2147483648
    %v880 = vxor.u32 %v816, 2147483648
    %v881 = vxor.u32 %v817, 2147483648
    %v882 = vxor.u32 %v818, 2147483648
    %v883 = vxor.u32 %v819, 2147483648
    %v884 = vxor.u32 %v820, 2147483648
    %v885 = vxor.u32 %v821, 2147483648
    %v886 = vxor.u32 %v822, 2147483648
    %v887 = vxor.u32 %v823, 2147483648
    %v888 = vxor.u32 %v824, 2147483648
    %v889 = vxor.u32 %v825, 2147483648
    %v890 = vxor.u32 %v826, 2147483648
    %v891 = vxor.u32 %v827, 2147483648
    %v892 = vxor.u32 %v828, 2147483648
    %v893 = vxor.u32 %v829, 2147483648
    %v894 = vxor.u32 %v830, 2147483648
    %v895 = vxor.u32 %v831, 2147483648
    %v896 = vxor.u32 %v832, 2147483648
    %v897 = vxor.u32 %v833, 2147483648
    %v898 = vxor.u32 %v834, 2147483648
    %v899 = vxor.u32 %v835, 2147483648
    %v900 = vxor.u32 %v836, 2147483648
    %v901 = vxor.u32 %v837, 2147483648
    %v902 = vmul.f32 %v838, 1.442695
    %v903 = vpow.pop %v902
    %v904 = vmul.f32 %v839, 1.442695
    %v905 = vpow.pop %v904
    %v906 = vmul.f32 %v840, 1.442695
    %v907 = vpow.pop %v906
    %v908 = vmul.f32 %v841, 1.442695
    %v909 = vpow.pop %v908
    %v910 = vmul.f32 %v842, 1.442695
    %v911 = vpow.pop %v910
    %v912 = vmul.f32 %v843, 1.442695
    %v913 = vpow.pop %v912
    %v914 = vmul.f32 %v844, 1.442695
    %v915 = vpow.pop %v914
    %v916 = vmul.f32 %v845, 1.442695
    %v917 = vpow.pop %v916
    %v918 = vmul.f32 %v846, 1.442695
    %v919 = vpow.pop %v918
    %v920 = vmul.f32 %v847, 1.442695
    %v921 = vpow.pop %v920
    %v922 = vmul.f32 %v848, 1.442695
    %v923 = vpow.pop %v922
    %v924 = vmul.f32 %v849, 1.442695
    %v925 = vpow.pop %v924
    %v926 = vmul.f32 %v850, 1.442695
    %v927 = vpow.pop %v926
    %v928 = vmul.f32 %v851, 1.442695
    %v929 = vpow.pop %v928
    %v930 = vmul.f32 %v852, 1.442695
    %v931 = vpow.pop %v930
    %v932 = vmul.f32 %v853, 1.442695
    %v933 = vpow.pop %v932
    %v934 = vmul.f32 %v854, 1.442695
    %v935 = vpow.pop %v934
    %v936 = vmul.f32 %v855, 1.442695
    %v937 = vpow.pop %v936
    %v938 = vmul.f32 %v856, 1.442695
    %v939 = vpow.pop %v938
    %v940 = vmul.f32 %v857, 1.442695
    %v941 = vpow.pop %v940
    %v942 = vmul.f32 %v858, 1.442695
    %v943 = vpow.pop %v942
    %v944 = vmul.f32 %v859, 1.442695
    %v945 = vpow.pop %v944
    %v946 = vmul.f32 %v860, 1.442695
    %v947 = vpow.pop %v946
    %v948 = vmul.f32 %v861, 1.442695
    %v949 = vpow.pop %v948
    %v950 = vmul.f32 %v862, 1.442695
    %v951 = vpow.pop %v950
    %v952 = vmul.f32 %v863, 1.442695
    %v953 = vpow.pop %v952
    %v954 = vmul.f32 %v864, 1.442695
    %v955 = vpow.pop %v954
    %v956 = vmul.f32 %v865, 1.442695
    %v957 = vpow.pop %v956
    %v958 = vmul.f32 %v866, 1.442695
    %v959 = vpow.pop %v958
    %v960 = vmul.f32 %v867, 1.442695
    %v961 = vpow.pop %v960
    %v962 = vmul.f32 %v868, 1.442695
    %v963 = vpow.pop %v962
    %v964 = vmul.f32 %v869, 1.442695
    %v965 = vpow.pop %v964
    %v966 = vmul.f32 %v870, 1.442695
    %v967 = vpow.pop %v966
    %v968 = vmul.f32 %v871, 1.442695
    %v969 = vpow.pop %v968
    %v970 = vmul.f32 %v872, 1.442695
    %v971 = vpow.pop %v970
    %v972 = vmul.f32 %v873, 1.442695
    %v973 = vpow.pop %v972
    %v974 = vmul.f32 %v874, 1.442695
    %v975 = vpow.pop %v974
    %v976 = vmul.f32 %v875, 1.442695
    %v977 = vpow.pop %v976
    %v978 = vmul.f32 %v876, 1.442695
    %v979 = vpow.pop %v978
    %v980 = vmul.f32 %v877, 1.442695
    %v981 = vpow.pop %v980
    %v982 = vmul.f32 %v878, 1.442695
    %v983 = vpow.pop %v982
    %v984 = vmul.f32 %v879, 1.442695
    %v985 = vpow.pop %v984
    %v986 = vmul.f32 %v880, 1.442695
    %v987 = vpow.pop %v986
    %v988 = vmul.f32 %v881, 1.442695
    %v989 = vpow.pop %v988
    %v990 = vmul.f32 %v882, 1.442695
    %v991 = vpow.pop %v990
    %v992 = vmul.f32 %v883, 1.442695
    %v993 = vpow.pop %v992
    %v994 = vmul.f32 %v884, 1.442695
    %v995 = vpow.pop %v994
    %v996 = vmul.f32 %v885, 1.442695
    %v997 = vpow.pop %v996
    %v998 = vmul.f32 %v886, 1.442695
    %v999 = vpow.pop %v998
    %v1000 = vmul.f32 %v887, 1.442695
    %v1001 = vpow.pop %v1000
    %v1002 = vmul.f32 %v888, 1.442695
    %v1003 = vpow.pop %v1002
    %v1004 = vmul.f32 %v889, 1.442695
    %v1005 = vpow.pop %v1004
    %v1006 = vmul.f32 %v890, 1.442695
    %v1007 = vpow.pop %v1006
    %v1008 = vmul.f32 %v891, 1.442695
    %v1009 = vpow.pop %v1008
    %v1010 = vmul.f32 %v892, 1.442695
    %v1011 = vpow.pop %v1010
    %v1012 = vmul.f32 %v893, 1.442695
    %v1013 = vpow.pop %v1012
    %v1014 = vmul.f32 %v894, 1.442695
    %v1015 = vpow.pop %v1014
    %v1016 = vmul.f32 %v895, 1.442695
    %v1017 = vpow.pop %v1016
    %v1018 = vmul.f32 %v896, 1.442695
    %v1019 = vpow.pop %v1018
    %v1020 = vmul.f32 %v897, 1.442695
    %v1021 = vpow.pop %v1020
    %v1022 = vmul.f32 %v898, 1.442695
    %v1023 = vpow.pop %v1022
    %v1024 = vmul.f32 %v899, 1.442695
    %v1025 = vpow.pop %v1024
    %v1026 = vmul.f32 %v900, 1.442695
    %v1027 = vpow.pop %v1026
    %v1028 = vmul.f32 %v901, 1.442695
    %v1029 = vpow.pop %v1028
    %v1030 = vadd.f32 %v903, 1.0
    %v1031 = vadd.f32 %v905, 1.0
    %v1032 = vadd.f32 %v907, 1.0
    %v1033 = vadd.f32 %v909, 1.0
    %v1034 = vadd.f32 %v911, 1.0
    %v1035 = vadd.f32 %v913, 1.0
    %v1036 = vadd.f32 %v915, 1.0
    %v1037 = vadd.f32 %v917, 1.0
    %v1038 = vadd.f32 %v919, 1.0
    %v1039 = vadd.f32 %v921, 1.0
    %v1040 = vadd.f32 %v923, 1.0
    %v1041 = vadd.f32 %v925, 1.0
    %v1042 = vadd.f32 %v927, 1.0
    %v1043 = vadd.f32 %v929, 1.0
    %v1044 = vadd.f32 %v931, 1.0
    %v1045 = vadd.f32 %v933, 1.0
    %v1046 = vadd.f32 %v935, 1.0
    %v1047 = vadd.f32 %v937, 1.0
    %v1048 = vadd.f32 %v939, 1.0
    %v1049 = vadd.f32 %v941, 1.0
    %v1050 = vadd.f32 %v943, 1.0
    %v1051 = vadd.f32 %v945, 1.0
    %v1052 = vadd.f32 %v947, 1.0
    %v1053 = vadd.f32 %v949, 1.0
    %v1054 = vadd.f32 %v951, 1.0
    %v1055 = vadd.f32 %v953, 1.0
    %v1056 = vadd.f32 %v955, 1.0
    %v1057 = vadd.f32 %v957, 1.0
    %v1058 = vadd.f32 %v959, 1.0
    %v1059 = vadd.f32 %v961, 1.0
    %v1060 = vadd.f32 %v963, 1.0
    %v1061 = vadd.f32 %v965, 1.0
    %v1062 = vadd.f32 %v967, 1.0
    %v1063 = vadd.f32 %v969, 1.0
    %v1064 = vadd.f32 %v971, 1.0
    %v1065 = vadd.f32 %v973, 1.0
    %v1066 = vadd.f32 %v975, 1.0
    %v1067 = vadd.f32 %v977, 1.0
    %v1068 = vadd.f32 %v979, 1.0
    %v1069 = vadd.f32 %v981, 1.0
    %v1070 = vadd.f32 %v983, 1.0
    %v1071 = vadd.f32 %v985, 1.0
    %v1072 = vadd.f32 %v987, 1.0
    %v1073 = vadd.f32 %v989, 1.0
    %v1074 = vadd.f32 %v991, 1.0
    %v1075 = vadd.f32 %v993, 1.0
    %v1076 = vadd.f32 %v995, 1.0
    %v1077 = vadd.f32 %v997, 1.0
    %v1078 = vadd.f32 %v999, 1.0
    %v1079 = vadd.f32 %v1001, 1.0
    %v1080 = vadd.f32 %v1003, 1.0
    %v1081 = vadd.f32 %v1005, 1.0
    %v1082 = vadd.f32 %v1007, 1.0
    %v1083 = vadd.f32 %v1009, 1.0
    %v1084 = vadd.f32 %v1011, 1.0
    %v1085 = vadd.f32 %v1013, 1.0
    %v1086 = vadd.f32 %v1015, 1.0
    %v1087 = vadd.f32 %v1017, 1.0
    %v1088 = vadd.f32 %v1019, 1.0
    %v1089 = vadd.f32 %v1021, 1.0
    %v1090 = vadd.f32 %v1023, 1.0
    %v1091 = vadd.f32 %v1025, 1.0
    %v1092 = vadd.f32 %v1027, 1.0
    %v1093 = vadd.f32 %v1029, 1.0
    %v1094 = vrcp.pop %v1030
    %v1095 = vmul.f32 1.0, %v1094
    %v1096 = vrcp.pop %v1031
    %v1097 = vmul.f32 1.0, %v1096
    %v1098 = vrcp.pop %v1032
    %v1099 = vmul.f32 1.0, %v1098
    %v1100 = vrcp.pop %v1033
    %v1101 = vmul.f32 1.0, %v1100
    %v1102 = vrcp.pop %v1034
    %v1103 = vmul.f32 1.0, %v1102
    %v1104 = vrcp.pop %v1035
    %v1105 = vmul.f32 1.0, %v1104
    %v1106 = vrcp.pop %v1036
    %v1107 = vmul.f32 1.0, %v1106
    %v1108 = vrcp.pop %v1037
    %v1109 = vmul.f32 1.0, %v1108
    %v1110 = vrcp.pop %v1038
    %v1111 = vmul.f32 1.0, %v1110
    %v1112 = vrcp.pop %v1039
    %v1113 = vmul.f32 1.0, %v1112
    %v1114 = vrcp.pop %v1040
    %v1115 = vmul.f32 1.0, %v1114
    %v1116 = vrcp.pop %v1041
    %v1117 = vmul.f32 1.0, %v1116
    %v1118 = vrcp.pop %v1042
    %v1119 = vmul.f32 1.0, %v1118
    %v1120 = vrcp.pop %v1043
    %v1121 = vmul.f32 1.0, %v1120
    %v1122 = vrcp.pop %v1044
    %v1123 = vmul.f32 1.0, %v1122
    %v1124 = vrcp.pop %v1045
    %v1125 = vmul.f32 1.0, %v1124
    %v1126 = vrcp.pop %v1046
    %v1127 = vmul.f32 1.0, %v1126
    %v1128 = vrcp.pop %v1047
    %v1129 = vmul.f32 1.0, %v1128
    %v1130 = vrcp.pop %v1048
    %v1131 = vmul.f32 1.0, %v1130
    %v1132 = vrcp.pop %v1049
    %v1133 = vmul.f32 1.0, %v1132
    %v1134 = vrcp.pop %v1050
    %v1135 = vmul.f32 1.0, %v1134
    %v1136 = vrcp.pop %v1051
    %v1137 = vmul.f32 1.0, %v1136
    %v1138 = vrcp.pop %v1052
    %v1139 = vmul.f32 1.0, %v1138
    %v1140 = vrcp.pop %v1053
    %v1141 = vmul.f32 1.0, %v1140
    %v1142 = vrcp.pop %v1054
    %v1143 = vmul.f32 1.0, %v1142
    %v1144 = vrcp.pop %v1055
    %v1145 = vmul.f32 1.0, %v1144
    %v1146 = vrcp.pop %v1056
    %v1147 = vmul.f32 1.0, %v1146
    %v1148 = vrcp.pop %v1057
    %v1149 = vmul.f32 1.0, %v1148
    %v1150 = vrcp.pop %v1058
    %v1151 = vmul.f32 1.0, %v1150
    %v1152 = vrcp.pop %v1059
    %v1153 = vmul.f32 1.0, %v1152
    %v1154 = vrcp.pop %v1060
    %v1155 = vmul.f32 1.0, %v1154
    %v1156 = vrcp.pop %v1061
    %v1157 = vmul.f32 1.0, %v1156
    %v1158 = vrcp.pop %v1062
    %v1159 = vmul.f32 1.0, %v1158
    %v1160 = vrcp.pop %v1063
    %v1161 = vmul.f32 1.0, %v1160
    %v1162 = vrcp.pop %v1064
    %v1163 = vmul.f32 1.0, %v1162
    %v1164 = vrcp.pop %v1065
    %v1165 = vmul.f32 1.0, %v1164
    %v1166 = vrcp.pop %v1066
    %v1167 = vmul.f32 1.0, %v1166
    %v1168 = vrcp.pop %v1067
    %v1169 = vmul.f32 1.0, %v1168
    %v1170 = vrcp.pop %v1068
    %v1171 = vmul.f32 1.0, %v1170
    %v1172 = vrcp.pop %v1069
    %v1173 = vmul.f32 1.0, %v1172
    %v1174 = vrcp.pop %v1070
    %v1175 = vmul.f32 1.0, %v1174
    %v1176 = vrcp.pop %v1071
    %v1177 = vmul.f32 1.0, %v1176
    %v1178 = vrcp.pop %v1072
    %v1179 = vmul.f32 1.0, %v1178
    %v1180 = vrcp.pop %v1073
    %v1181 = vmul.f32 1.0, %v1180
    %v1182 = vrcp.pop %v1074
    %v1183 = vmul.f32 1.0, %v1182
    %v1184 = vrcp.pop %v1075
    %v1185 = vmul.f32 1.0, %v1184
    %v1186 = vrcp.pop %v1076
    %v1187 = vmul.f32 1.0, %v1186
    %v1188 = vrcp.pop %v1077
    %v1189 = vmul.f32 1.0, %v1188
    %v1190 = vrcp.pop %v1078
    %v1191 = vmul.f32 1.0, %v1190
    %v1192 = vrcp.pop %v1079
    %v1193 = vmul.f32 1.0, %v1192
    %v1194 = vrcp.pop %v1080
    %v1195 = vmul.f32 1.0, %v1194
    %v1196 = vrcp.pop %v1081
    %v1197 = vmul.f32 1.0, %v1196
    %v1198 = vrcp.pop %v1082
    %v1199 = vmul.f32 1.0, %v1198
    %v1200 = vrcp.pop %v1083
    %v1201 = vmul.f32 1.0, %v1200
    %v1202 = vrcp.pop %v1084
    %v1203 = vmul.f32 1.0, %v1202
    %v1204 = vrcp.pop %v1085
    %v1205 = vmul.f32 1.0, %v1204
    %v1206 = vrcp.pop %v1086
    %v1207 = vmul.f32 1.0, %v1206
    %v1208 = vrcp.pop %v1087
    %v1209 = vmul.f32 1.0, %v1208
    %v1210 = vrcp.pop %v1088
    %v1211 = vmul.f32 1.0, %v1210
    %v1212 = vrcp.pop %v1089
    %v1213 = vmul.f32 1.0, %v1212
    %v1214 = vrcp.pop %v1090
    %v1215 = vmul.f32 1.0, %v1214
    %v1216 = vrcp.pop %v1091
    %v1217 = vmul.f32 1.0, %v1216
    %v1218 = vrcp.pop %v1092
    %v1219 = vmul.f32 1.0, %v1218
    %v1220 = vrcp.pop %v1093
    %v1221 = vmul.f32 1.0, %v1220
    %v1222 = vmul.f32 %v774, %v1095
    %v1223 = vmul.f32 %v775, %v1097
    %v1224 = vmul.f32 %v776, %v1099
    %v1225 = vmul.f32 %v777, %v1101
    %v1226 = vmul.f32 %v778, %v1103
    %v1227 = vmul.f32 %v779, %v1105
    %v1228 = vmul.f32 %v780, %v1107
    %v1229 = vmul.f32 %v781, %v1109
    %v1230 = vmul.f32 %v782, %v1111
    %v1231 = vmul.f32 %v783, %v1113
    %v1232 = vmul.f32 %v784, %v1115
    %v1233 = vmul.f32 %v785, %v1117
    %v1234 = vmul.f32 %v786, %v1119
    %v1235 = vmul.f32 %v787, %v1121
    %v1236 = vmul.f32 %v788, %v1123
    %v1237 = vmul.f32 %v789, %v1125
    %v1238 = vmul.f32 %v790, %v1127
    %v1239 = vmul.f32 %v791, %v1129
    %v1240 = vmul.f32 %v792, %v1131
    %v1241 = vmul.f32 %v793, %v1133
    %v1242 = vmul.f32 %v794, %v1135
    %v1243 = vmul.f32 %v795, %v1137
    %v1244 = vmul.f32 %v796, %v1139
    %v1245 = vmul.f32 %v797, %v1141
    %v1246 = vmul.f32 %v798, %v1143
    %v1247 = vmul.f32 %v799, %v1145
    %v1248 = vmul.f32 %v800, %v1147
    %v1249 = vmul.f32 %v801, %v1149
    %v1250 = vmul.f32 %v802, %v1151
    %v1251 = vmul.f32 %v803, %v1153
    %v1252 = vmul.f32 %v804, %v1155
    %v1253 = vmul.f32 %v805, %v1157
    %v1254 = vmul.f32 %v806, %v1159
    %v1255 = vmul.f32 %v807, %v1161
    %v1256 = vmul.f32 %v808, %v1163
    %v1257 = vmul.f32 %v809, %v1165
    %v1258 = vmul.f32 %v810, %v1167
    %v1259 = vmul.f32 %v811, %v1169
    %v1260 = vmul.f32 %v812, %v1171
    %v1261 = vmul.f32 %v813, %v1173
    %v1262 = vmul.f32 %v814, %v1175
    %v1263 = vmul.f32 %v815, %v1177
    %v1264 = vmul.f32 %v816, %v1179
    %v1265 = vmul.f32 %v817, %v1181
    %v1266 = vmul.f32 %v818, %v1183
    %v1267 = vmul.f32 %v819, %v1185
    %v1268 = vmul.f32 %v820, %v1187
    %v1269 = vmul.f32 %v821, %v1189
    %v1270 = vmul.f32 %v822, %v1191
    %v1271 = vmul.f32 %v823, %v1193
    %v1272 = vmul.f32 %v824, %v1195
    %v1273 = vmul.f32 %v825, %v1197
    %v1274 = vmul.f32 %v826, %v1199
    %v1275 = vmul.f32 %v827, %v1201
    %v1276 = vmul.f32 %v828, %v1203
    %v1277 = vmul.f32 %v829, %v1205
    %v1278 = vmul.f32 %v830, %v1207
    %v1279 = vmul.f32 %v831, %v1209
    %v1280 = vmul.f32 %v832, %v1211
    %v1281 = vmul.f32 %v833, %v1213
    %v1282 = vmul.f32 %v834, %v1215
    %v1283 = vmul.f32 %v835, %v1217
    %v1284 = vmul.f32 %v836, %v1219
    %v1285 = vmul.f32 %v837, %v1221
    %v1286 = vld [vmem:[%s7] sm:$0x1]
    %v1287 = vrot.slane %v1222, 7
    %v1288 = vrot.slane %v1223, 7
    %v1289 = vrot.slane %v1224, 7
    %v1290 = vrot.slane %v1225, 7
    %v1291 = vrot.slane %v1226, 7
    %v1292 = vrot.slane %v1227, 7
    %v1293 = vrot.slane %v1228, 7
    %v1294 = vrot.slane %v1229, 7
    %v1295 = vrot.slane %v1230, 7
    %v1296 = vrot.slane %v1231, 7
    %v1297 = vrot.slane %v1232, 7
    %v1298 = vrot.slane %v1233, 7
    %v1299 = vrot.slane %v1234, 7
    %v1300 = vrot.slane %v1235, 7
    %v1301 = vrot.slane %v1236, 7
    %v1302 = vrot.slane %v1237, 7
    %v1303 = vrot.slane %v1238, 7
    %v1304 = vrot.slane %v1239, 7
    %v1305 = vrot.slane %v1240, 7
    %v1306 = vrot.slane %v1241, 7
    %v1307 = vrot.slane %v1242, 7
    %v1308 = vrot.slane %v1243, 7
    %v1309 = vrot.slane %v1244, 7
    %v1310 = vrot.slane %v1245, 7
    %v1311 = vrot.slane %v1246, 7
    %v1312 = vrot.slane %v1247, 7
    %v1313 = vrot.slane %v1248, 7
    %v1314 = vrot.slane %v1249, 7
    %v1315 = vrot.slane %v1250, 7
    %v1316 = vrot.slane %v1251, 7
    %v1317 = vrot.slane %v1252, 7
    %v1318 = vrot.slane %v1253, 7
    %v1319 = vrot.slane %v1254, 7
    %v1320 = vrot.slane %v1255, 7
    %v1321 = vrot.slane %v1256, 7
    %v1322 = vrot.slane %v1257, 7
    %v1323 = vrot.slane %v1258, 7
    %v1324 = vrot.slane %v1259, 7
    %v1325 = vrot.slane %v1260, 7
    %v1326 = vrot.slane %v1261, 7
    %v1327 = vrot.slane %v1262, 7
    %v1328 = vrot.slane %v1263, 7
    %v1329 = vrot.slane %v1264, 7
    %v1330 = vrot.slane %v1265, 7
    %v1331 = vrot.slane %v1266, 7
    %v1332 = vrot.slane %v1267, 7
    %v1333 = vrot.slane %v1268, 7
    %v1334 = vrot.slane %v1269, 7
    %v1335 = vrot.slane %v1270, 7
    %v1336 = vrot.slane %v1271, 7
    %v1337 = vrot.slane %v1272, 7
    %v1338 = vrot.slane %v1273, 7
    %v1339 = vrot.slane %v1274, 7
    %v1340 = vrot.slane %v1275, 7
    %v1341 = vrot.slane %v1276, 7
    %v1342 = vrot.slane %v1277, 7
    %v1343 = vrot.slane %v1278, 7
    %v1344 = vrot.slane %v1279, 7
    %v1345 = vrot.slane %v1280, 7
    %v1346 = vrot.slane %v1281, 7
    %v1347 = vrot.slane %v1282, 7
    %v1348 = vrot.slane %v1283, 7
    %v1349 = vrot.slane %v1284, 7
    %v1350 = vrot.slane %v1285, 7
    %v1351 = vlaneseq
    %v1352 = vshrl.u32 %v1351, 7
    %vm1353 = vcmp.lt.s32.totalorder %v1352, 1
    %v1354 = vsel %vm1353, %v1349, %v1350
    %v1355 = vsel %vm1353, %v1348, %v1349
    %v1356 = vsel %vm1353, %v1347, %v1348
    %v1357 = vsel %vm1353, %v1346, %v1347
    %v1358 = vsel %vm1353, %v1345, %v1346
    %v1359 = vsel %vm1353, %v1344, %v1345
    %v1360 = vsel %vm1353, %v1343, %v1344
    %v1361 = vsel %vm1353, %v1342, %v1343
    %v1362 = vsel %vm1353, %v1341, %v1342
    %v1363 = vsel %vm1353, %v1340, %v1341
    %v1364 = vsel %vm1353, %v1339, %v1340
    %v1365 = vsel %vm1353, %v1338, %v1339
    %v1366 = vsel %vm1353, %v1337, %v1338
    %v1367 = vsel %vm1353, %v1336, %v1337
    %v1368 = vsel %vm1353, %v1335, %v1336
    %v1369 = vsel %vm1353, %v1334, %v1335
    %v1370 = vsel %vm1353, %v1333, %v1334
    %v1371 = vsel %vm1353, %v1332, %v1333
    %v1372 = vsel %vm1353, %v1331, %v1332
    %v1373 = vsel %vm1353, %v1330, %v1331
    %v1374 = vsel %vm1353, %v1329, %v1330
    %v1375 = vsel %vm1353, %v1328, %v1329
    %v1376 = vsel %vm1353, %v1327, %v1328
    %v1377 = vsel %vm1353, %v1326, %v1327
    %v1378 = vsel %vm1353, %v1325, %v1326
    %v1379 = vsel %vm1353, %v1324, %v1325
    %v1380 = vsel %vm1353, %v1323, %v1324
    %v1381 = vsel %vm1353, %v1322, %v1323
    %v1382 = vsel %vm1353, %v1321, %v1322
    %v1383 = vsel %vm1353, %v1320, %v1321
    %v1384 = vsel %vm1353, %v1319, %v1320
    %v1385 = vsel %vm1353, %v1318, %v1319
    %v1386 = vsel %vm1353, %v1317, %v1318
    %v1387 = vsel %vm1353, %v1316, %v1317
    %v1388 = vsel %vm1353, %v1315, %v1316
    %v1389 = vsel %vm1353, %v1314, %v1315
    %v1390 = vsel %vm1353, %v1313, %v1314
    %v1391 = vsel %vm1353, %v1312, %v1313
    %v1392 = vsel %vm1353, %v1311, %v1312
    %v1393 = vsel %vm1353, %v1310, %v1311
    %v1394 = vsel %vm1353, %v1309, %v1310
    %v1395 = vsel %vm1353, %v1308, %v1309
    %v1396 = vsel %vm1353, %v1307, %v1308
    %v1397 = vsel %vm1353, %v1306, %v1307
    %v1398 = vsel %vm1353, %v1305, %v1306
    %v1399 = vsel %vm1353, %v1304, %v1305
    %v1400 = vsel %vm1353, %v1303, %v1304
    %v1401 = vsel %vm1353, %v1302, %v1303
    %v1402 = vsel %vm1353, %v1301, %v1302
    %v1403 = vsel %vm1353, %v1300, %v1301
    %v1404 = vsel %vm1353, %v1299, %v1300
    %v1405 = vsel %vm1353, %v1298, %v1299
    %v1406 = vsel %vm1353, %v1297, %v1298
    %v1407 = vsel %vm1353, %v1296, %v1297
    %v1408 = vsel %vm1353, %v1295, %v1296
    %v1409 = vsel %vm1353, %v1294, %v1295
    %v1410 = vsel %vm1353, %v1293, %v1294
    %v1411 = vsel %vm1353, %v1292, %v1293
    %v1412 = vsel %vm1353, %v1291, %v1292
    %v1413 = vsel %vm1353, %v1290, %v1291
    %v1414 = vsel %vm1353, %v1289, %v1290
    %v1415 = vsel %vm1353, %v1288, %v1289
    %v1416 = vsel %vm1353, %v1287, %v1288
    %v1417 = vsel %vm1353, %v1350, %v1287
    %1482 = vrot.lane.b32.xlu0 %v1284, 64
    %v1483 = vpop.permute.xlu0 %1482
    %1484 = vrot.lane.b32.xlu0 %v1285, 64
    %v1485 = vpop.permute.xlu0 %1484
    %1486 = vrot.lane.b32.xlu0 %v1222, 64
    %v1487 = vpop.permute.xlu0 %1486
    %1488 = vrot.lane.b32.xlu0 %v1223, 64
    %v1489 = vpop.permute.xlu0 %1488
    %1490 = vrot.lane.b32.xlu0 %v1224, 64
    %v1491 = vpop.permute.xlu0 %1490
    %1492 = vrot.lane.b32.xlu0 %v1225, 64
    %v1493 = vpop.permute.xlu0 %1492
    %1494 = vrot.lane.b32.xlu0 %v1226, 64
    %v1495 = vpop.permute.xlu0 %1494
    %1496 = vrot.lane.b32.xlu0 %v1227, 64
    %v1497 = vpop.permute.xlu0 %1496
    %1498 = vrot.lane.b32.xlu0 %v1228, 64
    %v1499 = vpop.permute.xlu0 %1498
    %1500 = vrot.lane.b32.xlu0 %v1229, 64
    %v1501 = vpop.permute.xlu0 %1500
    %1502 = vrot.lane.b32.xlu0 %v1230, 64
    %v1503 = vpop.permute.xlu0 %1502
    %1504 = vrot.lane.b32.xlu0 %v1231, 64
    %v1505 = vpop.permute.xlu0 %1504
    %1506 = vrot.lane.b32.xlu0 %v1232, 64
    %v1507 = vpop.permute.xlu0 %1506
    %1508 = vrot.lane.b32.xlu0 %v1233, 64
    %v1509 = vpop.permute.xlu0 %1508
    %1510 = vrot.lane.b32.xlu0 %v1234, 64
    %v1511 = vpop.permute.xlu0 %1510
    %1512 = vrot.lane.b32.xlu0 %v1235, 64
    %v1513 = vpop.permute.xlu0 %1512
    %1514 = vrot.lane.b32.xlu0 %v1236, 64
    %v1515 = vpop.permute.xlu0 %1514
    %1516 = vrot.lane.b32.xlu0 %v1237, 64
    %v1517 = vpop.permute.xlu0 %1516
    %1518 = vrot.lane.b32.xlu0 %v1238, 64
    %v1519 = vpop.permute.xlu0 %1518
    %1520 = vrot.lane.b32.xlu0 %v1239, 64
    %v1521 = vpop.permute.xlu0 %1520
    %1522 = vrot.lane.b32.xlu0 %v1240, 64
    %v1523 = vpop.permute.xlu0 %1522
    %1524 = vrot.lane.b32.xlu0 %v1241, 64
    %v1525 = vpop.permute.xlu0 %1524
    %1526 = vrot.lane.b32.xlu0 %v1242, 64
    %v1527 = vpop.permute.xlu0 %1526
    %1528 = vrot.lane.b32.xlu0 %v1243, 64
    %v1529 = vpop.permute.xlu0 %1528
    %1530 = vrot.lane.b32.xlu0 %v1244, 64
    %v1531 = vpop.permute.xlu0 %1530
    %1532 = vrot.lane.b32.xlu0 %v1245, 64
    %v1533 = vpop.permute.xlu0 %1532
    %1534 = vrot.lane.b32.xlu0 %v1246, 64
    %v1535 = vpop.permute.xlu0 %1534
    %1536 = vrot.lane.b32.xlu0 %v1247, 64
    %v1537 = vpop.permute.xlu0 %1536
    %1538 = vrot.lane.b32.xlu0 %v1248, 64
    %v1539 = vpop.permute.xlu0 %1538
    %1540 = vrot.lane.b32.xlu0 %v1249, 64
    %v1541 = vpop.permute.xlu0 %1540
    %1542 = vrot.lane.b32.xlu0 %v1250, 64
    %v1543 = vpop.permute.xlu0 %1542
    %1544 = vrot.lane.b32.xlu0 %v1251, 64
    %v1545 = vpop.permute.xlu0 %1544
    %1546 = vrot.lane.b32.xlu0 %v1252, 64
    %v1547 = vpop.permute.xlu0 %1546
    %1548 = vrot.lane.b32.xlu0 %v1253, 64
    %v1549 = vpop.permute.xlu0 %1548
    %1550 = vrot.lane.b32.xlu0 %v1254, 64
    %v1551 = vpop.permute.xlu0 %1550
    %1552 = vrot.lane.b32.xlu0 %v1255, 64
    %v1553 = vpop.permute.xlu0 %1552
    %1554 = vrot.lane.b32.xlu0 %v1256, 64
    %v1555 = vpop.permute.xlu0 %1554
    %1556 = vrot.lane.b32.xlu0 %v1257, 64
    %v1557 = vpop.permute.xlu0 %1556
    %1558 = vrot.lane.b32.xlu0 %v1258, 64
    %v1559 = vpop.permute.xlu0 %1558
    %1560 = vrot.lane.b32.xlu0 %v1259, 64
    %v1561 = vpop.permute.xlu0 %1560
    %1562 = vrot.lane.b32.xlu0 %v1260, 64
    %v1563 = vpop.permute.xlu0 %1562
    %1564 = vrot.lane.b32.xlu0 %v1261, 64
    %v1565 = vpop.permute.xlu0 %1564
    %1566 = vrot.lane.b32.xlu0 %v1262, 64
    %v1567 = vpop.permute.xlu0 %1566
    %1568 = vrot.lane.b32.xlu0 %v1263, 64
    %v1569 = vpop.permute.xlu0 %1568
    %1570 = vrot.lane.b32.xlu0 %v1264, 64
    %v1571 = vpop.permute.xlu0 %1570
    %1572 = vrot.lane.b32.xlu0 %v1265, 64
    %v1573 = vpop.permute.xlu0 %1572
    %1574 = vrot.lane.b32.xlu0 %v1266, 64
    %v1575 = vpop.permute.xlu0 %1574
    %1576 = vrot.lane.b32.xlu0 %v1267, 64
    %v1577 = vpop.permute.xlu0 %1576
    %1578 = vrot.lane.b32.xlu0 %v1268, 64
    %v1579 = vpop.permute.xlu0 %1578
    %1580 = vrot.lane.b32.xlu0 %v1269, 64
    %v1581 = vpop.permute.xlu0 %1580
    %1582 = vrot.lane.b32.xlu0 %v1270, 64
    %v1583 = vpop.permute.xlu0 %1582
    %1584 = vrot.lane.b32.xlu0 %v1271, 64
    %v1585 = vpop.permute.xlu0 %1584
    %1586 = vrot.lane.b32.xlu0 %v1272, 64
    %v1587 = vpop.permute.xlu0 %1586
    %1588 = vrot.lane.b32.xlu0 %v1273, 64
    %v1589 = vpop.permute.xlu0 %1588
    %1590 = vrot.lane.b32.xlu0 %v1274, 64
    %v1591 = vpop.permute.xlu0 %1590
    %1592 = vrot.lane.b32.xlu0 %v1275, 64
    %v1593 = vpop.permute.xlu0 %1592
    %1594 = vrot.lane.b32.xlu0 %v1276, 64
    %v1595 = vpop.permute.xlu0 %1594
    %1596 = vrot.lane.b32.xlu0 %v1277, 64
    %v1597 = vpop.permute.xlu0 %1596
    %1598 = vrot.lane.b32.xlu0 %v1278, 64
    %v1599 = vpop.permute.xlu0 %1598
    %1600 = vrot.lane.b32.xlu0 %v1279, 64
    %v1601 = vpop.permute.xlu0 %1600
    %1602 = vrot.lane.b32.xlu0 %v1280, 64
    %v1603 = vpop.permute.xlu0 %1602
    %1604 = vrot.lane.b32.xlu0 %v1281, 64
    %v1605 = vpop.permute.xlu0 %1604
    %1606 = vrot.lane.b32.xlu0 %v1282, 64
    %v1607 = vpop.permute.xlu0 %1606
    %1608 = vrot.lane.b32.xlu0 %v1283, 64
    %v1609 = vpop.permute.xlu0 %1608
    %v1674 = vsel %vm183, %v1355, %v1483
    %v1675 = vsel %vm183, %v1354, %v1485
    %v1676 = vsel %vm183, %v1417, %v1487
    %v1677 = vsel %vm183, %v1416, %v1489
    %v1678 = vsel %vm183, %v1415, %v1491
    %v1679 = vsel %vm183, %v1414, %v1493
    %v1680 = vsel %vm183, %v1413, %v1495
    %v1681 = vsel %vm183, %v1412, %v1497
    %v1682 = vsel %vm183, %v1411, %v1499
    %v1683 = vsel %vm183, %v1410, %v1501
    %v1684 = vsel %vm183, %v1409, %v1503
    %v1685 = vsel %vm183, %v1408, %v1505
    %v1686 = vsel %vm183, %v1407, %v1507
    %v1687 = vsel %vm183, %v1406, %v1509
    %v1688 = vsel %vm183, %v1405, %v1511
    %v1689 = vsel %vm183, %v1404, %v1513
    %v1690 = vsel %vm183, %v1403, %v1515
    %v1691 = vsel %vm183, %v1402, %v1517
    %v1692 = vsel %vm183, %v1401, %v1519
    %v1693 = vsel %vm183, %v1400, %v1521
    %v1694 = vsel %vm183, %v1399, %v1523
    %v1695 = vsel %vm183, %v1398, %v1525
    %v1696 = vsel %vm183, %v1397, %v1527
    %v1697 = vsel %vm183, %v1396, %v1529
    %v1698 = vsel %vm183, %v1395, %v1531
    %v1699 = vsel %vm183, %v1394, %v1533
    %v1700 = vsel %vm183, %v1393, %v1535
    %v1701 = vsel %vm183, %v1392, %v1537
    %v1702 = vsel %vm183, %v1391, %v1539
    %v1703 = vsel %vm183, %v1390, %v1541
    %v1704 = vsel %vm183, %v1389, %v1543
    %v1705 = vsel %vm183, %v1388, %v1545
    %v1706 = vsel %vm183, %v1387, %v1547
    %v1707 = vsel %vm183, %v1386, %v1549
    %v1708 = vsel %vm183, %v1385, %v1551
    %v1709 = vsel %vm183, %v1384, %v1553
    %v1710 = vsel %vm183, %v1383, %v1555
    %v1711 = vsel %vm183, %v1382, %v1557
    %v1712 = vsel %vm183, %v1381, %v1559
    %v1713 = vsel %vm183, %v1380, %v1561
    %v1714 = vsel %vm183, %v1379, %v1563
    %v1715 = vsel %vm183, %v1378, %v1565
    %v1716 = vsel %vm183, %v1377, %v1567
    %v1717 = vsel %vm183, %v1376, %v1569
    %v1718 = vsel %vm183, %v1375, %v1571
    %v1719 = vsel %vm183, %v1374, %v1573
    %v1720 = vsel %vm183, %v1373, %v1575
    %v1721 = vsel %vm183, %v1372, %v1577
    %v1722 = vsel %vm183, %v1371, %v1579
    %v1723 = vsel %vm183, %v1370, %v1581
    %v1724 = vsel %vm183, %v1369, %v1583
    %v1725 = vsel %vm183, %v1368, %v1585
    %v1726 = vsel %vm183, %v1367, %v1587
    %v1727 = vsel %vm183, %v1366, %v1589
    %v1728 = vsel %vm183, %v1365, %v1591
    %v1729 = vsel %vm183, %v1364, %v1593
    %v1730 = vsel %vm183, %v1363, %v1595
    %v1731 = vsel %vm183, %v1362, %v1597
    %v1732 = vsel %vm183, %v1361, %v1599
    %v1733 = vsel %vm183, %v1360, %v1601
    %v1734 = vsel %vm183, %v1359, %v1603
    %v1735 = vsel %vm183, %v1358, %v1605
    %v1736 = vsel %vm183, %v1357, %v1607
    %v1737 = vsel %vm183, %v1356, %v1609
    %v1738 = vpack.c.bf16 %v1675, %v1674
    %v1739 = vpack.c.bf16 %v1677, %v1676
    %v1740 = vpack.c.bf16 %v1679, %v1678
    %v1741 = vpack.c.bf16 %v1681, %v1680
    %v1742 = vpack.c.bf16 %v1683, %v1682
    %v1743 = vpack.c.bf16 %v1685, %v1684
    %v1744 = vpack.c.bf16 %v1687, %v1686
    %v1745 = vpack.c.bf16 %v1689, %v1688
    %v1746 = vpack.c.bf16 %v1691, %v1690
    %v1747 = vpack.c.bf16 %v1693, %v1692
    %v1748 = vpack.c.bf16 %v1695, %v1694
    %v1749 = vpack.c.bf16 %v1697, %v1696
    %v1750 = vpack.c.bf16 %v1699, %v1698
    %v1751 = vpack.c.bf16 %v1701, %v1700
    %v1752 = vpack.c.bf16 %v1703, %v1702
    %v1753 = vpack.c.bf16 %v1705, %v1704
    %v1754 = vpack.c.bf16 %v1707, %v1706
    %v1755 = vpack.c.bf16 %v1709, %v1708
    %v1756 = vpack.c.bf16 %v1711, %v1710
    %v1757 = vpack.c.bf16 %v1713, %v1712
    %v1758 = vpack.c.bf16 %v1715, %v1714
    %v1759 = vpack.c.bf16 %v1717, %v1716
    %v1760 = vpack.c.bf16 %v1719, %v1718
    %v1761 = vpack.c.bf16 %v1721, %v1720
    %v1762 = vpack.c.bf16 %v1723, %v1722
    %v1763 = vpack.c.bf16 %v1725, %v1724
    %v1764 = vpack.c.bf16 %v1727, %v1726
    %v1765 = vpack.c.bf16 %v1729, %v1728
    %v1766 = vpack.c.bf16 %v1731, %v1730
    %v1767 = vpack.c.bf16 %v1733, %v1732
    %v1768 = vpack.c.bf16 %v1735, %v1734
    %v1769 = vpack.c.bf16 %v1737, %v1736
    %v1770 = vld [vmem:[#allocation6] sm:$0xf]
    %v1771 = vld [vmem:[#allocation6 + $0x4] sm:$0xf]
    %v1772 = vld [vmem:[#allocation6 + $0x8] sm:$0xf]
    %v1773 = vld [vmem:[#allocation6 + $0xc] sm:$0xf]
    %v1774 = vld [vmem:[#allocation6 + $0x10] sm:$0xf]
    %v1775 = vld [vmem:[#allocation6 + $0x14] sm:$0xf]
    %v1776 = vld [vmem:[#allocation6 + $0x18] sm:$0xf]
    %v1777 = vld [vmem:[#allocation6 + $0x1c] sm:$0xf]
    %v1778 = vld [vmem:[#allocation6 + $0x20] sm:$0xf]
    %v1779 = vld [vmem:[#allocation6 + $0x24] sm:$0xf]
    %v1780 = vld [vmem:[#allocation6 + $0x28] sm:$0xf]
    %v1781 = vld [vmem:[#allocation6 + $0x2c] sm:$0xf]
    %v1782 = vld [vmem:[#allocation6 + $0x30] sm:$0xf]
    %v1783 = vld [vmem:[#allocation6 + $0x34] sm:$0xf]
    %v1784 = vld [vmem:[#allocation6 + $0x38] sm:$0xf]
    %v1785 = vld [vmem:[#allocation6 + $0x3c] sm:$0xf]
    %v1786 = vld [vmem:[#allocation6 + $0x40] sm:$0xf]
    %v1787 = vld [vmem:[#allocation6 + $0x44] sm:$0xf]
    %v1788 = vld [vmem:[#allocation6 + $0x48] sm:$0xf]
    %v1789 = vld [vmem:[#allocation6 + $0x4c] sm:$0xf]
    %v1790 = vld [vmem:[#allocation6 + $0x50] sm:$0xf]
    %v1791 = vld [vmem:[#allocation6 + $0x54] sm:$0xf]
    %v1792 = vld [vmem:[#allocation6 + $0x58] sm:$0xf]
    %v1793 = vld [vmem:[#allocation6 + $0x5c] sm:$0xf]
    %v1794 = vld [vmem:[#allocation6 + $0x60] sm:$0xf]
    %v1795 = vld [vmem:[#allocation6 + $0x64] sm:$0xf]
    %v1796 = vld [vmem:[#allocation6 + $0x68] sm:$0xf]
    %v1797 = vld [vmem:[#allocation6 + $0x6c] sm:$0xf]
    %v1798 = vld [vmem:[#allocation6 + $0x70] sm:$0xf]
    %v1799 = vld [vmem:[#allocation6 + $0x74] sm:$0xf]
    %v1800 = vld [vmem:[#allocation6 + $0x78] sm:$0xf]
    %v1801 = vld [vmem:[#allocation6 + $0x7c] sm:$0xf]
    %v1802 = vld [vmem:[#allocation6 + $0x80] sm:$0xf]
    %v1803 = vld [vmem:[#allocation6 + $0x84] sm:$0xf]
    %v1804 = vld [vmem:[#allocation6 + $0x88] sm:$0xf]
    %v1805 = vld [vmem:[#allocation6 + $0x8c] sm:$0xf]
    %v1806 = vld [vmem:[#allocation6 + $0x90] sm:$0xf]
    %v1807 = vld [vmem:[#allocation6 + $0x94] sm:$0xf]
    %v1808 = vld [vmem:[#allocation6 + $0x98] sm:$0xf]
    %v1809 = vld [vmem:[#allocation6 + $0x9c] sm:$0xf]
    %v1810 = vld [vmem:[#allocation6 + $0xa0] sm:$0xf]
    %v1811 = vld [vmem:[#allocation6 + $0xa4] sm:$0xf]
    %v1812 = vld [vmem:[#allocation6 + $0xa8] sm:$0xf]
    %v1813 = vld [vmem:[#allocation6 + $0xac] sm:$0xf]
    %v1814 = vld [vmem:[#allocation6 + $0xb0] sm:$0xf]
    %v1815 = vld [vmem:[#allocation6 + $0xb4] sm:$0xf]
    %v1816 = vld [vmem:[#allocation6 + $0xb8] sm:$0xf]
    %v1817 = vld [vmem:[#allocation6 + $0xbc] sm:$0xf]
    %v1818 = vld [vmem:[#allocation6 + $0xc0] sm:$0xf]
    %v1819 = vld [vmem:[#allocation6 + $0xc4] sm:$0xf]
    %v1820 = vld [vmem:[#allocation6 + $0xc8] sm:$0xf]
    %v1821 = vld [vmem:[#allocation6 + $0xcc] sm:$0xf]
    %v1822 = vld [vmem:[#allocation6 + $0xd0] sm:$0xf]
    %v1823 = vld [vmem:[#allocation6 + $0xd4] sm:$0xf]
    %v1824 = vld [vmem:[#allocation6 + $0xd8] sm:$0xf]
    %v1825 = vld [vmem:[#allocation6 + $0xdc] sm:$0xf]
    %v1826 = vld [vmem:[#allocation6 + $0xe0] sm:$0xf]
    %v1827 = vld [vmem:[#allocation6 + $0xe4] sm:$0xf]
    %v1828 = vld [vmem:[#allocation6 + $0xe8] sm:$0xf]
    %v1829 = vld [vmem:[#allocation6 + $0xec] sm:$0xf]
    %v1830 = vld [vmem:[#allocation6 + $0xf0] sm:$0xf]
    %v1831 = vld [vmem:[#allocation6 + $0xf4] sm:$0xf]
    %v1832 = vld [vmem:[#allocation6 + $0xf8] sm:$0xf]
    %v1833 = vld [vmem:[#allocation6 + $0xfc] sm:$0xf]
    %v1898 = vunpack.c.l.b16 %v1770
    %v1899 = vunpack.c.l.b16 %v1771
    %v1900 = vunpack.c.l.b16 %v1772
    %v1901 = vunpack.c.l.b16 %v1773
    %v1902 = vunpack.c.l.b16 %v1774
    %v1903 = vunpack.c.l.b16 %v1775
    %v1904 = vunpack.c.l.b16 %v1776
    %v1905 = vunpack.c.l.b16 %v1777
    %v1906 = vunpack.c.l.b16 %v1778
    %v1907 = vunpack.c.l.b16 %v1779
    %v1908 = vunpack.c.l.b16 %v1780
    %v1909 = vunpack.c.l.b16 %v1781
    %v1910 = vunpack.c.l.b16 %v1782
    %v1911 = vunpack.c.l.b16 %v1783
    %v1912 = vunpack.c.l.b16 %v1784
    %v1913 = vunpack.c.l.b16 %v1785
    %v1914 = vunpack.c.l.b16 %v1786
    %v1915 = vunpack.c.l.b16 %v1787
    %v1916 = vunpack.c.l.b16 %v1788
    %v1917 = vunpack.c.l.b16 %v1789
    %v1918 = vunpack.c.l.b16 %v1790
    %v1919 = vunpack.c.l.b16 %v1791
    %v1920 = vunpack.c.l.b16 %v1792
    %v1921 = vunpack.c.l.b16 %v1793
    %v1922 = vunpack.c.l.b16 %v1794
    %v1923 = vunpack.c.l.b16 %v1795
    %v1924 = vunpack.c.l.b16 %v1796
    %v1925 = vunpack.c.l.b16 %v1797
    %v1926 = vunpack.c.l.b16 %v1798
    %v1927 = vunpack.c.l.b16 %v1799
    %v1928 = vunpack.c.l.b16 %v1800
    %v1929 = vunpack.c.l.b16 %v1801
    %v1930 = vunpack.c.l.b16 %v1802
    %v1931 = vunpack.c.l.b16 %v1803
    %v1932 = vunpack.c.l.b16 %v1804
    %v1933 = vunpack.c.l.b16 %v1805
    %v1934 = vunpack.c.l.b16 %v1806
    %v1935 = vunpack.c.l.b16 %v1807
    %v1936 = vunpack.c.l.b16 %v1808
    %v1937 = vunpack.c.l.b16 %v1809
    %v1938 = vunpack.c.l.b16 %v1810
    %v1939 = vunpack.c.l.b16 %v1811
    %v1940 = vunpack.c.l.b16 %v1812
    %v1941 = vunpack.c.l.b16 %v1813
    %v1942 = vunpack.c.l.b16 %v1814
    %v1943 = vunpack.c.l.b16 %v1815
    %v1944 = vunpack.c.l.b16 %v1816
    %v1945 = vunpack.c.l.b16 %v1817
    %v1946 = vunpack.c.l.b16 %v1818
    %v1947 = vunpack.c.l.b16 %v1819
    %v1948 = vunpack.c.l.b16 %v1820
    %v1949 = vunpack.c.l.b16 %v1821
    %v1950 = vunpack.c.l.b16 %v1822
    %v1951 = vunpack.c.l.b16 %v1823
    %v1952 = vunpack.c.l.b16 %v1824
    %v1953 = vunpack.c.l.b16 %v1825
    %v1954 = vunpack.c.l.b16 %v1826
    %v1955 = vunpack.c.l.b16 %v1827
    %v1956 = vunpack.c.l.b16 %v1828
    %v1957 = vunpack.c.l.b16 %v1829
    %v1958 = vunpack.c.l.b16 %v1830
    %v1959 = vunpack.c.l.b16 %v1831
    %v1960 = vunpack.c.l.b16 %v1832
    %v1961 = vunpack.c.l.b16 %v1833
    %v1962 = vpack.c.b16 %v1899, %v1898
    %v1963 = vpack.c.b16 %v1901, %v1900
    %v1964 = vpack.c.b16 %v1903, %v1902
    %v1965 = vpack.c.b16 %v1905, %v1904
    %v1966 = vpack.c.b16 %v1907, %v1906
    %v1967 = vpack.c.b16 %v1909, %v1908
    %v1968 = vpack.c.b16 %v1911, %v1910
    %v1969 = vpack.c.b16 %v1913, %v1912
    %v1970 = vpack.c.b16 %v1915, %v1914
    %v1971 = vpack.c.b16 %v1917, %v1916
    %v1972 = vpack.c.b16 %v1919, %v1918
    %v1973 = vpack.c.b16 %v1921, %v1920
    %v1974 = vpack.c.b16 %v1923, %v1922
    %v1975 = vpack.c.b16 %v1925, %v1924
    %v1976 = vpack.c.b16 %v1927, %v1926
    %v1977 = vpack.c.b16 %v1929, %v1928
    %v1978 = vpack.c.b16 %v1931, %v1930
    %v1979 = vpack.c.b16 %v1933, %v1932
    %v1980 = vpack.c.b16 %v1935, %v1934
    %v1981 = vpack.c.b16 %v1937, %v1936
    %v1982 = vpack.c.b16 %v1939, %v1938
    %v1983 = vpack.c.b16 %v1941, %v1940
    %v1984 = vpack.c.b16 %v1943, %v1942
    %v1985 = vpack.c.b16 %v1945, %v1944
    %v1986 = vpack.c.b16 %v1947, %v1946
    %v1987 = vpack.c.b16 %v1949, %v1948
    %v1988 = vpack.c.b16 %v1951, %v1950
    %v1989 = vpack.c.b16 %v1953, %v1952
    %v1990 = vpack.c.b16 %v1955, %v1954
    %v1991 = vpack.c.b16 %v1957, %v1956
    %v1992 = vpack.c.b16 %v1959, %v1958
    %v1993 = vpack.c.b16 %v1961, %v1960
    %v2026 = vmul.bf16 %v1738, %v1962
    %v2027 = vmul.bf16 %v1739, %v1963
    %v2028 = vmul.bf16 %v1740, %v1964
    %v2029 = vmul.bf16 %v1741, %v1965
    %v2030 = vmul.bf16 %v1742, %v1966
    %v2031 = vmul.bf16 %v1743, %v1967
    %v2032 = vmul.bf16 %v1744, %v1968
    %v2033 = vmul.bf16 %v1745, %v1969
    %v2034 = vmul.bf16 %v1746, %v1970
    %v2035 = vmul.bf16 %v1747, %v1971
    %v2036 = vmul.bf16 %v1748, %v1972
    %v2037 = vmul.bf16 %v1749, %v1973
    %v2038 = vmul.bf16 %v1750, %v1974
    %v2039 = vmul.bf16 %v1751, %v1975
    %v2040 = vmul.bf16 %v1752, %v1976
    %v2041 = vmul.bf16 %v1753, %v1977
    %v2042 = vmul.bf16 %v1754, %v1978
    %v2043 = vmul.bf16 %v1755, %v1979
    %v2044 = vmul.bf16 %v1756, %v1980
    %v2045 = vmul.bf16 %v1757, %v1981
    %v2046 = vmul.bf16 %v1758, %v1982
    %v2047 = vmul.bf16 %v1759, %v1983
    %v2048 = vmul.bf16 %v1760, %v1984
    %v2049 = vmul.bf16 %v1761, %v1985
    %v2050 = vmul.bf16 %v1762, %v1986
    %v2051 = vmul.bf16 %v1763, %v1987
    %v2052 = vmul.bf16 %v1764, %v1988
    %v2053 = vmul.bf16 %v1765, %v1989
    %v2054 = vmul.bf16 %v1766, %v1990
    %v2055 = vmul.bf16 %v1767, %v1991
    %v2056 = vmul.bf16 %v1768, %v1992
    %v2057 = vmul.bf16 %v1769, %v1993
    %2058 = vst [vmem:[#allocation2] sm:$0xff] %v2026
    %2059 = vst [vmem:[#allocation2 + $0x28] sm:$0xff] %v2027
    %2060 = vst [vmem:[#allocation2 + $0x50] sm:$0xff] %v2028
    %2061 = vst [vmem:[#allocation2 + $0x78] sm:$0xff] %v2029
    %2062 = vst [vmem:[#allocation2 + $0xa0] sm:$0xff] %v2030
    %2063 = vst [vmem:[#allocation2 + $0xc8] sm:$0xff] %v2031
    %2064 = vst [vmem:[#allocation2 + $0xf0] sm:$0xff] %v2032
    %2065 = vst [vmem:[#allocation2 + $0x118] sm:$0xff] %v2033
    %2066 = vst [vmem:[#allocation2 + $0x140] sm:$0xff] %v2034
    %2067 = vst [vmem:[#allocation2 + $0x168] sm:$0xff] %v2035
    %2068 = vst [vmem:[#allocation2 + $0x190] sm:$0xff] %v2036
    %2069 = vst [vmem:[#allocation2 + $0x1b8] sm:$0xff] %v2037
    %2070 = vst [vmem:[#allocation2 + $0x1e0] sm:$0xff] %v2038
    %2071 = vst [vmem:[#allocation2 + $0x208] sm:$0xff] %v2039
    %2072 = vst [vmem:[#allocation2 + $0x230] sm:$0xff] %v2040
    %2073 = vst [vmem:[#allocation2 + $0x258] sm:$0xff] %v2041
    %2074 = vst [vmem:[#allocation2 + $0x280] sm:$0xff] %v2042
    %2075 = vst [vmem:[#allocation2 + $0x2a8] sm:$0xff] %v2043
    %2076 = vst [vmem:[#allocation2 + $0x2d0] sm:$0xff] %v2044
    %2077 = vst [vmem:[#allocation2 + $0x2f8] sm:$0xff] %v2045
    %2078 = vst [vmem:[#allocation2 + $0x320] sm:$0xff] %v2046
    %2079 = vst [vmem:[#allocation2 + $0x348] sm:$0xff] %v2047
    %2080 = vst [vmem:[#allocation2 + $0x370] sm:$0xff] %v2048
    %2081 = vst [vmem:[#allocation2 + $0x398] sm:$0xff] %v2049
    %2082 = vst [vmem:[#allocation2 + $0x3c0] sm:$0xff] %v2050
    %2083 = vst [vmem:[#allocation2 + $0x3e8] sm:$0xff] %v2051
    %2084 = vst [vmem:[#allocation2 + $0x410] sm:$0xff] %v2052
    %2085 = vst [vmem:[#allocation2 + $0x438] sm:$0xff] %v2053
    %2086 = vst [vmem:[#allocation2 + $0x460] sm:$0xff] %v2054
    %2087 = vst [vmem:[#allocation2 + $0x488] sm:$0xff] %v2055
    %2088 = vst [vmem:[#allocation2 + $0x4b0] sm:$0xff] %v2056
    %2089 = vst [vmem:[#allocation2 + $0x4d8] sm:$0xff] %v2057
    %v2090 = vrot.slane %v1222, 1
    %v2091 = vrot.slane %v1223, 1
    %v2092 = vrot.slane %v1224, 1
    %v2093 = vrot.slane %v1225, 1
    %v2094 = vrot.slane %v1226, 1
    %v2095 = vrot.slane %v1227, 1
    %v2096 = vrot.slane %v1228, 1
    %v2097 = vrot.slane %v1229, 1
    %v2098 = vrot.slane %v1230, 1
    %v2099 = vrot.slane %v1231, 1
    %v2100 = vrot.slane %v1232, 1
    %v2101 = vrot.slane %v1233, 1
    %v2102 = vrot.slane %v1234, 1
    %v2103 = vrot.slane %v1235, 1
    %v2104 = vrot.slane %v1236, 1
    %v2105 = vrot.slane %v1237, 1
    %v2106 = vrot.slane %v1238, 1
    %v2107 = vrot.slane %v1239, 1
    %v2108 = vrot.slane %v1240, 1
    %v2109 = vrot.slane %v1241, 1
    %v2110 = vrot.slane %v1242, 1
    %v2111 = vrot.slane %v1243, 1
    %v2112 = vrot.slane %v1244, 1
    %v2113 = vrot.slane %v1245, 1
    %v2114 = vrot.slane %v1246, 1
    %v2115 = vrot.slane %v1247, 1
    %v2116 = vrot.slane %v1248, 1
    %v2117 = vrot.slane %v1249, 1
    %v2118 = vrot.slane %v1250, 1
    %v2119 = vrot.slane %v1251, 1
    %v2120 = vrot.slane %v1252, 1
    %v2121 = vrot.slane %v1253, 1
    %v2122 = vrot.slane %v1254, 1
    %v2123 = vrot.slane %v1255, 1
    %v2124 = vrot.slane %v1256, 1
    %v2125 = vrot.slane %v1257, 1
    %v2126 = vrot.slane %v1258, 1
    %v2127 = vrot.slane %v1259, 1
    %v2128 = vrot.slane %v1260, 1
    %v2129 = vrot.slane %v1261, 1
    %v2130 = vrot.slane %v1262, 1
    %v2131 = vrot.slane %v1263, 1
    %v2132 = vrot.slane %v1264, 1
    %v2133 = vrot.slane %v1265, 1
    %v2134 = vrot.slane %v1266, 1
    %v2135 = vrot.slane %v1267, 1
    %v2136 = vrot.slane %v1268, 1
    %v2137 = vrot.slane %v1269, 1
    %v2138 = vrot.slane %v1270, 1
    %v2139 = vrot.slane %v1271, 1
    %v2140 = vrot.slane %v1272, 1
    %v2141 = vrot.slane %v1273, 1
    %v2142 = vrot.slane %v1274, 1
    %v2143 = vrot.slane %v1275, 1
    %v2144 = vrot.slane %v1276, 1
    %v2145 = vrot.slane %v1277, 1
    %v2146 = vrot.slane %v1278, 1
    %v2147 = vrot.slane %v1279, 1
    %v2148 = vrot.slane %v1280, 1
    %v2149 = vrot.slane %v1281, 1
    %v2150 = vrot.slane %v1282, 1
    %v2151 = vrot.slane %v1283, 1
    %v2152 = vrot.slane %v1284, 1
    %v2153 = vrot.slane %v1285, 1
    %vm2154 = vcmp.lt.s32.totalorder %v1352, 7
    %v2155 = vsel %vm2154, %v2152, %v2153
    %v2156 = vsel %vm2154, %v2151, %v2152
    %v2157 = vsel %vm2154, %v2150, %v2151
    %v2158 = vsel %vm2154, %v2149, %v2150
    %v2159 = vsel %vm2154, %v2148, %v2149
    %v2160 = vsel %vm2154, %v2147, %v2148
    %v2161 = vsel %vm2154, %v2146, %v2147
    %v2162 = vsel %vm2154, %v2145, %v2146
    %v2163 = vsel %vm2154, %v2144, %v2145
    %v2164 = vsel %vm2154, %v2143, %v2144
    %v2165 = vsel %vm2154, %v2142, %v2143
    %v2166 = vsel %vm2154, %v2141, %v2142
    %v2167 = vsel %vm2154, %v2140, %v2141
    %v2168 = vsel %vm2154, %v2139, %v2140
    %v2169 = vsel %vm2154, %v2138, %v2139
    %v2170 = vsel %vm2154, %v2137, %v2138
    %v2171 = vsel %vm2154, %v2136, %v2137
    %v2172 = vsel %vm2154, %v2135, %v2136
    %v2173 = vsel %vm2154, %v2134, %v2135
    %v2174 = vsel %vm2154, %v2133, %v2134
    %v2175 = vsel %vm2154, %v2132, %v2133
    %v2176 = vsel %vm2154, %v2131, %v2132
    %v2177 = vsel %vm2154, %v2130, %v2131
    %v2178 = vsel %vm2154, %v2129, %v2130
    %v2179 = vsel %vm2154, %v2128, %v2129
    %v2180 = vsel %vm2154, %v2127, %v2128
    %v2181 = vsel %vm2154, %v2126, %v2127
    %v2182 = vsel %vm2154, %v2125, %v2126
    %v2183 = vsel %vm2154, %v2124, %v2125
    %v2184 = vsel %vm2154, %v2123, %v2124
    %v2185 = vsel %vm2154, %v2122, %v2123
    %v2186 = vsel %vm2154, %v2121, %v2122
    %v2187 = vsel %vm2154, %v2120, %v2121
    %v2188 = vsel %vm2154, %v2119, %v2120
    %v2189 = vsel %vm2154, %v2118, %v2119
    %v2190 = vsel %vm2154, %v2117, %v2118
    %v2191 = vsel %vm2154, %v2116, %v2117
    %v2192 = vsel %vm2154, %v2115, %v2116
    %v2193 = vsel %vm2154, %v2114, %v2115
    %v2194 = vsel %vm2154, %v2113, %v2114
    %v2195 = vsel %vm2154, %v2112, %v2113
    %v2196 = vsel %vm2154, %v2111, %v2112
    %v2197 = vsel %vm2154, %v2110, %v2111
    %v2198 = vsel %vm2154, %v2109, %v2110
    %v2199 = vsel %vm2154, %v2108, %v2109
    %v2200 = vsel %vm2154, %v2107, %v2108
    %v2201 = vsel %vm2154, %v2106, %v2107
    %v2202 = vsel %vm2154, %v2105, %v2106
    %v2203 = vsel %vm2154, %v2104, %v2105
    %v2204 = vsel %vm2154, %v2103, %v2104
    %v2205 = vsel %vm2154, %v2102, %v2103
    %v2206 = vsel %vm2154, %v2101, %v2102
    %v2207 = vsel %vm2154, %v2100, %v2101
    %v2208 = vsel %vm2154, %v2099, %v2100
    %v2209 = vsel %vm2154, %v2098, %v2099
    %v2210 = vsel %vm2154, %v2097, %v2098
    %v2211 = vsel %vm2154, %v2096, %v2097
    %v2212 = vsel %vm2154, %v2095, %v2096
    %v2213 = vsel %vm2154, %v2094, %v2095
    %v2214 = vsel %vm2154, %v2093, %v2094
    %v2215 = vsel %vm2154, %v2092, %v2093
    %v2216 = vsel %vm2154, %v2091, %v2092
    %v2217 = vsel %vm2154, %v2090, %v2091
    %v2218 = vsel %vm2154, %v2153, %v2090
    %2283 = vrot.lane.b32.xlu0 %v1417, 64
    %v2284 = vpop.permute.xlu0 %2283
    %2285 = vrot.lane.b32.xlu0 %v1416, 64
    %v2286 = vpop.permute.xlu0 %2285
    %2287 = vrot.lane.b32.xlu0 %v1415, 64
    %v2288 = vpop.permute.xlu0 %2287
    %2289 = vrot.lane.b32.xlu0 %v1414, 64
    %v2290 = vpop.permute.xlu0 %2289
    %2291 = vrot.lane.b32.xlu0 %v1413, 64
    %v2292 = vpop.permute.xlu0 %2291
    %2293 = vrot.lane.b32.xlu0 %v1412, 64
    %v2294 = vpop.permute.xlu0 %2293
    %2295 = vrot.lane.b32.xlu0 %v1411, 64
    %v2296 = vpop.permute.xlu0 %2295
    %2297 = vrot.lane.b32.xlu0 %v1410, 64
    %v2298 = vpop.permute.xlu0 %2297
    %2299 = vrot.lane.b32.xlu0 %v1409, 64
    %v2300 = vpop.permute.xlu0 %2299
    %2301 = vrot.lane.b32.xlu0 %v1408, 64
    %v2302 = vpop.permute.xlu0 %2301
    %2303 = vrot.lane.b32.xlu0 %v1407, 64
    %v2304 = vpop.permute.xlu0 %2303
    %2305 = vrot.lane.b32.xlu0 %v1406, 64
    %v2306 = vpop.permute.xlu0 %2305
    %2307 = vrot.lane.b32.xlu0 %v1405, 64
    %v2308 = vpop.permute.xlu0 %2307
    %2309 = vrot.lane.b32.xlu0 %v1404, 64
    %v2310 = vpop.permute.xlu0 %2309
    %2311 = vrot.lane.b32.xlu0 %v1403, 64
    %v2312 = vpop.permute.xlu0 %2311
    %2313 = vrot.lane.b32.xlu0 %v1402, 64
    %v2314 = vpop.permute.xlu0 %2313
    %2315 = vrot.lane.b32.xlu0 %v1401, 64
    %v2316 = vpop.permute.xlu0 %2315
    %2317 = vrot.lane.b32.xlu0 %v1400, 64
    %v2318 = vpop.permute.xlu0 %2317
    %2319 = vrot.lane.b32.xlu0 %v1399, 64
    %v2320 = vpop.permute.xlu0 %2319
    %2321 = vrot.lane.b32.xlu0 %v1398, 64
    %v2322 = vpop.permute.xlu0 %2321
    %2323 = vrot.lane.b32.xlu0 %v1397, 64
    %v2324 = vpop.permute.xlu0 %2323
    %2325 = vrot.lane.b32.xlu0 %v1396, 64
    %v2326 = vpop.permute.xlu0 %2325
    %2327 = vrot.lane.b32.xlu0 %v1395, 64
    %v2328 = vpop.permute.xlu0 %2327
    %2329 = vrot.lane.b32.xlu0 %v1394, 64
    %v2330 = vpop.permute.xlu0 %2329
    %2331 = vrot.lane.b32.xlu0 %v1393, 64
    %v2332 = vpop.permute.xlu0 %2331
    %2333 = vrot.lane.b32.xlu0 %v1392, 64
    %v2334 = vpop.permute.xlu0 %2333
    %2335 = vrot.lane.b32.xlu0 %v1391, 64
    %v2336 = vpop.permute.xlu0 %2335
    %2337 = vrot.lane.b32.xlu0 %v1390, 64
    %v2338 = vpop.permute.xlu0 %2337
    %2339 = vrot.lane.b32.xlu0 %v1389, 64
    %v2340 = vpop.permute.xlu0 %2339
    %2341 = vrot.lane.b32.xlu0 %v1388, 64
    %v2342 = vpop.permute.xlu0 %2341
    %2343 = vrot.lane.b32.xlu0 %v1387, 64
    %v2344 = vpop.permute.xlu0 %2343
    %2345 = vrot.lane.b32.xlu0 %v1386, 64
    %v2346 = vpop.permute.xlu0 %2345
    %2347 = vrot.lane.b32.xlu0 %v1385, 64
    %v2348 = vpop.permute.xlu0 %2347
    %2349 = vrot.lane.b32.xlu0 %v1384, 64
    %v2350 = vpop.permute.xlu0 %2349
    %2351 = vrot.lane.b32.xlu0 %v1383, 64
    %v2352 = vpop.permute.xlu0 %2351
    %2353 = vrot.lane.b32.xlu0 %v1382, 64
    %v2354 = vpop.permute.xlu0 %2353
    %2355 = vrot.lane.b32.xlu0 %v1381, 64
    %v2356 = vpop.permute.xlu0 %2355
    %2357 = vrot.lane.b32.xlu0 %v1380, 64
    %v2358 = vpop.permute.xlu0 %2357
    %2359 = vrot.lane.b32.xlu0 %v1379, 64
    %v2360 = vpop.permute.xlu0 %2359
    %2361 = vrot.lane.b32.xlu0 %v1378, 64
    %v2362 = vpop.permute.xlu0 %2361
    %2363 = vrot.lane.b32.xlu0 %v1377, 64
    %v2364 = vpop.permute.xlu0 %2363
    %2365 = vrot.lane.b32.xlu0 %v1376, 64
    %v2366 = vpop.permute.xlu0 %2365
    %2367 = vrot.lane.b32.xlu0 %v1375, 64
    %v2368 = vpop.permute.xlu0 %2367
    %2369 = vrot.lane.b32.xlu0 %v1374, 64
    %v2370 = vpop.permute.xlu0 %2369
    %2371 = vrot.lane.b32.xlu0 %v1373, 64
    %v2372 = vpop.permute.xlu0 %2371
    %2373 = vrot.lane.b32.xlu0 %v1372, 64
    %v2374 = vpop.permute.xlu0 %2373
    %2375 = vrot.lane.b32.xlu0 %v1371, 64
    %v2376 = vpop.permute.xlu0 %2375
    %2377 = vrot.lane.b32.xlu0 %v1370, 64
    %v2378 = vpop.permute.xlu0 %2377
    %2379 = vrot.lane.b32.xlu0 %v1369, 64
    %v2380 = vpop.permute.xlu0 %2379
    %2381 = vrot.lane.b32.xlu0 %v1368, 64
    %v2382 = vpop.permute.xlu0 %2381
    %2383 = vrot.lane.b32.xlu0 %v1367, 64
    %v2384 = vpop.permute.xlu0 %2383
    %2385 = vrot.lane.b32.xlu0 %v1366, 64
    %v2386 = vpop.permute.xlu0 %2385
    %2387 = vrot.lane.b32.xlu0 %v1365, 64
    %v2388 = vpop.permute.xlu0 %2387
    %2389 = vrot.lane.b32.xlu0 %v1364, 64
    %v2390 = vpop.permute.xlu0 %2389
    %2391 = vrot.lane.b32.xlu0 %v1363, 64
    %v2392 = vpop.permute.xlu0 %2391
    %2393 = vrot.lane.b32.xlu0 %v1362, 64
    %v2394 = vpop.permute.xlu0 %2393
    %2395 = vrot.lane.b32.xlu0 %v1361, 64
    %v2396 = vpop.permute.xlu0 %2395
    %2397 = vrot.lane.b32.xlu0 %v1360, 64
    %v2398 = vpop.permute.xlu0 %2397
    %2399 = vrot.lane.b32.xlu0 %v1359, 64
    %v2400 = vpop.permute.xlu0 %2399
    %2401 = vrot.lane.b32.xlu0 %v1358, 64
    %v2402 = vpop.permute.xlu0 %2401
    %2403 = vrot.lane.b32.xlu0 %v1357, 64
    %v2404 = vpop.permute.xlu0 %2403
    %2405 = vrot.lane.b32.xlu0 %v1356, 64
    %v2406 = vpop.permute.xlu0 %2405
    %2407 = vrot.lane.b32.xlu0 %v1355, 64
    %v2408 = vpop.permute.xlu0 %2407
    %2409 = vrot.lane.b32.xlu0 %v1354, 64
    %v2410 = vpop.permute.xlu0 %2409
    %v2475 = vsel %vm183, %v2155, %v2284
    %v2476 = vsel %vm183, %v2218, %v2286
    %v2477 = vsel %vm183, %v2217, %v2288
    %v2478 = vsel %vm183, %v2216, %v2290
    %v2479 = vsel %vm183, %v2215, %v2292
    %v2480 = vsel %vm183, %v2214, %v2294
    %v2481 = vsel %vm183, %v2213, %v2296
    %v2482 = vsel %vm183, %v2212, %v2298
    %v2483 = vsel %vm183, %v2211, %v2300
    %v2484 = vsel %vm183, %v2210, %v2302
    %v2485 = vsel %vm183, %v2209, %v2304
    %v2486 = vsel %vm183, %v2208, %v2306
    %v2487 = vsel %vm183, %v2207, %v2308
    %v2488 = vsel %vm183, %v2206, %v2310
    %v2489 = vsel %vm183, %v2205, %v2312
    %v2490 = vsel %vm183, %v2204, %v2314
    %v2491 = vsel %vm183, %v2203, %v2316
    %v2492 = vsel %vm183, %v2202, %v2318
    %v2493 = vsel %vm183, %v2201, %v2320
    %v2494 = vsel %vm183, %v2200, %v2322
    %v2495 = vsel %vm183, %v2199, %v2324
    %v2496 = vsel %vm183, %v2198, %v2326
    %v2497 = vsel %vm183, %v2197, %v2328
    %v2498 = vsel %vm183, %v2196, %v2330
    %v2499 = vsel %vm183, %v2195, %v2332
    %v2500 = vsel %vm183, %v2194, %v2334
    %v2501 = vsel %vm183, %v2193, %v2336
    %v2502 = vsel %vm183, %v2192, %v2338
    %v2503 = vsel %vm183, %v2191, %v2340
    %v2504 = vsel %vm183, %v2190, %v2342
    %v2505 = vsel %vm183, %v2189, %v2344
    %v2506 = vsel %vm183, %v2188, %v2346
    %v2507 = vsel %vm183, %v2187, %v2348
    %v2508 = vsel %vm183, %v2186, %v2350
    %v2509 = vsel %vm183, %v2185, %v2352
    %v2510 = vsel %vm183, %v2184, %v2354
    %v2511 = vsel %vm183, %v2183, %v2356
    %v2512 = vsel %vm183, %v2182, %v2358
    %v2513 = vsel %vm183, %v2181, %v2360
    %v2514 = vsel %vm183, %v2180, %v2362
    %v2515 = vsel %vm183, %v2179, %v2364
    %v2516 = vsel %vm183, %v2178, %v2366
    %v2517 = vsel %vm183, %v2177, %v2368
    %v2518 = vsel %vm183, %v2176, %v2370
    %v2519 = vsel %vm183, %v2175, %v2372
    %v2520 = vsel %vm183, %v2174, %v2374
    %v2521 = vsel %vm183, %v2173, %v2376
    %v2522 = vsel %vm183, %v2172, %v2378
    %v2523 = vsel %vm183, %v2171, %v2380
    %v2524 = vsel %vm183, %v2170, %v2382
    %v2525 = vsel %vm183, %v2169, %v2384
    %v2526 = vsel %vm183, %v2168, %v2386
    %v2527 = vsel %vm183, %v2167, %v2388
    %v2528 = vsel %vm183, %v2166, %v2390
    %v2529 = vsel %vm183, %v2165, %v2392
    %v2530 = vsel %vm183, %v2164, %v2394
    %v2531 = vsel %vm183, %v2163, %v2396
    %v2532 = vsel %vm183, %v2162, %v2398
    %v2533 = vsel %vm183, %v2161, %v2400
    %v2534 = vsel %vm183, %v2160, %v2402
    %v2535 = vsel %vm183, %v2159, %v2404
    %v2536 = vsel %vm183, %v2158, %v2406
    %v2537 = vsel %vm183, %v2157, %v2408
    %v2538 = vsel %vm183, %v2156, %v2410
    %v2539 = vpack.c.bf16 %v2476, %v2475
    %v2540 = vpack.c.bf16 %v2478, %v2477
    %v2541 = vpack.c.bf16 %v2480, %v2479
    %v2542 = vpack.c.bf16 %v2482, %v2481
    %v2543 = vpack.c.bf16 %v2484, %v2483
    %v2544 = vpack.c.bf16 %v2486, %v2485
    %v2545 = vpack.c.bf16 %v2488, %v2487
    %v2546 = vpack.c.bf16 %v2490, %v2489
    %v2547 = vpack.c.bf16 %v2492, %v2491
    %v2548 = vpack.c.bf16 %v2494, %v2493
    %v2549 = vpack.c.bf16 %v2496, %v2495
    %v2550 = vpack.c.bf16 %v2498, %v2497
    %v2551 = vpack.c.bf16 %v2500, %v2499
    %v2552 = vpack.c.bf16 %v2502, %v2501
    %v2553 = vpack.c.bf16 %v2504, %v2503
    %v2554 = vpack.c.bf16 %v2506, %v2505
    %v2555 = vpack.c.bf16 %v2508, %v2507
    %v2556 = vpack.c.bf16 %v2510, %v2509
    %v2557 = vpack.c.bf16 %v2512, %v2511
    %v2558 = vpack.c.bf16 %v2514, %v2513
    %v2559 = vpack.c.bf16 %v2516, %v2515
    %v2560 = vpack.c.bf16 %v2518, %v2517
    %v2561 = vpack.c.bf16 %v2520, %v2519
    %v2562 = vpack.c.bf16 %v2522, %v2521
    %v2563 = vpack.c.bf16 %v2524, %v2523
    %v2564 = vpack.c.bf16 %v2526, %v2525
    %v2565 = vpack.c.bf16 %v2528, %v2527
    %v2566 = vpack.c.bf16 %v2530, %v2529
    %v2567 = vpack.c.bf16 %v2532, %v2531
    %v2568 = vpack.c.bf16 %v2534, %v2533
    %v2569 = vpack.c.bf16 %v2536, %v2535
    %v2570 = vpack.c.bf16 %v2538, %v2537
    %s2571 = scalar_lea.vmem [#allocation6], 256
    %v2572 = vld [vmem:[%s2571] sm:$0xf]
    %v2573 = vld [vmem:[%s2571 + $0x4] sm:$0xf]
    %v2574 = vld [vmem:[%s2571 + $0x8] sm:$0xf]
    %v2575 = vld [vmem:[%s2571 + $0xc] sm:$0xf]
    %v2576 = vld [vmem:[%s2571 + $0x10] sm:$0xf]
    %v2577 = vld [vmem:[%s2571 + $0x14] sm:$0xf]
    %v2578 = vld [vmem:[%s2571 + $0x18] sm:$0xf]
    %v2579 = vld [vmem:[%s2571 + $0x1c] sm:$0xf]
    %v2580 = vld [vmem:[%s2571 + $0x20] sm:$0xf]
    %v2581 = vld [vmem:[%s2571 + $0x24] sm:$0xf]
    %v2582 = vld [vmem:[%s2571 + $0x28] sm:$0xf]
    %v2583 = vld [vmem:[%s2571 + $0x2c] sm:$0xf]
    %v2584 = vld [vmem:[%s2571 + $0x30] sm:$0xf]
    %v2585 = vld [vmem:[%s2571 + $0x34] sm:$0xf]
    %v2586 = vld [vmem:[%s2571 + $0x38] sm:$0xf]
    %v2587 = vld [vmem:[%s2571 + $0x3c] sm:$0xf]
    %v2588 = vld [vmem:[%s2571 + $0x40] sm:$0xf]
    %v2589 = vld [vmem:[%s2571 + $0x44] sm:$0xf]
    %v2590 = vld [vmem:[%s2571 + $0x48] sm:$0xf]
    %v2591 = vld [vmem:[%s2571 + $0x4c] sm:$0xf]
    %v2592 = vld [vmem:[%s2571 + $0x50] sm:$0xf]
    %v2593 = vld [vmem:[%s2571 + $0x54] sm:$0xf]
    %v2594 = vld [vmem:[%s2571 + $0x58] sm:$0xf]
    %v2595 = vld [vmem:[%s2571 + $0x5c] sm:$0xf]
    %v2596 = vld [vmem:[%s2571 + $0x60] sm:$0xf]
    %v2597 = vld [vmem:[%s2571 + $0x64] sm:$0xf]
    %v2598 = vld [vmem:[%s2571 + $0x68] sm:$0xf]
    %v2599 = vld [vmem:[%s2571 + $0x6c] sm:$0xf]
    %v2600 = vld [vmem:[%s2571 + $0x70] sm:$0xf]
    %v2601 = vld [vmem:[%s2571 + $0x74] sm:$0xf]
    %v2602 = vld [vmem:[%s2571 + $0x78] sm:$0xf]
    %v2603 = vld [vmem:[%s2571 + $0x7c] sm:$0xf]
    %v2604 = vld [vmem:[%s2571 + $0x80] sm:$0xf]
    %v2605 = vld [vmem:[%s2571 + $0x84] sm:$0xf]
    %v2606 = vld [vmem:[%s2571 + $0x88] sm:$0xf]
    %v2607 = vld [vmem:[%s2571 + $0x8c] sm:$0xf]
    %v2608 = vld [vmem:[%s2571 + $0x90] sm:$0xf]
    %v2609 = vld [vmem:[%s2571 + $0x94] sm:$0xf]
    %v2610 = vld [vmem:[%s2571 + $0x98] sm:$0xf]
    %v2611 = vld [vmem:[%s2571 + $0x9c] sm:$0xf]
    %v2612 = vld [vmem:[%s2571 + $0xa0] sm:$0xf]
    %v2613 = vld [vmem:[%s2571 + $0xa4] sm:$0xf]
    %v2614 = vld [vmem:[%s2571 + $0xa8] sm:$0xf]
    %v2615 = vld [vmem:[%s2571 + $0xac] sm:$0xf]
    %v2616 = vld [vmem:[%s2571 + $0xb0] sm:$0xf]
    %v2617 = vld [vmem:[%s2571 + $0xb4] sm:$0xf]
    %v2618 = vld [vmem:[%s2571 + $0xb8] sm:$0xf]
    %v2619 = vld [vmem:[%s2571 + $0xbc] sm:$0xf]
    %v2620 = vld [vmem:[%s2571 + $0xc0] sm:$0xf]
    %v2621 = vld [vmem:[%s2571 + $0xc4] sm:$0xf]
    %v2622 = vld [vmem:[%s2571 + $0xc8] sm:$0xf]
    %v2623 = vld [vmem:[%s2571 + $0xcc] sm:$0xf]
    %v2624 = vld [vmem:[%s2571 + $0xd0] sm:$0xf]
    %v2625 = vld [vmem:[%s2571 + $0xd4] sm:$0xf]
    %v2626 = vld [vmem:[%s2571 + $0xd8] sm:$0xf]
    %v2627 = vld [vmem:[%s2571 + $0xdc] sm:$0xf]
    %v2628 = vld [vmem:[%s2571 + $0xe0] sm:$0xf]
    %v2629 = vld [vmem:[%s2571 + $0xe4] sm:$0xf]
    %v2630 = vld [vmem:[%s2571 + $0xe8] sm:$0xf]
    %v2631 = vld [vmem:[%s2571 + $0xec] sm:$0xf]
    %v2632 = vld [vmem:[%s2571 + $0xf0] sm:$0xf]
    %v2633 = vld [vmem:[%s2571 + $0xf4] sm:$0xf]
    %v2634 = vld [vmem:[%s2571 + $0xf8] sm:$0xf]
    %v2635 = vld [vmem:[%s2571 + $0xfc] sm:$0xf]
    %v2700 = vunpack.c.l.b16 %v2572
    %v2701 = vunpack.c.l.b16 %v2573
    %v2702 = vunpack.c.l.b16 %v2574
    %v2703 = vunpack.c.l.b16 %v2575
    %v2704 = vunpack.c.l.b16 %v2576
    %v2705 = vunpack.c.l.b16 %v2577
    %v2706 = vunpack.c.l.b16 %v2578
    %v2707 = vunpack.c.l.b16 %v2579
    %v2708 = vunpack.c.l.b16 %v2580
    %v2709 = vunpack.c.l.b16 %v2581
    %v2710 = vunpack.c.l.b16 %v2582
    %v2711 = vunpack.c.l.b16 %v2583
    %v2712 = vunpack.c.l.b16 %v2584
    %v2713 = vunpack.c.l.b16 %v2585
    %v2714 = vunpack.c.l.b16 %v2586
    %v2715 = vunpack.c.l.b16 %v2587
    %v2716 = vunpack.c.l.b16 %v2588
    %v2717 = vunpack.c.l.b16 %v2589
    %v2718 = vunpack.c.l.b16 %v2590
    %v2719 = vunpack.c.l.b16 %v2591
    %v2720 = vunpack.c.l.b16 %v2592
    %v2721 = vunpack.c.l.b16 %v2593
    %v2722 = vunpack.c.l.b16 %v2594
    %v2723 = vunpack.c.l.b16 %v2595
    %v2724 = vunpack.c.l.b16 %v2596
    %v2725 = vunpack.c.l.b16 %v2597
    %v2726 = vunpack.c.l.b16 %v2598
    %v2727 = vunpack.c.l.b16 %v2599
    %v2728 = vunpack.c.l.b16 %v2600
    %v2729 = vunpack.c.l.b16 %v2601
    %v2730 = vunpack.c.l.b16 %v2602
    %v2731 = vunpack.c.l.b16 %v2603
    %v2732 = vunpack.c.l.b16 %v2604
    %v2733 = vunpack.c.l.b16 %v2605
    %v2734 = vunpack.c.l.b16 %v2606
    %v2735 = vunpack.c.l.b16 %v2607
    %v2736 = vunpack.c.l.b16 %v2608
    %v2737 = vunpack.c.l.b16 %v2609
    %v2738 = vunpack.c.l.b16 %v2610
    %v2739 = vunpack.c.l.b16 %v2611
    %v2740 = vunpack.c.l.b16 %v2612
    %v2741 = vunpack.c.l.b16 %v2613
    %v2742 = vunpack.c.l.b16 %v2614
    %v2743 = vunpack.c.l.b16 %v2615
    %v2744 = vunpack.c.l.b16 %v2616
    %v2745 = vunpack.c.l.b16 %v2617
    %v2746 = vunpack.c.l.b16 %v2618
    %v2747 = vunpack.c.l.b16 %v2619
    %v2748 = vunpack.c.l.b16 %v2620
    %v2749 = vunpack.c.l.b16 %v2621
    %v2750 = vunpack.c.l.b16 %v2622
    %v2751 = vunpack.c.l.b16 %v2623
    %v2752 = vunpack.c.l.b16 %v2624
    %v2753 = vunpack.c.l.b16 %v2625
    %v2754 = vunpack.c.l.b16 %v2626
    %v2755 = vunpack.c.l.b16 %v2627
    %v2756 = vunpack.c.l.b16 %v2628
    %v2757 = vunpack.c.l.b16 %v2629
    %v2758 = vunpack.c.l.b16 %v2630
    %v2759 = vunpack.c.l.b16 %v2631
    %v2760 = vunpack.c.l.b16 %v2632
    %v2761 = vunpack.c.l.b16 %v2633
    %v2762 = vunpack.c.l.b16 %v2634
    %v2763 = vunpack.c.l.b16 %v2635
    %v2764 = vpack.c.b16 %v2701, %v2700
    %v2765 = vpack.c.b16 %v2703, %v2702
    %v2766 = vpack.c.b16 %v2705, %v2704
    %v2767 = vpack.c.b16 %v2707, %v2706
    %v2768 = vpack.c.b16 %v2709, %v2708
    %v2769 = vpack.c.b16 %v2711, %v2710
    %v2770 = vpack.c.b16 %v2713, %v2712
    %v2771 = vpack.c.b16 %v2715, %v2714
    %v2772 = vpack.c.b16 %v2717, %v2716
    %v2773 = vpack.c.b16 %v2719, %v2718
    %v2774 = vpack.c.b16 %v2721, %v2720
    %v2775 = vpack.c.b16 %v2723, %v2722
    %v2776 = vpack.c.b16 %v2725, %v2724
    %v2777 = vpack.c.b16 %v2727, %v2726
    %v2778 = vpack.c.b16 %v2729, %v2728
    %v2779 = vpack.c.b16 %v2731, %v2730
    %v2780 = vpack.c.b16 %v2733, %v2732
    %v2781 = vpack.c.b16 %v2735, %v2734
    %v2782 = vpack.c.b16 %v2737, %v2736
    %v2783 = vpack.c.b16 %v2739, %v2738
    %v2784 = vpack.c.b16 %v2741, %v2740
    %v2785 = vpack.c.b16 %v2743, %v2742
    %v2786 = vpack.c.b16 %v2745, %v2744
    %v2787 = vpack.c.b16 %v2747, %v2746
    %v2788 = vpack.c.b16 %v2749, %v2748
    %v2789 = vpack.c.b16 %v2751, %v2750
    %v2790 = vpack.c.b16 %v2753, %v2752
    %v2791 = vpack.c.b16 %v2755, %v2754
    %v2792 = vpack.c.b16 %v2757, %v2756
    %v2793 = vpack.c.b16 %v2759, %v2758
    %v2794 = vpack.c.b16 %v2761, %v2760
    %v2795 = vpack.c.b16 %v2763, %v2762
    %v2828 = vmul.bf16 %v2539, %v2764
    %v2829 = vmul.bf16 %v2540, %v2765
    %v2830 = vmul.bf16 %v2541, %v2766
    %v2831 = vmul.bf16 %v2542, %v2767
    %v2832 = vmul.bf16 %v2543, %v2768
    %v2833 = vmul.bf16 %v2544, %v2769
    %v2834 = vmul.bf16 %v2545, %v2770
    %v2835 = vmul.bf16 %v2546, %v2771
    %v2836 = vmul.bf16 %v2547, %v2772
    %v2837 = vmul.bf16 %v2548, %v2773
    %v2838 = vmul.bf16 %v2549, %v2774
    %v2839 = vmul.bf16 %v2550, %v2775
    %v2840 = vmul.bf16 %v2551, %v2776
    %v2841 = vmul.bf16 %v2552, %v2777
    %v2842 = vmul.bf16 %v2553, %v2778
    %v2843 = vmul.bf16 %v2554, %v2779
    %v2844 = vmul.bf16 %v2555, %v2780
    %v2845 = vmul.bf16 %v2556, %v2781
    %v2846 = vmul.bf16 %v2557, %v2782
    %v2847 = vmul.bf16 %v2558, %v2783
    %v2848 = vmul.bf16 %v2559, %v2784
    %v2849 = vmul.bf16 %v2560, %v2785
    %v2850 = vmul.bf16 %v2561, %v2786
    %v2851 = vmul.bf16 %v2562, %v2787
    %v2852 = vmul.bf16 %v2563, %v2788
    %v2853 = vmul.bf16 %v2564, %v2789
    %v2854 = vmul.bf16 %v2565, %v2790
    %v2855 = vmul.bf16 %v2566, %v2791
    %v2856 = vmul.bf16 %v2567, %v2792
    %v2857 = vmul.bf16 %v2568, %v2793
    %v2858 = vmul.bf16 %v2569, %v2794
    %v2859 = vmul.bf16 %v2570, %v2795
    %2860 = vst [vmem:[#allocation2 + $0x8] sm:$0xff] %v2828
    %2861 = vst [vmem:[#allocation2 + $0x30] sm:$0xff] %v2829
    %2862 = vst [vmem:[#allocation2 + $0x58] sm:$0xff] %v2830
    %2863 = vst [vmem:[#allocation2 + $0x80] sm:$0xff] %v2831
    %2864 = vst [vmem:[#allocation2 + $0xa8] sm:$0xff] %v2832
    %2865 = vst [vmem:[#allocation2 + $0xd0] sm:$0xff] %v2833
    %2866 = vst [vmem:[#allocation2 + $0xf8] sm:$0xff] %v2834
    %2867 = vst [vmem:[#allocation2 + $0x120] sm:$0xff] %v2835
    %2868 = vst [vmem:[#allocation2 + $0x148] sm:$0xff] %v2836
    %2869 = vst [vmem:[#allocation2 + $0x170] sm:$0xff] %v2837
    %2870 = vst [vmem:[#allocation2 + $0x198] sm:$0xff] %v2838
    %2871 = vst [vmem:[#allocation2 + $0x1c0] sm:$0xff] %v2839
    %2872 = vst [vmem:[#allocation2 + $0x1e8] sm:$0xff] %v2840
    %2873 = vst [vmem:[#allocation2 + $0x210] sm:$0xff] %v2841
    %2874 = vst [vmem:[#allocation2 + $0x238] sm:$0xff] %v2842
    %2875 = vst [vmem:[#allocation2 + $0x260] sm:$0xff] %v2843
    %2876 = vst [vmem:[#allocation2 + $0x288] sm:$0xff] %v2844
    %2877 = vst [vmem:[#allocation2 + $0x2b0] sm:$0xff] %v2845
    %2878 = vst [vmem:[#allocation2 + $0x2d8] sm:$0xff] %v2846
    %2879 = vst [vmem:[#allocation2 + $0x300] sm:$0xff] %v2847
    %2880 = vst [vmem:[#allocation2 + $0x328] sm:$0xff] %v2848
    %2881 = vst [vmem:[#allocation2 + $0x350] sm:$0xff] %v2849
    %2882 = vst [vmem:[#allocation2 + $0x378] sm:$0xff] %v2850
    %2883 = vst [vmem:[#allocation2 + $0x3a0] sm:$0xff] %v2851
    %2884 = vst [vmem:[#allocation2 + $0x3c8] sm:$0xff] %v2852
    %2885 = vst [vmem:[#allocation2 + $0x3f0] sm:$0xff] %v2853
    %2886 = vst [vmem:[#allocation2 + $0x418] sm:$0xff] %v2854
    %2887 = vst [vmem:[#allocation2 + $0x440] sm:$0xff] %v2855
    %2888 = vst [vmem:[#allocation2 + $0x468] sm:$0xff] %v2856
    %2889 = vst [vmem:[#allocation2 + $0x490] sm:$0xff] %v2857
    %2890 = vst [vmem:[#allocation2 + $0x4b8] sm:$0xff] %v2858
    %2891 = vst [vmem:[#allocation2 + $0x4e0] sm:$0xff] %v2859
    %2956 = vrot.lane.b32.xlu0 %v2217, 64
    %v2957 = vpop.permute.xlu0 %2956
    %2958 = vrot.lane.b32.xlu0 %v2216, 64
    %v2959 = vpop.permute.xlu0 %2958
    %2960 = vrot.lane.b32.xlu0 %v2215, 64
    %v2961 = vpop.permute.xlu0 %2960
    %2962 = vrot.lane.b32.xlu0 %v2214, 64
    %v2963 = vpop.permute.xlu0 %2962
    %2964 = vrot.lane.b32.xlu0 %v2213, 64
    %v2965 = vpop.permute.xlu0 %2964
    %2966 = vrot.lane.b32.xlu0 %v2212, 64
    %v2967 = vpop.permute.xlu0 %2966
    %2968 = vrot.lane.b32.xlu0 %v2211, 64
    %v2969 = vpop.permute.xlu0 %2968
    %2970 = vrot.lane.b32.xlu0 %v2210, 64
    %v2971 = vpop.permute.xlu0 %2970
    %2972 = vrot.lane.b32.xlu0 %v2209, 64
    %v2973 = vpop.permute.xlu0 %2972
    %2974 = vrot.lane.b32.xlu0 %v2208, 64
    %v2975 = vpop.permute.xlu0 %2974
    %2976 = vrot.lane.b32.xlu0 %v2207, 64
    %v2977 = vpop.permute.xlu0 %2976
    %2978 = vrot.lane.b32.xlu0 %v2206, 64
    %v2979 = vpop.permute.xlu0 %2978
    %2980 = vrot.lane.b32.xlu0 %v2205, 64
    %v2981 = vpop.permute.xlu0 %2980
    %2982 = vrot.lane.b32.xlu0 %v2204, 64
    %v2983 = vpop.permute.xlu0 %2982
    %2984 = vrot.lane.b32.xlu0 %v2203, 64
    %v2985 = vpop.permute.xlu0 %2984
    %2986 = vrot.lane.b32.xlu0 %v2202, 64
    %v2987 = vpop.permute.xlu0 %2986
    %2988 = vrot.lane.b32.xlu0 %v2201, 64
    %v2989 = vpop.permute.xlu0 %2988
    %2990 = vrot.lane.b32.xlu0 %v2200, 64
    %v2991 = vpop.permute.xlu0 %2990
    %2992 = vrot.lane.b32.xlu0 %v2199, 64
    %v2993 = vpop.permute.xlu0 %2992
    %2994 = vrot.lane.b32.xlu0 %v2198, 64
    %v2995 = vpop.permute.xlu0 %2994
    %2996 = vrot.lane.b32.xlu0 %v2197, 64
    %v2997 = vpop.permute.xlu0 %2996
    %2998 = vrot.lane.b32.xlu0 %v2196, 64
    %v2999 = vpop.permute.xlu0 %2998
    %3000 = vrot.lane.b32.xlu0 %v2195, 64
    %v3001 = vpop.permute.xlu0 %3000
    %3002 = vrot.lane.b32.xlu0 %v2194, 64
    %v3003 = vpop.permute.xlu0 %3002
    %3004 = vrot.lane.b32.xlu0 %v2193, 64
    %v3005 = vpop.permute.xlu0 %3004
    %3006 = vrot.lane.b32.xlu0 %v2192, 64
    %v3007 = vpop.permute.xlu0 %3006
    %3008 = vrot.lane.b32.xlu0 %v2191, 64
    %v3009 = vpop.permute.xlu0 %3008
    %3010 = vrot.lane.b32.xlu0 %v2190, 64
    %v3011 = vpop.permute.xlu0 %3010
    %3012 = vrot.lane.b32.xlu0 %v2189, 64
    %v3013 = vpop.permute.xlu0 %3012
    %3014 = vrot.lane.b32.xlu0 %v2188, 64
    %v3015 = vpop.permute.xlu0 %3014
    %3016 = vrot.lane.b32.xlu0 %v2187, 64
    %v3017 = vpop.permute.xlu0 %3016
    %3018 = vrot.lane.b32.xlu0 %v2186, 64
    %v3019 = vpop.permute.xlu0 %3018
    %3020 = vrot.lane.b32.xlu0 %v2185, 64
    %v3021 = vpop.permute.xlu0 %3020
    %3022 = vrot.lane.b32.xlu0 %v2184, 64
    %v3023 = vpop.permute.xlu0 %3022
    %3024 = vrot.lane.b32.xlu0 %v2183, 64
    %v3025 = vpop.permute.xlu0 %3024
    %3026 = vrot.lane.b32.xlu0 %v2182, 64
    %v3027 = vpop.permute.xlu0 %3026
    %3028 = vrot.lane.b32.xlu0 %v2181, 64
    %v3029 = vpop.permute.xlu0 %3028
    %3030 = vrot.lane.b32.xlu0 %v2180, 64
    %v3031 = vpop.permute.xlu0 %3030
    %3032 = vrot.lane.b32.xlu0 %v2179, 64
    %v3033 = vpop.permute.xlu0 %3032
    %3034 = vrot.lane.b32.xlu0 %v2178, 64
    %v3035 = vpop.permute.xlu0 %3034
    %3036 = vrot.lane.b32.xlu0 %v2177, 64
    %v3037 = vpop.permute.xlu0 %3036
    %3038 = vrot.lane.b32.xlu0 %v2176, 64
    %v3039 = vpop.permute.xlu0 %3038
    %3040 = vrot.lane.b32.xlu0 %v2175, 64
    %v3041 = vpop.permute.xlu0 %3040
    %3042 = vrot.lane.b32.xlu0 %v2174, 64
    %v3043 = vpop.permute.xlu0 %3042
    %3044 = vrot.lane.b32.xlu0 %v2173, 64
    %v3045 = vpop.permute.xlu0 %3044
    %3046 = vrot.lane.b32.xlu0 %v2172, 64
    %v3047 = vpop.permute.xlu0 %3046
    %3048 = vrot.lane.b32.xlu0 %v2171, 64
    %v3049 = vpop.permute.xlu0 %3048
    %3050 = vrot.lane.b32.xlu0 %v2170, 64
    %v3051 = vpop.permute.xlu0 %3050
    %3052 = vrot.lane.b32.xlu0 %v2169, 64
    %v3053 = vpop.permute.xlu0 %3052
    %3054 = vrot.lane.b32.xlu0 %v2168, 64
    %v3055 = vpop.permute.xlu0 %3054
    %3056 = vrot.lane.b32.xlu0 %v2167, 64
    %v3057 = vpop.permute.xlu0 %3056
    %3058 = vrot.lane.b32.xlu0 %v2166, 64
    %v3059 = vpop.permute.xlu0 %3058
    %3060 = vrot.lane.b32.xlu0 %v2165, 64
    %v3061 = vpop.permute.xlu0 %3060
    %3062 = vrot.lane.b32.xlu0 %v2164, 64
    %v3063 = vpop.permute.xlu0 %3062
    %3064 = vrot.lane.b32.xlu0 %v2163, 64
    %v3065 = vpop.permute.xlu0 %3064
    %3066 = vrot.lane.b32.xlu0 %v2162, 64
    %v3067 = vpop.permute.xlu0 %3066
    %3068 = vrot.lane.b32.xlu0 %v2161, 64
    %v3069 = vpop.permute.xlu0 %3068
    %3070 = vrot.lane.b32.xlu0 %v2160, 64
    %v3071 = vpop.permute.xlu0 %3070
    %3072 = vrot.lane.b32.xlu0 %v2159, 64
    %v3073 = vpop.permute.xlu0 %3072
    %3074 = vrot.lane.b32.xlu0 %v2158, 64
    %v3075 = vpop.permute.xlu0 %3074
    %3076 = vrot.lane.b32.xlu0 %v2157, 64
    %v3077 = vpop.permute.xlu0 %3076
    %3078 = vrot.lane.b32.xlu0 %v2156, 64
    %v3079 = vpop.permute.xlu0 %3078
    %3080 = vrot.lane.b32.xlu0 %v2155, 64
    %v3081 = vpop.permute.xlu0 %3080
    %3082 = vrot.lane.b32.xlu0 %v2218, 64
    %v3083 = vpop.permute.xlu0 %3082
    %v3148 = vsel %vm183, %v1222, %v2957
    %v3149 = vsel %vm183, %v1223, %v2959
    %v3150 = vsel %vm183, %v1224, %v2961
    %v3151 = vsel %vm183, %v1225, %v2963
    %v3152 = vsel %vm183, %v1226, %v2965
    %v3153 = vsel %vm183, %v1227, %v2967
    %v3154 = vsel %vm183, %v1228, %v2969
    %v3155 = vsel %vm183, %v1229, %v2971
    %v3156 = vsel %vm183, %v1230, %v2973
    %v3157 = vsel %vm183, %v1231, %v2975
    %v3158 = vsel %vm183, %v1232, %v2977
    %v3159 = vsel %vm183, %v1233, %v2979
    %v3160 = vsel %vm183, %v1234, %v2981
    %v3161 = vsel %vm183, %v1235, %v2983
    %v3162 = vsel %vm183, %v1236, %v2985
    %v3163 = vsel %vm183, %v1237, %v2987
    %v3164 = vsel %vm183, %v1238, %v2989
    %v3165 = vsel %vm183, %v1239, %v2991
    %v3166 = vsel %vm183, %v1240, %v2993
    %v3167 = vsel %vm183, %v1241, %v2995
    %v3168 = vsel %vm183, %v1242, %v2997
    %v3169 = vsel %vm183, %v1243, %v2999
    %v3170 = vsel %vm183, %v1244, %v3001
    %v3171 = vsel %vm183, %v1245, %v3003
    %v3172 = vsel %vm183, %v1246, %v3005
    %v3173 = vsel %vm183, %v1247, %v3007
    %v3174 = vsel %vm183, %v1248, %v3009
    %v3175 = vsel %vm183, %v1249, %v3011
    %v3176 = vsel %vm183, %v1250, %v3013
    %v3177 = vsel %vm183, %v1251, %v3015
    %v3178 = vsel %vm183, %v1252, %v3017
    %v3179 = vsel %vm183, %v1253, %v3019
    %v3180 = vsel %vm183, %v1254, %v3021
    %v3181 = vsel %vm183, %v1255, %v3023
    %v3182 = vsel %vm183, %v1256, %v3025
    %v3183 = vsel %vm183, %v1257, %v3027
    %v3184 = vsel %vm183, %v1258, %v3029
    %v3185 = vsel %vm183, %v1259, %v3031
    %v3186 = vsel %vm183, %v1260, %v3033
    %v3187 = vsel %vm183, %v1261, %v3035
    %v3188 = vsel %vm183, %v1262, %v3037
    %v3189 = vsel %vm183, %v1263, %v3039
    %v3190 = vsel %vm183, %v1264, %v3041
    %v3191 = vsel %vm183, %v1265, %v3043
    %v3192 = vsel %vm183, %v1266, %v3045
    %v3193 = vsel %vm183, %v1267, %v3047
    %v3194 = vsel %vm183, %v1268, %v3049
    %v3195 = vsel %vm183, %v1269, %v3051
    %v3196 = vsel %vm183, %v1270, %v3053
    %v3197 = vsel %vm183, %v1271, %v3055
    %v3198 = vsel %vm183, %v1272, %v3057
    %v3199 = vsel %vm183, %v1273, %v3059
    %v3200 = vsel %vm183, %v1274, %v3061
    %v3201 = vsel %vm183, %v1275, %v3063
    %v3202 = vsel %vm183, %v1276, %v3065
    %v3203 = vsel %vm183, %v1277, %v3067
    %v3204 = vsel %vm183, %v1278, %v3069
    %v3205 = vsel %vm183, %v1279, %v3071
    %v3206 = vsel %vm183, %v1280, %v3073
    %v3207 = vsel %vm183, %v1281, %v3075
    %v3208 = vsel %vm183, %v1282, %v3077
    %v3209 = vsel %vm183, %v1283, %v3079
    %v3210 = vsel %vm183, %v1284, %v3081
    %v3211 = vsel %vm183, %v1285, %v3083
    %v3212 = vpack.c.bf16 %v3149, %v3148
    %v3213 = vpack.c.bf16 %v3151, %v3150
    %v3214 = vpack.c.bf16 %v3153, %v3152
    %v3215 = vpack.c.bf16 %v3155, %v3154
    %v3216 = vpack.c.bf16 %v3157, %v3156
    %v3217 = vpack.c.bf16 %v3159, %v3158
    %v3218 = vpack.c.bf16 %v3161, %v3160
    %v3219 = vpack.c.bf16 %v3163, %v3162
    %v3220 = vpack.c.bf16 %v3165, %v3164
    %v3221 = vpack.c.bf16 %v3167, %v3166
    %v3222 = vpack.c.bf16 %v3169, %v3168
    %v3223 = vpack.c.bf16 %v3171, %v3170
    %v3224 = vpack.c.bf16 %v3173, %v3172
    %v3225 = vpack.c.bf16 %v3175, %v3174
    %v3226 = vpack.c.bf16 %v3177, %v3176
    %v3227 = vpack.c.bf16 %v3179, %v3178
    %v3228 = vpack.c.bf16 %v3181, %v3180
    %v3229 = vpack.c.bf16 %v3183, %v3182
    %v3230 = vpack.c.bf16 %v3185, %v3184
    %v3231 = vpack.c.bf16 %v3187, %v3186
    %v3232 = vpack.c.bf16 %v3189, %v3188
    %v3233 = vpack.c.bf16 %v3191, %v3190
    %v3234 = vpack.c.bf16 %v3193, %v3192
    %v3235 = vpack.c.bf16 %v3195, %v3194
    %v3236 = vpack.c.bf16 %v3197, %v3196
    %v3237 = vpack.c.bf16 %v3199, %v3198
    %v3238 = vpack.c.bf16 %v3201, %v3200
    %v3239 = vpack.c.bf16 %v3203, %v3202
    %v3240 = vpack.c.bf16 %v3205, %v3204
    %v3241 = vpack.c.bf16 %v3207, %v3206
    %v3242 = vpack.c.bf16 %v3209, %v3208
    %v3243 = vpack.c.bf16 %v3211, %v3210
    %s3244 = scalar_lea.vmem [#allocation6], 512
    %v3245 = vld [vmem:[%s3244] sm:$0xf]
    %v3246 = vld [vmem:[%s3244 + $0x4] sm:$0xf]
    %v3247 = vld [vmem:[%s3244 + $0x8] sm:$0xf]
    %v3248 = vld [vmem:[%s3244 + $0xc] sm:$0xf]
    %v3249 = vld [vmem:[%s3244 + $0x10] sm:$0xf]
    %v3250 = vld [vmem:[%s3244 + $0x14] sm:$0xf]
    %v3251 = vld [vmem:[%s3244 + $0x18] sm:$0xf]
    %v3252 = vld [vmem:[%s3244 + $0x1c] sm:$0xf]
    %v3253 = vld [vmem:[%s3244 + $0x20] sm:$0xf]
    %v3254 = vld [vmem:[%s3244 + $0x24] sm:$0xf]
    %v3255 = vld [vmem:[%s3244 + $0x28] sm:$0xf]
    %v3256 = vld [vmem:[%s3244 + $0x2c] sm:$0xf]
    %v3257 = vld [vmem:[%s3244 + $0x30] sm:$0xf]
    %v3258 = vld [vmem:[%s3244 + $0x34] sm:$0xf]
    %v3259 = vld [vmem:[%s3244 + $0x38] sm:$0xf]
    %v3260 = vld [vmem:[%s3244 + $0x3c] sm:$0xf]
    %v3261 = vld [vmem:[%s3244 + $0x40] sm:$0xf]
    %v3262 = vld [vmem:[%s3244 + $0x44] sm:$0xf]
    %v3263 = vld [vmem:[%s3244 + $0x48] sm:$0xf]
    %v3264 = vld [vmem:[%s3244 + $0x4c] sm:$0xf]
    %v3265 = vld [vmem:[%s3244 + $0x50] sm:$0xf]
    %v3266 = vld [vmem:[%s3244 + $0x54] sm:$0xf]
    %v3267 = vld [vmem:[%s3244 + $0x58] sm:$0xf]
    %v3268 = vld [vmem:[%s3244 + $0x5c] sm:$0xf]
    %v3269 = vld [vmem:[%s3244 + $0x60] sm:$0xf]
    %v3270 = vld [vmem:[%s3244 + $0x64] sm:$0xf]
    %v3271 = vld [vmem:[%s3244 + $0x68] sm:$0xf]
    %v3272 = vld [vmem:[%s3244 + $0x6c] sm:$0xf]
    %v3273 = vld [vmem:[%s3244 + $0x70] sm:$0xf]
    %v3274 = vld [vmem:[%s3244 + $0x74] sm:$0xf]
    %v3275 = vld [vmem:[%s3244 + $0x78] sm:$0xf]
    %v3276 = vld [vmem:[%s3244 + $0x7c] sm:$0xf]
    %v3277 = vld [vmem:[%s3244 + $0x80] sm:$0xf]
    %v3278 = vld [vmem:[%s3244 + $0x84] sm:$0xf]
    %v3279 = vld [vmem:[%s3244 + $0x88] sm:$0xf]
    %v3280 = vld [vmem:[%s3244 + $0x8c] sm:$0xf]
    %v3281 = vld [vmem:[%s3244 + $0x90] sm:$0xf]
    %v3282 = vld [vmem:[%s3244 + $0x94] sm:$0xf]
    %v3283 = vld [vmem:[%s3244 + $0x98] sm:$0xf]
    %v3284 = vld [vmem:[%s3244 + $0x9c] sm:$0xf]
    %v3285 = vld [vmem:[%s3244 + $0xa0] sm:$0xf]
    %v3286 = vld [vmem:[%s3244 + $0xa4] sm:$0xf]
    %v3287 = vld [vmem:[%s3244 + $0xa8] sm:$0xf]
    %v3288 = vld [vmem:[%s3244 + $0xac] sm:$0xf]
    %v3289 = vld [vmem:[%s3244 + $0xb0] sm:$0xf]
    %v3290 = vld [vmem:[%s3244 + $0xb4] sm:$0xf]
    %v3291 = vld [vmem:[%s3244 + $0xb8] sm:$0xf]
    %v3292 = vld [vmem:[%s3244 + $0xbc] sm:$0xf]
    %v3293 = vld [vmem:[%s3244 + $0xc0] sm:$0xf]
    %v3294 = vld [vmem:[%s3244 + $0xc4] sm:$0xf]
    %v3295 = vld [vmem:[%s3244 + $0xc8] sm:$0xf]
    %v3296 = vld [vmem:[%s3244 + $0xcc] sm:$0xf]
    %v3297 = vld [vmem:[%s3244 + $0xd0] sm:$0xf]
    %v3298 = vld [vmem:[%s3244 + $0xd4] sm:$0xf]
    %v3299 = vld [vmem:[%s3244 + $0xd8] sm:$0xf]
    %v3300 = vld [vmem:[%s3244 + $0xdc] sm:$0xf]
    %v3301 = vld [vmem:[%s3244 + $0xe0] sm:$0xf]
    %v3302 = vld [vmem:[%s3244 + $0xe4] sm:$0xf]
    %v3303 = vld [vmem:[%s3244 + $0xe8] sm:$0xf]
    %v3304 = vld [vmem:[%s3244 + $0xec] sm:$0xf]
    %v3305 = vld [vmem:[%s3244 + $0xf0] sm:$0xf]
    %v3306 = vld [vmem:[%s3244 + $0xf4] sm:$0xf]
    %v3307 = vld [vmem:[%s3244 + $0xf8] sm:$0xf]
    %v3308 = vld [vmem:[%s3244 + $0xfc] sm:$0xf]
    %v3373 = vunpack.c.l.b16 %v3245
    %v3374 = vunpack.c.l.b16 %v3246
    %v3375 = vunpack.c.l.b16 %v3247
    %v3376 = vunpack.c.l.b16 %v3248
    %v3377 = vunpack.c.l.b16 %v3249
    %v3378 = vunpack.c.l.b16 %v3250
    %v3379 = vunpack.c.l.b16 %v3251
    %v3380 = vunpack.c.l.b16 %v3252
    %v3381 = vunpack.c.l.b16 %v3253
    %v3382 = vunpack.c.l.b16 %v3254
    %v3383 = vunpack.c.l.b16 %v3255
    %v3384 = vunpack.c.l.b16 %v3256
    %v3385 = vunpack.c.l.b16 %v3257
    %v3386 = vunpack.c.l.b16 %v3258
    %v3387 = vunpack.c.l.b16 %v3259
    %v3388 = vunpack.c.l.b16 %v3260
    %v3389 = vunpack.c.l.b16 %v3261
    %v3390 = vunpack.c.l.b16 %v3262
    %v3391 = vunpack.c.l.b16 %v3263
    %v3392 = vunpack.c.l.b16 %v3264
    %v3393 = vunpack.c.l.b16 %v3265
    %v3394 = vunpack.c.l.b16 %v3266
    %v3395 = vunpack.c.l.b16 %v3267
    %v3396 = vunpack.c.l.b16 %v3268
    %v3397 = vunpack.c.l.b16 %v3269
    %v3398 = vunpack.c.l.b16 %v3270
    %v3399 = vunpack.c.l.b16 %v3271
    %v3400 = vunpack.c.l.b16 %v3272
    %v3401 = vunpack.c.l.b16 %v3273
    %v3402 = vunpack.c.l.b16 %v3274
    %v3403 = vunpack.c.l.b16 %v3275
    %v3404 = vunpack.c.l.b16 %v3276
    %v3405 = vunpack.c.l.b16 %v3277
    %v3406 = vunpack.c.l.b16 %v3278
    %v3407 = vunpack.c.l.b16 %v3279
    %v3408 = vunpack.c.l.b16 %v3280
    %v3409 = vunpack.c.l.b16 %v3281
    %v3410 = vunpack.c.l.b16 %v3282
    %v3411 = vunpack.c.l.b16 %v3283
    %v3412 = vunpack.c.l.b16 %v3284
    %v3413 = vunpack.c.l.b16 %v3285
    %v3414 = vunpack.c.l.b16 %v3286
    %v3415 = vunpack.c.l.b16 %v3287
    %v3416 = vunpack.c.l.b16 %v3288
    %v3417 = vunpack.c.l.b16 %v3289
    %v3418 = vunpack.c.l.b16 %v3290
    %v3419 = vunpack.c.l.b16 %v3291
    %v3420 = vunpack.c.l.b16 %v3292
    %v3421 = vunpack.c.l.b16 %v3293
    %v3422 = vunpack.c.l.b16 %v3294
    %v3423 = vunpack.c.l.b16 %v3295
    %v3424 = vunpack.c.l.b16 %v3296
    %v3425 = vunpack.c.l.b16 %v3297
    %v3426 = vunpack.c.l.b16 %v3298
    %v3427 = vunpack.c.l.b16 %v3299
    %v3428 = vunpack.c.l.b16 %v3300
    %v3429 = vunpack.c.l.b16 %v3301
    %v3430 = vunpack.c.l.b16 %v3302
    %v3431 = vunpack.c.l.b16 %v3303
    %v3432 = vunpack.c.l.b16 %v3304
    %v3433 = vunpack.c.l.b16 %v3305
    %v3434 = vunpack.c.l.b16 %v3306
    %v3435 = vunpack.c.l.b16 %v3307
    %v3436 = vunpack.c.l.b16 %v3308
    %v3437 = vpack.c.b16 %v3374, %v3373
    %v3438 = vpack.c.b16 %v3376, %v3375
    %v3439 = vpack.c.b16 %v3378, %v3377
    %v3440 = vpack.c.b16 %v3380, %v3379
    %v3441 = vpack.c.b16 %v3382, %v3381
    %v3442 = vpack.c.b16 %v3384, %v3383
    %v3443 = vpack.c.b16 %v3386, %v3385
    %v3444 = vpack.c.b16 %v3388, %v3387
    %v3445 = vpack.c.b16 %v3390, %v3389
    %v3446 = vpack.c.b16 %v3392, %v3391
    %v3447 = vpack.c.b16 %v3394, %v3393
    %v3448 = vpack.c.b16 %v3396, %v3395
    %v3449 = vpack.c.b16 %v3398, %v3397
    %v3450 = vpack.c.b16 %v3400, %v3399
    %v3451 = vpack.c.b16 %v3402, %v3401
    %v3452 = vpack.c.b16 %v3404, %v3403
    %v3453 = vpack.c.b16 %v3406, %v3405
    %v3454 = vpack.c.b16 %v3408, %v3407
    %v3455 = vpack.c.b16 %v3410, %v3409
    %v3456 = vpack.c.b16 %v3412, %v3411
    %v3457 = vpack.c.b16 %v3414, %v3413
    %v3458 = vpack.c.b16 %v3416, %v3415
    %v3459 = vpack.c.b16 %v3418, %v3417
    %v3460 = vpack.c.b16 %v3420, %v3419
    %v3461 = vpack.c.b16 %v3422, %v3421
    %v3462 = vpack.c.b16 %v3424, %v3423
    %v3463 = vpack.c.b16 %v3426, %v3425
    %v3464 = vpack.c.b16 %v3428, %v3427
    %v3465 = vpack.c.b16 %v3430, %v3429
    %v3466 = vpack.c.b16 %v3432, %v3431
    %v3467 = vpack.c.b16 %v3434, %v3433
    %v3468 = vpack.c.b16 %v3436, %v3435
    %v3501 = vmul.bf16 %v3212, %v3437
    %v3502 = vmul.bf16 %v3213, %v3438
    %v3503 = vmul.bf16 %v3214, %v3439
    %v3504 = vmul.bf16 %v3215, %v3440
    %v3505 = vmul.bf16 %v3216, %v3441
    %v3506 = vmul.bf16 %v3217, %v3442
    %v3507 = vmul.bf16 %v3218, %v3443
    %v3508 = vmul.bf16 %v3219, %v3444
    %v3509 = vmul.bf16 %v3220, %v3445
    %v3510 = vmul.bf16 %v3221, %v3446
    %v3511 = vmul.bf16 %v3222, %v3447
    %v3512 = vmul.bf16 %v3223, %v3448
    %v3513 = vmul.bf16 %v3224, %v3449
    %v3514 = vmul.bf16 %v3225, %v3450
    %v3515 = vmul.bf16 %v3226, %v3451
    %v3516 = vmul.bf16 %v3227, %v3452
    %v3517 = vmul.bf16 %v3228, %v3453
    %v3518 = vmul.bf16 %v3229, %v3454
    %v3519 = vmul.bf16 %v3230, %v3455
    %v3520 = vmul.bf16 %v3231, %v3456
    %v3521 = vmul.bf16 %v3232, %v3457
    %v3522 = vmul.bf16 %v3233, %v3458
    %v3523 = vmul.bf16 %v3234, %v3459
    %v3524 = vmul.bf16 %v3235, %v3460
    %v3525 = vmul.bf16 %v3236, %v3461
    %v3526 = vmul.bf16 %v3237, %v3462
    %v3527 = vmul.bf16 %v3238, %v3463
    %v3528 = vmul.bf16 %v3239, %v3464
    %v3529 = vmul.bf16 %v3240, %v3465
    %v3530 = vmul.bf16 %v3241, %v3466
    %v3531 = vmul.bf16 %v3242, %v3467
    %v3532 = vmul.bf16 %v3243, %v3468
    %3533 = vst [vmem:[#allocation2 + $0x10] sm:$0xff] %v3501
    %3534 = vst [vmem:[#allocation2 + $0x38] sm:$0xff] %v3502
    %3535 = vst [vmem:[#allocation2 + $0x60] sm:$0xff] %v3503
    %3536 = vst [vmem:[#allocation2 + $0x88] sm:$0xff] %v3504
    %3537 = vst [vmem:[#allocation2 + $0xb0] sm:$0xff] %v3505
    %3538 = vst [vmem:[#allocation2 + $0xd8] sm:$0xff] %v3506
    %3539 = vst [vmem:[#allocation2 + $0x100] sm:$0xff] %v3507
    %3540 = vst [vmem:[#allocation2 + $0x128] sm:$0xff] %v3508
    %3541 = vst [vmem:[#allocation2 + $0x150] sm:$0xff] %v3509
    %3542 = vst [vmem:[#allocation2 + $0x178] sm:$0xff] %v3510
    %3543 = vst [vmem:[#allocation2 + $0x1a0] sm:$0xff] %v3511
    %3544 = vst [vmem:[#allocation2 + $0x1c8] sm:$0xff] %v3512
    %3545 = vst [vmem:[#allocation2 + $0x1f0] sm:$0xff] %v3513
    %3546 = vst [vmem:[#allocation2 + $0x218] sm:$0xff] %v3514
    %3547 = vst [vmem:[#allocation2 + $0x240] sm:$0xff] %v3515
    %3548 = vst [vmem:[#allocation2 + $0x268] sm:$0xff] %v3516
    %3549 = vst [vmem:[#allocation2 + $0x290] sm:$0xff] %v3517
    %3550 = vst [vmem:[#allocation2 + $0x2b8] sm:$0xff] %v3518
    %3551 = vst [vmem:[#allocation2 + $0x2e0] sm:$0xff] %v3519
    %3552 = vst [vmem:[#allocation2 + $0x308] sm:$0xff] %v3520
    %3553 = vst [vmem:[#allocation2 + $0x330] sm:$0xff] %v3521
    %3554 = vst [vmem:[#allocation2 + $0x358] sm:$0xff] %v3522
    %3555 = vst [vmem:[#allocation2 + $0x380] sm:$0xff] %v3523
    %3556 = vst [vmem:[#allocation2 + $0x3a8] sm:$0xff] %v3524
    %3557 = vst [vmem:[#allocation2 + $0x3d0] sm:$0xff] %v3525
    %3558 = vst [vmem:[#allocation2 + $0x3f8] sm:$0xff] %v3526
    %3559 = vst [vmem:[#allocation2 + $0x420] sm:$0xff] %v3527
    %3560 = vst [vmem:[#allocation2 + $0x448] sm:$0xff] %v3528
    %3561 = vst [vmem:[#allocation2 + $0x470] sm:$0xff] %v3529
    %3562 = vst [vmem:[#allocation2 + $0x498] sm:$0xff] %v3530
    %3563 = vst [vmem:[#allocation2 + $0x4c0] sm:$0xff] %v3531
    %3564 = vst [vmem:[#allocation2 + $0x4e8] sm:$0xff] %v3532
    %s3565 = scalar_lea.vmem [#allocation6], 768
    %v3566 = vld [vmem:[%s3565] sm:$0xf]
    %v3567 = vld [vmem:[%s3565 + $0x4] sm:$0xf]
    %v3568 = vld [vmem:[%s3565 + $0x8] sm:$0xf]
    %v3569 = vld [vmem:[%s3565 + $0xc] sm:$0xf]
    %v3570 = vld [vmem:[%s3565 + $0x10] sm:$0xf]
    %v3571 = vld [vmem:[%s3565 + $0x14] sm:$0xf]
    %v3572 = vld [vmem:[%s3565 + $0x18] sm:$0xf]
    %v3573 = vld [vmem:[%s3565 + $0x1c] sm:$0xf]
    %v3574 = vld [vmem:[%s3565 + $0x20] sm:$0xf]
    %v3575 = vld [vmem:[%s3565 + $0x24] sm:$0xf]
    %v3576 = vld [vmem:[%s3565 + $0x28] sm:$0xf]
    %v3577 = vld [vmem:[%s3565 + $0x2c] sm:$0xf]
    %v3578 = vld [vmem:[%s3565 + $0x30] sm:$0xf]
    %v3579 = vld [vmem:[%s3565 + $0x34] sm:$0xf]
    %v3580 = vld [vmem:[%s3565 + $0x38] sm:$0xf]
    %v3581 = vld [vmem:[%s3565 + $0x3c] sm:$0xf]
    %v3582 = vld [vmem:[%s3565 + $0x40] sm:$0xf]
    %v3583 = vld [vmem:[%s3565 + $0x44] sm:$0xf]
    %v3584 = vld [vmem:[%s3565 + $0x48] sm:$0xf]
    %v3585 = vld [vmem:[%s3565 + $0x4c] sm:$0xf]
    %v3586 = vld [vmem:[%s3565 + $0x50] sm:$0xf]
    %v3587 = vld [vmem:[%s3565 + $0x54] sm:$0xf]
    %v3588 = vld [vmem:[%s3565 + $0x58] sm:$0xf]
    %v3589 = vld [vmem:[%s3565 + $0x5c] sm:$0xf]
    %v3590 = vld [vmem:[%s3565 + $0x60] sm:$0xf]
    %v3591 = vld [vmem:[%s3565 + $0x64] sm:$0xf]
    %v3592 = vld [vmem:[%s3565 + $0x68] sm:$0xf]
    %v3593 = vld [vmem:[%s3565 + $0x6c] sm:$0xf]
    %v3594 = vld [vmem:[%s3565 + $0x70] sm:$0xf]
    %v3595 = vld [vmem:[%s3565 + $0x74] sm:$0xf]
    %v3596 = vld [vmem:[%s3565 + $0x78] sm:$0xf]
    %v3597 = vld [vmem:[%s3565 + $0x7c] sm:$0xf]
    %v3598 = vld [vmem:[%s3565 + $0x80] sm:$0xf]
    %v3599 = vld [vmem:[%s3565 + $0x84] sm:$0xf]
    %v3600 = vld [vmem:[%s3565 + $0x88] sm:$0xf]
    %v3601 = vld [vmem:[%s3565 + $0x8c] sm:$0xf]
    %v3602 = vld [vmem:[%s3565 + $0x90] sm:$0xf]
    %v3603 = vld [vmem:[%s3565 + $0x94] sm:$0xf]
    %v3604 = vld [vmem:[%s3565 + $0x98] sm:$0xf]
    %v3605 = vld [vmem:[%s3565 + $0x9c] sm:$0xf]
    %v3606 = vld [vmem:[%s3565 + $0xa0] sm:$0xf]
    %v3607 = vld [vmem:[%s3565 + $0xa4] sm:$0xf]
    %v3608 = vld [vmem:[%s3565 + $0xa8] sm:$0xf]
    %v3609 = vld [vmem:[%s3565 + $0xac] sm:$0xf]
    %v3610 = vld [vmem:[%s3565 + $0xb0] sm:$0xf]
    %v3611 = vld [vmem:[%s3565 + $0xb4] sm:$0xf]
    %v3612 = vld [vmem:[%s3565 + $0xb8] sm:$0xf]
    %v3613 = vld [vmem:[%s3565 + $0xbc] sm:$0xf]
    %v3614 = vld [vmem:[%s3565 + $0xc0] sm:$0xf]
    %v3615 = vld [vmem:[%s3565 + $0xc4] sm:$0xf]
    %v3616 = vld [vmem:[%s3565 + $0xc8] sm:$0xf]
    %v3617 = vld [vmem:[%s3565 + $0xcc] sm:$0xf]
    %v3618 = vld [vmem:[%s3565 + $0xd0] sm:$0xf]
    %v3619 = vld [vmem:[%s3565 + $0xd4] sm:$0xf]
    %v3620 = vld [vmem:[%s3565 + $0xd8] sm:$0xf]
    %v3621 = vld [vmem:[%s3565 + $0xdc] sm:$0xf]
    %v3622 = vld [vmem:[%s3565 + $0xe0] sm:$0xf]
    %v3623 = vld [vmem:[%s3565 + $0xe4] sm:$0xf]
    %v3624 = vld [vmem:[%s3565 + $0xe8] sm:$0xf]
    %v3625 = vld [vmem:[%s3565 + $0xec] sm:$0xf]
    %v3626 = vld [vmem:[%s3565 + $0xf0] sm:$0xf]
    %v3627 = vld [vmem:[%s3565 + $0xf4] sm:$0xf]
    %v3628 = vld [vmem:[%s3565 + $0xf8] sm:$0xf]
    %v3629 = vld [vmem:[%s3565 + $0xfc] sm:$0xf]
    %v3694 = vunpack.c.l.b16 %v3566
    %v3695 = vunpack.c.l.b16 %v3567
    %v3696 = vunpack.c.l.b16 %v3568
    %v3697 = vunpack.c.l.b16 %v3569
    %v3698 = vunpack.c.l.b16 %v3570
    %v3699 = vunpack.c.l.b16 %v3571
    %v3700 = vunpack.c.l.b16 %v3572
    %v3701 = vunpack.c.l.b16 %v3573
    %v3702 = vunpack.c.l.b16 %v3574
    %v3703 = vunpack.c.l.b16 %v3575
    %v3704 = vunpack.c.l.b16 %v3576
    %v3705 = vunpack.c.l.b16 %v3577
    %v3706 = vunpack.c.l.b16 %v3578
    %v3707 = vunpack.c.l.b16 %v3579
    %v3708 = vunpack.c.l.b16 %v3580
    %v3709 = vunpack.c.l.b16 %v3581
    %v3710 = vunpack.c.l.b16 %v3582
    %v3711 = vunpack.c.l.b16 %v3583
    %v3712 = vunpack.c.l.b16 %v3584
    %v3713 = vunpack.c.l.b16 %v3585
    %v3714 = vunpack.c.l.b16 %v3586
    %v3715 = vunpack.c.l.b16 %v3587
    %v3716 = vunpack.c.l.b16 %v3588
    %v3717 = vunpack.c.l.b16 %v3589
    %v3718 = vunpack.c.l.b16 %v3590
    %v3719 = vunpack.c.l.b16 %v3591
    %v3720 = vunpack.c.l.b16 %v3592
    %v3721 = vunpack.c.l.b16 %v3593
    %v3722 = vunpack.c.l.b16 %v3594
    %v3723 = vunpack.c.l.b16 %v3595
    %v3724 = vunpack.c.l.b16 %v3596
    %v3725 = vunpack.c.l.b16 %v3597
    %v3726 = vunpack.c.l.b16 %v3598
    %v3727 = vunpack.c.l.b16 %v3599
    %v3728 = vunpack.c.l.b16 %v3600
    %v3729 = vunpack.c.l.b16 %v3601
    %v3730 = vunpack.c.l.b16 %v3602
    %v3731 = vunpack.c.l.b16 %v3603
    %v3732 = vunpack.c.l.b16 %v3604
    %v3733 = vunpack.c.l.b16 %v3605
    %v3734 = vunpack.c.l.b16 %v3606
    %v3735 = vunpack.c.l.b16 %v3607
    %v3736 = vunpack.c.l.b16 %v3608
    %v3737 = vunpack.c.l.b16 %v3609
    %v3738 = vunpack.c.l.b16 %v3610
    %v3739 = vunpack.c.l.b16 %v3611
    %v3740 = vunpack.c.l.b16 %v3612
    %v3741 = vunpack.c.l.b16 %v3613
    %v3742 = vunpack.c.l.b16 %v3614
    %v3743 = vunpack.c.l.b16 %v3615
    %v3744 = vunpack.c.l.b16 %v3616
    %v3745 = vunpack.c.l.b16 %v3617
    %v3746 = vunpack.c.l.b16 %v3618
    %v3747 = vunpack.c.l.b16 %v3619
    %v3748 = vunpack.c.l.b16 %v3620
    %v3749 = vunpack.c.l.b16 %v3621
    %v3750 = vunpack.c.l.b16 %v3622
    %v3751 = vunpack.c.l.b16 %v3623
    %v3752 = vunpack.c.l.b16 %v3624
    %v3753 = vunpack.c.l.b16 %v3625
    %v3754 = vunpack.c.l.b16 %v3626
    %v3755 = vunpack.c.l.b16 %v3627
    %v3756 = vunpack.c.l.b16 %v3628
    %v3757 = vunpack.c.l.b16 %v3629
    %v3758 = vpack.c.b16 %v3695, %v3694
    %v3759 = vpack.c.b16 %v3697, %v3696
    %v3760 = vpack.c.b16 %v3699, %v3698
    %v3761 = vpack.c.b16 %v3701, %v3700
    %v3762 = vpack.c.b16 %v3703, %v3702
    %v3763 = vpack.c.b16 %v3705, %v3704
    %v3764 = vpack.c.b16 %v3707, %v3706
    %v3765 = vpack.c.b16 %v3709, %v3708
    %v3766 = vpack.c.b16 %v3711, %v3710
    %v3767 = vpack.c.b16 %v3713, %v3712
    %v3768 = vpack.c.b16 %v3715, %v3714
    %v3769 = vpack.c.b16 %v3717, %v3716
    %v3770 = vpack.c.b16 %v3719, %v3718
    %v3771 = vpack.c.b16 %v3721, %v3720
    %v3772 = vpack.c.b16 %v3723, %v3722
    %v3773 = vpack.c.b16 %v3725, %v3724
    %v3774 = vpack.c.b16 %v3727, %v3726
    %v3775 = vpack.c.b16 %v3729, %v3728
    %v3776 = vpack.c.b16 %v3731, %v3730
    %v3777 = vpack.c.b16 %v3733, %v3732
    %v3778 = vpack.c.b16 %v3735, %v3734
    %v3779 = vpack.c.b16 %v3737, %v3736
    %v3780 = vpack.c.b16 %v3739, %v3738
    %v3781 = vpack.c.b16 %v3741, %v3740
    %v3782 = vpack.c.b16 %v3743, %v3742
    %v3783 = vpack.c.b16 %v3745, %v3744
    %v3784 = vpack.c.b16 %v3747, %v3746
    %v3785 = vpack.c.b16 %v3749, %v3748
    %v3786 = vpack.c.b16 %v3751, %v3750
    %v3787 = vpack.c.b16 %v3753, %v3752
    %v3788 = vpack.c.b16 %v3755, %v3754
    %v3789 = vpack.c.b16 %v3757, %v3756
    %v3822 = vmul.bf16 %v1740, %v3758
    %v3823 = vmul.bf16 %v1741, %v3759
    %v3824 = vmul.bf16 %v1742, %v3760
    %v3825 = vmul.bf16 %v1743, %v3761
    %v3826 = vmul.bf16 %v1744, %v3762
    %v3827 = vmul.bf16 %v1745, %v3763
    %v3828 = vmul.bf16 %v1746, %v3764
    %v3829 = vmul.bf16 %v1747, %v3765
    %v3830 = vmul.bf16 %v1748, %v3766
    %v3831 = vmul.bf16 %v1749, %v3767
    %v3832 = vmul.bf16 %v1750, %v3768
    %v3833 = vmul.bf16 %v1751, %v3769
    %v3834 = vmul.bf16 %v1752, %v3770
    %v3835 = vmul.bf16 %v1753, %v3771
    %v3836 = vmul.bf16 %v1754, %v3772
    %v3837 = vmul.bf16 %v1755, %v3773
    %v3838 = vmul.bf16 %v1756, %v3774
    %v3839 = vmul.bf16 %v1757, %v3775
    %v3840 = vmul.bf16 %v1758, %v3776
    %v3841 = vmul.bf16 %v1759, %v3777
    %v3842 = vmul.bf16 %v1760, %v3778
    %v3843 = vmul.bf16 %v1761, %v3779
    %v3844 = vmul.bf16 %v1762, %v3780
    %v3845 = vmul.bf16 %v1763, %v3781
    %v3846 = vmul.bf16 %v1764, %v3782
    %v3847 = vmul.bf16 %v1765, %v3783
    %v3848 = vmul.bf16 %v1766, %v3784
    %v3849 = vmul.bf16 %v1767, %v3785
    %v3850 = vmul.bf16 %v1768, %v3786
    %v3851 = vmul.bf16 %v1769, %v3787
    %v3852 = vmul.bf16 %v1738, %v3788
    %v3853 = vmul.bf16 %v1739, %v3789
    %3854 = vst [vmem:[#allocation2 + $0x18] sm:$0xff] %v3822
    %3855 = vst [vmem:[#allocation2 + $0x40] sm:$0xff] %v3823
    %3856 = vst [vmem:[#allocation2 + $0x68] sm:$0xff] %v3824
    %3857 = vst [vmem:[#allocation2 + $0x90] sm:$0xff] %v3825
    %3858 = vst [vmem:[#allocation2 + $0xb8] sm:$0xff] %v3826
    %3859 = vst [vmem:[#allocation2 + $0xe0] sm:$0xff] %v3827
    %3860 = vst [vmem:[#allocation2 + $0x108] sm:$0xff] %v3828
    %3861 = vst [vmem:[#allocation2 + $0x130] sm:$0xff] %v3829
    %3862 = vst [vmem:[#allocation2 + $0x158] sm:$0xff] %v3830
    %3863 = vst [vmem:[#allocation2 + $0x180] sm:$0xff] %v3831
    %3864 = vst [vmem:[#allocation2 + $0x1a8] sm:$0xff] %v3832
    %3865 = vst [vmem:[#allocation2 + $0x1d0] sm:$0xff] %v3833
    %3866 = vst [vmem:[#allocation2 + $0x1f8] sm:$0xff] %v3834
    %3867 = vst [vmem:[#allocation2 + $0x220] sm:$0xff] %v3835
    %3868 = vst [vmem:[#allocation2 + $0x248] sm:$0xff] %v3836
    %3869 = vst [vmem:[#allocation2 + $0x270] sm:$0xff] %v3837
    %3870 = vst [vmem:[#allocation2 + $0x298] sm:$0xff] %v3838
    %3871 = vst [vmem:[#allocation2 + $0x2c0] sm:$0xff] %v3839
    %3872 = vst [vmem:[#allocation2 + $0x2e8] sm:$0xff] %v3840
    %3873 = vst [vmem:[#allocation2 + $0x310] sm:$0xff] %v3841
    %3874 = vst [vmem:[#allocation2 + $0x338] sm:$0xff] %v3842
    %3875 = vst [vmem:[#allocation2 + $0x360] sm:$0xff] %v3843
    %3876 = vst [vmem:[#allocation2 + $0x388] sm:$0xff] %v3844
    %3877 = vst [vmem:[#allocation2 + $0x3b0] sm:$0xff] %v3845
    %3878 = vst [vmem:[#allocation2 + $0x3d8] sm:$0xff] %v3846
    %3879 = vst [vmem:[#allocation2 + $0x400] sm:$0xff] %v3847
    %3880 = vst [vmem:[#allocation2 + $0x428] sm:$0xff] %v3848
    %3881 = vst [vmem:[#allocation2 + $0x450] sm:$0xff] %v3849
    %3882 = vst [vmem:[#allocation2 + $0x478] sm:$0xff] %v3850
    %3883 = vst [vmem:[#allocation2 + $0x4a0] sm:$0xff] %v3851
    %3884 = vst [vmem:[#allocation2 + $0x4c8] sm:$0xff] %v3852
    %3885 = vst [vmem:[#allocation2 + $0x4f0] sm:$0xff] %v3853
    %v3886 = vsel %vm183, %v2215, %v2961
    %v3887 = vsel %vm183, %v2214, %v2963
    %v3888 = vsel %vm183, %v2213, %v2965
    %v3889 = vsel %vm183, %v2212, %v2967
    %v3890 = vsel %vm183, %v2211, %v2969
    %v3891 = vsel %vm183, %v2210, %v2971
    %v3892 = vsel %vm183, %v2209, %v2973
    %v3893 = vsel %vm183, %v2208, %v2975
    %v3894 = vsel %vm183, %v2207, %v2977
    %v3895 = vsel %vm183, %v2206, %v2979
    %v3896 = vsel %vm183, %v2205, %v2981
    %v3897 = vsel %vm183, %v2204, %v2983
    %v3898 = vsel %vm183, %v2203, %v2985
    %v3899 = vsel %vm183, %v2202, %v2987
    %v3900 = vsel %vm183, %v2201, %v2989
    %v3901 = vsel %vm183, %v2200, %v2991
    %v3902 = vsel %vm183, %v2199, %v2993
    %v3903 = vsel %vm183, %v2198, %v2995
    %v3904 = vsel %vm183, %v2197, %v2997
    %v3905 = vsel %vm183, %v2196, %v2999
    %v3906 = vsel %vm183, %v2195, %v3001
    %v3907 = vsel %vm183, %v2194, %v3003
    %v3908 = vsel %vm183, %v2193, %v3005
    %v3909 = vsel %vm183, %v2192, %v3007
    %v3910 = vsel %vm183, %v2191, %v3009
    %v3911 = vsel %vm183, %v2190, %v3011
    %v3912 = vsel %vm183, %v2189, %v3013
    %v3913 = vsel %vm183, %v2188, %v3015
    %v3914 = vsel %vm183, %v2187, %v3017
    %v3915 = vsel %vm183, %v2186, %v3019
    %v3916 = vsel %vm183, %v2185, %v3021
    %v3917 = vsel %vm183, %v2184, %v3023
    %v3918 = vsel %vm183, %v2183, %v3025
    %v3919 = vsel %vm183, %v2182, %v3027
    %v3920 = vsel %vm183, %v2181, %v3029
    %v3921 = vsel %vm183, %v2180, %v3031
    %v3922 = vsel %vm183, %v2179, %v3033
    %v3923 = vsel %vm183, %v2178, %v3035
    %v3924 = vsel %vm183, %v2177, %v3037
    %v3925 = vsel %vm183, %v2176, %v3039
    %v3926 = vsel %vm183, %v2175, %v3041
    %v3927 = vsel %vm183, %v2174, %v3043
    %v3928 = vsel %vm183, %v2173, %v3045
    %v3929 = vsel %vm183, %v2172, %v3047
    %v3930 = vsel %vm183, %v2171, %v3049
    %v3931 = vsel %vm183, %v2170, %v3051
    %v3932 = vsel %vm183, %v2169, %v3053
    %v3933 = vsel %vm183, %v2168, %v3055
    %v3934 = vsel %vm183, %v2167, %v3057
    %v3935 = vsel %vm183, %v2166, %v3059
    %v3936 = vsel %vm183, %v2165, %v3061
    %v3937 = vsel %vm183, %v2164, %v3063
    %v3938 = vsel %vm183, %v2163, %v3065
    %v3939 = vsel %vm183, %v2162, %v3067
    %v3940 = vsel %vm183, %v2161, %v3069
    %v3941 = vsel %vm183, %v2160, %v3071
    %v3942 = vsel %vm183, %v2159, %v3073
    %v3943 = vsel %vm183, %v2158, %v3075
    %v3944 = vsel %vm183, %v2157, %v3077
    %v3945 = vsel %vm183, %v2156, %v3079
    %v3946 = vsel %vm183, %v2155, %v3081
    %v3947 = vsel %vm183, %v2218, %v3083
    %v3948 = vsel %vm183, %v2217, %v2957
    %v3949 = vsel %vm183, %v2216, %v2959
    %v3950 = vpack.c.bf16 %v3887, %v3886
    %v3951 = vpack.c.bf16 %v3889, %v3888
    %v3952 = vpack.c.bf16 %v3891, %v3890
    %v3953 = vpack.c.bf16 %v3893, %v3892
    %v3954 = vpack.c.bf16 %v3895, %v3894
    %v3955 = vpack.c.bf16 %v3897, %v3896
    %v3956 = vpack.c.bf16 %v3899, %v3898
    %v3957 = vpack.c.bf16 %v3901, %v3900
    %v3958 = vpack.c.bf16 %v3903, %v3902
    %v3959 = vpack.c.bf16 %v3905, %v3904
    %v3960 = vpack.c.bf16 %v3907, %v3906
    %v3961 = vpack.c.bf16 %v3909, %v3908
    %v3962 = vpack.c.bf16 %v3911, %v3910
    %v3963 = vpack.c.bf16 %v3913, %v3912
    %v3964 = vpack.c.bf16 %v3915, %v3914
    %v3965 = vpack.c.bf16 %v3917, %v3916
    %v3966 = vpack.c.bf16 %v3919, %v3918
    %v3967 = vpack.c.bf16 %v3921, %v3920
    %v3968 = vpack.c.bf16 %v3923, %v3922
    %v3969 = vpack.c.bf16 %v3925, %v3924
    %v3970 = vpack.c.bf16 %v3927, %v3926
    %v3971 = vpack.c.bf16 %v3929, %v3928
    %v3972 = vpack.c.bf16 %v3931, %v3930
    %v3973 = vpack.c.bf16 %v3933, %v3932
    %v3974 = vpack.c.bf16 %v3935, %v3934
    %v3975 = vpack.c.bf16 %v3937, %v3936
    %v3976 = vpack.c.bf16 %v3939, %v3938
    %v3977 = vpack.c.bf16 %v3941, %v3940
    %v3978 = vpack.c.bf16 %v3943, %v3942
    %v3979 = vpack.c.bf16 %v3945, %v3944
    %v3980 = vpack.c.bf16 %v3947, %v3946
    %v3981 = vpack.c.bf16 %v3949, %v3948
    %s3982 = scalar_lea.vmem [#allocation6], 1024
    %v3983 = vld [vmem:[%s3982] sm:$0xf]
    %v3984 = vld [vmem:[%s3982 + $0x4] sm:$0xf]
    %v3985 = vld [vmem:[%s3982 + $0x8] sm:$0xf]
    %v3986 = vld [vmem:[%s3982 + $0xc] sm:$0xf]
    %v3987 = vld [vmem:[%s3982 + $0x10] sm:$0xf]
    %v3988 = vld [vmem:[%s3982 + $0x14] sm:$0xf]
    %v3989 = vld [vmem:[%s3982 + $0x18] sm:$0xf]
    %v3990 = vld [vmem:[%s3982 + $0x1c] sm:$0xf]
    %v3991 = vld [vmem:[%s3982 + $0x20] sm:$0xf]
    %v3992 = vld [vmem:[%s3982 + $0x24] sm:$0xf]
    %v3993 = vld [vmem:[%s3982 + $0x28] sm:$0xf]
    %v3994 = vld [vmem:[%s3982 + $0x2c] sm:$0xf]
    %v3995 = vld [vmem:[%s3982 + $0x30] sm:$0xf]
    %v3996 = vld [vmem:[%s3982 + $0x34] sm:$0xf]
    %v3997 = vld [vmem:[%s3982 + $0x38] sm:$0xf]
    %v3998 = vld [vmem:[%s3982 + $0x3c] sm:$0xf]
    %v3999 = vld [vmem:[%s3982 + $0x40] sm:$0xf]
    %v4000 = vld [vmem:[%s3982 + $0x44] sm:$0xf]
    %v4001 = vld [vmem:[%s3982 + $0x48] sm:$0xf]
    %v4002 = vld [vmem:[%s3982 + $0x4c] sm:$0xf]
    %v4003 = vld [vmem:[%s3982 + $0x50] sm:$0xf]
    %v4004 = vld [vmem:[%s3982 + $0x54] sm:$0xf]
    %v4005 = vld [vmem:[%s3982 + $0x58] sm:$0xf]
    %v4006 = vld [vmem:[%s3982 + $0x5c] sm:$0xf]
    %v4007 = vld [vmem:[%s3982 + $0x60] sm:$0xf]
    %v4008 = vld [vmem:[%s3982 + $0x64] sm:$0xf]
    %v4009 = vld [vmem:[%s3982 + $0x68] sm:$0xf]
    %v4010 = vld [vmem:[%s3982 + $0x6c] sm:$0xf]
    %v4011 = vld [vmem:[%s3982 + $0x70] sm:$0xf]
    %v4012 = vld [vmem:[%s3982 + $0x74] sm:$0xf]
    %v4013 = vld [vmem:[%s3982 + $0x78] sm:$0xf]
    %v4014 = vld [vmem:[%s3982 + $0x7c] sm:$0xf]
    %v4015 = vld [vmem:[%s3982 + $0x80] sm:$0xf]
    %v4016 = vld [vmem:[%s3982 + $0x84] sm:$0xf]
    %v4017 = vld [vmem:[%s3982 + $0x88] sm:$0xf]
    %v4018 = vld [vmem:[%s3982 + $0x8c] sm:$0xf]
    %v4019 = vld [vmem:[%s3982 + $0x90] sm:$0xf]
    %v4020 = vld [vmem:[%s3982 + $0x94] sm:$0xf]
    %v4021 = vld [vmem:[%s3982 + $0x98] sm:$0xf]
    %v4022 = vld [vmem:[%s3982 + $0x9c] sm:$0xf]
    %v4023 = vld [vmem:[%s3982 + $0xa0] sm:$0xf]
    %v4024 = vld [vmem:[%s3982 + $0xa4] sm:$0xf]
    %v4025 = vld [vmem:[%s3982 + $0xa8] sm:$0xf]
    %v4026 = vld [vmem:[%s3982 + $0xac] sm:$0xf]
    %v4027 = vld [vmem:[%s3982 + $0xb0] sm:$0xf]
    %v4028 = vld [vmem:[%s3982 + $0xb4] sm:$0xf]
    %v4029 = vld [vmem:[%s3982 + $0xb8] sm:$0xf]
    %v4030 = vld [vmem:[%s3982 + $0xbc] sm:$0xf]
    %v4031 = vld [vmem:[%s3982 + $0xc0] sm:$0xf]
    %v4032 = vld [vmem:[%s3982 + $0xc4] sm:$0xf]
    %v4033 = vld [vmem:[%s3982 + $0xc8] sm:$0xf]
    %v4034 = vld [vmem:[%s3982 + $0xcc] sm:$0xf]
    %v4035 = vld [vmem:[%s3982 + $0xd0] sm:$0xf]
    %v4036 = vld [vmem:[%s3982 + $0xd4] sm:$0xf]
    %v4037 = vld [vmem:[%s3982 + $0xd8] sm:$0xf]
    %v4038 = vld [vmem:[%s3982 + $0xdc] sm:$0xf]
    %v4039 = vld [vmem:[%s3982 + $0xe0] sm:$0xf]
    %v4040 = vld [vmem:[%s3982 + $0xe4] sm:$0xf]
    %v4041 = vld [vmem:[%s3982 + $0xe8] sm:$0xf]
    %v4042 = vld [vmem:[%s3982 + $0xec] sm:$0xf]
    %v4043 = vld [vmem:[%s3982 + $0xf0] sm:$0xf]
    %v4044 = vld [vmem:[%s3982 + $0xf4] sm:$0xf]
    %v4045 = vld [vmem:[%s3982 + $0xf8] sm:$0xf]
    %v4046 = vld [vmem:[%s3982 + $0xfc] sm:$0xf]
    %v4111 = vunpack.c.l.b16 %v3983
    %v4112 = vunpack.c.l.b16 %v3984
    %v4113 = vunpack.c.l.b16 %v3985
    %v4114 = vunpack.c.l.b16 %v3986
    %v4115 = vunpack.c.l.b16 %v3987
    %v4116 = vunpack.c.l.b16 %v3988
    %v4117 = vunpack.c.l.b16 %v3989
    %v4118 = vunpack.c.l.b16 %v3990
    %v4119 = vunpack.c.l.b16 %v3991
    %v4120 = vunpack.c.l.b16 %v3992
    %v4121 = vunpack.c.l.b16 %v3993
    %v4122 = vunpack.c.l.b16 %v3994
    %v4123 = vunpack.c.l.b16 %v3995
    %v4124 = vunpack.c.l.b16 %v3996
    %v4125 = vunpack.c.l.b16 %v3997
    %v4126 = vunpack.c.l.b16 %v3998
    %v4127 = vunpack.c.l.b16 %v3999
    %v4128 = vunpack.c.l.b16 %v4000
    %v4129 = vunpack.c.l.b16 %v4001
    %v4130 = vunpack.c.l.b16 %v4002
    %v4131 = vunpack.c.l.b16 %v4003
    %v4132 = vunpack.c.l.b16 %v4004
    %v4133 = vunpack.c.l.b16 %v4005
    %v4134 = vunpack.c.l.b16 %v4006
    %v4135 = vunpack.c.l.b16 %v4007
    %v4136 = vunpack.c.l.b16 %v4008
    %v4137 = vunpack.c.l.b16 %v4009
    %v4138 = vunpack.c.l.b16 %v4010
    %v4139 = vunpack.c.l.b16 %v4011
    %v4140 = vunpack.c.l.b16 %v4012
    %v4141 = vunpack.c.l.b16 %v4013
    %v4142 = vunpack.c.l.b16 %v4014
    %v4143 = vunpack.c.l.b16 %v4015
    %v4144 = vunpack.c.l.b16 %v4016
    %v4145 = vunpack.c.l.b16 %v4017
    %v4146 = vunpack.c.l.b16 %v4018
    %v4147 = vunpack.c.l.b16 %v4019
    %v4148 = vunpack.c.l.b16 %v4020
    %v4149 = vunpack.c.l.b16 %v4021
    %v4150 = vunpack.c.l.b16 %v4022
    %v4151 = vunpack.c.l.b16 %v4023
    %v4152 = vunpack.c.l.b16 %v4024
    %v4153 = vunpack.c.l.b16 %v4025
    %v4154 = vunpack.c.l.b16 %v4026
    %v4155 = vunpack.c.l.b16 %v4027
    %v4156 = vunpack.c.l.b16 %v4028
    %v4157 = vunpack.c.l.b16 %v4029
    %v4158 = vunpack.c.l.b16 %v4030
    %v4159 = vunpack.c.l.b16 %v4031
    %v4160 = vunpack.c.l.b16 %v4032
    %v4161 = vunpack.c.l.b16 %v4033
    %v4162 = vunpack.c.l.b16 %v4034
    %v4163 = vunpack.c.l.b16 %v4035
    %v4164 = vunpack.c.l.b16 %v4036
    %v4165 = vunpack.c.l.b16 %v4037
    %v4166 = vunpack.c.l.b16 %v4038
    %v4167 = vunpack.c.l.b16 %v4039
    %v4168 = vunpack.c.l.b16 %v4040
    %v4169 = vunpack.c.l.b16 %v4041
    %v4170 = vunpack.c.l.b16 %v4042
    %v4171 = vunpack.c.l.b16 %v4043
    %v4172 = vunpack.c.l.b16 %v4044
    %v4173 = vunpack.c.l.b16 %v4045
    %v4174 = vunpack.c.l.b16 %v4046
    %v4175 = vpack.c.b16 %v4112, %v4111
    %v4176 = vpack.c.b16 %v4114, %v4113
    %v4177 = vpack.c.b16 %v4116, %v4115
    %v4178 = vpack.c.b16 %v4118, %v4117
    %v4179 = vpack.c.b16 %v4120, %v4119
    %v4180 = vpack.c.b16 %v4122, %v4121
    %v4181 = vpack.c.b16 %v4124, %v4123
    %v4182 = vpack.c.b16 %v4126, %v4125
    %v4183 = vpack.c.b16 %v4128, %v4127
    %v4184 = vpack.c.b16 %v4130, %v4129
    %v4185 = vpack.c.b16 %v4132, %v4131
    %v4186 = vpack.c.b16 %v4134, %v4133
    %v4187 = vpack.c.b16 %v4136, %v4135
    %v4188 = vpack.c.b16 %v4138, %v4137
    %v4189 = vpack.c.b16 %v4140, %v4139
    %v4190 = vpack.c.b16 %v4142, %v4141
    %v4191 = vpack.c.b16 %v4144, %v4143
    %v4192 = vpack.c.b16 %v4146, %v4145
    %v4193 = vpack.c.b16 %v4148, %v4147
    %v4194 = vpack.c.b16 %v4150, %v4149
    %v4195 = vpack.c.b16 %v4152, %v4151
    %v4196 = vpack.c.b16 %v4154, %v4153
    %v4197 = vpack.c.b16 %v4156, %v4155
    %v4198 = vpack.c.b16 %v4158, %v4157
    %v4199 = vpack.c.b16 %v4160, %v4159
    %v4200 = vpack.c.b16 %v4162, %v4161
    %v4201 = vpack.c.b16 %v4164, %v4163
    %v4202 = vpack.c.b16 %v4166, %v4165
    %v4203 = vpack.c.b16 %v4168, %v4167
    %v4204 = vpack.c.b16 %v4170, %v4169
    %v4205 = vpack.c.b16 %v4172, %v4171
    %v4206 = vpack.c.b16 %v4174, %v4173
    %v4239 = vmul.bf16 %v3950, %v4175
    %v4240 = vmul.bf16 %v3951, %v4176
    %v4241 = vmul.bf16 %v3952, %v4177
    %v4242 = vmul.bf16 %v3953, %v4178
    %v4243 = vmul.bf16 %v3954, %v4179
    %v4244 = vmul.bf16 %v3955, %v4180
    %v4245 = vmul.bf16 %v3956, %v4181
    %v4246 = vmul.bf16 %v3957, %v4182
    %v4247 = vmul.bf16 %v3958, %v4183
    %v4248 = vmul.bf16 %v3959, %v4184
    %v4249 = vmul.bf16 %v3960, %v4185
    %v4250 = vmul.bf16 %v3961, %v4186
    %v4251 = vmul.bf16 %v3962, %v4187
    %v4252 = vmul.bf16 %v3963, %v4188
    %v4253 = vmul.bf16 %v3964, %v4189
    %v4254 = vmul.bf16 %v3965, %v4190
    %v4255 = vmul.bf16 %v3966, %v4191
    %v4256 = vmul.bf16 %v3967, %v4192
    %v4257 = vmul.bf16 %v3968, %v4193
    %v4258 = vmul.bf16 %v3969, %v4194
    %v4259 = vmul.bf16 %v3970, %v4195
    %v4260 = vmul.bf16 %v3971, %v4196
    %v4261 = vmul.bf16 %v3972, %v4197
    %v4262 = vmul.bf16 %v3973, %v4198
    %v4263 = vmul.bf16 %v3974, %v4199
    %v4264 = vmul.bf16 %v3975, %v4200
    %v4265 = vmul.bf16 %v3976, %v4201
    %v4266 = vmul.bf16 %v3977, %v4202
    %v4267 = vmul.bf16 %v3978, %v4203
    %v4268 = vmul.bf16 %v3979, %v4204
    %v4269 = vmul.bf16 %v3980, %v4205
    %v4270 = vmul.bf16 %v3981, %v4206
    %4271 = vst [vmem:[#allocation2 + $0x20] sm:$0xff] %v4239
    %4272 = vst [vmem:[#allocation2 + $0x48] sm:$0xff] %v4240
    %4273 = vst [vmem:[#allocation2 + $0x70] sm:$0xff] %v4241
    %4274 = vst [vmem:[#allocation2 + $0x98] sm:$0xff] %v4242
    %4275 = vst [vmem:[#allocation2 + $0xc0] sm:$0xff] %v4243
    %4276 = vst [vmem:[#allocation2 + $0xe8] sm:$0xff] %v4244
    %4277 = vst [vmem:[#allocation2 + $0x110] sm:$0xff] %v4245
    %4278 = vst [vmem:[#allocation2 + $0x138] sm:$0xff] %v4246
    %4279 = vst [vmem:[#allocation2 + $0x160] sm:$0xff] %v4247
    %4280 = vst [vmem:[#allocation2 + $0x188] sm:$0xff] %v4248
    %4281 = vst [vmem:[#allocation2 + $0x1b0] sm:$0xff] %v4249
    %4282 = vst [vmem:[#allocation2 + $0x1d8] sm:$0xff] %v4250
    %4283 = vst [vmem:[#allocation2 + $0x200] sm:$0xff] %v4251
    %4284 = vst [vmem:[#allocation2 + $0x228] sm:$0xff] %v4252
    %4285 = vst [vmem:[#allocation2 + $0x250] sm:$0xff] %v4253
    %4286 = vst [vmem:[#allocation2 + $0x278] sm:$0xff] %v4254
    %4287 = vst [vmem:[#allocation2 + $0x2a0] sm:$0xff] %v4255
    %4288 = vst [vmem:[#allocation2 + $0x2c8] sm:$0xff] %v4256
    %4289 = vst [vmem:[#allocation2 + $0x2f0] sm:$0xff] %v4257
    %4290 = vst [vmem:[#allocation2 + $0x318] sm:$0xff] %v4258
    %4291 = vst [vmem:[#allocation2 + $0x340] sm:$0xff] %v4259
    %4292 = vst [vmem:[#allocation2 + $0x368] sm:$0xff] %v4260
    %4293 = vst [vmem:[#allocation2 + $0x390] sm:$0xff] %v4261
    %4294 = vst [vmem:[#allocation2 + $0x3b8] sm:$0xff] %v4262
    %4295 = vst [vmem:[#allocation2 + $0x3e0] sm:$0xff] %v4263
    %4296 = vst [vmem:[#allocation2 + $0x408] sm:$0xff] %v4264
    %4297 = vst [vmem:[#allocation2 + $0x430] sm:$0xff] %v4265
    %4298 = vst [vmem:[#allocation2 + $0x458] sm:$0xff] %v4266
    %4299 = vst [vmem:[#allocation2 + $0x480] sm:$0xff] %v4267
    %4300 = vst [vmem:[#allocation2 + $0x4a8] sm:$0xff] %v4268
    %4301 = vst [vmem:[#allocation2 + $0x4d0] sm:$0xff] %v4269
    %4302 = vst [vmem:[#allocation2 + $0x4f8] sm:$0xff] %v4270
    %v4303 = vld [vmem:[#allocation2] sm:$0xff]
    %v4304 = vld [vmem:[#allocation2 + $0x8] sm:$0xff]
    %v4305 = vld [vmem:[#allocation2 + $0x10] sm:$0xff]
    %v4306 = vld [vmem:[#allocation2 + $0x18] sm:$0xff]
    %v4307 = vld [vmem:[#allocation2 + $0x20] sm:$0xff]
    %v4308 = vld [vmem:[#allocation2 + $0x28] sm:$0xff]
    %v4309 = vld [vmem:[#allocation2 + $0x30] sm:$0xff]
    %v4310 = vld [vmem:[#allocation2 + $0x38] sm:$0xff]
    %v4311 = vld [vmem:[#allocation2 + $0x40] sm:$0xff]
    %v4312 = vld [vmem:[#allocation2 + $0x48] sm:$0xff]
    %v4313 = vld [vmem:[#allocation2 + $0x50] sm:$0xff]
    %v4314 = vld [vmem:[#allocation2 + $0x58] sm:$0xff]
    %v4315 = vld [vmem:[#allocation2 + $0x60] sm:$0xff]
    %v4316 = vld [vmem:[#allocation2 + $0x68] sm:$0xff]
    %v4317 = vld [vmem:[#allocation2 + $0x70] sm:$0xff]
    %v4318 = vld [vmem:[#allocation2 + $0x78] sm:$0xff]
    %v4319 = vld [vmem:[#allocation2 + $0x80] sm:$0xff]
    %v4320 = vld [vmem:[#allocation2 + $0x88] sm:$0xff]
    %v4321 = vld [vmem:[#allocation2 + $0x90] sm:$0xff]
    %v4322 = vld [vmem:[#allocation2 + $0x98] sm:$0xff]
    %v4323 = vld [vmem:[#allocation2 + $0xa0] sm:$0xff]
    %v4324 = vld [vmem:[#allocation2 + $0xa8] sm:$0xff]
    %v4325 = vld [vmem:[#allocation2 + $0xb0] sm:$0xff]
    %v4326 = vld [vmem:[#allocation2 + $0xb8] sm:$0xff]
    %v4327 = vld [vmem:[#allocation2 + $0xc0] sm:$0xff]
    %v4328 = vld [vmem:[#allocation2 + $0xc8] sm:$0xff]
    %v4329 = vld [vmem:[#allocation2 + $0xd0] sm:$0xff]
    %v4330 = vld [vmem:[#allocation2 + $0xd8] sm:$0xff]
    %v4331 = vld [vmem:[#allocation2 + $0xe0] sm:$0xff]
    %v4332 = vld [vmem:[#allocation2 + $0xe8] sm:$0xff]
    %v4333 = vld [vmem:[#allocation2 + $0xf0] sm:$0xff]
    %v4334 = vld [vmem:[#allocation2 + $0xf8] sm:$0xff]
    %v4335 = vld [vmem:[#allocation2 + $0x100] sm:$0xff]
    %v4336 = vld [vmem:[#allocation2 + $0x108] sm:$0xff]
    %v4337 = vld [vmem:[#allocation2 + $0x110] sm:$0xff]
    %v4338 = vld [vmem:[#allocation2 + $0x118] sm:$0xff]
    %v4339 = vld [vmem:[#allocation2 + $0x120] sm:$0xff]
    %v4340 = vld [vmem:[#allocation2 + $0x128] sm:$0xff]
    %v4341 = vld [vmem:[#allocation2 + $0x130] sm:$0xff]
    %v4342 = vld [vmem:[#allocation2 + $0x138] sm:$0xff]
    %v4343 = vld [vmem:[#allocation2 + $0x140] sm:$0xff]
    %v4344 = vld [vmem:[#allocation2 + $0x148] sm:$0xff]
    %v4345 = vld [vmem:[#allocation2 + $0x150] sm:$0xff]
    %v4346 = vld [vmem:[#allocation2 + $0x158] sm:$0xff]
    %v4347 = vld [vmem:[#allocation2 + $0x160] sm:$0xff]
    %v4348 = vld [vmem:[#allocation2 + $0x168] sm:$0xff]
    %v4349 = vld [vmem:[#allocation2 + $0x170] sm:$0xff]
    %v4350 = vld [vmem:[#allocation2 + $0x178] sm:$0xff]
    %v4351 = vld [vmem:[#allocation2 + $0x180] sm:$0xff]
    %v4352 = vld [vmem:[#allocation2 + $0x188] sm:$0xff]
    %v4353 = vld [vmem:[#allocation2 + $0x190] sm:$0xff]
    %v4354 = vld [vmem:[#allocation2 + $0x198] sm:$0xff]
    %v4355 = vld [vmem:[#allocation2 + $0x1a0] sm:$0xff]
    %v4356 = vld [vmem:[#allocation2 + $0x1a8] sm:$0xff]
    %v4357 = vld [vmem:[#allocation2 + $0x1b0] sm:$0xff]
    %v4358 = vld [vmem:[#allocation2 + $0x1b8] sm:$0xff]
    %v4359 = vld [vmem:[#allocation2 + $0x1c0] sm:$0xff]
    %v4360 = vld [vmem:[#allocation2 + $0x1c8] sm:$0xff]
    %v4361 = vld [vmem:[#allocation2 + $0x1d0] sm:$0xff]
    %v4362 = vld [vmem:[#allocation2 + $0x1d8] sm:$0xff]
    %v4363 = vld [vmem:[#allocation2 + $0x1e0] sm:$0xff]
    %v4364 = vld [vmem:[#allocation2 + $0x1e8] sm:$0xff]
    %v4365 = vld [vmem:[#allocation2 + $0x1f0] sm:$0xff]
    %v4366 = vld [vmem:[#allocation2 + $0x1f8] sm:$0xff]
    %v4367 = vld [vmem:[#allocation2 + $0x200] sm:$0xff]
    %v4368 = vld [vmem:[#allocation2 + $0x208] sm:$0xff]
    %v4369 = vld [vmem:[#allocation2 + $0x210] sm:$0xff]
    %v4370 = vld [vmem:[#allocation2 + $0x218] sm:$0xff]
    %v4371 = vld [vmem:[#allocation2 + $0x220] sm:$0xff]
    %v4372 = vld [vmem:[#allocation2 + $0x228] sm:$0xff]
    %v4373 = vld [vmem:[#allocation2 + $0x230] sm:$0xff]
    %v4374 = vld [vmem:[#allocation2 + $0x238] sm:$0xff]
    %v4375 = vld [vmem:[#allocation2 + $0x240] sm:$0xff]
    %v4376 = vld [vmem:[#allocation2 + $0x248] sm:$0xff]
    %v4377 = vld [vmem:[#allocation2 + $0x250] sm:$0xff]
    %v4378 = vld [vmem:[#allocation2 + $0x258] sm:$0xff]
    %v4379 = vld [vmem:[#allocation2 + $0x260] sm:$0xff]
    %v4380 = vld [vmem:[#allocation2 + $0x268] sm:$0xff]
    %v4381 = vld [vmem:[#allocation2 + $0x270] sm:$0xff]
    %v4382 = vld [vmem:[#allocation2 + $0x278] sm:$0xff]
    %v4383 = vld [vmem:[#allocation2 + $0x280] sm:$0xff]
    %v4384 = vld [vmem:[#allocation2 + $0x288] sm:$0xff]
    %v4385 = vld [vmem:[#allocation2 + $0x290] sm:$0xff]
    %v4386 = vld [vmem:[#allocation2 + $0x298] sm:$0xff]
    %v4387 = vld [vmem:[#allocation2 + $0x2a0] sm:$0xff]
    %v4388 = vld [vmem:[#allocation2 + $0x2a8] sm:$0xff]
    %v4389 = vld [vmem:[#allocation2 + $0x2b0] sm:$0xff]
    %v4390 = vld [vmem:[#allocation2 + $0x2b8] sm:$0xff]
    %v4391 = vld [vmem:[#allocation2 + $0x2c0] sm:$0xff]
    %v4392 = vld [vmem:[#allocation2 + $0x2c8] sm:$0xff]
    %v4393 = vld [vmem:[#allocation2 + $0x2d0] sm:$0xff]
    %v4394 = vld [vmem:[#allocation2 + $0x2d8] sm:$0xff]
    %v4395 = vld [vmem:[#allocation2 + $0x2e0] sm:$0xff]
    %v4396 = vld [vmem:[#allocation2 + $0x2e8] sm:$0xff]
    %v4397 = vld [vmem:[#allocation2 + $0x2f0] sm:$0xff]
    %v4398 = vld [vmem:[#allocation2 + $0x2f8] sm:$0xff]
    %v4399 = vld [vmem:[#allocation2 + $0x300] sm:$0xff]
    %v4400 = vld [vmem:[#allocation2 + $0x308] sm:$0xff]
    %v4401 = vld [vmem:[#allocation2 + $0x310] sm:$0xff]
    %v4402 = vld [vmem:[#allocation2 + $0x318] sm:$0xff]
    %v4403 = vld [vmem:[#allocation2 + $0x320] sm:$0xff]
    %v4404 = vld [vmem:[#allocation2 + $0x328] sm:$0xff]
    %v4405 = vld [vmem:[#allocation2 + $0x330] sm:$0xff]
    %v4406 = vld [vmem:[#allocation2 + $0x338] sm:$0xff]
    %v4407 = vld [vmem:[#allocation2 + $0x340] sm:$0xff]
    %v4408 = vld [vmem:[#allocation2 + $0x348] sm:$0xff]
    %v4409 = vld [vmem:[#allocation2 + $0x350] sm:$0xff]
    %v4410 = vld [vmem:[#allocation2 + $0x358] sm:$0xff]
    %v4411 = vld [vmem:[#allocation2 + $0x360] sm:$0xff]
    %v4412 = vld [vmem:[#allocation2 + $0x368] sm:$0xff]
    %v4413 = vld [vmem:[#allocation2 + $0x370] sm:$0xff]
    %v4414 = vld [vmem:[#allocation2 + $0x378] sm:$0xff]
    %v4415 = vld [vmem:[#allocation2 + $0x380] sm:$0xff]
    %v4416 = vld [vmem:[#allocation2 + $0x388] sm:$0xff]
    %v4417 = vld [vmem:[#allocation2 + $0x390] sm:$0xff]
    %v4418 = vld [vmem:[#allocation2 + $0x398] sm:$0xff]
    %v4419 = vld [vmem:[#allocation2 + $0x3a0] sm:$0xff]
    %v4420 = vld [vmem:[#allocation2 + $0x3a8] sm:$0xff]
    %v4421 = vld [vmem:[#allocation2 + $0x3b0] sm:$0xff]
    %v4422 = vld [vmem:[#allocation2 + $0x3b8] sm:$0xff]
    %v4423 = vld [vmem:[#allocation2 + $0x3c0] sm:$0xff]
    %v4424 = vld [vmem:[#allocation2 + $0x3c8] sm:$0xff]
    %v4425 = vld [vmem:[#allocation2 + $0x3d0] sm:$0xff]
    %v4426 = vld [vmem:[#allocation2 + $0x3d8] sm:$0xff]
    %v4427 = vld [vmem:[#allocation2 + $0x3e0] sm:$0xff]
    %v4428 = vld [vmem:[#allocation2 + $0x3e8] sm:$0xff]
    %v4429 = vld [vmem:[#allocation2 + $0x3f0] sm:$0xff]
    %v4430 = vld [vmem:[#allocation2 + $0x3f8] sm:$0xff]
    %v4431 = vld [vmem:[#allocation2 + $0x400] sm:$0xff]
    %v4432 = vld [vmem:[#allocation2 + $0x408] sm:$0xff]
    %v4433 = vld [vmem:[#allocation2 + $0x410] sm:$0xff]
    %v4434 = vld [vmem:[#allocation2 + $0x418] sm:$0xff]
    %v4435 = vld [vmem:[#allocation2 + $0x420] sm:$0xff]
    %v4436 = vld [vmem:[#allocation2 + $0x428] sm:$0xff]
    %v4437 = vld [vmem:[#allocation2 + $0x430] sm:$0xff]
    %v4438 = vld [vmem:[#allocation2 + $0x438] sm:$0xff]
    %v4439 = vld [vmem:[#allocation2 + $0x440] sm:$0xff]
    %v4440 = vld [vmem:[#allocation2 + $0x448] sm:$0xff]
    %v4441 = vld [vmem:[#allocation2 + $0x450] sm:$0xff]
    %v4442 = vld [vmem:[#allocation2 + $0x458] sm:$0xff]
    %v4443 = vld [vmem:[#allocation2 + $0x460] sm:$0xff]
    %v4444 = vld [vmem:[#allocation2 + $0x468] sm:$0xff]
    %v4445 = vld [vmem:[#allocation2 + $0x470] sm:$0xff]
    %v4446 = vld [vmem:[#allocation2 + $0x478] sm:$0xff]
    %v4447 = vld [vmem:[#allocation2 + $0x480] sm:$0xff]
    %v4448 = vld [vmem:[#allocation2 + $0x488] sm:$0xff]
    %v4449 = vld [vmem:[#allocation2 + $0x490] sm:$0xff]
    %v4450 = vld [vmem:[#allocation2 + $0x498] sm:$0xff]
    %v4451 = vld [vmem:[#allocation2 + $0x4a0] sm:$0xff]
    %v4452 = vld [vmem:[#allocation2 + $0x4a8] sm:$0xff]
    %v4453 = vld [vmem:[#allocation2 + $0x4b0] sm:$0xff]
    %v4454 = vld [vmem:[#allocation2 + $0x4b8] sm:$0xff]
    %v4455 = vld [vmem:[#allocation2 + $0x4c0] sm:$0xff]
    %v4456 = vld [vmem:[#allocation2 + $0x4c8] sm:$0xff]
    %v4457 = vld [vmem:[#allocation2 + $0x4d0] sm:$0xff]
    %v4458 = vld [vmem:[#allocation2 + $0x4d8] sm:$0xff]
    %v4459 = vld [vmem:[#allocation2 + $0x4e0] sm:$0xff]
    %v4460 = vld [vmem:[#allocation2 + $0x4e8] sm:$0xff]
    %v4461 = vld [vmem:[#allocation2 + $0x4f0] sm:$0xff]
    %v4462 = vld [vmem:[#allocation2 + $0x4f8] sm:$0xff]
    %v4463 = vld [vmem:[#allocation9] sm:$0xf]
    %v4464 = vld [vmem:[#allocation9 + $0x4] sm:$0xf]
    %v4465 = vld [vmem:[#allocation9 + $0x8] sm:$0xf]
    %v4466 = vld [vmem:[#allocation9 + $0xc] sm:$0xf]
    %v4467 = vld [vmem:[#allocation9 + $0x10] sm:$0xf]
    %v4468 = vld [vmem:[#allocation9 + $0x14] sm:$0xf]
    %v4469 = vld [vmem:[#allocation9 + $0x18] sm:$0xf]
    %v4470 = vld [vmem:[#allocation9 + $0x1c] sm:$0xf]
    %v4471 = vld [vmem:[#allocation9 + $0x20] sm:$0xf]
    %v4472 = vld [vmem:[#allocation9 + $0x24] sm:$0xf]
    %v4473 = vld [vmem:[#allocation9 + $0x28] sm:$0xf]
    %v4474 = vld [vmem:[#allocation9 + $0x2c] sm:$0xf]
    %v4475 = vld [vmem:[#allocation9 + $0x30] sm:$0xf]
    %v4476 = vld [vmem:[#allocation9 + $0x34] sm:$0xf]
    %v4477 = vld [vmem:[#allocation9 + $0x38] sm:$0xf]
    %v4478 = vld [vmem:[#allocation9 + $0x3c] sm:$0xf]
    %v4479 = vld [vmem:[#allocation9 + $0x40] sm:$0xf]
    %v4480 = vld [vmem:[#allocation9 + $0x44] sm:$0xf]
    %v4481 = vld [vmem:[#allocation9 + $0x48] sm:$0xf]
    %v4482 = vld [vmem:[#allocation9 + $0x4c] sm:$0xf]
    %v4483 = vld [vmem:[#allocation9 + $0x50] sm:$0xf]
    %v4484 = vld [vmem:[#allocation9 + $0x54] sm:$0xf]
    %v4485 = vld [vmem:[#allocation9 + $0x58] sm:$0xf]
    %v4486 = vld [vmem:[#allocation9 + $0x5c] sm:$0xf]
    %v4487 = vld [vmem:[#allocation9 + $0x60] sm:$0xf]
    %v4488 = vld [vmem:[#allocation9 + $0x64] sm:$0xf]
    %v4489 = vld [vmem:[#allocation9 + $0x68] sm:$0xf]
    %v4490 = vld [vmem:[#allocation9 + $0x6c] sm:$0xf]
    %v4491 = vld [vmem:[#allocation9 + $0x70] sm:$0xf]
    %v4492 = vld [vmem:[#allocation9 + $0x74] sm:$0xf]
    %v4493 = vld [vmem:[#allocation9 + $0x78] sm:$0xf]
    %v4494 = vld [vmem:[#allocation9 + $0x7c] sm:$0xf]
    %v4495 = vld [vmem:[#allocation9 + $0x80] sm:$0xf]
    %v4496 = vld [vmem:[#allocation9 + $0x84] sm:$0xf]
    %v4497 = vld [vmem:[#allocation9 + $0x88] sm:$0xf]
    %v4498 = vld [vmem:[#allocation9 + $0x8c] sm:$0xf]
    %v4499 = vld [vmem:[#allocation9 + $0x90] sm:$0xf]
    %v4500 = vld [vmem:[#allocation9 + $0x94] sm:$0xf]
    %v4501 = vld [vmem:[#allocation9 + $0x98] sm:$0xf]
    %v4502 = vld [vmem:[#allocation9 + $0x9c] sm:$0xf]
    %v4503 = vld [vmem:[#allocation9 + $0xa0] sm:$0xf]
    %v4504 = vld [vmem:[#allocation9 + $0xa4] sm:$0xf]
    %v4505 = vld [vmem:[#allocation9 + $0xa8] sm:$0xf]
    %v4506 = vld [vmem:[#allocation9 + $0xac] sm:$0xf]
    %v4507 = vld [vmem:[#allocation9 + $0xb0] sm:$0xf]
    %v4508 = vld [vmem:[#allocation9 + $0xb4] sm:$0xf]
    %v4509 = vld [vmem:[#allocation9 + $0xb8] sm:$0xf]
    %v4510 = vld [vmem:[#allocation9 + $0xbc] sm:$0xf]
    %v4511 = vld [vmem:[#allocation9 + $0xc0] sm:$0xf]
    %v4512 = vld [vmem:[#allocation9 + $0xc4] sm:$0xf]
    %v4513 = vld [vmem:[#allocation9 + $0xc8] sm:$0xf]
    %v4514 = vld [vmem:[#allocation9 + $0xcc] sm:$0xf]
    %v4515 = vld [vmem:[#allocation9 + $0xd0] sm:$0xf]
    %v4516 = vld [vmem:[#allocation9 + $0xd4] sm:$0xf]
    %v4517 = vld [vmem:[#allocation9 + $0xd8] sm:$0xf]
    %v4518 = vld [vmem:[#allocation9 + $0xdc] sm:$0xf]
    %v4519 = vld [vmem:[#allocation9 + $0xe0] sm:$0xf]
    %v4520 = vld [vmem:[#allocation9 + $0xe4] sm:$0xf]
    %v4521 = vld [vmem:[#allocation9 + $0xe8] sm:$0xf]
    %v4522 = vld [vmem:[#allocation9 + $0xec] sm:$0xf]
    %v4523 = vld [vmem:[#allocation9 + $0xf0] sm:$0xf]
    %v4524 = vld [vmem:[#allocation9 + $0xf4] sm:$0xf]
    %v4525 = vld [vmem:[#allocation9 + $0xf8] sm:$0xf]
    %v4526 = vld [vmem:[#allocation9 + $0xfc] sm:$0xf]
    %v4527 = vld [vmem:[#allocation9 + $0x100] sm:$0xf]
    %v4528 = vld [vmem:[#allocation9 + $0x104] sm:$0xf]
    %v4529 = vld [vmem:[#allocation9 + $0x108] sm:$0xf]
    %v4530 = vld [vmem:[#allocation9 + $0x10c] sm:$0xf]
    %v4531 = vld [vmem:[#allocation9 + $0x110] sm:$0xf]
    %v4532 = vld [vmem:[#allocation9 + $0x114] sm:$0xf]
    %v4533 = vld [vmem:[#allocation9 + $0x118] sm:$0xf]
    %v4534 = vld [vmem:[#allocation9 + $0x11c] sm:$0xf]
    %v4535 = vld [vmem:[#allocation9 + $0x120] sm:$0xf]
    %v4536 = vld [vmem:[#allocation9 + $0x124] sm:$0xf]
    %v4537 = vld [vmem:[#allocation9 + $0x128] sm:$0xf]
    %v4538 = vld [vmem:[#allocation9 + $0x12c] sm:$0xf]
    %v4539 = vld [vmem:[#allocation9 + $0x130] sm:$0xf]
    %v4540 = vld [vmem:[#allocation9 + $0x134] sm:$0xf]
    %v4541 = vld [vmem:[#allocation9 + $0x138] sm:$0xf]
    %v4542 = vld [vmem:[#allocation9 + $0x13c] sm:$0xf]
    %v4544 = vlaneseq
    %v4545 = vshrl.u32 %v4544, 7
    %v4546 = vsub.s32 0, %v4545
    %v4547 = vrot.slane %v1286, %v4546
    %v4629 = vunpack.c.l.b16 %v4463
    %v4630 = vunpack.c.l.b16 %v4464
    %v4631 = vunpack.c.l.b16 %v4465
    %v4632 = vunpack.c.l.b16 %v4466
    %v4633 = vunpack.c.l.b16 %v4467
    %v4634 = vunpack.c.l.b16 %v4468
    %v4635 = vunpack.c.l.b16 %v4469
    %v4636 = vunpack.c.l.b16 %v4470
    %v4637 = vunpack.c.l.b16 %v4471
    %v4638 = vunpack.c.l.b16 %v4472
    %v4639 = vunpack.c.l.b16 %v4473
    %v4640 = vunpack.c.l.b16 %v4474
    %v4641 = vunpack.c.l.b16 %v4475
    %v4642 = vunpack.c.l.b16 %v4476
    %v4643 = vunpack.c.l.b16 %v4477
    %v4644 = vunpack.c.l.b16 %v4478
    %v4645 = vunpack.c.l.b16 %v4479
    %v4646 = vunpack.c.l.b16 %v4480
    %v4647 = vunpack.c.l.b16 %v4481
    %v4648 = vunpack.c.l.b16 %v4482
    %v4649 = vunpack.c.l.b16 %v4483
    %v4650 = vunpack.c.l.b16 %v4484
    %v4651 = vunpack.c.l.b16 %v4485
    %v4652 = vunpack.c.l.b16 %v4486
    %v4653 = vunpack.c.l.b16 %v4487
    %v4654 = vunpack.c.l.b16 %v4488
    %v4655 = vunpack.c.l.b16 %v4489
    %v4656 = vunpack.c.l.b16 %v4490
    %v4657 = vunpack.c.l.b16 %v4491
    %v4658 = vunpack.c.l.b16 %v4492
    %v4659 = vunpack.c.l.b16 %v4493
    %v4660 = vunpack.c.l.b16 %v4494
    %v4661 = vunpack.c.l.b16 %v4495
    %v4662 = vunpack.c.l.b16 %v4496
    %v4663 = vunpack.c.l.b16 %v4497
    %v4664 = vunpack.c.l.b16 %v4498
    %v4665 = vunpack.c.l.b16 %v4499
    %v4666 = vunpack.c.l.b16 %v4500
    %v4667 = vunpack.c.l.b16 %v4501
    %v4668 = vunpack.c.l.b16 %v4502
    %v4669 = vunpack.c.l.b16 %v4503
    %v4670 = vunpack.c.l.b16 %v4504
    %v4671 = vunpack.c.l.b16 %v4505
    %v4672 = vunpack.c.l.b16 %v4506
    %v4673 = vunpack.c.l.b16 %v4507
    %v4674 = vunpack.c.l.b16 %v4508
    %v4675 = vunpack.c.l.b16 %v4509
    %v4676 = vunpack.c.l.b16 %v4510
    %v4677 = vunpack.c.l.b16 %v4511
    %v4678 = vunpack.c.l.b16 %v4512
    %v4679 = vunpack.c.l.b16 %v4513
    %v4680 = vunpack.c.l.b16 %v4514
    %v4681 = vunpack.c.l.b16 %v4515
    %v4682 = vunpack.c.l.b16 %v4516
    %v4683 = vunpack.c.l.b16 %v4517
    %v4684 = vunpack.c.l.b16 %v4518
    %v4685 = vunpack.c.l.b16 %v4519
    %v4686 = vunpack.c.l.b16 %v4520
    %v4687 = vunpack.c.l.b16 %v4521
    %v4688 = vunpack.c.l.b16 %v4522
    %v4689 = vunpack.c.l.b16 %v4523
    %v4690 = vunpack.c.l.b16 %v4524
    %v4691 = vunpack.c.l.b16 %v4525
    %v4692 = vunpack.c.l.b16 %v4526
    %v4693 = vunpack.c.l.b16 %v4527
    %v4694 = vunpack.c.l.b16 %v4528
    %v4695 = vunpack.c.l.b16 %v4529
    %v4696 = vunpack.c.l.b16 %v4530
    %v4697 = vunpack.c.l.b16 %v4531
    %v4698 = vunpack.c.l.b16 %v4532
    %v4699 = vunpack.c.l.b16 %v4533
    %v4700 = vunpack.c.l.b16 %v4534
    %v4701 = vunpack.c.l.b16 %v4535
    %v4702 = vunpack.c.l.b16 %v4536
    %v4703 = vunpack.c.l.b16 %v4537
    %v4704 = vunpack.c.l.b16 %v4538
    %v4705 = vunpack.c.l.b16 %v4539
    %v4706 = vunpack.c.l.b16 %v4540
    %v4707 = vunpack.c.l.b16 %v4541
    %v4708 = vunpack.c.l.b16 %v4542
    %v4709 = vpack.c.b16 %v4630, %v4629
    %v4710 = vpack.c.b16 %v4632, %v4631
    %v4711 = vpack.c.b16 %v4634, %v4633
    %v4712 = vpack.c.b16 %v4636, %v4635
    %v4713 = vpack.c.b16 %v4638, %v4637
    %v4714 = vpack.c.b16 %v4640, %v4639
    %v4715 = vpack.c.b16 %v4642, %v4641
    %v4716 = vpack.c.b16 %v4644, %v4643
    %v4717 = vpack.c.b16 %v4646, %v4645
    %v4718 = vpack.c.b16 %v4648, %v4647
    %v4719 = vpack.c.b16 %v4650, %v4649
    %v4720 = vpack.c.b16 %v4652, %v4651
    %v4721 = vpack.c.b16 %v4654, %v4653
    %v4722 = vpack.c.b16 %v4656, %v4655
    %v4723 = vpack.c.b16 %v4658, %v4657
    %v4724 = vpack.c.b16 %v4660, %v4659
    %v4725 = vpack.c.b16 %v4662, %v4661
    %v4726 = vpack.c.b16 %v4664, %v4663
    %v4727 = vpack.c.b16 %v4666, %v4665
    %v4728 = vpack.c.b16 %v4668, %v4667
    %v4729 = vpack.c.b16 %v4670, %v4669
    %v4730 = vpack.c.b16 %v4672, %v4671
    %v4731 = vpack.c.b16 %v4674, %v4673
    %v4732 = vpack.c.b16 %v4676, %v4675
    %v4733 = vpack.c.b16 %v4678, %v4677
    %v4734 = vpack.c.b16 %v4680, %v4679
    %v4735 = vpack.c.b16 %v4682, %v4681
    %v4736 = vpack.c.b16 %v4684, %v4683
    %v4737 = vpack.c.b16 %v4686, %v4685
    %v4738 = vpack.c.b16 %v4688, %v4687
    %v4739 = vpack.c.b16 %v4690, %v4689
    %v4740 = vpack.c.b16 %v4692, %v4691
    %v4741 = vpack.c.b16 %v4694, %v4693
    %v4742 = vpack.c.b16 %v4696, %v4695
    %v4743 = vpack.c.b16 %v4698, %v4697
    %v4744 = vpack.c.b16 %v4700, %v4699
    %v4745 = vpack.c.b16 %v4702, %v4701
    %v4746 = vpack.c.b16 %v4704, %v4703
    %v4747 = vpack.c.b16 %v4706, %v4705
    %v4748 = vpack.c.b16 %v4708, %v4707
    %4789 = vmatprep.subr.bf16.mxu0 0
    %4790 = vmatpush1.bf16.msra.mxu0 %v4709
    %4791 = vmatprep.subr.bf16.mxu0 0
    %4792 = vmatpush1.bf16.msra.mxu0 %v4710
    %4793 = vmatprep.subr.bf16.mxu0 0
    %4794 = vmatpush1.bf16.msra.mxu0 %v4711
    %4795 = vmatprep.subr.bf16.mxu0 0
    %4796 = vmatpush1.bf16.msra.mxu0 %v4712
    %4797 = vmatprep.subr.bf16.mxu0 0
    %4798 = vmatpush1.bf16.msra.mxu0 %v4713
    %4799 = vmatprep.subr.bf16.mxu0 0
    %4800 = vmatpush1.bf16.msra.mxu0 %v4714
    %4801 = vmatprep.subr.bf16.mxu0 0
    %4802 = vmatpush1.bf16.msra.mxu0 %v4715
    %4803 = vmatprep.subr.bf16.mxu0 0
    %4804 = vmatpush1.bf16.msra.mxu0 %v4716
    %4805 = vmatprep.subr.bf16.mxu0 0
    %4806 = vmatpush1.bf16.msra.mxu0 %v4717
    %4807 = vmatprep.subr.bf16.mxu0 0
    %4808 = vmatpush1.bf16.msra.mxu0 %v4718
    %4809 = vmatprep.subr.bf16.mxu0 0
    %4810 = vmatpush1.bf16.msra.mxu0 %v4719
    %4811 = vmatprep.subr.bf16.mxu0 0
    %4812 = vmatpush1.bf16.msra.mxu0 %v4720
    %4813 = vmatprep.subr.bf16.mxu0 0
    %4814 = vmatpush1.bf16.msra.mxu0 %v4721
    %4815 = vmatprep.subr.bf16.mxu0 0
    %4816 = vmatpush1.bf16.msra.mxu0 %v4722
    %4817 = vmatprep.subr.bf16.mxu0 0
    %4818 = vmatpush1.bf16.msra.mxu0 %v4723
    %4819 = vmatprep.subr.bf16.mxu0 0
    %4820 = vmatpush1.bf16.msra.mxu0 %v4724
    %4821 = vmatprep.mubr.bf16.mxu0 %v4304
    %4822 = vmatmul.mubr.bf16.gmra.mrb[0].mxu0 %v4303
    %v4823 = vpop.f32.mrb[0].mxu0
    %v4824 = vadd.f32 %v4547, %v4823
    %v4825 = vpop.f32.mrb[0].mxu0
    %v4826 = vpop.f32.mrb[0].mxu0
    %v4827 = vadd.f32 %v4547, %v4826
    %v4828 = vpop.f32.mrb[0].mxu0
    %4829 = vmatprep.mubr.bf16.mxu0 %v4309
    %4830 = vmatmul.mubr.bf16.gmra.mrb[0].mxu0 %v4308
    %v4831 = vpop.f32.mrb[0].mxu0
    %v4832 = vadd.f32 %v4547, %v4831
    %v4833 = vpop.f32.mrb[0].mxu0
    %v4834 = vpop.f32.mrb[0].mxu0
    %v4835 = vadd.f32 %v4547, %v4834
    %v4836 = vpop.f32.mrb[0].mxu0
    %4837 = vmatprep.mubr.bf16.mxu0 %v4314
    %4838 = vmatmul.mubr.bf16.gmra.mrb[0].mxu0 %v4313
    %v4839 = vpop.f32.mrb[0].mxu0
    %v4840 = vadd.f32 %v4547, %v4839
    %v4841 = vpop.f32.mrb[0].mxu0
    %v4842 = vpop.f32.mrb[0].mxu0
    %v4843 = vadd.f32 %v4547, %v4842
    %v4844 = vpop.f32.mrb[0].mxu0
    %4845 = vmatprep.mubr.bf16.mxu0 %v4319
    %4846 = vmatmul.mubr.bf16.gmra.mrb[0].mxu0 %v4318
    %v4847 = vpop.f32.mrb[0].mxu0
    %v4848 = vadd.f32 %v4547, %v4847
    %v4849 = vpop.f32.mrb[0].mxu0
    %v4850 = vpop.f32.mrb[0].mxu0
    %v4851 = vadd.f32 %v4547, %v4850
    %v4852 = vpop.f32.mrb[0].mxu0
    %4853 = vmatprep.mubr.bf16.mxu0 %v4324
    %4854 = vmatmul.mubr.bf16.gmra.mrb[0].mxu0 %v4323
    %v4855 = vpop.f32.mrb[0].mxu0
    %v4856 = vadd.f32 %v4547, %v4855
    %v4857 = vpop.f32.mrb[0].mxu0
    %v4858 = vpop.f32.mrb[0].mxu0
    %v4859 = vadd.f32 %v4547, %v4858
    %v4860 = vpop.f32.mrb[0].mxu0
    %4861 = vmatprep.mubr.bf16.mxu0 %v4329
    %4862 = vmatmul.mubr.bf16.gmra.mrb[0].mxu0 %v4328
    %v4863 = vpop.f32.mrb[0].mxu0
    %v4864 = vadd.f32 %v4547, %v4863
    %v4865 = vpop.f32.mrb[0].mxu0
    %v4866 = vpop.f32.mrb[0].mxu0
    %v4867 = vadd.f32 %v4547, %v4866
    %v4868 = vpop.f32.mrb[0].mxu0
    %4869 = vmatprep.mubr.bf16.mxu0 %v4334
    %4870 = vmatmul.mubr.bf16.gmra.mrb[0].mxu0 %v4333
    %v4871 = vpop.f32.mrb[0].mxu0
    %v4872 = vadd.f32 %v4547, %v4871
    %v4873 = vpop.f32.mrb[0].mxu0
    %v4874 = vpop.f32.mrb[0].mxu0
    %v4875 = vadd.f32 %v4547, %v4874
    %v4876 = vpop.f32.mrb[0].mxu0
    %4877 = vmatprep.mubr.bf16.mxu0 %v4339
    %4878 = vmatmul.mubr.bf16.gmra.mrb[0].mxu0 %v4338
    %v4879 = vpop.f32.mrb[0].mxu0
    %v4880 = vadd.f32 %v4547, %v4879
    %v4881 = vpop.f32.mrb[0].mxu0
    %v4882 = vpop.f32.mrb[0].mxu0
    %v4883 = vadd.f32 %v4547, %v4882
    %v4884 = vpop.f32.mrb[0].mxu0
    %4885 = vmatprep.mubr.bf16.mxu0 %v4344
    %4886 = vmatmul.mubr.bf16.gmra.mrb[0].mxu0 %v4343
    %v4887 = vpop.f32.mrb[0].mxu0
    %v4888 = vadd.f32 %v4547, %v4887
    %v4889 = vpop.f32.mrb[0].mxu0
    %v4890 = vpop.f32.mrb[0].mxu0
    %v4891 = vadd.f32 %v4547, %v4890
    %v4892 = vpop.f32.mrb[0].mxu0
    %4893 = vmatprep.mubr.bf16.mxu0 %v4349
    %4894 = vmatmul.mubr.bf16.gmra.mrb[0].mxu0 %v4348
    %v4895 = vpop.f32.mrb[0].mxu0
    %v4896 = vadd.f32 %v4547, %v4895
    %v4897 = vpop.f32.mrb[0].mxu0
    %v4898 = vpop.f32.mrb[0].mxu0
    %v4899 = vadd.f32 %v4547, %v4898
    %v4900 = vpop.f32.mrb[0].mxu0
    %4901 = vmatprep.mubr.bf16.mxu0 %v4354
    %4902 = vmatmul.mubr.bf16.gmra.mrb[0].mxu0 %v4353
    %v4903 = vpop.f32.mrb[0].mxu0
    %v4904 = vadd.f32 %v4547, %v4903
    %v4905 = vpop.f32.mrb[0].mxu0
    %v4906 = vpop.f32.mrb[0].mxu0
    %v4907 = vadd.f32 %v4547, %v4906
    %v4908 = vpop.f32.mrb[0].mxu0
    %4909 = vmatprep.mubr.bf16.mxu0 %v4359
    %4910 = vmatmul.mubr.bf16.gmra.mrb[0].mxu0 %v4358
    %v4911 = vpop.f32.mrb[0].mxu0
    %v4912 = vadd.f32 %v4547, %v4911
    %v4913 = vpop.f32.mrb[0].mxu0
    %v4914 = vpop.f32.mrb[0].mxu0
    %v4915 = vadd.f32 %v4547, %v4914
    %v4916 = vpop.f32.mrb[0].mxu0
    %4917 = vmatprep.mubr.bf16.mxu0 %v4364
    %4918 = vmatmul.mubr.bf16.gmra.mrb[0].mxu0 %v4363
    %v4919 = vpop.f32.mrb[0].mxu0
    %v4920 = vadd.f32 %v4547, %v4919
    %v4921 = vpop.f32.mrb[0].mxu0
    %v4922 = vpop.f32.mrb[0].mxu0
    %v4923 = vadd.f32 %v4547, %v4922
    %v4924 = vpop.f32.mrb[0].mxu0
    %4925 = vmatprep.mubr.bf16.mxu0 %v4369
    %4926 = vmatmul.mubr.bf16.gmra.mrb[0].mxu0 %v4368
    %v4927 = vpop.f32.mrb[0].mxu0
    %v4928 = vadd.f32 %v4547, %v4927
    %v4929 = vpop.f32.mrb[0].mxu0
    %v4930 = vpop.f32.mrb[0].mxu0
    %v4931 = vadd.f32 %v4547, %v4930
    %v4932 = vpop.f32.mrb[0].mxu0
    %4933 = vmatprep.mubr.bf16.mxu0 %v4374
    %4934 = vmatmul.mubr.bf16.gmra.mrb[0].mxu0 %v4373
    %v4935 = vpop.f32.mrb[0].mxu0
    %v4936 = vadd.f32 %v4547, %v4935
    %v4937 = vpop.f32.mrb[0].mxu0
    %v4938 = vpop.f32.mrb[0].mxu0
    %v4939 = vadd.f32 %v4547, %v4938
    %v4940 = vpop.f32.mrb[0].mxu0
    %4941 = vmatprep.mubr.bf16.mxu0 %v4379
    %4942 = vmatmul.mubr.bf16.gmra.mrb[0].mxu0 %v4378
    %v4943 = vpop.f32.mrb[0].mxu0
    %v4944 = vadd.f32 %v4547, %v4943
    %v4945 = vpop.f32.mrb[0].mxu0
    %v4946 = vpop.f32.mrb[0].mxu0
    %v4947 = vadd.f32 %v4547, %v4946
    %v4948 = vpop.f32.mrb[0].mxu0
    %4949 = vmatprep.mubr.bf16.mxu0 %v4384
    %4950 = vmatmul.mubr.bf16.gmra.mrb[0].mxu0 %v4383
    %v4951 = vpop.f32.mrb[0].mxu0
    %v4952 = vadd.f32 %v4547, %v4951
    %v4953 = vpop.f32.mrb[0].mxu0
    %v4954 = vpop.f32.mrb[0].mxu0
    %v4955 = vadd.f32 %v4547, %v4954
    %v4956 = vpop.f32.mrb[0].mxu0
    %4957 = vmatprep.mubr.bf16.mxu0 %v4389
    %4958 = vmatmul.mubr.bf16.gmra.mrb[0].mxu0 %v4388
    %v4959 = vpop.f32.mrb[0].mxu0
    %v4960 = vadd.f32 %v4547, %v4959
    %v4961 = vpop.f32.mrb[0].mxu0
    %v4962 = vpop.f32.mrb[0].mxu0
    %v4963 = vadd.f32 %v4547, %v4962
    %v4964 = vpop.f32.mrb[0].mxu0
    %4965 = vmatprep.mubr.bf16.mxu0 %v4394
    %4966 = vmatmul.mubr.bf16.gmra.mrb[0].mxu0 %v4393
    %v4967 = vpop.f32.mrb[0].mxu0
    %v4968 = vadd.f32 %v4547, %v4967
    %v4969 = vpop.f32.mrb[0].mxu0
    %v4970 = vpop.f32.mrb[0].mxu0
    %v4971 = vadd.f32 %v4547, %v4970
    %v4972 = vpop.f32.mrb[0].mxu0
    %4973 = vmatprep.mubr.bf16.mxu0 %v4399
    %4974 = vmatmul.mubr.bf16.gmra.mrb[0].mxu0 %v4398
    %v4975 = vpop.f32.mrb[0].mxu0
    %v4976 = vadd.f32 %v4547, %v4975
    %v4977 = vpop.f32.mrb[0].mxu0
    %v4978 = vpop.f32.mrb[0].mxu0
    %v4979 = vadd.f32 %v4547, %v4978
    %v4980 = vpop.f32.mrb[0].mxu0
    %4981 = vmatprep.mubr.bf16.mxu0 %v4404
    %4982 = vmatmul.mubr.bf16.gmra.mrb[0].mxu0 %v4403
    %v4983 = vpop.f32.mrb[0].mxu0
    %v4984 = vadd.f32 %v4547, %v4983
    %v4985 = vpop.f32.mrb[0].mxu0
    %v4986 = vpop.f32.mrb[0].mxu0
    %v4987 = vadd.f32 %v4547, %v4986
    %v4988 = vpop.f32.mrb[0].mxu0
    %4989 = vmatprep.mubr.bf16.mxu0 %v4409
    %4990 = vmatmul.mubr.bf16.gmra.mrb[0].mxu0 %v4408
    %v4991 = vpop.f32.mrb[0].mxu0
    %v4992 = vadd.f32 %v4547, %v4991
    %v4993 = vpop.f32.mrb[0].mxu0
    %v4994 = vpop.f32.mrb[0].mxu0
    %v4995 = vadd.f32 %v4547, %v4994
    %v4996 = vpop.f32.mrb[0].mxu0
    %4997 = vmatprep.mubr.bf16.mxu0 %v4414
    %4998 = vmatmul.mubr.bf16.gmra.mrb[0].mxu0 %v4413
    %v4999 = vpop.f32.mrb[0].mxu0
    %v5000 = vadd.f32 %v4547, %v4999
    %v5001 = vpop.f32.mrb[0].mxu0
    %v5002 = vpop.f32.mrb[0].mxu0
    %v5003 = vadd.f32 %v4547, %v5002
    %v5004 = vpop.f32.mrb[0].mxu0
    %5005 = vmatprep.mubr.bf16.mxu0 %v4419
    %5006 = vmatmul.mubr.bf16.gmra.mrb[0].mxu0 %v4418
    %v5007 = vpop.f32.mrb[0].mxu0
    %v5008 = vadd.f32 %v4547, %v5007
    %v5009 = vpop.f32.mrb[0].mxu0
    %v5010 = vpop.f32.mrb[0].mxu0
    %v5011 = vadd.f32 %v4547, %v5010
    %v5012 = vpop.f32.mrb[0].mxu0
    %5013 = vmatprep.mubr.bf16.mxu0 %v4424
    %5014 = vmatmul.mubr.bf16.gmra.mrb[0].mxu0 %v4423
    %v5015 = vpop.f32.mrb[0].mxu0
    %v5016 = vadd.f32 %v4547, %v5015
    %v5017 = vpop.f32.mrb[0].mxu0
    %v5018 = vpop.f32.mrb[0].mxu0
    %v5019 = vadd.f32 %v4547, %v5018
    %v5020 = vpop.f32.mrb[0].mxu0
    %5021 = vmatprep.mubr.bf16.mxu0 %v4429
    %5022 = vmatmul.mubr.bf16.gmra.mrb[0].mxu0 %v4428
    %v5023 = vpop.f32.mrb[0].mxu0
    %v5024 = vadd.f32 %v4547, %v5023
    %v5025 = vpop.f32.mrb[0].mxu0
    %v5026 = vpop.f32.mrb[0].mxu0
    %v5027 = vadd.f32 %v4547, %v5026
    %v5028 = vpop.f32.mrb[0].mxu0
    %5029 = vmatprep.mubr.bf16.mxu0 %v4434
    %5030 = vmatmul.mubr.bf16.gmra.mrb[0].mxu0 %v4433
    %v5031 = vpop.f32.mrb[0].mxu0
    %v5032 = vadd.f32 %v4547, %v5031
    %v5033 = vpop.f32.mrb[0].mxu0
    %v5034 = vpop.f32.mrb[0].mxu0
    %v5035 = vadd.f32 %v4547, %v5034
    %v5036 = vpop.f32.mrb[0].mxu0
    %5037 = vmatprep.mubr.bf16.mxu0 %v4439
    %5038 = vmatmul.mubr.bf16.gmra.mrb[0].mxu0 %v4438
    %v5039 = vpop.f32.mrb[0].mxu0
    %v5040 = vadd.f32 %v4547, %v5039
    %v5041 = vpop.f32.mrb[0].mxu0
    %v5042 = vpop.f32.mrb[0].mxu0
    %v5043 = vadd.f32 %v4547, %v5042
    %v5044 = vpop.f32.mrb[0].mxu0
    %5045 = vmatprep.mubr.bf16.mxu0 %v4444
    %5046 = vmatmul.mubr.bf16.gmra.mrb[0].mxu0 %v4443
    %v5047 = vpop.f32.mrb[0].mxu0
    %v5048 = vadd.f32 %v4547, %v5047
    %v5049 = vpop.f32.mrb[0].mxu0
    %v5050 = vpop.f32.mrb[0].mxu0
    %v5051 = vadd.f32 %v4547, %v5050
    %v5052 = vpop.f32.mrb[0].mxu0
    %5053 = vmatprep.mubr.bf16.mxu0 %v4449
    %5054 = vmatmul.mubr.bf16.gmra.mrb[0].mxu0 %v4448
    %v5055 = vpop.f32.mrb[0].mxu0
    %v5056 = vadd.f32 %v4547, %v5055
    %v5057 = vpop.f32.mrb[0].mxu0
    %v5058 = vpop.f32.mrb[0].mxu0
    %v5059 = vadd.f32 %v4547, %v5058
    %v5060 = vpop.f32.mrb[0].mxu0
    %5061 = vmatprep.mubr.bf16.mxu0 %v4454
    %5062 = vmatmul.mubr.bf16.gmra.mrb[0].mxu0 %v4453
    %v5063 = vpop.f32.mrb[0].mxu0
    %v5064 = vadd.f32 %v4547, %v5063
    %v5065 = vpop.f32.mrb[0].mxu0
    %v5066 = vpop.f32.mrb[0].mxu0
    %v5067 = vadd.f32 %v4547, %v5066
    %v5068 = vpop.f32.mrb[0].mxu0
    %5069 = vmatprep.mubr.bf16.mxu0 %v4459
    %5070 = vmatmul.mubr.bf16.gmra.mrb[0].mxu0 %v4458
    %v5071 = vpop.f32.mrb[0].mxu0
    %v5072 = vadd.f32 %v4547, %v5071
    %v5073 = vpop.f32.mrb[0].mxu0
    %v5074 = vpop.f32.mrb[0].mxu0
    %v5075 = vadd.f32 %v4547, %v5074
    %v5076 = vpop.f32.mrb[0].mxu0
    %5077 = vdwg.mxu0
    %5078 = vmatprep.subr.bf16.mxu0 0
    %5079 = vmatpush1.bf16.msra.mxu0 %v4725
    %5080 = vmatprep.subr.bf16.mxu0 0
    %5081 = vmatpush1.bf16.msra.mxu0 %v4726
    %5082 = vmatprep.subr.bf16.mxu0 0
    %5083 = vmatpush1.bf16.msra.mxu0 %v4727
    %5084 = vmatprep.subr.bf16.mxu0 0
    %5085 = vmatpush1.bf16.msra.mxu0 %v4728
    %5086 = vmatprep.subr.bf16.mxu0 0
    %5087 = vmatpush1.bf16.msra.mxu0 %v4729
    %5088 = vmatprep.subr.bf16.mxu0 0
    %5089 = vmatpush1.bf16.msra.mxu0 %v4730
    %5090 = vmatprep.subr.bf16.mxu0 0
    %5091 = vmatpush1.bf16.msra.mxu0 %v4731
    %5092 = vmatprep.subr.bf16.mxu0 0
    %5093 = vmatpush1.bf16.msra.mxu0 %v4732
    %5094 = vmatprep.subr.bf16.mxu0 0
    %5095 = vmatpush1.bf16.msra.mxu0 %v4733
    %5096 = vmatprep.subr.bf16.mxu0 0
    %5097 = vmatpush1.bf16.msra.mxu0 %v4734
    %5098 = vmatprep.subr.bf16.mxu0 0
    %5099 = vmatpush1.bf16.msra.mxu0 %v4735
    %5100 = vmatprep.subr.bf16.mxu0 0
    %5101 = vmatpush1.bf16.msra.mxu0 %v4736
    %5102 = vmatprep.subr.bf16.mxu0 0
    %5103 = vmatpush1.bf16.msra.mxu0 %v4737
    %5104 = vmatprep.subr.bf16.mxu0 0
    %5105 = vmatpush1.bf16.msra.mxu0 %v4738
    %5106 = vmatprep.subr.bf16.mxu0 0
    %5107 = vmatpush1.bf16.msra.mxu0 %v4739
    %5108 = vmatprep.subr.bf16.mxu0 0
    %5109 = vmatpush1.bf16.msra.mxu0 %v4740
    %5110 = vmatprep.mubr.bf16.mxu0 %v4306
    %5111 = vmatmul.mubr.bf16.gmra.mrb[0].mxu0 %v4305
    %v5112 = vpop.f32.mrb[0].mxu0
    %v5113 = vadd.f32 %v4824, %v5112
    %v5114 = vpop.f32.mrb[0].mxu0
    %v5115 = vpop.f32.mrb[0].mxu0
    %v5116 = vadd.f32 %v4827, %v5115
    %v5117 = vpop.f32.mrb[0].mxu0
    %5118 = vmatprep.mubr.bf16.mxu0 %v4311
    %5119 = vmatmul.mubr.bf16.gmra.mrb[0].mxu0 %v4310
    %v5120 = vpop.f32.mrb[0].mxu0
    %v5121 = vadd.f32 %v4832, %v5120
    %v5122 = vpop.f32.mrb[0].mxu0
    %v5123 = vpop.f32.mrb[0].mxu0
    %v5124 = vadd.f32 %v4835, %v5123
    %v5125 = vpop.f32.mrb[0].mxu0
    %5126 = vmatprep.mubr.bf16.mxu0 %v4316
    %5127 = vmatmul.mubr.bf16.gmra.mrb[0].mxu0 %v4315
    %v5128 = vpop.f32.mrb[0].mxu0
    %v5129 = vadd.f32 %v4840, %v5128
    %v5130 = vpop.f32.mrb[0].mxu0
    %v5131 = vpop.f32.mrb[0].mxu0
    %v5132 = vadd.f32 %v4843, %v5131
    %v5133 = vpop.f32.mrb[0].mxu0
    %5134 = vmatprep.mubr.bf16.mxu0 %v4321
    %5135 = vmatmul.mubr.bf16.gmra.mrb[0].mxu0 %v4320
    %v5136 = vpop.f32.mrb[0].mxu0
    %v5137 = vadd.f32 %v4848, %v5136
    %v5138 = vpop.f32.mrb[0].mxu0
    %v5139 = vpop.f32.mrb[0].mxu0
    %v5140 = vadd.f32 %v4851, %v5139
    %v5141 = vpop.f32.mrb[0].mxu0
    %5142 = vmatprep.mubr.bf16.mxu0 %v4326
    %5143 = vmatmul.mubr.bf16.gmra.mrb[0].mxu0 %v4325
    %v5144 = vpop.f32.mrb[0].mxu0
    %v5145 = vadd.f32 %v4856, %v5144
    %v5146 = vpop.f32.mrb[0].mxu0
    %v5147 = vpop.f32.mrb[0].mxu0
    %v5148 = vadd.f32 %v4859, %v5147
    %v5149 = vpop.f32.mrb[0].mxu0
    %5150 = vmatprep.mubr.bf16.mxu0 %v4331
    %5151 = vmatmul.mubr.bf16.gmra.mrb[0].mxu0 %v4330
    %v5152 = vpop.f32.mrb[0].mxu0
    %v5153 = vadd.f32 %v4864, %v5152
    %v5154 = vpop.f32.mrb[0].mxu0
    %v5155 = vpop.f32.mrb[0].mxu0
    %v5156 = vadd.f32 %v4867, %v5155
    %v5157 = vpop.f32.mrb[0].mxu0
    %5158 = vmatprep.mubr.bf16.mxu0 %v4336
    %5159 = vmatmul.mubr.bf16.gmra.mrb[0].mxu0 %v4335
    %v5160 = vpop.f32.mrb[0].mxu0
    %v5161 = vadd.f32 %v4872, %v5160
    %v5162 = vpop.f32.mrb[0].mxu0
    %v5163 = vpop.f32.mrb[0].mxu0
    %v5164 = vadd.f32 %v4875, %v5163
    %v5165 = vpop.f32.mrb[0].mxu0
    %5166 = vmatprep.mubr.bf16.mxu0 %v4341
    %5167 = vmatmul.mubr.bf16.gmra.mrb[0].mxu0 %v4340
    %v5168 = vpop.f32.mrb[0].mxu0
    %v5169 = vadd.f32 %v4880, %v5168
    %v5170 = vpop.f32.mrb[0].mxu0
    %v5171 = vpop.f32.mrb[0].mxu0
    %v5172 = vadd.f32 %v4883, %v5171
    %v5173 = vpop.f32.mrb[0].mxu0
    %5174 = vmatprep.mubr.bf16.mxu0 %v4346
    %5175 = vmatmul.mubr.bf16.gmra.mrb[0].mxu0 %v4345
    %v5176 = vpop.f32.mrb[0].mxu0
    %v5177 = vadd.f32 %v4888, %v5176
    %v5178 = vpop.f32.mrb[0].mxu0
    %v5179 = vpop.f32.mrb[0].mxu0
    %v5180 = vadd.f32 %v4891, %v5179
    %v5181 = vpop.f32.mrb[0].mxu0
    %5182 = vmatprep.mubr.bf16.mxu0 %v4351
    %5183 = vmatmul.mubr.bf16.gmra.mrb[0].mxu0 %v4350
    %v5184 = vpop.f32.mrb[0].mxu0
    %v5185 = vadd.f32 %v4896, %v5184
    %v5186 = vpop.f32.mrb[0].mxu0
    %v5187 = vpop.f32.mrb[0].mxu0
    %v5188 = vadd.f32 %v4899, %v5187
    %v5189 = vpop.f32.mrb[0].mxu0
    %5190 = vmatprep.mubr.bf16.mxu0 %v4356
    %5191 = vmatmul.mubr.bf16.gmra.mrb[0].mxu0 %v4355
    %v5192 = vpop.f32.mrb[0].mxu0
    %v5193 = vadd.f32 %v4904, %v5192
    %v5194 = vpop.f32.mrb[0].mxu0
    %v5195 = vpop.f32.mrb[0].mxu0
    %v5196 = vadd.f32 %v4907, %v5195
    %v5197 = vpop.f32.mrb[0].mxu0
    %5198 = vmatprep.mubr.bf16.mxu0 %v4361
    %5199 = vmatmul.mubr.bf16.gmra.mrb[0].mxu0 %v4360
    %v5200 = vpop.f32.mrb[0].mxu0
    %v5201 = vadd.f32 %v4912, %v5200
    %v5202 = vpop.f32.mrb[0].mxu0
    %v5203 = vpop.f32.mrb[0].mxu0
    %v5204 = vadd.f32 %v4915, %v5203
    %v5205 = vpop.f32.mrb[0].mxu0
    %5206 = vmatprep.mubr.bf16.mxu0 %v4366
    %5207 = vmatmul.mubr.bf16.gmra.mrb[0].mxu0 %v4365
    %v5208 = vpop.f32.mrb[0].mxu0
    %v5209 = vadd.f32 %v4920, %v5208
    %v5210 = vpop.f32.mrb[0].mxu0
    %v5211 = vpop.f32.mrb[0].mxu0
    %v5212 = vadd.f32 %v4923, %v5211
    %v5213 = vpop.f32.mrb[0].mxu0
    %5214 = vmatprep.mubr.bf16.mxu0 %v4371
    %5215 = vmatmul.mubr.bf16.gmra.mrb[0].mxu0 %v4370
    %v5216 = vpop.f32.mrb[0].mxu0
    %v5217 = vadd.f32 %v4928, %v5216
    %v5218 = vpop.f32.mrb[0].mxu0
    %v5219 = vpop.f32.mrb[0].mxu0
    %v5220 = vadd.f32 %v4931, %v5219
    %v5221 = vpop.f32.mrb[0].mxu0
    %5222 = vmatprep.mubr.bf16.mxu0 %v4376
    %5223 = vmatmul.mubr.bf16.gmra.mrb[0].mxu0 %v4375
    %v5224 = vpop.f32.mrb[0].mxu0
    %v5225 = vadd.f32 %v4936, %v5224
    %v5226 = vpop.f32.mrb[0].mxu0
    %v5227 = vpop.f32.mrb[0].mxu0
    %v5228 = vadd.f32 %v4939, %v5227
    %v5229 = vpop.f32.mrb[0].mxu0
    %5230 = vmatprep.mubr.bf16.mxu0 %v4381
    %5231 = vmatmul.mubr.bf16.gmra.mrb[0].mxu0 %v4380
    %v5232 = vpop.f32.mrb[0].mxu0
    %v5233 = vadd.f32 %v4944, %v5232
    %v5234 = vpop.f32.mrb[0].mxu0
    %v5235 = vpop.f32.mrb[0].mxu0
    %v5236 = vadd.f32 %v4947, %v5235
    %v5237 = vpop.f32.mrb[0].mxu0
    %5238 = vmatprep.mubr.bf16.mxu0 %v4386
    %5239 = vmatmul.mubr.bf16.gmra.mrb[0].mxu0 %v4385
    %v5240 = vpop.f32.mrb[0].mxu0
    %v5241 = vadd.f32 %v4952, %v5240
    %v5242 = vpop.f32.mrb[0].mxu0
    %v5243 = vpop.f32.mrb[0].mxu0
    %v5244 = vadd.f32 %v4955, %v5243
    %v5245 = vpop.f32.mrb[0].mxu0
    %5246 = vmatprep.mubr.bf16.mxu0 %v4391
    %5247 = vmatmul.mubr.bf16.gmra.mrb[0].mxu0 %v4390
    %v5248 = vpop.f32.mrb[0].mxu0
    %v5249 = vadd.f32 %v4960, %v5248
    %v5250 = vpop.f32.mrb[0].mxu0
    %v5251 = vpop.f32.mrb[0].mxu0
    %v5252 = vadd.f32 %v4963, %v5251
    %v5253 = vpop.f32.mrb[0].mxu0
    %5254 = vmatprep.mubr.bf16.mxu0 %v4396
    %5255 = vmatmul.mubr.bf16.gmra.mrb[0].mxu0 %v4395
    %v5256 = vpop.f32.mrb[0].mxu0
    %v5257 = vadd.f32 %v4968, %v5256
    %v5258 = vpop.f32.mrb[0].mxu0
    %v5259 = vpop.f32.mrb[0].mxu0
    %v5260 = vadd.f32 %v4971, %v5259
    %v5261 = vpop.f32.mrb[0].mxu0
    %5262 = vmatprep.mubr.bf16.mxu0 %v4401
    %5263 = vmatmul.mubr.bf16.gmra.mrb[0].mxu0 %v4400
    %v5264 = vpop.f32.mrb[0].mxu0
    %v5265 = vadd.f32 %v4976, %v5264
    %v5266 = vpop.f32.mrb[0].mxu0
    %v5267 = vpop.f32.mrb[0].mxu0
    %v5268 = vadd.f32 %v4979, %v5267
    %v5269 = vpop.f32.mrb[0].mxu0
    %5270 = vmatprep.mubr.bf16.mxu0 %v4406
    %5271 = vmatmul.mubr.bf16.gmra.mrb[0].mxu0 %v4405
    %v5272 = vpop.f32.mrb[0].mxu0
    %v5273 = vadd.f32 %v4984, %v5272
    %v5274 = vpop.f32.mrb[0].mxu0
    %v5275 = vpop.f32.mrb[0].mxu0
    %v5276 = vadd.f32 %v4987, %v5275
    %v5277 = vpop.f32.mrb[0].mxu0
    %5278 = vmatprep.mubr.bf16.mxu0 %v4411
    %5279 = vmatmul.mubr.bf16.gmra.mrb[0].mxu0 %v4410
    %v5280 = vpop.f32.mrb[0].mxu0
    %v5281 = vadd.f32 %v4992, %v5280
    %v5282 = vpop.f32.mrb[0].mxu0
    %v5283 = vpop.f32.mrb[0].mxu0
    %v5284 = vadd.f32 %v4995, %v5283
    %v5285 = vpop.f32.mrb[0].mxu0
    %5286 = vmatprep.mubr.bf16.mxu0 %v4416
    %5287 = vmatmul.mubr.bf16.gmra.mrb[0].mxu0 %v4415
    %v5288 = vpop.f32.mrb[0].mxu0
    %v5289 = vadd.f32 %v5000, %v5288
    %v5290 = vpop.f32.mrb[0].mxu0
    %v5291 = vpop.f32.mrb[0].mxu0
    %v5292 = vadd.f32 %v5003, %v5291
    %v5293 = vpop.f32.mrb[0].mxu0
    %5294 = vmatprep.mubr.bf16.mxu0 %v4421
    %5295 = vmatmul.mubr.bf16.gmra.mrb[0].mxu0 %v4420
    %v5296 = vpop.f32.mrb[0].mxu0
    %v5297 = vadd.f32 %v5008, %v5296
    %v5298 = vpop.f32.mrb[0].mxu0
    %v5299 = vpop.f32.mrb[0].mxu0
    %v5300 = vadd.f32 %v5011, %v5299
    %v5301 = vpop.f32.mrb[0].mxu0
    %5302 = vmatprep.mubr.bf16.mxu0 %v4426
    %5303 = vmatmul.mubr.bf16.gmra.mrb[0].mxu0 %v4425
    %v5304 = vpop.f32.mrb[0].mxu0
    %v5305 = vadd.f32 %v5016, %v5304
    %v5306 = vpop.f32.mrb[0].mxu0
    %v5307 = vpop.f32.mrb[0].mxu0
    %v5308 = vadd.f32 %v5019, %v5307
    %v5309 = vpop.f32.mrb[0].mxu0
    %5310 = vmatprep.mubr.bf16.mxu0 %v4431
    %5311 = vmatmul.mubr.bf16.gmra.mrb[0].mxu0 %v4430
    %v5312 = vpop.f32.mrb[0].mxu0
    %v5313 = vadd.f32 %v5024, %v5312
    %v5314 = vpop.f32.mrb[0].mxu0
    %v5315 = vpop.f32.mrb[0].mxu0
    %v5316 = vadd.f32 %v5027, %v5315
    %v5317 = vpop.f32.mrb[0].mxu0
    %5318 = vmatprep.mubr.bf16.mxu0 %v4436
    %5319 = vmatmul.mubr.bf16.gmra.mrb[0].mxu0 %v4435
    %v5320 = vpop.f32.mrb[0].mxu0
    %v5321 = vadd.f32 %v5032, %v5320
    %v5322 = vpop.f32.mrb[0].mxu0
    %v5323 = vpop.f32.mrb[0].mxu0
    %v5324 = vadd.f32 %v5035, %v5323
    %v5325 = vpop.f32.mrb[0].mxu0
    %5326 = vmatprep.mubr.bf16.mxu0 %v4441
    %5327 = vmatmul.mubr.bf16.gmra.mrb[0].mxu0 %v4440
    %v5328 = vpop.f32.mrb[0].mxu0
    %v5329 = vadd.f32 %v5040, %v5328
    %v5330 = vpop.f32.mrb[0].mxu0
    %v5331 = vpop.f32.mrb[0].mxu0
    %v5332 = vadd.f32 %v5043, %v5331
    %v5333 = vpop.f32.mrb[0].mxu0
    %5334 = vmatprep.mubr.bf16.mxu0 %v4446
    %5335 = vmatmul.mubr.bf16.gmra.mrb[0].mxu0 %v4445
    %v5336 = vpop.f32.mrb[0].mxu0
    %v5337 = vadd.f32 %v5048, %v5336
    %v5338 = vpop.f32.mrb[0].mxu0
    %v5339 = vpop.f32.mrb[0].mxu0
    %v5340 = vadd.f32 %v5051, %v5339
    %v5341 = vpop.f32.mrb[0].mxu0
    %5342 = vmatprep.mubr.bf16.mxu0 %v4451
    %5343 = vmatmul.mubr.bf16.gmra.mrb[0].mxu0 %v4450
    %v5344 = vpop.f32.mrb[0].mxu0
    %v5345 = vadd.f32 %v5056, %v5344
    %v5346 = vpop.f32.mrb[0].mxu0
    %v5347 = vpop.f32.mrb[0].mxu0
    %v5348 = vadd.f32 %v5059, %v5347
    %v5349 = vpop.f32.mrb[0].mxu0
    %5350 = vmatprep.mubr.bf16.mxu0 %v4456
    %5351 = vmatmul.mubr.bf16.gmra.mrb[0].mxu0 %v4455
    %v5352 = vpop.f32.mrb[0].mxu0
    %v5353 = vadd.f32 %v5064, %v5352
    %v5354 = vpop.f32.mrb[0].mxu0
    %v5355 = vpop.f32.mrb[0].mxu0
    %v5356 = vadd.f32 %v5067, %v5355
    %v5357 = vpop.f32.mrb[0].mxu0
    %5358 = vmatprep.mubr.bf16.mxu0 %v4461
    %5359 = vmatmul.mubr.bf16.gmra.mrb[0].mxu0 %v4460
    %v5360 = vpop.f32.mrb[0].mxu0
    %v5361 = vadd.f32 %v5072, %v5360
    %v5362 = vpop.f32.mrb[0].mxu0
    %v5363 = vpop.f32.mrb[0].mxu0
    %v5364 = vadd.f32 %v5075, %v5363
    %v5365 = vpop.f32.mrb[0].mxu0
    %5366 = vdwg.mxu0
    %5367 = vmatprep.subr.bf16.mxu0 0
    %5368 = vmatpush1.bf16.msra.mxu0 %v4741
    %5369 = vmatprep.subr.bf16.mxu0 0
    %5370 = vmatpush1.bf16.msra.mxu0 %v4742
    %5371 = vmatprep.subr.bf16.mxu0 0
    %5372 = vmatpush1.bf16.msra.mxu0 %v4743
    %5373 = vmatprep.subr.bf16.mxu0 0
    %5374 = vmatpush1.bf16.msra.mxu0 %v4744
    %5375 = vmatprep.subr.bf16.mxu0 0
    %5376 = vmatpush1.bf16.msra.mxu0 %v4745
    %5377 = vmatprep.subr.bf16.mxu0 0
    %5378 = vmatpush1.bf16.msra.mxu0 %v4746
    %5379 = vmatprep.subr.bf16.mxu0 0
    %5380 = vmatpush1.bf16.msra.mxu0 %v4747
    %5381 = vmatprep.subr.bf16.mxu0 0
    %5382 = vmatpush1.bf16.msra.mxu0 %v4748
    %5383 = vmatprep.subr.bf16.mxu0 0
    %5384 = vmatpush1.bf16.msra.mxu0 0
    %5385 = vmatprep.subr.bf16.mxu0 0
    %5386 = vmatpush1.bf16.msra.mxu0 0
    %5387 = vmatprep.subr.bf16.mxu0 0
    %5388 = vmatpush1.bf16.msra.mxu0 0
    %5389 = vmatprep.subr.bf16.mxu0 0
    %5390 = vmatpush1.bf16.msra.mxu0 0
    %5391 = vmatprep.subr.bf16.mxu0 0
    %5392 = vmatpush1.bf16.msra.mxu0 0
    %5393 = vmatprep.subr.bf16.mxu0 0
    %5394 = vmatpush1.bf16.msra.mxu0 0
    %5395 = vmatprep.subr.bf16.mxu0 0
    %5396 = vmatpush1.bf16.msra.mxu0 0
    %5397 = vmatprep.subr.bf16.mxu0 0
    %5398 = vmatpush1.bf16.msra.mxu0 0
    %5399 = vmatprep.mubr.bf16.mxu0 0
    %5400 = vmatmul.mubr.bf16.gmra.mrb[0].mxu0 %v4307
    %v5401 = vpop.f32.mrb[0].mxu0
    %v5402 = vadd.f32 %v5113, %v5401
    %v5403 = vpop.f32.mrb[0].mxu0
    %v5404 = vpop.f32.mrb[0].mxu0
    %v5405 = vadd.f32 %v5116, %v5404
    %v5406 = vpop.f32.mrb[0].mxu0
    %5407 = vmatprep.mubr.bf16.mxu0 0
    %5408 = vmatmul.mubr.bf16.gmra.mrb[0].mxu0 %v4312
    %v5409 = vpop.f32.mrb[0].mxu0
    %v5410 = vadd.f32 %v5121, %v5409
    %v5411 = vpop.f32.mrb[0].mxu0
    %v5412 = vpop.f32.mrb[0].mxu0
    %v5413 = vadd.f32 %v5124, %v5412
    %v5414 = vpop.f32.mrb[0].mxu0
    %5415 = vmatprep.mubr.bf16.mxu0 0
    %5416 = vmatmul.mubr.bf16.gmra.mrb[0].mxu0 %v4317
    %v5417 = vpop.f32.mrb[0].mxu0
    %v5418 = vadd.f32 %v5129, %v5417
    %v5419 = vpop.f32.mrb[0].mxu0
    %v5420 = vpop.f32.mrb[0].mxu0
    %v5421 = vadd.f32 %v5132, %v5420
    %v5422 = vpop.f32.mrb[0].mxu0
    %5423 = vmatprep.mubr.bf16.mxu0 0
    %5424 = vmatmul.mubr.bf16.gmra.mrb[0].mxu0 %v4322
    %v5425 = vpop.f32.mrb[0].mxu0
    %v5426 = vadd.f32 %v5137, %v5425
    %v5427 = vpop.f32.mrb[0].mxu0
    %v5428 = vpop.f32.mrb[0].mxu0
    %v5429 = vadd.f32 %v5140, %v5428
    %v5430 = vpop.f32.mrb[0].mxu0
    %5431 = vmatprep.mubr.bf16.mxu0 0
    %5432 = vmatmul.mubr.bf16.gmra.mrb[0].mxu0 %v4327
    %v5433 = vpop.f32.mrb[0].mxu0
    %v5434 = vadd.f32 %v5145, %v5433
    %v5435 = vpop.f32.mrb[0].mxu0
    %v5436 = vpop.f32.mrb[0].mxu0
    %v5437 = vadd.f32 %v5148, %v5436
    %v5438 = vpop.f32.mrb[0].mxu0
    %5439 = vmatprep.mubr.bf16.mxu0 0
    %5440 = vmatmul.mubr.bf16.gmra.mrb[0].mxu0 %v4332
    %v5441 = vpop.f32.mrb[0].mxu0
    %v5442 = vadd.f32 %v5153, %v5441
    %v5443 = vpop.f32.mrb[0].mxu0
    %v5444 = vpop.f32.mrb[0].mxu0
    %v5445 = vadd.f32 %v5156, %v5444
    %v5446 = vpop.f32.mrb[0].mxu0
    %5447 = vmatprep.mubr.bf16.mxu0 0
    %5448 = vmatmul.mubr.bf16.gmra.mrb[0].mxu0 %v4337
    %v5449 = vpop.f32.mrb[0].mxu0
    %v5450 = vadd.f32 %v5161, %v5449
    %v5451 = vpop.f32.mrb[0].mxu0
    %v5452 = vpop.f32.mrb[0].mxu0
    %v5453 = vadd.f32 %v5164, %v5452
    %v5454 = vpop.f32.mrb[0].mxu0
    %5455 = vmatprep.mubr.bf16.mxu0 0
    %5456 = vmatmul.mubr.bf16.gmra.mrb[0].mxu0 %v4342
    %v5457 = vpop.f32.mrb[0].mxu0
    %v5458 = vadd.f32 %v5169, %v5457
    %v5459 = vpop.f32.mrb[0].mxu0
    %v5460 = vpop.f32.mrb[0].mxu0
    %v5461 = vadd.f32 %v5172, %v5460
    %v5462 = vpop.f32.mrb[0].mxu0
    %5463 = vmatprep.mubr.bf16.mxu0 0
    %5464 = vmatmul.mubr.bf16.gmra.mrb[0].mxu0 %v4347
    %v5465 = vpop.f32.mrb[0].mxu0
    %v5466 = vadd.f32 %v5177, %v5465
    %v5467 = vpop.f32.mrb[0].mxu0
    %v5468 = vpop.f32.mrb[0].mxu0
    %v5469 = vadd.f32 %v5180, %v5468
    %v5470 = vpop.f32.mrb[0].mxu0
    %5471 = vmatprep.mubr.bf16.mxu0 0
    %5472 = vmatmul.mubr.bf16.gmra.mrb[0].mxu0 %v4352
    %v5473 = vpop.f32.mrb[0].mxu0
    %v5474 = vadd.f32 %v5185, %v5473
    %v5475 = vpop.f32.mrb[0].mxu0
    %v5476 = vpop.f32.mrb[0].mxu0
    %v5477 = vadd.f32 %v5188, %v5476
    %v5478 = vpop.f32.mrb[0].mxu0
    %5479 = vmatprep.mubr.bf16.mxu0 0
    %5480 = vmatmul.mubr.bf16.gmra.mrb[0].mxu0 %v4357
    %v5481 = vpop.f32.mrb[0].mxu0
    %v5482 = vadd.f32 %v5193, %v5481
    %v5483 = vpop.f32.mrb[0].mxu0
    %v5484 = vpop.f32.mrb[0].mxu0
    %v5485 = vadd.f32 %v5196, %v5484
    %v5486 = vpop.f32.mrb[0].mxu0
    %5487 = vmatprep.mubr.bf16.mxu0 0
    %5488 = vmatmul.mubr.bf16.gmra.mrb[0].mxu0 %v4362
    %v5489 = vpop.f32.mrb[0].mxu0
    %v5490 = vadd.f32 %v5201, %v5489
    %v5491 = vpop.f32.mrb[0].mxu0
    %v5492 = vpop.f32.mrb[0].mxu0
    %v5493 = vadd.f32 %v5204, %v5492
    %v5494 = vpop.f32.mrb[0].mxu0
    %5495 = vmatprep.mubr.bf16.mxu0 0
    %5496 = vmatmul.mubr.bf16.gmra.mrb[0].mxu0 %v4367
    %v5497 = vpop.f32.mrb[0].mxu0
    %v5498 = vadd.f32 %v5209, %v5497
    %v5499 = vpop.f32.mrb[0].mxu0
    %v5500 = vpop.f32.mrb[0].mxu0
    %v5501 = vadd.f32 %v5212, %v5500
    %v5502 = vpop.f32.mrb[0].mxu0
    %5503 = vmatprep.mubr.bf16.mxu0 0
    %5504 = vmatmul.mubr.bf16.gmra.mrb[0].mxu0 %v4372
    %v5505 = vpop.f32.mrb[0].mxu0
    %v5506 = vadd.f32 %v5217, %v5505
    %v5507 = vpop.f32.mrb[0].mxu0
    %v5508 = vpop.f32.mrb[0].mxu0
    %v5509 = vadd.f32 %v5220, %v5508
    %v5510 = vpop.f32.mrb[0].mxu0
    %5511 = vmatprep.mubr.bf16.mxu0 0
    %5512 = vmatmul.mubr.bf16.gmra.mrb[0].mxu0 %v4377
    %v5513 = vpop.f32.mrb[0].mxu0
    %v5514 = vadd.f32 %v5225, %v5513
    %v5515 = vpop.f32.mrb[0].mxu0
    %v5516 = vpop.f32.mrb[0].mxu0
    %v5517 = vadd.f32 %v5228, %v5516
    %v5518 = vpop.f32.mrb[0].mxu0
    %5519 = vmatprep.mubr.bf16.mxu0 0
    %5520 = vmatmul.mubr.bf16.gmra.mrb[0].mxu0 %v4382
    %v5521 = vpop.f32.mrb[0].mxu0
    %v5522 = vadd.f32 %v5233, %v5521
    %v5523 = vpop.f32.mrb[0].mxu0
    %v5524 = vpop.f32.mrb[0].mxu0
    %v5525 = vadd.f32 %v5236, %v5524
    %v5526 = vpop.f32.mrb[0].mxu0
    %5527 = vmatprep.mubr.bf16.mxu0 0
    %5528 = vmatmul.mubr.bf16.gmra.mrb[0].mxu0 %v4387
    %v5529 = vpop.f32.mrb[0].mxu0
    %v5530 = vadd.f32 %v5241, %v5529
    %v5531 = vpop.f32.mrb[0].mxu0
    %v5532 = vpop.f32.mrb[0].mxu0
    %v5533 = vadd.f32 %v5244, %v5532
    %v5534 = vpop.f32.mrb[0].mxu0
    %5535 = vmatprep.mubr.bf16.mxu0 0
    %5536 = vmatmul.mubr.bf16.gmra.mrb[0].mxu0 %v4392
    %v5537 = vpop.f32.mrb[0].mxu0
    %v5538 = vadd.f32 %v5249, %v5537
    %v5539 = vpop.f32.mrb[0].mxu0
    %v5540 = vpop.f32.mrb[0].mxu0
    %v5541 = vadd.f32 %v5252, %v5540
    %v5542 = vpop.f32.mrb[0].mxu0
    %5543 = vmatprep.mubr.bf16.mxu0 0
    %5544 = vmatmul.mubr.bf16.gmra.mrb[0].mxu0 %v4397
    %v5545 = vpop.f32.mrb[0].mxu0
    %v5546 = vadd.f32 %v5257, %v5545
    %v5547 = vpop.f32.mrb[0].mxu0
    %v5548 = vpop.f32.mrb[0].mxu0
    %v5549 = vadd.f32 %v5260, %v5548
    %v5550 = vpop.f32.mrb[0].mxu0
    %5551 = vmatprep.mubr.bf16.mxu0 0
    %5552 = vmatmul.mubr.bf16.gmra.mrb[0].mxu0 %v4402
    %v5553 = vpop.f32.mrb[0].mxu0
    %v5554 = vadd.f32 %v5265, %v5553
    %v5555 = vpop.f32.mrb[0].mxu0
    %v5556 = vpop.f32.mrb[0].mxu0
    %v5557 = vadd.f32 %v5268, %v5556
    %v5558 = vpop.f32.mrb[0].mxu0
    %5559 = vmatprep.mubr.bf16.mxu0 0
    %5560 = vmatmul.mubr.bf16.gmra.mrb[0].mxu0 %v4407
    %v5561 = vpop.f32.mrb[0].mxu0
    %v5562 = vadd.f32 %v5273, %v5561
    %v5563 = vpop.f32.mrb[0].mxu0
    %v5564 = vpop.f32.mrb[0].mxu0
    %v5565 = vadd.f32 %v5276, %v5564
    %v5566 = vpop.f32.mrb[0].mxu0
    %5567 = vmatprep.mubr.bf16.mxu0 0
    %5568 = vmatmul.mubr.bf16.gmra.mrb[0].mxu0 %v4412
    %v5569 = vpop.f32.mrb[0].mxu0
    %v5570 = vadd.f32 %v5281, %v5569
    %v5571 = vpop.f32.mrb[0].mxu0
    %v5572 = vpop.f32.mrb[0].mxu0
    %v5573 = vadd.f32 %v5284, %v5572
    %v5574 = vpop.f32.mrb[0].mxu0
    %5575 = vmatprep.mubr.bf16.mxu0 0
    %5576 = vmatmul.mubr.bf16.gmra.mrb[0].mxu0 %v4417
    %v5577 = vpop.f32.mrb[0].mxu0
    %v5578 = vadd.f32 %v5289, %v5577
    %v5579 = vpop.f32.mrb[0].mxu0
    %v5580 = vpop.f32.mrb[0].mxu0
    %v5581 = vadd.f32 %v5292, %v5580
    %v5582 = vpop.f32.mrb[0].mxu0
    %5583 = vmatprep.mubr.bf16.mxu0 0
    %5584 = vmatmul.mubr.bf16.gmra.mrb[0].mxu0 %v4422
    %v5585 = vpop.f32.mrb[0].mxu0
    %v5586 = vadd.f32 %v5297, %v5585
    %v5587 = vpop.f32.mrb[0].mxu0
    %v5588 = vpop.f32.mrb[0].mxu0
    %v5589 = vadd.f32 %v5300, %v5588
    %v5590 = vpop.f32.mrb[0].mxu0
    %5591 = vmatprep.mubr.bf16.mxu0 0
    %5592 = vmatmul.mubr.bf16.gmra.mrb[0].mxu0 %v4427
    %v5593 = vpop.f32.mrb[0].mxu0
    %v5594 = vadd.f32 %v5305, %v5593
    %v5595 = vpop.f32.mrb[0].mxu0
    %v5596 = vpop.f32.mrb[0].mxu0
    %v5597 = vadd.f32 %v5308, %v5596
    %v5598 = vpop.f32.mrb[0].mxu0
    %5599 = vmatprep.mubr.bf16.mxu0 0
    %5600 = vmatmul.mubr.bf16.gmra.mrb[0].mxu0 %v4432
    %v5601 = vpop.f32.mrb[0].mxu0
    %v5602 = vadd.f32 %v5313, %v5601
    %v5603 = vpop.f32.mrb[0].mxu0
    %v5604 = vpop.f32.mrb[0].mxu0
    %v5605 = vadd.f32 %v5316, %v5604
    %v5606 = vpop.f32.mrb[0].mxu0
    %5607 = vmatprep.mubr.bf16.mxu0 0
    %5608 = vmatmul.mubr.bf16.gmra.mrb[0].mxu0 %v4437
    %v5609 = vpop.f32.mrb[0].mxu0
    %v5610 = vadd.f32 %v5321, %v5609
    %v5611 = vpop.f32.mrb[0].mxu0
    %v5612 = vpop.f32.mrb[0].mxu0
    %v5613 = vadd.f32 %v5324, %v5612
    %v5614 = vpop.f32.mrb[0].mxu0
    %5615 = vmatprep.mubr.bf16.mxu0 0
    %5616 = vmatmul.mubr.bf16.gmra.mrb[0].mxu0 %v4442
    %v5617 = vpop.f32.mrb[0].mxu0
    %v5618 = vadd.f32 %v5329, %v5617
    %v5619 = vpop.f32.mrb[0].mxu0
    %v5620 = vpop.f32.mrb[0].mxu0
    %v5621 = vadd.f32 %v5332, %v5620
    %v5622 = vpop.f32.mrb[0].mxu0
    %5623 = vmatprep.mubr.bf16.mxu0 0
    %5624 = vmatmul.mubr.bf16.gmra.mrb[0].mxu0 %v4447
    %v5625 = vpop.f32.mrb[0].mxu0
    %v5626 = vadd.f32 %v5337, %v5625
    %v5627 = vpop.f32.mrb[0].mxu0
    %v5628 = vpop.f32.mrb[0].mxu0
    %v5629 = vadd.f32 %v5340, %v5628
    %v5630 = vpop.f32.mrb[0].mxu0
    %5631 = vmatprep.mubr.bf16.mxu0 0
    %5632 = vmatmul.mubr.bf16.gmra.mrb[0].mxu0 %v4452
    %v5633 = vpop.f32.mrb[0].mxu0
    %v5634 = vadd.f32 %v5345, %v5633
    %v5635 = vpop.f32.mrb[0].mxu0
    %v5636 = vpop.f32.mrb[0].mxu0
    %v5637 = vadd.f32 %v5348, %v5636
    %v5638 = vpop.f32.mrb[0].mxu0
    %5639 = vmatprep.mubr.bf16.mxu0 0
    %5640 = vmatmul.mubr.bf16.gmra.mrb[0].mxu0 %v4457
    %v5641 = vpop.f32.mrb[0].mxu0
    %v5642 = vadd.f32 %v5353, %v5641
    %v5643 = vpop.f32.mrb[0].mxu0
    %v5644 = vpop.f32.mrb[0].mxu0
    %v5645 = vadd.f32 %v5356, %v5644
    %v5646 = vpop.f32.mrb[0].mxu0
    %5647 = vmatprep.mubr.bf16.mxu0 0
    %5648 = vmatmul.mubr.bf16.gmra.mrb[0].mxu0 %v4462
    %v5649 = vpop.f32.mrb[0].mxu0
    %v5650 = vadd.f32 %v5361, %v5649
    %v5651 = vpop.f32.mrb[0].mxu0
    %v5652 = vpop.f32.mrb[0].mxu0
    %v5653 = vadd.f32 %v5364, %v5652
    %v5654 = vpop.f32.mrb[0].mxu0
    %5655 = vdwg.mxu0
    %v5656 = vld [vmem:[%s1] sm:$0x1]
    %v5657 = vld [vmem:[%s1 + $0x1] sm:$0x1]
    %v5658 = vxor.u32 %v5656, 2147483648
    %v5659 = vxor.u32 %v5657, 2147483648
    %v5660 = vmul.f32 %v5658, 1.442695
    %v5661 = vpow.pop %v5660
    %v5662 = vmul.f32 %v5659, 1.442695
    %v5663 = vpow.pop %v5662
    %v5664 = vadd.f32 %v5661, 1.0
    %v5665 = vadd.f32 %v5663, 1.0
    %v5666 = vrcp.pop %v5664
    %v5667 = vmul.f32 1.0, %v5666
    %v5668 = vrcp.pop %v5665
    %v5669 = vmul.f32 1.0, %v5668
    %v5670 = vmul.f32 %v5656, %v5667
    %v5671 = vmul.f32 %v5657, %v5669
    %v5672 = vpack.c.bf16 %v5670, %v5670
    %v5673 = vpack.c.bf16 %v5671, %v5671
    %v5674 = vld [vmem:[%s8] sm:$0xf]
    %v5675 = vld [vmem:[%s8 + $0x4] sm:$0xf]
    %v5676 = vld [vmem:[%s8 + $0x8] sm:$0xf]
    %v5677 = vld [vmem:[%s8 + $0xc] sm:$0xf]
    %v5678 = vld [vmem:[%s9] sm:$0x1]
    %v5680 = vlaneseq
    %v5681 = vshrl.u32 %v5680, 7
    %v5682 = vsub.s32 0, %v5681
    %v5683 = vrot.slane %v5678, %v5682
    %v5687 = vunpack.c.l.b16 %v5672
    %v5688 = vunpack.c.l.b16 %v5673
    %v5689 = vrot.slane %v5688, 7
    %v5690 = vsel %vm526, %v5689, %v5687
    %v5691 = vpack.c.b16 %v5690, %v5690
    %v5696 = vunpack.c.l.b16 %v5674
    %v5697 = vunpack.c.l.b16 %v5675
    %v5698 = vunpack.c.l.b16 %v5676
    %v5699 = vunpack.c.l.b16 %v5677
    %v5700 = vpack.c.b16 %v5697, %v5696
    %v5701 = vpack.c.b16 %v5699, %v5698
    %vm5704 = vcmask 261120
    %v5706 = vsel %vm5704, %v5691, 0
    %5708 = vmatprep.subr.bf16.mxu0 0
    %5709 = vmatpush1.bf16.msra.mxu0 %v5700
    %5710 = vmatprep.subr.bf16.mxu0 0
    %5711 = vmatpush1.bf16.msra.mxu0 %v5701
    %5712 = vmatprep.subr.bf16.mxu0 0
    %5713 = vmatpush1.bf16.msra.mxu0 0
    %5714 = vmatprep.subr.bf16.mxu0 0
    %5715 = vmatpush1.bf16.msra.mxu0 0
    %5716 = vmatprep.subr.bf16.mxu0 0
    %5717 = vmatpush1.bf16.msra.mxu0 0
    %5718 = vmatprep.subr.bf16.mxu0 0
    %5719 = vmatpush1.bf16.msra.mxu0 0
    %5720 = vmatprep.subr.bf16.mxu0 0
    %5721 = vmatpush1.bf16.msra.mxu0 0
    %5722 = vmatprep.subr.bf16.mxu0 0
    %5723 = vmatpush1.bf16.msra.mxu0 0
    %5724 = vmatprep.subr.bf16.mxu0 0
    %5725 = vmatpush1.bf16.msra.mxu0 0
    %5726 = vmatprep.subr.bf16.mxu0 0
    %5727 = vmatpush1.bf16.msra.mxu0 0
    %5728 = vmatprep.subr.bf16.mxu0 0
    %5729 = vmatpush1.bf16.msra.mxu0 0
    %5730 = vmatprep.subr.bf16.mxu0 0
    %5731 = vmatpush1.bf16.msra.mxu0 0
    %5732 = vmatprep.subr.bf16.mxu0 0
    %5733 = vmatpush1.bf16.msra.mxu0 0
    %5734 = vmatprep.subr.bf16.mxu0 0
    %5735 = vmatpush1.bf16.msra.mxu0 0
    %5736 = vmatprep.subr.bf16.mxu0 0
    %5737 = vmatpush1.bf16.msra.mxu0 0
    %5738 = vmatprep.subr.bf16.mxu0 0
    %5739 = vmatpush1.bf16.msra.mxu0 0
    %5740 = vmatprep.mubr.bf16.mxu0 0
    %5741 = vmatmul.mubr.bf16.gmra.mrb[0].mxu0 %v5706
    %v5742 = vpop.f32.mrb[0].mxu0
    %v5743 = vadd.f32 %v5683, %v5742
    %v5744 = vpop.f32.mrb[0].mxu0
    %v5745 = vpop.f32.mrb[0].mxu0
    %v5746 = vpop.f32.mrb[0].mxu0
    %5747 = vdwg.mxu0
    %v5750 = vunpack.c.l.s4 1966171168
    %v5751 = vunpack.c.0.s8 %v5750
    %v5752 = vlaneseq
    %v5753 = vshrl.u32 %v5752, 7
    %v5754 = vsub.s32 %v5751, %v5753
    %v5755 = vrot.slane %v5743, %v5754
    %v5756 = vcombine.high %v5755, %v5755
    %v5758 = vunpack.c.l.s4 1966171168
    %v5759 = vunpack.c.0.s8 %v5758
    %v5760 = vlaneseq
    %v5761 = vshrl.u32 %v5760, 7
    %v5762 = vsub.s32 %v5759, %v5761
    %v5763 = vrot.slane %v5755, %v5762
    %v5765 = vunpack.c.l.s4 1966171168
    %v5766 = vunpack.c.0.s8 %v5765
    %v5767 = vlaneseq
    %v5768 = vshrl.u32 %v5767, 7
    %v5769 = vsub.s32 %v5766, %v5768
    %v5770 = vrot.slane %v5756, %v5769
    %v5771 = vlaneseq
    %v5772 = vshrl.u32 %v5771, 7
    %v5773 = vsub.s32 0, %v5772
    %v5774 = vrot.slane %v5763, %v5773
    %v5775 = vlaneseq
    %v5776 = vshrl.u32 %v5775, 7
    %v5777 = vsub.s32 0, %v5776
    %v5778 = vrot.slane %v5770, %v5777
    %v5781 = vadd.f32 %v5402, %v5774
    %v5782 = vadd.f32 %v5405, %v5774
    %v5783 = vadd.f32 %v5410, %v5774
    %v5784 = vadd.f32 %v5413, %v5774
    %v5785 = vadd.f32 %v5418, %v5774
    %v5786 = vadd.f32 %v5421, %v5774
    %v5787 = vadd.f32 %v5426, %v5774
    %v5788 = vadd.f32 %v5429, %v5774
    %v5789 = vadd.f32 %v5434, %v5774
    %v5790 = vadd.f32 %v5437, %v5774
    %v5791 = vadd.f32 %v5442, %v5774
    %v5792 = vadd.f32 %v5445, %v5774
    %v5793 = vadd.f32 %v5450, %v5774
    %v5794 = vadd.f32 %v5453, %v5774
    %v5795 = vadd.f32 %v5458, %v5774
    %v5796 = vadd.f32 %v5461, %v5774
    %v5797 = vadd.f32 %v5466, %v5774
    %v5798 = vadd.f32 %v5469, %v5774
    %v5799 = vadd.f32 %v5474, %v5774
    %v5800 = vadd.f32 %v5477, %v5774
    %v5801 = vadd.f32 %v5482, %v5774
    %v5802 = vadd.f32 %v5485, %v5774
    %v5803 = vadd.f32 %v5490, %v5774
    %v5804 = vadd.f32 %v5493, %v5774
    %v5805 = vadd.f32 %v5498, %v5774
    %v5806 = vadd.f32 %v5501, %v5774
    %v5807 = vadd.f32 %v5506, %v5774
    %v5808 = vadd.f32 %v5509, %v5774
    %v5809 = vadd.f32 %v5514, %v5774
    %v5810 = vadd.f32 %v5517, %v5774
    %v5811 = vadd.f32 %v5522, %v5774
    %v5812 = vadd.f32 %v5525, %v5774
    %v5813 = vadd.f32 %v5530, %v5778
    %v5814 = vadd.f32 %v5533, %v5778
    %v5815 = vadd.f32 %v5538, %v5778
    %v5816 = vadd.f32 %v5541, %v5778
    %v5817 = vadd.f32 %v5546, %v5778
    %v5818 = vadd.f32 %v5549, %v5778
    %v5819 = vadd.f32 %v5554, %v5778
    %v5820 = vadd.f32 %v5557, %v5778
    %v5821 = vadd.f32 %v5562, %v5778
    %v5822 = vadd.f32 %v5565, %v5778
    %v5823 = vadd.f32 %v5570, %v5778
    %v5824 = vadd.f32 %v5573, %v5778
    %v5825 = vadd.f32 %v5578, %v5778
    %v5826 = vadd.f32 %v5581, %v5778
    %v5827 = vadd.f32 %v5586, %v5778
    %v5828 = vadd.f32 %v5589, %v5778
    %v5829 = vadd.f32 %v5594, %v5778
    %v5830 = vadd.f32 %v5597, %v5778
    %v5831 = vadd.f32 %v5602, %v5778
    %v5832 = vadd.f32 %v5605, %v5778
    %v5833 = vadd.f32 %v5610, %v5778
    %v5834 = vadd.f32 %v5613, %v5778
    %v5835 = vadd.f32 %v5618, %v5778
    %v5836 = vadd.f32 %v5621, %v5778
    %v5837 = vadd.f32 %v5626, %v5778
    %v5838 = vadd.f32 %v5629, %v5778
    %v5839 = vadd.f32 %v5634, %v5778
    %v5840 = vadd.f32 %v5637, %v5778
    %v5841 = vadd.f32 %v5642, %v5778
    %v5842 = vadd.f32 %v5645, %v5778
    %v5843 = vadd.f32 %v5650, %v5778
    %v5844 = vadd.f32 %v5653, %v5778
    %v5845 = vld [vmem:[%s10] sm:$0x1]
    %v5846 = vld [vmem:[%s11] sm:$0x1]
    %v5847 = vsel %vm183, %v5781, 0.0
    %v5848 = vsel %vm183, %v5782, 0.0
    %v5849 = vadd.f32 %v5847, %v5848
    %v5850 = vsel %vm183, %v5783, 0.0
    %v5851 = vadd.f32 %v5849, %v5850
    %v5852 = vsel %vm183, %v5784, 0.0
    %v5853 = vadd.f32 %v5851, %v5852
    %v5854 = vsel %vm183, %v5785, 0.0
    %v5855 = vadd.f32 %v5853, %v5854
    %v5856 = vsel %vm183, %v5786, 0.0
    %v5857 = vadd.f32 %v5855, %v5856
    %v5858 = vsel %vm183, %v5787, 0.0
    %v5859 = vadd.f32 %v5857, %v5858
    %v5860 = vsel %vm183, %v5788, 0.0
    %v5861 = vadd.f32 %v5859, %v5860
    %v5862 = vsel %vm183, %v5789, 0.0
    %v5863 = vadd.f32 %v5861, %v5862
    %v5864 = vsel %vm183, %v5790, 0.0
    %v5865 = vadd.f32 %v5863, %v5864
    %v5866 = vsel %vm183, %v5791, 0.0
    %v5867 = vadd.f32 %v5865, %v5866
    %v5868 = vsel %vm183, %v5792, 0.0
    %v5869 = vadd.f32 %v5867, %v5868
    %v5870 = vsel %vm183, %v5793, 0.0
    %v5871 = vadd.f32 %v5869, %v5870
    %v5872 = vsel %vm183, %v5794, 0.0
    %v5873 = vadd.f32 %v5871, %v5872
    %v5874 = vsel %vm183, %v5795, 0.0
    %v5875 = vadd.f32 %v5873, %v5874
    %v5876 = vsel %vm183, %v5796, 0.0
    %v5877 = vadd.f32 %v5875, %v5876
    %v5878 = vsel %vm183, %v5797, 0.0
    %v5879 = vadd.f32 %v5877, %v5878
    %v5880 = vsel %vm183, %v5798, 0.0
    %v5881 = vadd.f32 %v5879, %v5880
    %v5882 = vsel %vm183, %v5799, 0.0
    %v5883 = vadd.f32 %v5881, %v5882
    %v5884 = vsel %vm183, %v5800, 0.0
    %v5885 = vadd.f32 %v5883, %v5884
    %v5886 = vsel %vm183, %v5801, 0.0
    %v5887 = vadd.f32 %v5885, %v5886
    %v5888 = vsel %vm183, %v5802, 0.0
    %v5889 = vadd.f32 %v5887, %v5888
    %v5890 = vsel %vm183, %v5803, 0.0
    %v5891 = vadd.f32 %v5889, %v5890
    %v5892 = vsel %vm183, %v5804, 0.0
    %v5893 = vadd.f32 %v5891, %v5892
    %v5894 = vsel %vm183, %v5805, 0.0
    %v5895 = vadd.f32 %v5893, %v5894
    %v5896 = vsel %vm183, %v5806, 0.0
    %v5897 = vadd.f32 %v5895, %v5896
    %v5898 = vsel %vm183, %v5807, 0.0
    %v5899 = vadd.f32 %v5897, %v5898
    %v5900 = vsel %vm183, %v5808, 0.0
    %v5901 = vadd.f32 %v5899, %v5900
    %v5902 = vsel %vm183, %v5809, 0.0
    %v5903 = vadd.f32 %v5901, %v5902
    %v5904 = vsel %vm183, %v5810, 0.0
    %v5905 = vadd.f32 %v5903, %v5904
    %v5906 = vsel %vm183, %v5811, 0.0
    %v5907 = vadd.f32 %v5905, %v5906
    %v5908 = vsel %vm183, %v5812, 0.0
    %v5909 = vadd.f32 %v5907, %v5908
    %v5910 = vrot.slane %v5909, 4
    %v5911 = vadd.f32 %v5909, %v5910
    %v5912 = vrot.slane %v5911, 2
    %v5913 = vadd.f32 %v5911, %v5912
    %v5914 = vrot.slane %v5913, 1
    %v5915 = vadd.f32 %v5913, %v5914
    %v5916 = vsel %vm183, %v5813, 0.0
    %v5917 = vsel %vm183, %v5814, 0.0
    %v5918 = vadd.f32 %v5916, %v5917
    %v5919 = vsel %vm183, %v5815, 0.0
    %v5920 = vadd.f32 %v5918, %v5919
    %v5921 = vsel %vm183, %v5816, 0.0
    %v5922 = vadd.f32 %v5920, %v5921
    %v5923 = vsel %vm183, %v5817, 0.0
    %v5924 = vadd.f32 %v5922, %v5923
    %v5925 = vsel %vm183, %v5818, 0.0
    %v5926 = vadd.f32 %v5924, %v5925
    %v5927 = vsel %vm183, %v5819, 0.0
    %v5928 = vadd.f32 %v5926, %v5927
    %v5929 = vsel %vm183, %v5820, 0.0
    %v5930 = vadd.f32 %v5928, %v5929
    %v5931 = vsel %vm183, %v5821, 0.0
    %v5932 = vadd.f32 %v5930, %v5931
    %v5933 = vsel %vm183, %v5822, 0.0
    %v5934 = vadd.f32 %v5932, %v5933
    %v5935 = vsel %vm183, %v5823, 0.0
    %v5936 = vadd.f32 %v5934, %v5935
    %v5937 = vsel %vm183, %v5824, 0.0
    %v5938 = vadd.f32 %v5936, %v5937
    %v5939 = vsel %vm183, %v5825, 0.0
    %v5940 = vadd.f32 %v5938, %v5939
    %v5941 = vsel %vm183, %v5826, 0.0
    %v5942 = vadd.f32 %v5940, %v5941
    %v5943 = vsel %vm183, %v5827, 0.0
    %v5944 = vadd.f32 %v5942, %v5943
    %v5945 = vsel %vm183, %v5828, 0.0
    %v5946 = vadd.f32 %v5944, %v5945
    %v5947 = vsel %vm183, %v5829, 0.0
    %v5948 = vadd.f32 %v5946, %v5947
    %v5949 = vsel %vm183, %v5830, 0.0
    %v5950 = vadd.f32 %v5948, %v5949
    %v5951 = vsel %vm183, %v5831, 0.0
    %v5952 = vadd.f32 %v5950, %v5951
    %v5953 = vsel %vm183, %v5832, 0.0
    %v5954 = vadd.f32 %v5952, %v5953
    %v5955 = vsel %vm183, %v5833, 0.0
    %v5956 = vadd.f32 %v5954, %v5955
    %v5957 = vsel %vm183, %v5834, 0.0
    %v5958 = vadd.f32 %v5956, %v5957
    %v5959 = vsel %vm183, %v5835, 0.0
    %v5960 = vadd.f32 %v5958, %v5959
    %v5961 = vsel %vm183, %v5836, 0.0
    %v5962 = vadd.f32 %v5960, %v5961
    %v5963 = vsel %vm183, %v5837, 0.0
    %v5964 = vadd.f32 %v5962, %v5963
    %v5965 = vsel %vm183, %v5838, 0.0
    %v5966 = vadd.f32 %v5964, %v5965
    %v5967 = vsel %vm183, %v5839, 0.0
    %v5968 = vadd.f32 %v5966, %v5967
    %v5969 = vsel %vm183, %v5840, 0.0
    %v5970 = vadd.f32 %v5968, %v5969
    %v5971 = vsel %vm183, %v5841, 0.0
    %v5972 = vadd.f32 %v5970, %v5971
    %v5973 = vsel %vm183, %v5842, 0.0
    %v5974 = vadd.f32 %v5972, %v5973
    %v5975 = vsel %vm183, %v5843, 0.0
    %v5976 = vadd.f32 %v5974, %v5975
    %v5977 = vsel %vm183, %v5844, 0.0
    %v5978 = vadd.f32 %v5976, %v5977
    %v5979 = vrot.slane %v5978, 4
    %v5980 = vadd.f32 %v5978, %v5979
    %v5981 = vrot.slane %v5980, 2
    %v5982 = vadd.f32 %v5980, %v5981
    %v5983 = vrot.slane %v5982, 1
    %v5984 = vadd.f32 %v5982, %v5983
    %v5985 = vmul.f32 %v5781, %v5781
    %v5986 = vmul.f32 %v5782, %v5782
    %v5987 = vmul.f32 %v5783, %v5783
    %v5988 = vmul.f32 %v5784, %v5784
    %v5989 = vmul.f32 %v5785, %v5785
    %v5990 = vmul.f32 %v5786, %v5786
    %v5991 = vmul.f32 %v5787, %v5787
    %v5992 = vmul.f32 %v5788, %v5788
    %v5993 = vmul.f32 %v5789, %v5789
    %v5994 = vmul.f32 %v5790, %v5790
    %v5995 = vmul.f32 %v5791, %v5791
    %v5996 = vmul.f32 %v5792, %v5792
    %v5997 = vmul.f32 %v5793, %v5793
    %v5998 = vmul.f32 %v5794, %v5794
    %v5999 = vmul.f32 %v5795, %v5795
    %v6000 = vmul.f32 %v5796, %v5796
    %v6001 = vmul.f32 %v5797, %v5797
    %v6002 = vmul.f32 %v5798, %v5798
    %v6003 = vmul.f32 %v5799, %v5799
    %v6004 = vmul.f32 %v5800, %v5800
    %v6005 = vmul.f32 %v5801, %v5801
    %v6006 = vmul.f32 %v5802, %v5802
    %v6007 = vmul.f32 %v5803, %v5803
    %v6008 = vmul.f32 %v5804, %v5804
    %v6009 = vmul.f32 %v5805, %v5805
    %v6010 = vmul.f32 %v5806, %v5806
    %v6011 = vmul.f32 %v5807, %v5807
    %v6012 = vmul.f32 %v5808, %v5808
    %v6013 = vmul.f32 %v5809, %v5809
    %v6014 = vmul.f32 %v5810, %v5810
    %v6015 = vmul.f32 %v5811, %v5811
    %v6016 = vmul.f32 %v5812, %v5812
    %v6017 = vmul.f32 %v5813, %v5813
    %v6018 = vmul.f32 %v5814, %v5814
    %v6019 = vmul.f32 %v5815, %v5815
    %v6020 = vmul.f32 %v5816, %v5816
    %v6021 = vmul.f32 %v5817, %v5817
    %v6022 = vmul.f32 %v5818, %v5818
    %v6023 = vmul.f32 %v5819, %v5819
    %v6024 = vmul.f32 %v5820, %v5820
    %v6025 = vmul.f32 %v5821, %v5821
    %v6026 = vmul.f32 %v5822, %v5822
    %v6027 = vmul.f32 %v5823, %v5823
    %v6028 = vmul.f32 %v5824, %v5824
    %v6029 = vmul.f32 %v5825, %v5825
    %v6030 = vmul.f32 %v5826, %v5826
    %v6031 = vmul.f32 %v5827, %v5827
    %v6032 = vmul.f32 %v5828, %v5828
    %v6033 = vmul.f32 %v5829, %v5829
    %v6034 = vmul.f32 %v5830, %v5830
    %v6035 = vmul.f32 %v5831, %v5831
    %v6036 = vmul.f32 %v5832, %v5832
    %v6037 = vmul.f32 %v5833, %v5833
    %v6038 = vmul.f32 %v5834, %v5834
    %v6039 = vmul.f32 %v5835, %v5835
    %v6040 = vmul.f32 %v5836, %v5836
    %v6041 = vmul.f32 %v5837, %v5837
    %v6042 = vmul.f32 %v5838, %v5838
    %v6043 = vmul.f32 %v5839, %v5839
    %v6044 = vmul.f32 %v5840, %v5840
    %v6045 = vmul.f32 %v5841, %v5841
    %v6046 = vmul.f32 %v5842, %v5842
    %v6047 = vmul.f32 %v5843, %v5843
    %v6048 = vmul.f32 %v5844, %v5844
    %v6049 = vsel %vm183, %v5985, 0.0
    %v6050 = vsel %vm183, %v5986, 0.0
    %v6051 = vadd.f32 %v6049, %v6050
    %v6052 = vsel %vm183, %v5987, 0.0
    %v6053 = vadd.f32 %v6051, %v6052
    %v6054 = vsel %vm183, %v5988, 0.0
    %v6055 = vadd.f32 %v6053, %v6054
    %v6056 = vsel %vm183, %v5989, 0.0
    %v6057 = vadd.f32 %v6055, %v6056
    %v6058 = vsel %vm183, %v5990, 0.0
    %v6059 = vadd.f32 %v6057, %v6058
    %v6060 = vsel %vm183, %v5991, 0.0
    %v6061 = vadd.f32 %v6059, %v6060
    %v6062 = vsel %vm183, %v5992, 0.0
    %v6063 = vadd.f32 %v6061, %v6062
    %v6064 = vsel %vm183, %v5993, 0.0
    %v6065 = vadd.f32 %v6063, %v6064
    %v6066 = vsel %vm183, %v5994, 0.0
    %v6067 = vadd.f32 %v6065, %v6066
    %v6068 = vsel %vm183, %v5995, 0.0
    %v6069 = vadd.f32 %v6067, %v6068
    %v6070 = vsel %vm183, %v5996, 0.0
    %v6071 = vadd.f32 %v6069, %v6070
    %v6072 = vsel %vm183, %v5997, 0.0
    %v6073 = vadd.f32 %v6071, %v6072
    %v6074 = vsel %vm183, %v5998, 0.0
    %v6075 = vadd.f32 %v6073, %v6074
    %v6076 = vsel %vm183, %v5999, 0.0
    %v6077 = vadd.f32 %v6075, %v6076
    %v6078 = vsel %vm183, %v6000, 0.0
    %v6079 = vadd.f32 %v6077, %v6078
    %v6080 = vsel %vm183, %v6001, 0.0
    %v6081 = vadd.f32 %v6079, %v6080
    %v6082 = vsel %vm183, %v6002, 0.0
    %v6083 = vadd.f32 %v6081, %v6082
    %v6084 = vsel %vm183, %v6003, 0.0
    %v6085 = vadd.f32 %v6083, %v6084
    %v6086 = vsel %vm183, %v6004, 0.0
    %v6087 = vadd.f32 %v6085, %v6086
    %v6088 = vsel %vm183, %v6005, 0.0
    %v6089 = vadd.f32 %v6087, %v6088
    %v6090 = vsel %vm183, %v6006, 0.0
    %v6091 = vadd.f32 %v6089, %v6090
    %v6092 = vsel %vm183, %v6007, 0.0
    %v6093 = vadd.f32 %v6091, %v6092
    %v6094 = vsel %vm183, %v6008, 0.0
    %v6095 = vadd.f32 %v6093, %v6094
    %v6096 = vsel %vm183, %v6009, 0.0
    %v6097 = vadd.f32 %v6095, %v6096
    %v6098 = vsel %vm183, %v6010, 0.0
    %v6099 = vadd.f32 %v6097, %v6098
    %v6100 = vsel %vm183, %v6011, 0.0
    %v6101 = vadd.f32 %v6099, %v6100
    %v6102 = vsel %vm183, %v6012, 0.0
    %v6103 = vadd.f32 %v6101, %v6102
    %v6104 = vsel %vm183, %v6013, 0.0
    %v6105 = vadd.f32 %v6103, %v6104
    %v6106 = vsel %vm183, %v6014, 0.0
    %v6107 = vadd.f32 %v6105, %v6106
    %v6108 = vsel %vm183, %v6015, 0.0
    %v6109 = vadd.f32 %v6107, %v6108
    %v6110 = vsel %vm183, %v6016, 0.0
    %v6111 = vadd.f32 %v6109, %v6110
    %v6112 = vrot.slane %v6111, 4
    %v6113 = vadd.f32 %v6111, %v6112
    %v6114 = vrot.slane %v6113, 2
    %v6115 = vadd.f32 %v6113, %v6114
    %v6116 = vrot.slane %v6115, 1
    %v6117 = vadd.f32 %v6115, %v6116
    %v6118 = vsel %vm183, %v6017, 0.0
    %v6119 = vsel %vm183, %v6018, 0.0
    %v6120 = vadd.f32 %v6118, %v6119
    %v6121 = vsel %vm183, %v6019, 0.0
    %v6122 = vadd.f32 %v6120, %v6121
    %v6123 = vsel %vm183, %v6020, 0.0
    %v6124 = vadd.f32 %v6122, %v6123
    %v6125 = vsel %vm183, %v6021, 0.0
    %v6126 = vadd.f32 %v6124, %v6125
    %v6127 = vsel %vm183, %v6022, 0.0
    %v6128 = vadd.f32 %v6126, %v6127
    %v6129 = vsel %vm183, %v6023, 0.0
    %v6130 = vadd.f32 %v6128, %v6129
    %v6131 = vsel %vm183, %v6024, 0.0
    %v6132 = vadd.f32 %v6130, %v6131
    %v6133 = vsel %vm183, %v6025, 0.0
    %v6134 = vadd.f32 %v6132, %v6133
    %v6135 = vsel %vm183, %v6026, 0.0
    %v6136 = vadd.f32 %v6134, %v6135
    %v6137 = vsel %vm183, %v6027, 0.0
    %v6138 = vadd.f32 %v6136, %v6137
    %v6139 = vsel %vm183, %v6028, 0.0
    %v6140 = vadd.f32 %v6138, %v6139
    %v6141 = vsel %vm183, %v6029, 0.0
    %v6142 = vadd.f32 %v6140, %v6141
    %v6143 = vsel %vm183, %v6030, 0.0
    %v6144 = vadd.f32 %v6142, %v6143
    %v6145 = vsel %vm183, %v6031, 0.0
    %v6146 = vadd.f32 %v6144, %v6145
    %v6147 = vsel %vm183, %v6032, 0.0
    %v6148 = vadd.f32 %v6146, %v6147
    %v6149 = vsel %vm183, %v6033, 0.0
    %v6150 = vadd.f32 %v6148, %v6149
    %v6151 = vsel %vm183, %v6034, 0.0
    %v6152 = vadd.f32 %v6150, %v6151
    %v6153 = vsel %vm183, %v6035, 0.0
    %v6154 = vadd.f32 %v6152, %v6153
    %v6155 = vsel %vm183, %v6036, 0.0
    %v6156 = vadd.f32 %v6154, %v6155
    %v6157 = vsel %vm183, %v6037, 0.0
    %v6158 = vadd.f32 %v6156, %v6157
    %v6159 = vsel %vm183, %v6038, 0.0
    %v6160 = vadd.f32 %v6158, %v6159
    %v6161 = vsel %vm183, %v6039, 0.0
    %v6162 = vadd.f32 %v6160, %v6161
    %v6163 = vsel %vm183, %v6040, 0.0
    %v6164 = vadd.f32 %v6162, %v6163
    %v6165 = vsel %vm183, %v6041, 0.0
    %v6166 = vadd.f32 %v6164, %v6165
    %v6167 = vsel %vm183, %v6042, 0.0
    %v6168 = vadd.f32 %v6166, %v6167
    %v6169 = vsel %vm183, %v6043, 0.0
    %v6170 = vadd.f32 %v6168, %v6169
    %v6171 = vsel %vm183, %v6044, 0.0
    %v6172 = vadd.f32 %v6170, %v6171
    %v6173 = vsel %vm183, %v6045, 0.0
    %v6174 = vadd.f32 %v6172, %v6173
    %v6175 = vsel %vm183, %v6046, 0.0
    %v6176 = vadd.f32 %v6174, %v6175
    %v6177 = vsel %vm183, %v6047, 0.0
    %v6178 = vadd.f32 %v6176, %v6177
    %v6179 = vsel %vm183, %v6048, 0.0
    %v6180 = vadd.f32 %v6178, %v6179
    %v6181 = vrot.slane %v6180, 4
    %v6182 = vadd.f32 %v6180, %v6181
    %v6183 = vrot.slane %v6182, 2
    %v6184 = vadd.f32 %v6182, %v6183
    %v6185 = vrot.slane %v6184, 1
    %v6186 = vadd.f32 %v6184, %v6185
    %v6189 = vsel %vm526, %v5984, %v5915
    %v6193 = vsel %vm531, %v6186, %v6117
    %v6195 = vsel %vm534, %v6189, %v6193
    %v6196 = vld [vmem:[#allocation8] sm:$0xff]
    %v6197 = vld [vmem:[#allocation8 + $0x8] sm:$0xff]
    %v6198 = vld [vmem:[#allocation8 + $0x10] sm:$0xff]
    %v6199 = vld [vmem:[#allocation8 + $0x18] sm:$0xff]
    %v6200 = vld [vmem:[#allocation8 + $0x20] sm:$0xff]
    %v6201 = vld [vmem:[#allocation8 + $0x28] sm:$0xff]
    %v6202 = vld [vmem:[#allocation8 + $0x30] sm:$0xff]
    %v6203 = vld [vmem:[#allocation8 + $0x38] sm:$0xff]
    %v6205 = vsel %vm183, %v6195, 0
    %6207 = vmatprep.subr.mxu0 0.0
    %6208 = vmatpush1.msra.mxu0 %v6196
    %6209 = vmatprep.subr.mxu0 0.0
    %6210 = vmatpush1.msra.mxu0 %v6197
    %6211 = vmatprep.subr.mxu0 0.0
    %6212 = vmatpush1.msra.mxu0 %v6198
    %6213 = vmatprep.subr.mxu0 0.0
    %6214 = vmatpush1.msra.mxu0 %v6199
    %6215 = vmatprep.subr.mxu0 0.0
    %6216 = vmatpush1.msra.mxu0 %v6200
    %6217 = vmatprep.subr.mxu0 0.0
    %6218 = vmatpush1.msra.mxu0 %v6201
    %6219 = vmatprep.subr.mxu0 0.0
    %6220 = vmatpush1.msra.mxu0 %v6202
    %6221 = vmatprep.subr.mxu0 0.0
    %6222 = vmatpush1.msra.mxu0 %v6203
    %6223 = vmatprep.subr.mxu0 0.0
    %6224 = vmatpush1.msra.mxu0 0.0
    %6225 = vmatprep.subr.mxu0 0.0
    %6226 = vmatpush1.msra.mxu0 0.0
    %6227 = vmatprep.subr.mxu0 0.0
    %6228 = vmatpush1.msra.mxu0 0.0
    %6229 = vmatprep.subr.mxu0 0.0
    %6230 = vmatpush1.msra.mxu0 0.0
    %6231 = vmatprep.subr.mxu0 0.0
    %6232 = vmatpush1.msra.mxu0 0.0
    %6233 = vmatprep.subr.mxu0 0.0
    %6234 = vmatpush1.msra.mxu0 0.0
    %6235 = vmatprep.subr.mxu0 0.0
    %6236 = vmatpush1.msra.mxu0 0.0
    %6237 = vmatprep.subr.mxu0 0.0
    %6238 = vmatpush1.msra.mxu0 0.0
    %6239 = vmatprep.subr.mxu0 0.0
    %6240 = vmatpush1.msra.mxu0 0.0
    %6241 = vmatprep.subr.mxu0 0.0
    %6242 = vmatpush1.msra.mxu0 0.0
    %6243 = vmatprep.subr.mxu0 0.0
    %6244 = vmatpush1.msra.mxu0 0.0
    %6245 = vmatprep.subr.mxu0 0.0
    %6246 = vmatpush1.msra.mxu0 0.0
    %6247 = vmatprep.subr.mxu0 0.0
    %6248 = vmatpush1.msra.mxu0 0.0
    %6249 = vmatprep.subr.mxu0 0.0
    %6250 = vmatpush1.msra.mxu0 0.0
    %6251 = vmatprep.subr.mxu0 0.0
    %6252 = vmatpush1.msra.mxu0 0.0
    %6253 = vmatprep.subr.mxu0 0.0
    %6254 = vmatpush1.msra.mxu0 0.0
    %6255 = vmatprep.subr.mxu0 0.0
    %6256 = vmatpush1.msra.mxu0 0.0
    %6257 = vmatprep.subr.mxu0 0.0
    %6258 = vmatpush1.msra.mxu0 0.0
    %6259 = vmatprep.subr.mxu0 0.0
    %6260 = vmatpush1.msra.mxu0 0.0
    %6261 = vmatprep.subr.mxu0 0.0
    %6262 = vmatpush1.msra.mxu0 0.0
    %6263 = vmatprep.subr.mxu0 0.0
    %6264 = vmatpush1.msra.mxu0 0.0
    %6265 = vmatprep.subr.mxu0 0.0
    %6266 = vmatpush1.msra.mxu0 0.0
    %6267 = vmatprep.subr.mxu0 0.0
    %6268 = vmatpush1.msra.mxu0 0.0
    %6269 = vmatprep.subr.mxu0 0.0
    %6270 = vmatpush1.msra.mxu0 0.0
    %6271 = vmatprep.mubr.f32.mxu0 0.0
    %6272 = vmatmul.mubr.f32.gmra.mrb[0].mxu0 %v6205
    %v6273 = vpop.f32.mrb[0].mxu0
    %v6274 = vadd.f32 0.0, %v6273
    %v6275 = vpop.f32.mrb[0].mxu0
    %6276 = vdwg.mxu0
    %v6277 = vmul.f32 %v6274, %v6274
    %v6279 = vrot.slane %v6277, 6
    %v6281 = vsub.f32 %v6274, %v6279
    %v6282 = vmax.f32 %v6281, 0.0
    %v6283 = vadd.f32 %v6282, 1e-05
    %v6284 = vrsqrt.pop %v6283
    %v6286 = vlaneseq
    %v6287 = vshrl.u32 %v6286, 7
    %v6288 = vsub.s32 0, %v6287
    %v6289 = vrot.slane %v5845, %v6288
    %v6291 = vmul.f32 %v6284, %v6289
    %v6293 = vrot.slane %v6291, 2
    %v6295 = vmul.f32 %v6274, %v6293
    %v6297 = vlaneseq
    %v6298 = vshrl.u32 %v6297, 7
    %v6299 = vsub.s32 0, %v6298
    %v6300 = vrot.slane %v5846, %v6299
    %v6302 = vsub.f32 %v6300, %v6295
    %v6304 = vunpack.c.l.s4 1966171168
    %v6305 = vunpack.c.0.s8 %v6304
    %v6306 = vlaneseq
    %v6307 = vshrl.u32 %v6306, 7
    %v6308 = vsub.s32 %v6305, %v6307
    %v6309 = vrot.slane %v6291, %v6308
    %v6310 = vcombine.high %v6309, %v6309
    %v6312 = vunpack.c.l.s4 1966171168
    %v6313 = vunpack.c.0.s8 %v6312
    %v6314 = vlaneseq
    %v6315 = vshrl.u32 %v6314, 7
    %v6316 = vsub.s32 %v6313, %v6315
    %v6317 = vrot.slane %v6309, %v6316
    %v6319 = vunpack.c.l.s4 1966171168
    %v6320 = vunpack.c.0.s8 %v6319
    %v6321 = vlaneseq
    %v6322 = vshrl.u32 %v6321, 7
    %v6323 = vsub.s32 %v6320, %v6322
    %v6324 = vrot.slane %v6310, %v6323
    %v6325 = vcombine.high %v6317, %v6317
    %v6326 = vcombine.high %v6324, %v6324
    %v6327 = vlaneseq
    %v6328 = vshrl.u32 %v6327, 7
    %v6329 = vsub.s32 0, %v6328
    %v6330 = vrot.slane %v6325, %v6329
    %v6331 = vlaneseq
    %v6332 = vshrl.u32 %v6331, 7
    %v6333 = vsub.s32 0, %v6332
    %v6334 = vrot.slane %v6326, %v6333
    %v6337 = vmul.f32 %v5781, %v6330
    %v6338 = vmul.f32 %v5782, %v6330
    %v6339 = vmul.f32 %v5783, %v6330
    %v6340 = vmul.f32 %v5784, %v6330
    %v6341 = vmul.f32 %v5785, %v6330
    %v6342 = vmul.f32 %v5786, %v6330
    %v6343 = vmul.f32 %v5787, %v6330
    %v6344 = vmul.f32 %v5788, %v6330
    %v6345 = vmul.f32 %v5789, %v6330
    %v6346 = vmul.f32 %v5790, %v6330
    %v6347 = vmul.f32 %v5791, %v6330
    %v6348 = vmul.f32 %v5792, %v6330
    %v6349 = vmul.f32 %v5793, %v6330
    %v6350 = vmul.f32 %v5794, %v6330
    %v6351 = vmul.f32 %v5795, %v6330
    %v6352 = vmul.f32 %v5796, %v6330
    %v6353 = vmul.f32 %v5797, %v6330
    %v6354 = vmul.f32 %v5798, %v6330
    %v6355 = vmul.f32 %v5799, %v6330
    %v6356 = vmul.f32 %v5800, %v6330
    %v6357 = vmul.f32 %v5801, %v6330
    %v6358 = vmul.f32 %v5802, %v6330
    %v6359 = vmul.f32 %v5803, %v6330
    %v6360 = vmul.f32 %v5804, %v6330
    %v6361 = vmul.f32 %v5805, %v6330
    %v6362 = vmul.f32 %v5806, %v6330
    %v6363 = vmul.f32 %v5807, %v6330
    %v6364 = vmul.f32 %v5808, %v6330
    %v6365 = vmul.f32 %v5809, %v6330
    %v6366 = vmul.f32 %v5810, %v6330
    %v6367 = vmul.f32 %v5811, %v6330
    %v6368 = vmul.f32 %v5812, %v6330
    %v6369 = vmul.f32 %v5813, %v6334
    %v6370 = vmul.f32 %v5814, %v6334
    %v6371 = vmul.f32 %v5815, %v6334
    %v6372 = vmul.f32 %v5816, %v6334
    %v6373 = vmul.f32 %v5817, %v6334
    %v6374 = vmul.f32 %v5818, %v6334
    %v6375 = vmul.f32 %v5819, %v6334
    %v6376 = vmul.f32 %v5820, %v6334
    %v6377 = vmul.f32 %v5821, %v6334
    %v6378 = vmul.f32 %v5822, %v6334
    %v6379 = vmul.f32 %v5823, %v6334
    %v6380 = vmul.f32 %v5824, %v6334
    %v6381 = vmul.f32 %v5825, %v6334
    %v6382 = vmul.f32 %v5826, %v6334
    %v6383 = vmul.f32 %v5827, %v6334
    %v6384 = vmul.f32 %v5828, %v6334
    %v6385 = vmul.f32 %v5829, %v6334
    %v6386 = vmul.f32 %v5830, %v6334
    %v6387 = vmul.f32 %v5831, %v6334
    %v6388 = vmul.f32 %v5832, %v6334
    %v6389 = vmul.f32 %v5833, %v6334
    %v6390 = vmul.f32 %v5834, %v6334
    %v6391 = vmul.f32 %v5835, %v6334
    %v6392 = vmul.f32 %v5836, %v6334
    %v6393 = vmul.f32 %v5837, %v6334
    %v6394 = vmul.f32 %v5838, %v6334
    %v6395 = vmul.f32 %v5839, %v6334
    %v6396 = vmul.f32 %v5840, %v6334
    %v6397 = vmul.f32 %v5841, %v6334
    %v6398 = vmul.f32 %v5842, %v6334
    %v6399 = vmul.f32 %v5843, %v6334
    %v6400 = vmul.f32 %v5844, %v6334
    %v6403 = vunpack.c.l.s4 1966171168
    %v6404 = vunpack.c.0.s8 %v6403
    %v6405 = vlaneseq
    %v6406 = vshrl.u32 %v6405, 7
    %v6407 = vsub.s32 %v6404, %v6406
    %v6408 = vrot.slane %v6302, %v6407
    %v6409 = vcombine.high %v6408, %v6408
    %v6411 = vunpack.c.l.s4 1966171168
    %v6412 = vunpack.c.0.s8 %v6411
    %v6413 = vlaneseq
    %v6414 = vshrl.u32 %v6413, 7
    %v6415 = vsub.s32 %v6412, %v6414
    %v6416 = vrot.slane %v6408, %v6415
    %v6418 = vunpack.c.l.s4 1966171168
    %v6419 = vunpack.c.0.s8 %v6418
    %v6420 = vlaneseq
    %v6421 = vshrl.u32 %v6420, 7
    %v6422 = vsub.s32 %v6419, %v6421
    %v6423 = vrot.slane %v6409, %v6422
    %v6424 = vlaneseq
    %v6425 = vshrl.u32 %v6424, 7
    %v6426 = vsub.s32 0, %v6425
    %v6427 = vrot.slane %v6416, %v6426
    %v6428 = vlaneseq
    %v6429 = vshrl.u32 %v6428, 7
    %v6430 = vsub.s32 0, %v6429
    %v6431 = vrot.slane %v6423, %v6430
    %v6434 = vadd.f32 %v6337, %v6427
    %v6435 = vadd.f32 %v6338, %v6427
    %v6436 = vadd.f32 %v6339, %v6427
    %v6437 = vadd.f32 %v6340, %v6427
    %v6438 = vadd.f32 %v6341, %v6427
    %v6439 = vadd.f32 %v6342, %v6427
    %v6440 = vadd.f32 %v6343, %v6427
    %v6441 = vadd.f32 %v6344, %v6427
    %v6442 = vadd.f32 %v6345, %v6427
    %v6443 = vadd.f32 %v6346, %v6427
    %v6444 = vadd.f32 %v6347, %v6427
    %v6445 = vadd.f32 %v6348, %v6427
    %v6446 = vadd.f32 %v6349, %v6427
    %v6447 = vadd.f32 %v6350, %v6427
    %v6448 = vadd.f32 %v6351, %v6427
    %v6449 = vadd.f32 %v6352, %v6427
    %v6450 = vadd.f32 %v6353, %v6427
    %v6451 = vadd.f32 %v6354, %v6427
    %v6452 = vadd.f32 %v6355, %v6427
    %v6453 = vadd.f32 %v6356, %v6427
    %v6454 = vadd.f32 %v6357, %v6427
    %v6455 = vadd.f32 %v6358, %v6427
    %v6456 = vadd.f32 %v6359, %v6427
    %v6457 = vadd.f32 %v6360, %v6427
    %v6458 = vadd.f32 %v6361, %v6427
    %v6459 = vadd.f32 %v6362, %v6427
    %v6460 = vadd.f32 %v6363, %v6427
    %v6461 = vadd.f32 %v6364, %v6427
    %v6462 = vadd.f32 %v6365, %v6427
    %v6463 = vadd.f32 %v6366, %v6427
    %v6464 = vadd.f32 %v6367, %v6427
    %v6465 = vadd.f32 %v6368, %v6427
    %v6466 = vadd.f32 %v6369, %v6431
    %v6467 = vadd.f32 %v6370, %v6431
    %v6468 = vadd.f32 %v6371, %v6431
    %v6469 = vadd.f32 %v6372, %v6431
    %v6470 = vadd.f32 %v6373, %v6431
    %v6471 = vadd.f32 %v6374, %v6431
    %v6472 = vadd.f32 %v6375, %v6431
    %v6473 = vadd.f32 %v6376, %v6431
    %v6474 = vadd.f32 %v6377, %v6431
    %v6475 = vadd.f32 %v6378, %v6431
    %v6476 = vadd.f32 %v6379, %v6431
    %v6477 = vadd.f32 %v6380, %v6431
    %v6478 = vadd.f32 %v6381, %v6431
    %v6479 = vadd.f32 %v6382, %v6431
    %v6480 = vadd.f32 %v6383, %v6431
    %v6481 = vadd.f32 %v6384, %v6431
    %v6482 = vadd.f32 %v6385, %v6431
    %v6483 = vadd.f32 %v6386, %v6431
    %v6484 = vadd.f32 %v6387, %v6431
    %v6485 = vadd.f32 %v6388, %v6431
    %v6486 = vadd.f32 %v6389, %v6431
    %v6487 = vadd.f32 %v6390, %v6431
    %v6488 = vadd.f32 %v6391, %v6431
    %v6489 = vadd.f32 %v6392, %v6431
    %v6490 = vadd.f32 %v6393, %v6431
    %v6491 = vadd.f32 %v6394, %v6431
    %v6492 = vadd.f32 %v6395, %v6431
    %v6493 = vadd.f32 %v6396, %v6431
    %v6494 = vadd.f32 %v6397, %v6431
    %v6495 = vadd.f32 %v6398, %v6431
    %v6496 = vadd.f32 %v6399, %v6431
    %v6497 = vadd.f32 %v6400, %v6431
    %v6498 = vxor.u32 %v6434, 2147483648
    %v6499 = vxor.u32 %v6435, 2147483648
    %v6500 = vxor.u32 %v6436, 2147483648
    %v6501 = vxor.u32 %v6437, 2147483648
    %v6502 = vxor.u32 %v6438, 2147483648
    %v6503 = vxor.u32 %v6439, 2147483648
    %v6504 = vxor.u32 %v6440, 2147483648
    %v6505 = vxor.u32 %v6441, 2147483648
    %v6506 = vxor.u32 %v6442, 2147483648
    %v6507 = vxor.u32 %v6443, 2147483648
    %v6508 = vxor.u32 %v6444, 2147483648
    %v6509 = vxor.u32 %v6445, 2147483648
    %v6510 = vxor.u32 %v6446, 2147483648
    %v6511 = vxor.u32 %v6447, 2147483648
    %v6512 = vxor.u32 %v6448, 2147483648
    %v6513 = vxor.u32 %v6449, 2147483648
    %v6514 = vxor.u32 %v6450, 2147483648
    %v6515 = vxor.u32 %v6451, 2147483648
    %v6516 = vxor.u32 %v6452, 2147483648
    %v6517 = vxor.u32 %v6453, 2147483648
    %v6518 = vxor.u32 %v6454, 2147483648
    %v6519 = vxor.u32 %v6455, 2147483648
    %v6520 = vxor.u32 %v6456, 2147483648
    %v6521 = vxor.u32 %v6457, 2147483648
    %v6522 = vxor.u32 %v6458, 2147483648
    %v6523 = vxor.u32 %v6459, 2147483648
    %v6524 = vxor.u32 %v6460, 2147483648
    %v6525 = vxor.u32 %v6461, 2147483648
    %v6526 = vxor.u32 %v6462, 2147483648
    %v6527 = vxor.u32 %v6463, 2147483648
    %v6528 = vxor.u32 %v6464, 2147483648
    %v6529 = vxor.u32 %v6465, 2147483648
    %v6530 = vxor.u32 %v6466, 2147483648
    %v6531 = vxor.u32 %v6467, 2147483648
    %v6532 = vxor.u32 %v6468, 2147483648
    %v6533 = vxor.u32 %v6469, 2147483648
    %v6534 = vxor.u32 %v6470, 2147483648
    %v6535 = vxor.u32 %v6471, 2147483648
    %v6536 = vxor.u32 %v6472, 2147483648
    %v6537 = vxor.u32 %v6473, 2147483648
    %v6538 = vxor.u32 %v6474, 2147483648
    %v6539 = vxor.u32 %v6475, 2147483648
    %v6540 = vxor.u32 %v6476, 2147483648
    %v6541 = vxor.u32 %v6477, 2147483648
    %v6542 = vxor.u32 %v6478, 2147483648
    %v6543 = vxor.u32 %v6479, 2147483648
    %v6544 = vxor.u32 %v6480, 2147483648
    %v6545 = vxor.u32 %v6481, 2147483648
    %v6546 = vxor.u32 %v6482, 2147483648
    %v6547 = vxor.u32 %v6483, 2147483648
    %v6548 = vxor.u32 %v6484, 2147483648
    %v6549 = vxor.u32 %v6485, 2147483648
    %v6550 = vxor.u32 %v6486, 2147483648
    %v6551 = vxor.u32 %v6487, 2147483648
    %v6552 = vxor.u32 %v6488, 2147483648
    %v6553 = vxor.u32 %v6489, 2147483648
    %v6554 = vxor.u32 %v6490, 2147483648
    %v6555 = vxor.u32 %v6491, 2147483648
    %v6556 = vxor.u32 %v6492, 2147483648
    %v6557 = vxor.u32 %v6493, 2147483648
    %v6558 = vxor.u32 %v6494, 2147483648
    %v6559 = vxor.u32 %v6495, 2147483648
    %v6560 = vxor.u32 %v6496, 2147483648
    %v6561 = vxor.u32 %v6497, 2147483648
    %v6562 = vmul.f32 %v6498, 1.442695
    %v6563 = vpow.pop %v6562
    %v6564 = vmul.f32 %v6499, 1.442695
    %v6565 = vpow.pop %v6564
    %v6566 = vmul.f32 %v6500, 1.442695
    %v6567 = vpow.pop %v6566
    %v6568 = vmul.f32 %v6501, 1.442695
    %v6569 = vpow.pop %v6568
    %v6570 = vmul.f32 %v6502, 1.442695
    %v6571 = vpow.pop %v6570
    %v6572 = vmul.f32 %v6503, 1.442695
    %v6573 = vpow.pop %v6572
    %v6574 = vmul.f32 %v6504, 1.442695
    %v6575 = vpow.pop %v6574
    %v6576 = vmul.f32 %v6505, 1.442695
    %v6577 = vpow.pop %v6576
    %v6578 = vmul.f32 %v6506, 1.442695
    %v6579 = vpow.pop %v6578
    %v6580 = vmul.f32 %v6507, 1.442695
    %v6581 = vpow.pop %v6580
    %v6582 = vmul.f32 %v6508, 1.442695
    %v6583 = vpow.pop %v6582
    %v6584 = vmul.f32 %v6509, 1.442695
    %v6585 = vpow.pop %v6584
    %v6586 = vmul.f32 %v6510, 1.442695
    %v6587 = vpow.pop %v6586
    %v6588 = vmul.f32 %v6511, 1.442695
    %v6589 = vpow.pop %v6588
    %v6590 = vmul.f32 %v6512, 1.442695
    %v6591 = vpow.pop %v6590
    %v6592 = vmul.f32 %v6513, 1.442695
    %v6593 = vpow.pop %v6592
    %v6594 = vmul.f32 %v6514, 1.442695
    %v6595 = vpow.pop %v6594
    %v6596 = vmul.f32 %v6515, 1.442695
    %v6597 = vpow.pop %v6596
    %v6598 = vmul.f32 %v6516, 1.442695
    %v6599 = vpow.pop %v6598
    %v6600 = vmul.f32 %v6517, 1.442695
    %v6601 = vpow.pop %v6600
    %v6602 = vmul.f32 %v6518, 1.442695
    %v6603 = vpow.pop %v6602
    %v6604 = vmul.f32 %v6519, 1.442695
    %v6605 = vpow.pop %v6604
    %v6606 = vmul.f32 %v6520, 1.442695
    %v6607 = vpow.pop %v6606
    %v6608 = vmul.f32 %v6521, 1.442695
    %v6609 = vpow.pop %v6608
    %v6610 = vmul.f32 %v6522, 1.442695
    %v6611 = vpow.pop %v6610
    %v6612 = vmul.f32 %v6523, 1.442695
    %v6613 = vpow.pop %v6612
    %v6614 = vmul.f32 %v6524, 1.442695
    %v6615 = vpow.pop %v6614
    %v6616 = vmul.f32 %v6525, 1.442695
    %v6617 = vpow.pop %v6616
    %v6618 = vmul.f32 %v6526, 1.442695
    %v6619 = vpow.pop %v6618
    %v6620 = vmul.f32 %v6527, 1.442695
    %v6621 = vpow.pop %v6620
    %v6622 = vmul.f32 %v6528, 1.442695
    %v6623 = vpow.pop %v6622
    %v6624 = vmul.f32 %v6529, 1.442695
    %v6625 = vpow.pop %v6624
    %v6626 = vmul.f32 %v6530, 1.442695
    %v6627 = vpow.pop %v6626
    %v6628 = vmul.f32 %v6531, 1.442695
    %v6629 = vpow.pop %v6628
    %v6630 = vmul.f32 %v6532, 1.442695
    %v6631 = vpow.pop %v6630
    %v6632 = vmul.f32 %v6533, 1.442695
    %v6633 = vpow.pop %v6632
    %v6634 = vmul.f32 %v6534, 1.442695
    %v6635 = vpow.pop %v6634
    %v6636 = vmul.f32 %v6535, 1.442695
    %v6637 = vpow.pop %v6636
    %v6638 = vmul.f32 %v6536, 1.442695
    %v6639 = vpow.pop %v6638
    %v6640 = vmul.f32 %v6537, 1.442695
    %v6641 = vpow.pop %v6640
    %v6642 = vmul.f32 %v6538, 1.442695
    %v6643 = vpow.pop %v6642
    %v6644 = vmul.f32 %v6539, 1.442695
    %v6645 = vpow.pop %v6644
    %v6646 = vmul.f32 %v6540, 1.442695
    %v6647 = vpow.pop %v6646
    %v6648 = vmul.f32 %v6541, 1.442695
    %v6649 = vpow.pop %v6648
    %v6650 = vmul.f32 %v6542, 1.442695
    %v6651 = vpow.pop %v6650
    %v6652 = vmul.f32 %v6543, 1.442695
    %v6653 = vpow.pop %v6652
    %v6654 = vmul.f32 %v6544, 1.442695
    %v6655 = vpow.pop %v6654
    %v6656 = vmul.f32 %v6545, 1.442695
    %v6657 = vpow.pop %v6656
    %v6658 = vmul.f32 %v6546, 1.442695
    %v6659 = vpow.pop %v6658
    %v6660 = vmul.f32 %v6547, 1.442695
    %v6661 = vpow.pop %v6660
    %v6662 = vmul.f32 %v6548, 1.442695
    %v6663 = vpow.pop %v6662
    %v6664 = vmul.f32 %v6549, 1.442695
    %v6665 = vpow.pop %v6664
    %v6666 = vmul.f32 %v6550, 1.442695
    %v6667 = vpow.pop %v6666
    %v6668 = vmul.f32 %v6551, 1.442695
    %v6669 = vpow.pop %v6668
    %v6670 = vmul.f32 %v6552, 1.442695
    %v6671 = vpow.pop %v6670
    %v6672 = vmul.f32 %v6553, 1.442695
    %v6673 = vpow.pop %v6672
    %v6674 = vmul.f32 %v6554, 1.442695
    %v6675 = vpow.pop %v6674
    %v6676 = vmul.f32 %v6555, 1.442695
    %v6677 = vpow.pop %v6676
    %v6678 = vmul.f32 %v6556, 1.442695
    %v6679 = vpow.pop %v6678
    %v6680 = vmul.f32 %v6557, 1.442695
    %v6681 = vpow.pop %v6680
    %v6682 = vmul.f32 %v6558, 1.442695
    %v6683 = vpow.pop %v6682
    %v6684 = vmul.f32 %v6559, 1.442695
    %v6685 = vpow.pop %v6684
    %v6686 = vmul.f32 %v6560, 1.442695
    %v6687 = vpow.pop %v6686
    %v6688 = vmul.f32 %v6561, 1.442695
    %v6689 = vpow.pop %v6688
    %v6690 = vadd.f32 %v6563, 1.0
    %v6691 = vadd.f32 %v6565, 1.0
    %v6692 = vadd.f32 %v6567, 1.0
    %v6693 = vadd.f32 %v6569, 1.0
    %v6694 = vadd.f32 %v6571, 1.0
    %v6695 = vadd.f32 %v6573, 1.0
    %v6696 = vadd.f32 %v6575, 1.0
    %v6697 = vadd.f32 %v6577, 1.0
    %v6698 = vadd.f32 %v6579, 1.0
    %v6699 = vadd.f32 %v6581, 1.0
    %v6700 = vadd.f32 %v6583, 1.0
    %v6701 = vadd.f32 %v6585, 1.0
    %v6702 = vadd.f32 %v6587, 1.0
    %v6703 = vadd.f32 %v6589, 1.0
    %v6704 = vadd.f32 %v6591, 1.0
    %v6705 = vadd.f32 %v6593, 1.0
    %v6706 = vadd.f32 %v6595, 1.0
    %v6707 = vadd.f32 %v6597, 1.0
    %v6708 = vadd.f32 %v6599, 1.0
    %v6709 = vadd.f32 %v6601, 1.0
    %v6710 = vadd.f32 %v6603, 1.0
    %v6711 = vadd.f32 %v6605, 1.0
    %v6712 = vadd.f32 %v6607, 1.0
    %v6713 = vadd.f32 %v6609, 1.0
    %v6714 = vadd.f32 %v6611, 1.0
    %v6715 = vadd.f32 %v6613, 1.0
    %v6716 = vadd.f32 %v6615, 1.0
    %v6717 = vadd.f32 %v6617, 1.0
    %v6718 = vadd.f32 %v6619, 1.0
    %v6719 = vadd.f32 %v6621, 1.0
    %v6720 = vadd.f32 %v6623, 1.0
    %v6721 = vadd.f32 %v6625, 1.0
    %v6722 = vadd.f32 %v6627, 1.0
    %v6723 = vadd.f32 %v6629, 1.0
    %v6724 = vadd.f32 %v6631, 1.0
    %v6725 = vadd.f32 %v6633, 1.0
    %v6726 = vadd.f32 %v6635, 1.0
    %v6727 = vadd.f32 %v6637, 1.0
    %v6728 = vadd.f32 %v6639, 1.0
    %v6729 = vadd.f32 %v6641, 1.0
    %v6730 = vadd.f32 %v6643, 1.0
    %v6731 = vadd.f32 %v6645, 1.0
    %v6732 = vadd.f32 %v6647, 1.0
    %v6733 = vadd.f32 %v6649, 1.0
    %v6734 = vadd.f32 %v6651, 1.0
    %v6735 = vadd.f32 %v6653, 1.0
    %v6736 = vadd.f32 %v6655, 1.0
    %v6737 = vadd.f32 %v6657, 1.0
    %v6738 = vadd.f32 %v6659, 1.0
    %v6739 = vadd.f32 %v6661, 1.0
    %v6740 = vadd.f32 %v6663, 1.0
    %v6741 = vadd.f32 %v6665, 1.0
    %v6742 = vadd.f32 %v6667, 1.0
    %v6743 = vadd.f32 %v6669, 1.0
    %v6744 = vadd.f32 %v6671, 1.0
    %v6745 = vadd.f32 %v6673, 1.0
    %v6746 = vadd.f32 %v6675, 1.0
    %v6747 = vadd.f32 %v6677, 1.0
    %v6748 = vadd.f32 %v6679, 1.0
    %v6749 = vadd.f32 %v6681, 1.0
    %v6750 = vadd.f32 %v6683, 1.0
    %v6751 = vadd.f32 %v6685, 1.0
    %v6752 = vadd.f32 %v6687, 1.0
    %v6753 = vadd.f32 %v6689, 1.0
    %v6754 = vrcp.pop %v6690
    %v6755 = vmul.f32 1.0, %v6754
    %v6756 = vrcp.pop %v6691
    %v6757 = vmul.f32 1.0, %v6756
    %v6758 = vrcp.pop %v6692
    %v6759 = vmul.f32 1.0, %v6758
    %v6760 = vrcp.pop %v6693
    %v6761 = vmul.f32 1.0, %v6760
    %v6762 = vrcp.pop %v6694
    %v6763 = vmul.f32 1.0, %v6762
    %v6764 = vrcp.pop %v6695
    %v6765 = vmul.f32 1.0, %v6764
    %v6766 = vrcp.pop %v6696
    %v6767 = vmul.f32 1.0, %v6766
    %v6768 = vrcp.pop %v6697
    %v6769 = vmul.f32 1.0, %v6768
    %v6770 = vrcp.pop %v6698
    %v6771 = vmul.f32 1.0, %v6770
    %v6772 = vrcp.pop %v6699
    %v6773 = vmul.f32 1.0, %v6772
    %v6774 = vrcp.pop %v6700
    %v6775 = vmul.f32 1.0, %v6774
    %v6776 = vrcp.pop %v6701
    %v6777 = vmul.f32 1.0, %v6776
    %v6778 = vrcp.pop %v6702
    %v6779 = vmul.f32 1.0, %v6778
    %v6780 = vrcp.pop %v6703
    %v6781 = vmul.f32 1.0, %v6780
    %v6782 = vrcp.pop %v6704
    %v6783 = vmul.f32 1.0, %v6782
    %v6784 = vrcp.pop %v6705
    %v6785 = vmul.f32 1.0, %v6784
    %v6786 = vrcp.pop %v6706
    %v6787 = vmul.f32 1.0, %v6786
    %v6788 = vrcp.pop %v6707
    %v6789 = vmul.f32 1.0, %v6788
    %v6790 = vrcp.pop %v6708
    %v6791 = vmul.f32 1.0, %v6790
    %v6792 = vrcp.pop %v6709
    %v6793 = vmul.f32 1.0, %v6792
    %v6794 = vrcp.pop %v6710
    %v6795 = vmul.f32 1.0, %v6794
    %v6796 = vrcp.pop %v6711
    %v6797 = vmul.f32 1.0, %v6796
    %v6798 = vrcp.pop %v6712
    %v6799 = vmul.f32 1.0, %v6798
    %v6800 = vrcp.pop %v6713
    %v6801 = vmul.f32 1.0, %v6800
    %v6802 = vrcp.pop %v6714
    %v6803 = vmul.f32 1.0, %v6802
    %v6804 = vrcp.pop %v6715
    %v6805 = vmul.f32 1.0, %v6804
    %v6806 = vrcp.pop %v6716
    %v6807 = vmul.f32 1.0, %v6806
    %v6808 = vrcp.pop %v6717
    %v6809 = vmul.f32 1.0, %v6808
    %v6810 = vrcp.pop %v6718
    %v6811 = vmul.f32 1.0, %v6810
    %v6812 = vrcp.pop %v6719
    %v6813 = vmul.f32 1.0, %v6812
    %v6814 = vrcp.pop %v6720
    %v6815 = vmul.f32 1.0, %v6814
    %v6816 = vrcp.pop %v6721
    %v6817 = vmul.f32 1.0, %v6816
    %v6818 = vrcp.pop %v6722
    %v6819 = vmul.f32 1.0, %v6818
    %v6820 = vrcp.pop %v6723
    %v6821 = vmul.f32 1.0, %v6820
    %v6822 = vrcp.pop %v6724
    %v6823 = vmul.f32 1.0, %v6822
    %v6824 = vrcp.pop %v6725
    %v6825 = vmul.f32 1.0, %v6824
    %v6826 = vrcp.pop %v6726
    %v6827 = vmul.f32 1.0, %v6826
    %v6828 = vrcp.pop %v6727
    %v6829 = vmul.f32 1.0, %v6828
    %v6830 = vrcp.pop %v6728
    %v6831 = vmul.f32 1.0, %v6830
    %v6832 = vrcp.pop %v6729
    %v6833 = vmul.f32 1.0, %v6832
    %v6834 = vrcp.pop %v6730
    %v6835 = vmul.f32 1.0, %v6834
    %v6836 = vrcp.pop %v6731
    %v6837 = vmul.f32 1.0, %v6836
    %v6838 = vrcp.pop %v6732
    %v6839 = vmul.f32 1.0, %v6838
    %v6840 = vrcp.pop %v6733
    %v6841 = vmul.f32 1.0, %v6840
    %v6842 = vrcp.pop %v6734
    %v6843 = vmul.f32 1.0, %v6842
    %v6844 = vrcp.pop %v6735
    %v6845 = vmul.f32 1.0, %v6844
    %v6846 = vrcp.pop %v6736
    %v6847 = vmul.f32 1.0, %v6846
    %v6848 = vrcp.pop %v6737
    %v6849 = vmul.f32 1.0, %v6848
    %v6850 = vrcp.pop %v6738
    %v6851 = vmul.f32 1.0, %v6850
    %v6852 = vrcp.pop %v6739
    %v6853 = vmul.f32 1.0, %v6852
    %v6854 = vrcp.pop %v6740
    %v6855 = vmul.f32 1.0, %v6854
    %v6856 = vrcp.pop %v6741
    %v6857 = vmul.f32 1.0, %v6856
    %v6858 = vrcp.pop %v6742
    %v6859 = vmul.f32 1.0, %v6858
    %v6860 = vrcp.pop %v6743
    %v6861 = vmul.f32 1.0, %v6860
    %v6862 = vrcp.pop %v6744
    %v6863 = vmul.f32 1.0, %v6862
    %v6864 = vrcp.pop %v6745
    %v6865 = vmul.f32 1.0, %v6864
    %v6866 = vrcp.pop %v6746
    %v6867 = vmul.f32 1.0, %v6866
    %v6868 = vrcp.pop %v6747
    %v6869 = vmul.f32 1.0, %v6868
    %v6870 = vrcp.pop %v6748
    %v6871 = vmul.f32 1.0, %v6870
    %v6872 = vrcp.pop %v6749
    %v6873 = vmul.f32 1.0, %v6872
    %v6874 = vrcp.pop %v6750
    %v6875 = vmul.f32 1.0, %v6874
    %v6876 = vrcp.pop %v6751
    %v6877 = vmul.f32 1.0, %v6876
    %v6878 = vrcp.pop %v6752
    %v6879 = vmul.f32 1.0, %v6878
    %v6880 = vrcp.pop %v6753
    %v6881 = vmul.f32 1.0, %v6880
    %v6882 = vmul.f32 %v6434, %v6755
    %v6883 = vmul.f32 %v6435, %v6757
    %v6884 = vmul.f32 %v6436, %v6759
    %v6885 = vmul.f32 %v6437, %v6761
    %v6886 = vmul.f32 %v6438, %v6763
    %v6887 = vmul.f32 %v6439, %v6765
    %v6888 = vmul.f32 %v6440, %v6767
    %v6889 = vmul.f32 %v6441, %v6769
    %v6890 = vmul.f32 %v6442, %v6771
    %v6891 = vmul.f32 %v6443, %v6773
    %v6892 = vmul.f32 %v6444, %v6775
    %v6893 = vmul.f32 %v6445, %v6777
    %v6894 = vmul.f32 %v6446, %v6779
    %v6895 = vmul.f32 %v6447, %v6781
    %v6896 = vmul.f32 %v6448, %v6783
    %v6897 = vmul.f32 %v6449, %v6785
    %v6898 = vmul.f32 %v6450, %v6787
    %v6899 = vmul.f32 %v6451, %v6789
    %v6900 = vmul.f32 %v6452, %v6791
    %v6901 = vmul.f32 %v6453, %v6793
    %v6902 = vmul.f32 %v6454, %v6795
    %v6903 = vmul.f32 %v6455, %v6797
    %v6904 = vmul.f32 %v6456, %v6799
    %v6905 = vmul.f32 %v6457, %v6801
    %v6906 = vmul.f32 %v6458, %v6803
    %v6907 = vmul.f32 %v6459, %v6805
    %v6908 = vmul.f32 %v6460, %v6807
    %v6909 = vmul.f32 %v6461, %v6809
    %v6910 = vmul.f32 %v6462, %v6811
    %v6911 = vmul.f32 %v6463, %v6813
    %v6912 = vmul.f32 %v6464, %v6815
    %v6913 = vmul.f32 %v6465, %v6817
    %v6914 = vmul.f32 %v6466, %v6819
    %v6915 = vmul.f32 %v6467, %v6821
    %v6916 = vmul.f32 %v6468, %v6823
    %v6917 = vmul.f32 %v6469, %v6825
    %v6918 = vmul.f32 %v6470, %v6827
    %v6919 = vmul.f32 %v6471, %v6829
    %v6920 = vmul.f32 %v6472, %v6831
    %v6921 = vmul.f32 %v6473, %v6833
    %v6922 = vmul.f32 %v6474, %v6835
    %v6923 = vmul.f32 %v6475, %v6837
    %v6924 = vmul.f32 %v6476, %v6839
    %v6925 = vmul.f32 %v6477, %v6841
    %v6926 = vmul.f32 %v6478, %v6843
    %v6927 = vmul.f32 %v6479, %v6845
    %v6928 = vmul.f32 %v6480, %v6847
    %v6929 = vmul.f32 %v6481, %v6849
    %v6930 = vmul.f32 %v6482, %v6851
    %v6931 = vmul.f32 %v6483, %v6853
    %v6932 = vmul.f32 %v6484, %v6855
    %v6933 = vmul.f32 %v6485, %v6857
    %v6934 = vmul.f32 %v6486, %v6859
    %v6935 = vmul.f32 %v6487, %v6861
    %v6936 = vmul.f32 %v6488, %v6863
    %v6937 = vmul.f32 %v6489, %v6865
    %v6938 = vmul.f32 %v6490, %v6867
    %v6939 = vmul.f32 %v6491, %v6869
    %v6940 = vmul.f32 %v6492, %v6871
    %v6941 = vmul.f32 %v6493, %v6873
    %v6942 = vmul.f32 %v6494, %v6875
    %v6943 = vmul.f32 %v6495, %v6877
    %v6944 = vmul.f32 %v6496, %v6879
    %v6945 = vmul.f32 %v6497, %v6881
    %v6946 = vld [vmem:[%s13] sm:$0x1]
    %v6947 = vrot.slane %v6882, 7
    %v6948 = vrot.slane %v6883, 7
    %v6949 = vrot.slane %v6884, 7
    %v6950 = vrot.slane %v6885, 7
    %v6951 = vrot.slane %v6886, 7
    %v6952 = vrot.slane %v6887, 7
    %v6953 = vrot.slane %v6888, 7
    %v6954 = vrot.slane %v6889, 7
    %v6955 = vrot.slane %v6890, 7
    %v6956 = vrot.slane %v6891, 7
    %v6957 = vrot.slane %v6892, 7
    %v6958 = vrot.slane %v6893, 7
    %v6959 = vrot.slane %v6894, 7
    %v6960 = vrot.slane %v6895, 7
    %v6961 = vrot.slane %v6896, 7
    %v6962 = vrot.slane %v6897, 7
    %v6963 = vrot.slane %v6898, 7
    %v6964 = vrot.slane %v6899, 7
    %v6965 = vrot.slane %v6900, 7
    %v6966 = vrot.slane %v6901, 7
    %v6967 = vrot.slane %v6902, 7
    %v6968 = vrot.slane %v6903, 7
    %v6969 = vrot.slane %v6904, 7
    %v6970 = vrot.slane %v6905, 7
    %v6971 = vrot.slane %v6906, 7
    %v6972 = vrot.slane %v6907, 7
    %v6973 = vrot.slane %v6908, 7
    %v6974 = vrot.slane %v6909, 7
    %v6975 = vrot.slane %v6910, 7
    %v6976 = vrot.slane %v6911, 7
    %v6977 = vrot.slane %v6912, 7
    %v6978 = vrot.slane %v6913, 7
    %v6979 = vrot.slane %v6914, 7
    %v6980 = vrot.slane %v6915, 7
    %v6981 = vrot.slane %v6916, 7
    %v6982 = vrot.slane %v6917, 7
    %v6983 = vrot.slane %v6918, 7
    %v6984 = vrot.slane %v6919, 7
    %v6985 = vrot.slane %v6920, 7
    %v6986 = vrot.slane %v6921, 7
    %v6987 = vrot.slane %v6922, 7
    %v6988 = vrot.slane %v6923, 7
    %v6989 = vrot.slane %v6924, 7
    %v6990 = vrot.slane %v6925, 7
    %v6991 = vrot.slane %v6926, 7
    %v6992 = vrot.slane %v6927, 7
    %v6993 = vrot.slane %v6928, 7
    %v6994 = vrot.slane %v6929, 7
    %v6995 = vrot.slane %v6930, 7
    %v6996 = vrot.slane %v6931, 7
    %v6997 = vrot.slane %v6932, 7
    %v6998 = vrot.slane %v6933, 7
    %v6999 = vrot.slane %v6934, 7
    %v7000 = vrot.slane %v6935, 7
    %v7001 = vrot.slane %v6936, 7
    %v7002 = vrot.slane %v6937, 7
    %v7003 = vrot.slane %v6938, 7
    %v7004 = vrot.slane %v6939, 7
    %v7005 = vrot.slane %v6940, 7
    %v7006 = vrot.slane %v6941, 7
    %v7007 = vrot.slane %v6942, 7
    %v7008 = vrot.slane %v6943, 7
    %v7009 = vrot.slane %v6944, 7
    %v7010 = vrot.slane %v6945, 7
    %v7011 = vsel %vm1353, %v7009, %v7010
    %v7012 = vsel %vm1353, %v7008, %v7009
    %v7013 = vsel %vm1353, %v7007, %v7008
    %v7014 = vsel %vm1353, %v7006, %v7007
    %v7015 = vsel %vm1353, %v7005, %v7006
    %v7016 = vsel %vm1353, %v7004, %v7005
    %v7017 = vsel %vm1353, %v7003, %v7004
    %v7018 = vsel %vm1353, %v7002, %v7003
    %v7019 = vsel %vm1353, %v7001, %v7002
    %v7020 = vsel %vm1353, %v7000, %v7001
    %v7021 = vsel %vm1353, %v6999, %v7000
    %v7022 = vsel %vm1353, %v6998, %v6999
    %v7023 = vsel %vm1353, %v6997, %v6998
    %v7024 = vsel %vm1353, %v6996, %v6997
    %v7025 = vsel %vm1353, %v6995, %v6996
    %v7026 = vsel %vm1353, %v6994, %v6995
    %v7027 = vsel %vm1353, %v6993, %v6994
    %v7028 = vsel %vm1353, %v6992, %v6993
    %v7029 = vsel %vm1353, %v6991, %v6992
    %v7030 = vsel %vm1353, %v6990, %v6991
    %v7031 = vsel %vm1353, %v6989, %v6990
    %v7032 = vsel %vm1353, %v6988, %v6989
    %v7033 = vsel %vm1353, %v6987, %v6988
    %v7034 = vsel %vm1353, %v6986, %v6987
    %v7035 = vsel %vm1353, %v6985, %v6986
    %v7036 = vsel %vm1353, %v6984, %v6985
    %v7037 = vsel %vm1353, %v6983, %v6984
    %v7038 = vsel %vm1353, %v6982, %v6983
    %v7039 = vsel %vm1353, %v6981, %v6982
    %v7040 = vsel %vm1353, %v6980, %v6981
    %v7041 = vsel %vm1353, %v6979, %v6980
    %v7042 = vsel %vm1353, %v6978, %v6979
    %v7043 = vsel %vm1353, %v6977, %v6978
    %v7044 = vsel %vm1353, %v6976, %v6977
    %v7045 = vsel %vm1353, %v6975, %v6976
    %v7046 = vsel %vm1353, %v6974, %v6975
    %v7047 = vsel %vm1353, %v6973, %v6974
    %v7048 = vsel %vm1353, %v6972, %v6973
    %v7049 = vsel %vm1353, %v6971, %v6972
    %v7050 = vsel %vm1353, %v6970, %v6971
    %v7051 = vsel %vm1353, %v6969, %v6970
    %v7052 = vsel %vm1353, %v6968, %v6969
    %v7053 = vsel %vm1353, %v6967, %v6968
    %v7054 = vsel %vm1353, %v6966, %v6967
    %v7055 = vsel %vm1353, %v6965, %v6966
    %v7056 = vsel %vm1353, %v6964, %v6965
    %v7057 = vsel %vm1353, %v6963, %v6964
    %v7058 = vsel %vm1353, %v6962, %v6963
    %v7059 = vsel %vm1353, %v6961, %v6962
    %v7060 = vsel %vm1353, %v6960, %v6961
    %v7061 = vsel %vm1353, %v6959, %v6960
    %v7062 = vsel %vm1353, %v6958, %v6959
    %v7063 = vsel %vm1353, %v6957, %v6958
    %v7064 = vsel %vm1353, %v6956, %v6957
    %v7065 = vsel %vm1353, %v6955, %v6956
    %v7066 = vsel %vm1353, %v6954, %v6955
    %v7067 = vsel %vm1353, %v6953, %v6954
    %v7068 = vsel %vm1353, %v6952, %v6953
    %v7069 = vsel %vm1353, %v6951, %v6952
    %v7070 = vsel %vm1353, %v6950, %v6951
    %v7071 = vsel %vm1353, %v6949, %v6950
    %v7072 = vsel %vm1353, %v6948, %v6949
    %v7073 = vsel %vm1353, %v6947, %v6948
    %v7074 = vsel %vm1353, %v7010, %v6947
    %7139 = vrot.lane.b32.xlu0 %v6944, 64
    %v7140 = vpop.permute.xlu0 %7139
    %7141 = vrot.lane.b32.xlu0 %v6945, 64
    %v7142 = vpop.permute.xlu0 %7141
    %7143 = vrot.lane.b32.xlu0 %v6882, 64
    %v7144 = vpop.permute.xlu0 %7143
    %7145 = vrot.lane.b32.xlu0 %v6883, 64
    %v7146 = vpop.permute.xlu0 %7145
    %7147 = vrot.lane.b32.xlu0 %v6884, 64
    %v7148 = vpop.permute.xlu0 %7147
    %7149 = vrot.lane.b32.xlu0 %v6885, 64
    %v7150 = vpop.permute.xlu0 %7149
    %7151 = vrot.lane.b32.xlu0 %v6886, 64
    %v7152 = vpop.permute.xlu0 %7151
    %7153 = vrot.lane.b32.xlu0 %v6887, 64
    %v7154 = vpop.permute.xlu0 %7153
    %7155 = vrot.lane.b32.xlu0 %v6888, 64
    %v7156 = vpop.permute.xlu0 %7155
    %7157 = vrot.lane.b32.xlu0 %v6889, 64
    %v7158 = vpop.permute.xlu0 %7157
    %7159 = vrot.lane.b32.xlu0 %v6890, 64
    %v7160 = vpop.permute.xlu0 %7159
    %7161 = vrot.lane.b32.xlu0 %v6891, 64
    %v7162 = vpop.permute.xlu0 %7161
    %7163 = vrot.lane.b32.xlu0 %v6892, 64
    %v7164 = vpop.permute.xlu0 %7163
    %7165 = vrot.lane.b32.xlu0 %v6893, 64
    %v7166 = vpop.permute.xlu0 %7165
    %7167 = vrot.lane.b32.xlu0 %v6894, 64
    %v7168 = vpop.permute.xlu0 %7167
    %7169 = vrot.lane.b32.xlu0 %v6895, 64
    %v7170 = vpop.permute.xlu0 %7169
    %7171 = vrot.lane.b32.xlu0 %v6896, 64
    %v7172 = vpop.permute.xlu0 %7171
    %7173 = vrot.lane.b32.xlu0 %v6897, 64
    %v7174 = vpop.permute.xlu0 %7173
    %7175 = vrot.lane.b32.xlu0 %v6898, 64
    %v7176 = vpop.permute.xlu0 %7175
    %7177 = vrot.lane.b32.xlu0 %v6899, 64
    %v7178 = vpop.permute.xlu0 %7177
    %7179 = vrot.lane.b32.xlu0 %v6900, 64
    %v7180 = vpop.permute.xlu0 %7179
    %7181 = vrot.lane.b32.xlu0 %v6901, 64
    %v7182 = vpop.permute.xlu0 %7181
    %7183 = vrot.lane.b32.xlu0 %v6902, 64
    %v7184 = vpop.permute.xlu0 %7183
    %7185 = vrot.lane.b32.xlu0 %v6903, 64
    %v7186 = vpop.permute.xlu0 %7185
    %7187 = vrot.lane.b32.xlu0 %v6904, 64
    %v7188 = vpop.permute.xlu0 %7187
    %7189 = vrot.lane.b32.xlu0 %v6905, 64
    %v7190 = vpop.permute.xlu0 %7189
    %7191 = vrot.lane.b32.xlu0 %v6906, 64
    %v7192 = vpop.permute.xlu0 %7191
    %7193 = vrot.lane.b32.xlu0 %v6907, 64
    %v7194 = vpop.permute.xlu0 %7193
    %7195 = vrot.lane.b32.xlu0 %v6908, 64
    %v7196 = vpop.permute.xlu0 %7195
    %7197 = vrot.lane.b32.xlu0 %v6909, 64
    %v7198 = vpop.permute.xlu0 %7197
    %7199 = vrot.lane.b32.xlu0 %v6910, 64
    %v7200 = vpop.permute.xlu0 %7199
    %7201 = vrot.lane.b32.xlu0 %v6911, 64
    %v7202 = vpop.permute.xlu0 %7201
    %7203 = vrot.lane.b32.xlu0 %v6912, 64
    %v7204 = vpop.permute.xlu0 %7203
    %7205 = vrot.lane.b32.xlu0 %v6913, 64
    %v7206 = vpop.permute.xlu0 %7205
    %7207 = vrot.lane.b32.xlu0 %v6914, 64
    %v7208 = vpop.permute.xlu0 %7207
    %7209 = vrot.lane.b32.xlu0 %v6915, 64
    %v7210 = vpop.permute.xlu0 %7209
    %7211 = vrot.lane.b32.xlu0 %v6916, 64
    %v7212 = vpop.permute.xlu0 %7211
    %7213 = vrot.lane.b32.xlu0 %v6917, 64
    %v7214 = vpop.permute.xlu0 %7213
    %7215 = vrot.lane.b32.xlu0 %v6918, 64
    %v7216 = vpop.permute.xlu0 %7215
    %7217 = vrot.lane.b32.xlu0 %v6919, 64
    %v7218 = vpop.permute.xlu0 %7217
    %7219 = vrot.lane.b32.xlu0 %v6920, 64
    %v7220 = vpop.permute.xlu0 %7219
    %7221 = vrot.lane.b32.xlu0 %v6921, 64
    %v7222 = vpop.permute.xlu0 %7221
    %7223 = vrot.lane.b32.xlu0 %v6922, 64
    %v7224 = vpop.permute.xlu0 %7223
    %7225 = vrot.lane.b32.xlu0 %v6923, 64
    %v7226 = vpop.permute.xlu0 %7225
    %7227 = vrot.lane.b32.xlu0 %v6924, 64
    %v7228 = vpop.permute.xlu0 %7227
    %7229 = vrot.lane.b32.xlu0 %v6925, 64
    %v7230 = vpop.permute.xlu0 %7229
    %7231 = vrot.lane.b32.xlu0 %v6926, 64
    %v7232 = vpop.permute.xlu0 %7231
    %7233 = vrot.lane.b32.xlu0 %v6927, 64
    %v7234 = vpop.permute.xlu0 %7233
    %7235 = vrot.lane.b32.xlu0 %v6928, 64
    %v7236 = vpop.permute.xlu0 %7235
    %7237 = vrot.lane.b32.xlu0 %v6929, 64
    %v7238 = vpop.permute.xlu0 %7237
    %7239 = vrot.lane.b32.xlu0 %v6930, 64
    %v7240 = vpop.permute.xlu0 %7239
    %7241 = vrot.lane.b32.xlu0 %v6931, 64
    %v7242 = vpop.permute.xlu0 %7241
    %7243 = vrot.lane.b32.xlu0 %v6932, 64
    %v7244 = vpop.permute.xlu0 %7243
    %7245 = vrot.lane.b32.xlu0 %v6933, 64
    %v7246 = vpop.permute.xlu0 %7245
    %7247 = vrot.lane.b32.xlu0 %v6934, 64
    %v7248 = vpop.permute.xlu0 %7247
    %7249 = vrot.lane.b32.xlu0 %v6935, 64
    %v7250 = vpop.permute.xlu0 %7249
    %7251 = vrot.lane.b32.xlu0 %v6936, 64
    %v7252 = vpop.permute.xlu0 %7251
    %7253 = vrot.lane.b32.xlu0 %v6937, 64
    %v7254 = vpop.permute.xlu0 %7253
    %7255 = vrot.lane.b32.xlu0 %v6938, 64
    %v7256 = vpop.permute.xlu0 %7255
    %7257 = vrot.lane.b32.xlu0 %v6939, 64
    %v7258 = vpop.permute.xlu0 %7257
    %7259 = vrot.lane.b32.xlu0 %v6940, 64
    %v7260 = vpop.permute.xlu0 %7259
    %7261 = vrot.lane.b32.xlu0 %v6941, 64
    %v7262 = vpop.permute.xlu0 %7261
    %7263 = vrot.lane.b32.xlu0 %v6942, 64
    %v7264 = vpop.permute.xlu0 %7263
    %7265 = vrot.lane.b32.xlu0 %v6943, 64
    %v7266 = vpop.permute.xlu0 %7265
    %v7331 = vsel %vm183, %v7012, %v7140
    %v7332 = vsel %vm183, %v7011, %v7142
    %v7333 = vsel %vm183, %v7074, %v7144
    %v7334 = vsel %vm183, %v7073, %v7146
    %v7335 = vsel %vm183, %v7072, %v7148
    %v7336 = vsel %vm183, %v7071, %v7150
    %v7337 = vsel %vm183, %v7070, %v7152
    %v7338 = vsel %vm183, %v7069, %v7154
    %v7339 = vsel %vm183, %v7068, %v7156
    %v7340 = vsel %vm183, %v7067, %v7158
    %v7341 = vsel %vm183, %v7066, %v7160
    %v7342 = vsel %vm183, %v7065, %v7162
    %v7343 = vsel %vm183, %v7064, %v7164
    %v7344 = vsel %vm183, %v7063, %v7166
    %v7345 = vsel %vm183, %v7062, %v7168
    %v7346 = vsel %vm183, %v7061, %v7170
    %v7347 = vsel %vm183, %v7060, %v7172
    %v7348 = vsel %vm183, %v7059, %v7174
    %v7349 = vsel %vm183, %v7058, %v7176
    %v7350 = vsel %vm183, %v7057, %v7178
    %v7351 = vsel %vm183, %v7056, %v7180
    %v7352 = vsel %vm183, %v7055, %v7182
    %v7353 = vsel %vm183, %v7054, %v7184
    %v7354 = vsel %vm183, %v7053, %v7186
    %v7355 = vsel %vm183, %v7052, %v7188
    %v7356 = vsel %vm183, %v7051, %v7190
    %v7357 = vsel %vm183, %v7050, %v7192
    %v7358 = vsel %vm183, %v7049, %v7194
    %v7359 = vsel %vm183, %v7048, %v7196
    %v7360 = vsel %vm183, %v7047, %v7198
    %v7361 = vsel %vm183, %v7046, %v7200
    %v7362 = vsel %vm183, %v7045, %v7202
    %v7363 = vsel %vm183, %v7044, %v7204
    %v7364 = vsel %vm183, %v7043, %v7206
    %v7365 = vsel %vm183, %v7042, %v7208
    %v7366 = vsel %vm183, %v7041, %v7210
    %v7367 = vsel %vm183, %v7040, %v7212
    %v7368 = vsel %vm183, %v7039, %v7214
    %v7369 = vsel %vm183, %v7038, %v7216
    %v7370 = vsel %vm183, %v7037, %v7218
    %v7371 = vsel %vm183, %v7036, %v7220
    %v7372 = vsel %vm183, %v7035, %v7222
    %v7373 = vsel %vm183, %v7034, %v7224
    %v7374 = vsel %vm183, %v7033, %v7226
    %v7375 = vsel %vm183, %v7032, %v7228
    %v7376 = vsel %vm183, %v7031, %v7230
    %v7377 = vsel %vm183, %v7030, %v7232
    %v7378 = vsel %vm183, %v7029, %v7234
    %v7379 = vsel %vm183, %v7028, %v7236
    %v7380 = vsel %vm183, %v7027, %v7238
    %v7381 = vsel %vm183, %v7026, %v7240
    %v7382 = vsel %vm183, %v7025, %v7242
    %v7383 = vsel %vm183, %v7024, %v7244
    %v7384 = vsel %vm183, %v7023, %v7246
    %v7385 = vsel %vm183, %v7022, %v7248
    %v7386 = vsel %vm183, %v7021, %v7250
    %v7387 = vsel %vm183, %v7020, %v7252
    %v7388 = vsel %vm183, %v7019, %v7254
    %v7389 = vsel %vm183, %v7018, %v7256
    %v7390 = vsel %vm183, %v7017, %v7258
    %v7391 = vsel %vm183, %v7016, %v7260
    %v7392 = vsel %vm183, %v7015, %v7262
    %v7393 = vsel %vm183, %v7014, %v7264
    %v7394 = vsel %vm183, %v7013, %v7266
    %v7395 = vpack.c.bf16 %v7332, %v7331
    %v7396 = vpack.c.bf16 %v7334, %v7333
    %v7397 = vpack.c.bf16 %v7336, %v7335
    %v7398 = vpack.c.bf16 %v7338, %v7337
    %v7399 = vpack.c.bf16 %v7340, %v7339
    %v7400 = vpack.c.bf16 %v7342, %v7341
    %v7401 = vpack.c.bf16 %v7344, %v7343
    %v7402 = vpack.c.bf16 %v7346, %v7345
    %v7403 = vpack.c.bf16 %v7348, %v7347
    %v7404 = vpack.c.bf16 %v7350, %v7349
    %v7405 = vpack.c.bf16 %v7352, %v7351
    %v7406 = vpack.c.bf16 %v7354, %v7353
    %v7407 = vpack.c.bf16 %v7356, %v7355
    %v7408 = vpack.c.bf16 %v7358, %v7357
    %v7409 = vpack.c.bf16 %v7360, %v7359
    %v7410 = vpack.c.bf16 %v7362, %v7361
    %v7411 = vpack.c.bf16 %v7364, %v7363
    %v7412 = vpack.c.bf16 %v7366, %v7365
    %v7413 = vpack.c.bf16 %v7368, %v7367
    %v7414 = vpack.c.bf16 %v7370, %v7369
    %v7415 = vpack.c.bf16 %v7372, %v7371
    %v7416 = vpack.c.bf16 %v7374, %v7373
    %v7417 = vpack.c.bf16 %v7376, %v7375
    %v7418 = vpack.c.bf16 %v7378, %v7377
    %v7419 = vpack.c.bf16 %v7380, %v7379
    %v7420 = vpack.c.bf16 %v7382, %v7381
    %v7421 = vpack.c.bf16 %v7384, %v7383
    %v7422 = vpack.c.bf16 %v7386, %v7385
    %v7423 = vpack.c.bf16 %v7388, %v7387
    %v7424 = vpack.c.bf16 %v7390, %v7389
    %v7425 = vpack.c.bf16 %v7392, %v7391
    %v7426 = vpack.c.bf16 %v7394, %v7393
    %v7427 = vld [vmem:[#allocation6] sm:$0xf]
    %v7428 = vld [vmem:[#allocation6 + $0x4] sm:$0xf]
    %v7429 = vld [vmem:[#allocation6 + $0x8] sm:$0xf]
    %v7430 = vld [vmem:[#allocation6 + $0xc] sm:$0xf]
    %v7431 = vld [vmem:[#allocation6 + $0x10] sm:$0xf]
    %v7432 = vld [vmem:[#allocation6 + $0x14] sm:$0xf]
    %v7433 = vld [vmem:[#allocation6 + $0x18] sm:$0xf]
    %v7434 = vld [vmem:[#allocation6 + $0x1c] sm:$0xf]
    %v7435 = vld [vmem:[#allocation6 + $0x20] sm:$0xf]
    %v7436 = vld [vmem:[#allocation6 + $0x24] sm:$0xf]
    %v7437 = vld [vmem:[#allocation6 + $0x28] sm:$0xf]
    %v7438 = vld [vmem:[#allocation6 + $0x2c] sm:$0xf]
    %v7439 = vld [vmem:[#allocation6 + $0x30] sm:$0xf]
    %v7440 = vld [vmem:[#allocation6 + $0x34] sm:$0xf]
    %v7441 = vld [vmem:[#allocation6 + $0x38] sm:$0xf]
    %v7442 = vld [vmem:[#allocation6 + $0x3c] sm:$0xf]
    %v7443 = vld [vmem:[#allocation6 + $0x40] sm:$0xf]
    %v7444 = vld [vmem:[#allocation6 + $0x44] sm:$0xf]
    %v7445 = vld [vmem:[#allocation6 + $0x48] sm:$0xf]
    %v7446 = vld [vmem:[#allocation6 + $0x4c] sm:$0xf]
    %v7447 = vld [vmem:[#allocation6 + $0x50] sm:$0xf]
    %v7448 = vld [vmem:[#allocation6 + $0x54] sm:$0xf]
    %v7449 = vld [vmem:[#allocation6 + $0x58] sm:$0xf]
    %v7450 = vld [vmem:[#allocation6 + $0x5c] sm:$0xf]
    %v7451 = vld [vmem:[#allocation6 + $0x60] sm:$0xf]
    %v7452 = vld [vmem:[#allocation6 + $0x64] sm:$0xf]
    %v7453 = vld [vmem:[#allocation6 + $0x68] sm:$0xf]
    %v7454 = vld [vmem:[#allocation6 + $0x6c] sm:$0xf]
    %v7455 = vld [vmem:[#allocation6 + $0x70] sm:$0xf]
    %v7456 = vld [vmem:[#allocation6 + $0x74] sm:$0xf]
    %v7457 = vld [vmem:[#allocation6 + $0x78] sm:$0xf]
    %v7458 = vld [vmem:[#allocation6 + $0x7c] sm:$0xf]
    %v7459 = vld [vmem:[#allocation6 + $0x80] sm:$0xf]
    %v7460 = vld [vmem:[#allocation6 + $0x84] sm:$0xf]
    %v7461 = vld [vmem:[#allocation6 + $0x88] sm:$0xf]
    %v7462 = vld [vmem:[#allocation6 + $0x8c] sm:$0xf]
    %v7463 = vld [vmem:[#allocation6 + $0x90] sm:$0xf]
    %v7464 = vld [vmem:[#allocation6 + $0x94] sm:$0xf]
    %v7465 = vld [vmem:[#allocation6 + $0x98] sm:$0xf]
    %v7466 = vld [vmem:[#allocation6 + $0x9c] sm:$0xf]
    %v7467 = vld [vmem:[#allocation6 + $0xa0] sm:$0xf]
    %v7468 = vld [vmem:[#allocation6 + $0xa4] sm:$0xf]
    %v7469 = vld [vmem:[#allocation6 + $0xa8] sm:$0xf]
    %v7470 = vld [vmem:[#allocation6 + $0xac] sm:$0xf]
    %v7471 = vld [vmem:[#allocation6 + $0xb0] sm:$0xf]
    %v7472 = vld [vmem:[#allocation6 + $0xb4] sm:$0xf]
    %v7473 = vld [vmem:[#allocation6 + $0xb8] sm:$0xf]
    %v7474 = vld [vmem:[#allocation6 + $0xbc] sm:$0xf]
    %v7475 = vld [vmem:[#allocation6 + $0xc0] sm:$0xf]
    %v7476 = vld [vmem:[#allocation6 + $0xc4] sm:$0xf]
    %v7477 = vld [vmem:[#allocation6 + $0xc8] sm:$0xf]
    %v7478 = vld [vmem:[#allocation6 + $0xcc] sm:$0xf]
    %v7479 = vld [vmem:[#allocation6 + $0xd0] sm:$0xf]
    %v7480 = vld [vmem:[#allocation6 + $0xd4] sm:$0xf]
    %v7481 = vld [vmem:[#allocation6 + $0xd8] sm:$0xf]
    %v7482 = vld [vmem:[#allocation6 + $0xdc] sm:$0xf]
    %v7483 = vld [vmem:[#allocation6 + $0xe0] sm:$0xf]
    %v7484 = vld [vmem:[#allocation6 + $0xe4] sm:$0xf]
    %v7485 = vld [vmem:[#allocation6 + $0xe8] sm:$0xf]
    %v7486 = vld [vmem:[#allocation6 + $0xec] sm:$0xf]
    %v7487 = vld [vmem:[#allocation6 + $0xf0] sm:$0xf]
    %v7488 = vld [vmem:[#allocation6 + $0xf4] sm:$0xf]
    %v7489 = vld [vmem:[#allocation6 + $0xf8] sm:$0xf]
    %v7490 = vld [vmem:[#allocation6 + $0xfc] sm:$0xf]
    %v7555 = vunpack.c.l.b16 %v7427
    %v7556 = vunpack.c.l.b16 %v7428
    %v7557 = vunpack.c.l.b16 %v7429
    %v7558 = vunpack.c.l.b16 %v7430
    %v7559 = vunpack.c.l.b16 %v7431
    %v7560 = vunpack.c.l.b16 %v7432
    %v7561 = vunpack.c.l.b16 %v7433
    %v7562 = vunpack.c.l.b16 %v7434
    %v7563 = vunpack.c.l.b16 %v7435
    %v7564 = vunpack.c.l.b16 %v7436
    %v7565 = vunpack.c.l.b16 %v7437
    %v7566 = vunpack.c.l.b16 %v7438
    %v7567 = vunpack.c.l.b16 %v7439
    %v7568 = vunpack.c.l.b16 %v7440
    %v7569 = vunpack.c.l.b16 %v7441
    %v7570 = vunpack.c.l.b16 %v7442
    %v7571 = vunpack.c.l.b16 %v7443
    %v7572 = vunpack.c.l.b16 %v7444
    %v7573 = vunpack.c.l.b16 %v7445
    %v7574 = vunpack.c.l.b16 %v7446
    %v7575 = vunpack.c.l.b16 %v7447
    %v7576 = vunpack.c.l.b16 %v7448
    %v7577 = vunpack.c.l.b16 %v7449
    %v7578 = vunpack.c.l.b16 %v7450
    %v7579 = vunpack.c.l.b16 %v7451
    %v7580 = vunpack.c.l.b16 %v7452
    %v7581 = vunpack.c.l.b16 %v7453
    %v7582 = vunpack.c.l.b16 %v7454
    %v7583 = vunpack.c.l.b16 %v7455
    %v7584 = vunpack.c.l.b16 %v7456
    %v7585 = vunpack.c.l.b16 %v7457
    %v7586 = vunpack.c.l.b16 %v7458
    %v7587 = vunpack.c.l.b16 %v7459
    %v7588 = vunpack.c.l.b16 %v7460
    %v7589 = vunpack.c.l.b16 %v7461
    %v7590 = vunpack.c.l.b16 %v7462
    %v7591 = vunpack.c.l.b16 %v7463
    %v7592 = vunpack.c.l.b16 %v7464
    %v7593 = vunpack.c.l.b16 %v7465
    %v7594 = vunpack.c.l.b16 %v7466
    %v7595 = vunpack.c.l.b16 %v7467
    %v7596 = vunpack.c.l.b16 %v7468
    %v7597 = vunpack.c.l.b16 %v7469
    %v7598 = vunpack.c.l.b16 %v7470
    %v7599 = vunpack.c.l.b16 %v7471
    %v7600 = vunpack.c.l.b16 %v7472
    %v7601 = vunpack.c.l.b16 %v7473
    %v7602 = vunpack.c.l.b16 %v7474
    %v7603 = vunpack.c.l.b16 %v7475
    %v7604 = vunpack.c.l.b16 %v7476
    %v7605 = vunpack.c.l.b16 %v7477
    %v7606 = vunpack.c.l.b16 %v7478
    %v7607 = vunpack.c.l.b16 %v7479
    %v7608 = vunpack.c.l.b16 %v7480
    %v7609 = vunpack.c.l.b16 %v7481
    %v7610 = vunpack.c.l.b16 %v7482
    %v7611 = vunpack.c.l.b16 %v7483
    %v7612 = vunpack.c.l.b16 %v7484
    %v7613 = vunpack.c.l.b16 %v7485
    %v7614 = vunpack.c.l.b16 %v7486
    %v7615 = vunpack.c.l.b16 %v7487
    %v7616 = vunpack.c.l.b16 %v7488
    %v7617 = vunpack.c.l.b16 %v7489
    %v7618 = vunpack.c.l.b16 %v7490
    %v7619 = vpack.c.b16 %v7556, %v7555
    %v7620 = vpack.c.b16 %v7558, %v7557
    %v7621 = vpack.c.b16 %v7560, %v7559
    %v7622 = vpack.c.b16 %v7562, %v7561
    %v7623 = vpack.c.b16 %v7564, %v7563
    %v7624 = vpack.c.b16 %v7566, %v7565
    %v7625 = vpack.c.b16 %v7568, %v7567
    %v7626 = vpack.c.b16 %v7570, %v7569
    %v7627 = vpack.c.b16 %v7572, %v7571
    %v7628 = vpack.c.b16 %v7574, %v7573
    %v7629 = vpack.c.b16 %v7576, %v7575
    %v7630 = vpack.c.b16 %v7578, %v7577
    %v7631 = vpack.c.b16 %v7580, %v7579
    %v7632 = vpack.c.b16 %v7582, %v7581
    %v7633 = vpack.c.b16 %v7584, %v7583
    %v7634 = vpack.c.b16 %v7586, %v7585
    %v7635 = vpack.c.b16 %v7588, %v7587
    %v7636 = vpack.c.b16 %v7590, %v7589
    %v7637 = vpack.c.b16 %v7592, %v7591
    %v7638 = vpack.c.b16 %v7594, %v7593
    %v7639 = vpack.c.b16 %v7596, %v7595
    %v7640 = vpack.c.b16 %v7598, %v7597
    %v7641 = vpack.c.b16 %v7600, %v7599
    %v7642 = vpack.c.b16 %v7602, %v7601
    %v7643 = vpack.c.b16 %v7604, %v7603
    %v7644 = vpack.c.b16 %v7606, %v7605
    %v7645 = vpack.c.b16 %v7608, %v7607
    %v7646 = vpack.c.b16 %v7610, %v7609
    %v7647 = vpack.c.b16 %v7612, %v7611
    %v7648 = vpack.c.b16 %v7614, %v7613
    %v7649 = vpack.c.b16 %v7616, %v7615
    %v7650 = vpack.c.b16 %v7618, %v7617
    %v7683 = vmul.bf16 %v7395, %v7619
    %v7684 = vmul.bf16 %v7396, %v7620
    %v7685 = vmul.bf16 %v7397, %v7621
    %v7686 = vmul.bf16 %v7398, %v7622
    %v7687 = vmul.bf16 %v7399, %v7623
    %v7688 = vmul.bf16 %v7400, %v7624
    %v7689 = vmul.bf16 %v7401, %v7625
    %v7690 = vmul.bf16 %v7402, %v7626
    %v7691 = vmul.bf16 %v7403, %v7627
    %v7692 = vmul.bf16 %v7404, %v7628
    %v7693 = vmul.bf16 %v7405, %v7629
    %v7694 = vmul.bf16 %v7406, %v7630
    %v7695 = vmul.bf16 %v7407, %v7631
    %v7696 = vmul.bf16 %v7408, %v7632
    %v7697 = vmul.bf16 %v7409, %v7633
    %v7698 = vmul.bf16 %v7410, %v7634
    %v7699 = vmul.bf16 %v7411, %v7635
    %v7700 = vmul.bf16 %v7412, %v7636
    %v7701 = vmul.bf16 %v7413, %v7637
    %v7702 = vmul.bf16 %v7414, %v7638
    %v7703 = vmul.bf16 %v7415, %v7639
    %v7704 = vmul.bf16 %v7416, %v7640
    %v7705 = vmul.bf16 %v7417, %v7641
    %v7706 = vmul.bf16 %v7418, %v7642
    %v7707 = vmul.bf16 %v7419, %v7643
    %v7708 = vmul.bf16 %v7420, %v7644
    %v7709 = vmul.bf16 %v7421, %v7645
    %v7710 = vmul.bf16 %v7422, %v7646
    %v7711 = vmul.bf16 %v7423, %v7647
    %v7712 = vmul.bf16 %v7424, %v7648
    %v7713 = vmul.bf16 %v7425, %v7649
    %v7714 = vmul.bf16 %v7426, %v7650
    %7715 = vst [vmem:[#allocation2] sm:$0xff] %v7683
    %7716 = vst [vmem:[#allocation2 + $0x28] sm:$0xff] %v7684
    %7717 = vst [vmem:[#allocation2 + $0x50] sm:$0xff] %v7685
    %7718 = vst [vmem:[#allocation2 + $0x78] sm:$0xff] %v7686
    %7719 = vst [vmem:[#allocation2 + $0xa0] sm:$0xff] %v7687
    %7720 = vst [vmem:[#allocation2 + $0xc8] sm:$0xff] %v7688
    %7721 = vst [vmem:[#allocation2 + $0xf0] sm:$0xff] %v7689
    %7722 = vst [vmem:[#allocation2 + $0x118] sm:$0xff] %v7690
    %7723 = vst [vmem:[#allocation2 + $0x140] sm:$0xff] %v7691
    %7724 = vst [vmem:[#allocation2 + $0x168] sm:$0xff] %v7692
    %7725 = vst [vmem:[#allocation2 + $0x190] sm:$0xff] %v7693
    %7726 = vst [vmem:[#allocation2 + $0x1b8] sm:$0xff] %v7694
    %7727 = vst [vmem:[#allocation2 + $0x1e0] sm:$0xff] %v7695
    %7728 = vst [vmem:[#allocation2 + $0x208] sm:$0xff] %v7696
    %7729 = vst [vmem:[#allocation2 + $0x230] sm:$0xff] %v7697
    %7730 = vst [vmem:[#allocation2 + $0x258] sm:$0xff] %v7698
    %7731 = vst [vmem:[#allocation2 + $0x280] sm:$0xff] %v7699
    %7732 = vst [vmem:[#allocation2 + $0x2a8] sm:$0xff] %v7700
    %7733 = vst [vmem:[#allocation2 + $0x2d0] sm:$0xff] %v7701
    %7734 = vst [vmem:[#allocation2 + $0x2f8] sm:$0xff] %v7702
    %7735 = vst [vmem:[#allocation2 + $0x320] sm:$0xff] %v7703
    %7736 = vst [vmem:[#allocation2 + $0x348] sm:$0xff] %v7704
    %7737 = vst [vmem:[#allocation2 + $0x370] sm:$0xff] %v7705
    %7738 = vst [vmem:[#allocation2 + $0x398] sm:$0xff] %v7706
    %7739 = vst [vmem:[#allocation2 + $0x3c0] sm:$0xff] %v7707
    %7740 = vst [vmem:[#allocation2 + $0x3e8] sm:$0xff] %v7708
    %7741 = vst [vmem:[#allocation2 + $0x410] sm:$0xff] %v7709
    %7742 = vst [vmem:[#allocation2 + $0x438] sm:$0xff] %v7710
    %7743 = vst [vmem:[#allocation2 + $0x460] sm:$0xff] %v7711
    %7744 = vst [vmem:[#allocation2 + $0x488] sm:$0xff] %v7712
    %7745 = vst [vmem:[#allocation2 + $0x4b0] sm:$0xff] %v7713
    %7746 = vst [vmem:[#allocation2 + $0x4d8] sm:$0xff] %v7714
    %v7747 = vrot.slane %v6882, 1
    %v7748 = vrot.slane %v6883, 1
    %v7749 = vrot.slane %v6884, 1
    %v7750 = vrot.slane %v6885, 1
    %v7751 = vrot.slane %v6886, 1
    %v7752 = vrot.slane %v6887, 1
    %v7753 = vrot.slane %v6888, 1
    %v7754 = vrot.slane %v6889, 1
    %v7755 = vrot.slane %v6890, 1
    %v7756 = vrot.slane %v6891, 1
    %v7757 = vrot.slane %v6892, 1
    %v7758 = vrot.slane %v6893, 1
    %v7759 = vrot.slane %v6894, 1
    %v7760 = vrot.slane %v6895, 1
    %v7761 = vrot.slane %v6896, 1
    %v7762 = vrot.slane %v6897, 1
    %v7763 = vrot.slane %v6898, 1
    %v7764 = vrot.slane %v6899, 1
    %v7765 = vrot.slane %v6900, 1
    %v7766 = vrot.slane %v6901, 1
    %v7767 = vrot.slane %v6902, 1
    %v7768 = vrot.slane %v6903, 1
    %v7769 = vrot.slane %v6904, 1
    %v7770 = vrot.slane %v6905, 1
    %v7771 = vrot.slane %v6906, 1
    %v7772 = vrot.slane %v6907, 1
    %v7773 = vrot.slane %v6908, 1
    %v7774 = vrot.slane %v6909, 1
    %v7775 = vrot.slane %v6910, 1
    %v7776 = vrot.slane %v6911, 1
    %v7777 = vrot.slane %v6912, 1
    %v7778 = vrot.slane %v6913, 1
    %v7779 = vrot.slane %v6914, 1
    %v7780 = vrot.slane %v6915, 1
    %v7781 = vrot.slane %v6916, 1
    %v7782 = vrot.slane %v6917, 1
    %v7783 = vrot.slane %v6918, 1
    %v7784 = vrot.slane %v6919, 1
    %v7785 = vrot.slane %v6920, 1
    %v7786 = vrot.slane %v6921, 1
    %v7787 = vrot.slane %v6922, 1
    %v7788 = vrot.slane %v6923, 1
    %v7789 = vrot.slane %v6924, 1
    %v7790 = vrot.slane %v6925, 1
    %v7791 = vrot.slane %v6926, 1
    %v7792 = vrot.slane %v6927, 1
    %v7793 = vrot.slane %v6928, 1
    %v7794 = vrot.slane %v6929, 1
    %v7795 = vrot.slane %v6930, 1
    %v7796 = vrot.slane %v6931, 1
    %v7797 = vrot.slane %v6932, 1
    %v7798 = vrot.slane %v6933, 1
    %v7799 = vrot.slane %v6934, 1
    %v7800 = vrot.slane %v6935, 1
    %v7801 = vrot.slane %v6936, 1
    %v7802 = vrot.slane %v6937, 1
    %v7803 = vrot.slane %v6938, 1
    %v7804 = vrot.slane %v6939, 1
    %v7805 = vrot.slane %v6940, 1
    %v7806 = vrot.slane %v6941, 1
    %v7807 = vrot.slane %v6942, 1
    %v7808 = vrot.slane %v6943, 1
    %v7809 = vrot.slane %v6944, 1
    %v7810 = vrot.slane %v6945, 1
    %v7811 = vsel %vm2154, %v7809, %v7810
    %v7812 = vsel %vm2154, %v7808, %v7809
    %v7813 = vsel %vm2154, %v7807, %v7808
    %v7814 = vsel %vm2154, %v7806, %v7807
    %v7815 = vsel %vm2154, %v7805, %v7806
    %v7816 = vsel %vm2154, %v7804, %v7805
    %v7817 = vsel %vm2154, %v7803, %v7804
    %v7818 = vsel %vm2154, %v7802, %v7803
    %v7819 = vsel %vm2154, %v7801, %v7802
    %v7820 = vsel %vm2154, %v7800, %v7801
    %v7821 = vsel %vm2154, %v7799, %v7800
    %v7822 = vsel %vm2154, %v7798, %v7799
    %v7823 = vsel %vm2154, %v7797, %v7798
    %v7824 = vsel %vm2154, %v7796, %v7797
    %v7825 = vsel %vm2154, %v7795, %v7796
    %v7826 = vsel %vm2154, %v7794, %v7795
    %v7827 = vsel %vm2154, %v7793, %v7794
    %v7828 = vsel %vm2154, %v7792, %v7793
    %v7829 = vsel %vm2154, %v7791, %v7792
    %v7830 = vsel %vm2154, %v7790, %v7791
    %v7831 = vsel %vm2154, %v7789, %v7790
    %v7832 = vsel %vm2154, %v7788, %v7789
    %v7833 = vsel %vm2154, %v7787, %v7788
    %v7834 = vsel %vm2154, %v7786, %v7787
    %v7835 = vsel %vm2154, %v7785, %v7786
    %v7836 = vsel %vm2154, %v7784, %v7785
    %v7837 = vsel %vm2154, %v7783, %v7784
    %v7838 = vsel %vm2154, %v7782, %v7783
    %v7839 = vsel %vm2154, %v7781, %v7782
    %v7840 = vsel %vm2154, %v7780, %v7781
    %v7841 = vsel %vm2154, %v7779, %v7780
    %v7842 = vsel %vm2154, %v7778, %v7779
    %v7843 = vsel %vm2154, %v7777, %v7778
    %v7844 = vsel %vm2154, %v7776, %v7777
    %v7845 = vsel %vm2154, %v7775, %v7776
    %v7846 = vsel %vm2154, %v7774, %v7775
    %v7847 = vsel %vm2154, %v7773, %v7774
    %v7848 = vsel %vm2154, %v7772, %v7773
    %v7849 = vsel %vm2154, %v7771, %v7772
    %v7850 = vsel %vm2154, %v7770, %v7771
    %v7851 = vsel %vm2154, %v7769, %v7770
    %v7852 = vsel %vm2154, %v7768, %v7769
    %v7853 = vsel %vm2154, %v7767, %v7768
    %v7854 = vsel %vm2154, %v7766, %v7767
    %v7855 = vsel %vm2154, %v7765, %v7766
    %v7856 = vsel %vm2154, %v7764, %v7765
    %v7857 = vsel %vm2154, %v7763, %v7764
    %v7858 = vsel %vm2154, %v7762, %v7763
    %v7859 = vsel %vm2154, %v7761, %v7762
    %v7860 = vsel %vm2154, %v7760, %v7761
    %v7861 = vsel %vm2154, %v7759, %v7760
    %v7862 = vsel %vm2154, %v7758, %v7759
    %v7863 = vsel %vm2154, %v7757, %v7758
    %v7864 = vsel %vm2154, %v7756, %v7757
    %v7865 = vsel %vm2154, %v7755, %v7756
    %v7866 = vsel %vm2154, %v7754, %v7755
    %v7867 = vsel %vm2154, %v7753, %v7754
    %v7868 = vsel %vm2154, %v7752, %v7753
    %v7869 = vsel %vm2154, %v7751, %v7752
    %v7870 = vsel %vm2154, %v7750, %v7751
    %v7871 = vsel %vm2154, %v7749, %v7750
    %v7872 = vsel %vm2154, %v7748, %v7749
    %v7873 = vsel %vm2154, %v7747, %v7748
    %v7874 = vsel %vm2154, %v7810, %v7747
    %7939 = vrot.lane.b32.xlu0 %v7074, 64
    %v7940 = vpop.permute.xlu0 %7939
    %7941 = vrot.lane.b32.xlu0 %v7073, 64
    %v7942 = vpop.permute.xlu0 %7941
    %7943 = vrot.lane.b32.xlu0 %v7072, 64
    %v7944 = vpop.permute.xlu0 %7943
    %7945 = vrot.lane.b32.xlu0 %v7071, 64
    %v7946 = vpop.permute.xlu0 %7945
    %7947 = vrot.lane.b32.xlu0 %v7070, 64
    %v7948 = vpop.permute.xlu0 %7947
    %7949 = vrot.lane.b32.xlu0 %v7069, 64
    %v7950 = vpop.permute.xlu0 %7949
    %7951 = vrot.lane.b32.xlu0 %v7068, 64
    %v7952 = vpop.permute.xlu0 %7951
    %7953 = vrot.lane.b32.xlu0 %v7067, 64
    %v7954 = vpop.permute.xlu0 %7953
    %7955 = vrot.lane.b32.xlu0 %v7066, 64
    %v7956 = vpop.permute.xlu0 %7955
    %7957 = vrot.lane.b32.xlu0 %v7065, 64
    %v7958 = vpop.permute.xlu0 %7957
    %7959 = vrot.lane.b32.xlu0 %v7064, 64
    %v7960 = vpop.permute.xlu0 %7959
    %7961 = vrot.lane.b32.xlu0 %v7063, 64
    %v7962 = vpop.permute.xlu0 %7961
    %7963 = vrot.lane.b32.xlu0 %v7062, 64
    %v7964 = vpop.permute.xlu0 %7963
    %7965 = vrot.lane.b32.xlu0 %v7061, 64
    %v7966 = vpop.permute.xlu0 %7965
    %7967 = vrot.lane.b32.xlu0 %v7060, 64
    %v7968 = vpop.permute.xlu0 %7967
    %7969 = vrot.lane.b32.xlu0 %v7059, 64
    %v7970 = vpop.permute.xlu0 %7969
    %7971 = vrot.lane.b32.xlu0 %v7058, 64
    %v7972 = vpop.permute.xlu0 %7971
    %7973 = vrot.lane.b32.xlu0 %v7057, 64
    %v7974 = vpop.permute.xlu0 %7973
    %7975 = vrot.lane.b32.xlu0 %v7056, 64
    %v7976 = vpop.permute.xlu0 %7975
    %7977 = vrot.lane.b32.xlu0 %v7055, 64
    %v7978 = vpop.permute.xlu0 %7977
    %7979 = vrot.lane.b32.xlu0 %v7054, 64
    %v7980 = vpop.permute.xlu0 %7979
    %7981 = vrot.lane.b32.xlu0 %v7053, 64
    %v7982 = vpop.permute.xlu0 %7981
    %7983 = vrot.lane.b32.xlu0 %v7052, 64
    %v7984 = vpop.permute.xlu0 %7983
    %7985 = vrot.lane.b32.xlu0 %v7051, 64
    %v7986 = vpop.permute.xlu0 %7985
    %7987 = vrot.lane.b32.xlu0 %v7050, 64
    %v7988 = vpop.permute.xlu0 %7987
    %7989 = vrot.lane.b32.xlu0 %v7049, 64
    %v7990 = vpop.permute.xlu0 %7989
    %7991 = vrot.lane.b32.xlu0 %v7048, 64
    %v7992 = vpop.permute.xlu0 %7991
    %7993 = vrot.lane.b32.xlu0 %v7047, 64
    %v7994 = vpop.permute.xlu0 %7993
    %7995 = vrot.lane.b32.xlu0 %v7046, 64
    %v7996 = vpop.permute.xlu0 %7995
    %7997 = vrot.lane.b32.xlu0 %v7045, 64
    %v7998 = vpop.permute.xlu0 %7997
    %7999 = vrot.lane.b32.xlu0 %v7044, 64
    %v8000 = vpop.permute.xlu0 %7999
    %8001 = vrot.lane.b32.xlu0 %v7043, 64
    %v8002 = vpop.permute.xlu0 %8001
    %8003 = vrot.lane.b32.xlu0 %v7042, 64
    %v8004 = vpop.permute.xlu0 %8003
    %8005 = vrot.lane.b32.xlu0 %v7041, 64
    %v8006 = vpop.permute.xlu0 %8005
    %8007 = vrot.lane.b32.xlu0 %v7040, 64
    %v8008 = vpop.permute.xlu0 %8007
    %8009 = vrot.lane.b32.xlu0 %v7039, 64
    %v8010 = vpop.permute.xlu0 %8009
    %8011 = vrot.lane.b32.xlu0 %v7038, 64
    %v8012 = vpop.permute.xlu0 %8011
    %8013 = vrot.lane.b32.xlu0 %v7037, 64
    %v8014 = vpop.permute.xlu0 %8013
    %8015 = vrot.lane.b32.xlu0 %v7036, 64
    %v8016 = vpop.permute.xlu0 %8015
    %8017 = vrot.lane.b32.xlu0 %v7035, 64
    %v8018 = vpop.permute.xlu0 %8017
    %8019 = vrot.lane.b32.xlu0 %v7034, 64
    %v8020 = vpop.permute.xlu0 %8019
    %8021 = vrot.lane.b32.xlu0 %v7033, 64
    %v8022 = vpop.permute.xlu0 %8021
    %8023 = vrot.lane.b32.xlu0 %v7032, 64
    %v8024 = vpop.permute.xlu0 %8023
    %8025 = vrot.lane.b32.xlu0 %v7031, 64
    %v8026 = vpop.permute.xlu0 %8025
    %8027 = vrot.lane.b32.xlu0 %v7030, 64
    %v8028 = vpop.permute.xlu0 %8027
    %8029 = vrot.lane.b32.xlu0 %v7029, 64
    %v8030 = vpop.permute.xlu0 %8029
    %8031 = vrot.lane.b32.xlu0 %v7028, 64
    %v8032 = vpop.permute.xlu0 %8031
    %8033 = vrot.lane.b32.xlu0 %v7027, 64
    %v8034 = vpop.permute.xlu0 %8033
    %8035 = vrot.lane.b32.xlu0 %v7026, 64
    %v8036 = vpop.permute.xlu0 %8035
    %8037 = vrot.lane.b32.xlu0 %v7025, 64
    %v8038 = vpop.permute.xlu0 %8037
    %8039 = vrot.lane.b32.xlu0 %v7024, 64
    %v8040 = vpop.permute.xlu0 %8039
    %8041 = vrot.lane.b32.xlu0 %v7023, 64
    %v8042 = vpop.permute.xlu0 %8041
    %8043 = vrot.lane.b32.xlu0 %v7022, 64
    %v8044 = vpop.permute.xlu0 %8043
    %8045 = vrot.lane.b32.xlu0 %v7021, 64
    %v8046 = vpop.permute.xlu0 %8045
    %8047 = vrot.lane.b32.xlu0 %v7020, 64
    %v8048 = vpop.permute.xlu0 %8047
    %8049 = vrot.lane.b32.xlu0 %v7019, 64
    %v8050 = vpop.permute.xlu0 %8049
    %8051 = vrot.lane.b32.xlu0 %v7018, 64
    %v8052 = vpop.permute.xlu0 %8051
    %8053 = vrot.lane.b32.xlu0 %v7017, 64
    %v8054 = vpop.permute.xlu0 %8053
    %8055 = vrot.lane.b32.xlu0 %v7016, 64
    %v8056 = vpop.permute.xlu0 %8055
    %8057 = vrot.lane.b32.xlu0 %v7015, 64
    %v8058 = vpop.permute.xlu0 %8057
    %8059 = vrot.lane.b32.xlu0 %v7014, 64
    %v8060 = vpop.permute.xlu0 %8059
    %8061 = vrot.lane.b32.xlu0 %v7013, 64
    %v8062 = vpop.permute.xlu0 %8061
    %8063 = vrot.lane.b32.xlu0 %v7012, 64
    %v8064 = vpop.permute.xlu0 %8063
    %8065 = vrot.lane.b32.xlu0 %v7011, 64
    %v8066 = vpop.permute.xlu0 %8065
    %v8131 = vsel %vm183, %v7811, %v7940
    %v8132 = vsel %vm183, %v7874, %v7942
    %v8133 = vsel %vm183, %v7873, %v7944
    %v8134 = vsel %vm183, %v7872, %v7946
    %v8135 = vsel %vm183, %v7871, %v7948
    %v8136 = vsel %vm183, %v7870, %v7950
    %v8137 = vsel %vm183, %v7869, %v7952
    %v8138 = vsel %vm183, %v7868, %v7954
    %v8139 = vsel %vm183, %v7867, %v7956
    %v8140 = vsel %vm183, %v7866, %v7958
    %v8141 = vsel %vm183, %v7865, %v7960
    %v8142 = vsel %vm183, %v7864, %v7962
    %v8143 = vsel %vm183, %v7863, %v7964
    %v8144 = vsel %vm183, %v7862, %v7966
    %v8145 = vsel %vm183, %v7861, %v7968
    %v8146 = vsel %vm183, %v7860, %v7970
    %v8147 = vsel %vm183, %v7859, %v7972
    %v8148 = vsel %vm183, %v7858, %v7974
    %v8149 = vsel %vm183, %v7857, %v7976
    %v8150 = vsel %vm183, %v7856, %v7978
    %v8151 = vsel %vm183, %v7855, %v7980
    %v8152 = vsel %vm183, %v7854, %v7982
    %v8153 = vsel %vm183, %v7853, %v7984
    %v8154 = vsel %vm183, %v7852, %v7986
    %v8155 = vsel %vm183, %v7851, %v7988
    %v8156 = vsel %vm183, %v7850, %v7990
    %v8157 = vsel %vm183, %v7849, %v7992
    %v8158 = vsel %vm183, %v7848, %v7994
    %v8159 = vsel %vm183, %v7847, %v7996
    %v8160 = vsel %vm183, %v7846, %v7998
    %v8161 = vsel %vm183, %v7845, %v8000
    %v8162 = vsel %vm183, %v7844, %v8002
    %v8163 = vsel %vm183, %v7843, %v8004
    %v8164 = vsel %vm183, %v7842, %v8006
    %v8165 = vsel %vm183, %v7841, %v8008
    %v8166 = vsel %vm183, %v7840, %v8010
    %v8167 = vsel %vm183, %v7839, %v8012
    %v8168 = vsel %vm183, %v7838, %v8014
    %v8169 = vsel %vm183, %v7837, %v8016
    %v8170 = vsel %vm183, %v7836, %v8018
    %v8171 = vsel %vm183, %v7835, %v8020
    %v8172 = vsel %vm183, %v7834, %v8022
    %v8173 = vsel %vm183, %v7833, %v8024
    %v8174 = vsel %vm183, %v7832, %v8026
    %v8175 = vsel %vm183, %v7831, %v8028
    %v8176 = vsel %vm183, %v7830, %v8030
    %v8177 = vsel %vm183, %v7829, %v8032
    %v8178 = vsel %vm183, %v7828, %v8034
    %v8179 = vsel %vm183, %v7827, %v8036
    %v8180 = vsel %vm183, %v7826, %v8038
    %v8181 = vsel %vm183, %v7825, %v8040
    %v8182 = vsel %vm183, %v7824, %v8042
    %v8183 = vsel %vm183, %v7823, %v8044
    %v8184 = vsel %vm183, %v7822, %v8046
    %v8185 = vsel %vm183, %v7821, %v8048
    %v8186 = vsel %vm183, %v7820, %v8050
    %v8187 = vsel %vm183, %v7819, %v8052
    %v8188 = vsel %vm183, %v7818, %v8054
    %v8189 = vsel %vm183, %v7817, %v8056
    %v8190 = vsel %vm183, %v7816, %v8058
    %v8191 = vsel %vm183, %v7815, %v8060
    %v8192 = vsel %vm183, %v7814, %v8062
    %v8193 = vsel %vm183, %v7813, %v8064
    %v8194 = vsel %vm183, %v7812, %v8066
    %v8195 = vpack.c.bf16 %v8132, %v8131
    %v8196 = vpack.c.bf16 %v8134, %v8133
    %v8197 = vpack.c.bf16 %v8136, %v8135
    %v8198 = vpack.c.bf16 %v8138, %v8137
    %v8199 = vpack.c.bf16 %v8140, %v8139
    %v8200 = vpack.c.bf16 %v8142, %v8141
    %v8201 = vpack.c.bf16 %v8144, %v8143
    %v8202 = vpack.c.bf16 %v8146, %v8145
    %v8203 = vpack.c.bf16 %v8148, %v8147
    %v8204 = vpack.c.bf16 %v8150, %v8149
    %v8205 = vpack.c.bf16 %v8152, %v8151
    %v8206 = vpack.c.bf16 %v8154, %v8153
    %v8207 = vpack.c.bf16 %v8156, %v8155
    %v8208 = vpack.c.bf16 %v8158, %v8157
    %v8209 = vpack.c.bf16 %v8160, %v8159
    %v8210 = vpack.c.bf16 %v8162, %v8161
    %v8211 = vpack.c.bf16 %v8164, %v8163
    %v8212 = vpack.c.bf16 %v8166, %v8165
    %v8213 = vpack.c.bf16 %v8168, %v8167
    %v8214 = vpack.c.bf16 %v8170, %v8169
    %v8215 = vpack.c.bf16 %v8172, %v8171
    %v8216 = vpack.c.bf16 %v8174, %v8173
    %v8217 = vpack.c.bf16 %v8176, %v8175
    %v8218 = vpack.c.bf16 %v8178, %v8177
    %v8219 = vpack.c.bf16 %v8180, %v8179
    %v8220 = vpack.c.bf16 %v8182, %v8181
    %v8221 = vpack.c.bf16 %v8184, %v8183
    %v8222 = vpack.c.bf16 %v8186, %v8185
    %v8223 = vpack.c.bf16 %v8188, %v8187
    %v8224 = vpack.c.bf16 %v8190, %v8189
    %v8225 = vpack.c.bf16 %v8192, %v8191
    %v8226 = vpack.c.bf16 %v8194, %v8193
    %v8227 = vld [vmem:[%s2571] sm:$0xf]
    %v8228 = vld [vmem:[%s2571 + $0x4] sm:$0xf]
    %v8229 = vld [vmem:[%s2571 + $0x8] sm:$0xf]
    %v8230 = vld [vmem:[%s2571 + $0xc] sm:$0xf]
    %v8231 = vld [vmem:[%s2571 + $0x10] sm:$0xf]
    %v8232 = vld [vmem:[%s2571 + $0x14] sm:$0xf]
    %v8233 = vld [vmem:[%s2571 + $0x18] sm:$0xf]
    %v8234 = vld [vmem:[%s2571 + $0x1c] sm:$0xf]
    %v8235 = vld [vmem:[%s2571 + $0x20] sm:$0xf]
    %v8236 = vld [vmem:[%s2571 + $0x24] sm:$0xf]
    %v8237 = vld [vmem:[%s2571 + $0x28] sm:$0xf]
    %v8238 = vld [vmem:[%s2571 + $0x2c] sm:$0xf]
    %v8239 = vld [vmem:[%s2571 + $0x30] sm:$0xf]
    %v8240 = vld [vmem:[%s2571 + $0x34] sm:$0xf]
    %v8241 = vld [vmem:[%s2571 + $0x38] sm:$0xf]
    %v8242 = vld [vmem:[%s2571 + $0x3c] sm:$0xf]
    %v8243 = vld [vmem:[%s2571 + $0x40] sm:$0xf]
    %v8244 = vld [vmem:[%s2571 + $0x44] sm:$0xf]
    %v8245 = vld [vmem:[%s2571 + $0x48] sm:$0xf]
    %v8246 = vld [vmem:[%s2571 + $0x4c] sm:$0xf]
    %v8247 = vld [vmem:[%s2571 + $0x50] sm:$0xf]
    %v8248 = vld [vmem:[%s2571 + $0x54] sm:$0xf]
    %v8249 = vld [vmem:[%s2571 + $0x58] sm:$0xf]
    %v8250 = vld [vmem:[%s2571 + $0x5c] sm:$0xf]
    %v8251 = vld [vmem:[%s2571 + $0x60] sm:$0xf]
    %v8252 = vld [vmem:[%s2571 + $0x64] sm:$0xf]
    %v8253 = vld [vmem:[%s2571 + $0x68] sm:$0xf]
    %v8254 = vld [vmem:[%s2571 + $0x6c] sm:$0xf]
    %v8255 = vld [vmem:[%s2571 + $0x70] sm:$0xf]
    %v8256 = vld [vmem:[%s2571 + $0x74] sm:$0xf]
    %v8257 = vld [vmem:[%s2571 + $0x78] sm:$0xf]
    %v8258 = vld [vmem:[%s2571 + $0x7c] sm:$0xf]
    %v8259 = vld [vmem:[%s2571 + $0x80] sm:$0xf]
    %v8260 = vld [vmem:[%s2571 + $0x84] sm:$0xf]
    %v8261 = vld [vmem:[%s2571 + $0x88] sm:$0xf]
    %v8262 = vld [vmem:[%s2571 + $0x8c] sm:$0xf]
    %v8263 = vld [vmem:[%s2571 + $0x90] sm:$0xf]
    %v8264 = vld [vmem:[%s2571 + $0x94] sm:$0xf]
    %v8265 = vld [vmem:[%s2571 + $0x98] sm:$0xf]
    %v8266 = vld [vmem:[%s2571 + $0x9c] sm:$0xf]
    %v8267 = vld [vmem:[%s2571 + $0xa0] sm:$0xf]
    %v8268 = vld [vmem:[%s2571 + $0xa4] sm:$0xf]
    %v8269 = vld [vmem:[%s2571 + $0xa8] sm:$0xf]
    %v8270 = vld [vmem:[%s2571 + $0xac] sm:$0xf]
    %v8271 = vld [vmem:[%s2571 + $0xb0] sm:$0xf]
    %v8272 = vld [vmem:[%s2571 + $0xb4] sm:$0xf]
    %v8273 = vld [vmem:[%s2571 + $0xb8] sm:$0xf]
    %v8274 = vld [vmem:[%s2571 + $0xbc] sm:$0xf]
    %v8275 = vld [vmem:[%s2571 + $0xc0] sm:$0xf]
    %v8276 = vld [vmem:[%s2571 + $0xc4] sm:$0xf]
    %v8277 = vld [vmem:[%s2571 + $0xc8] sm:$0xf]
    %v8278 = vld [vmem:[%s2571 + $0xcc] sm:$0xf]
    %v8279 = vld [vmem:[%s2571 + $0xd0] sm:$0xf]
    %v8280 = vld [vmem:[%s2571 + $0xd4] sm:$0xf]
    %v8281 = vld [vmem:[%s2571 + $0xd8] sm:$0xf]
    %v8282 = vld [vmem:[%s2571 + $0xdc] sm:$0xf]
    %v8283 = vld [vmem:[%s2571 + $0xe0] sm:$0xf]
    %v8284 = vld [vmem:[%s2571 + $0xe4] sm:$0xf]
    %v8285 = vld [vmem:[%s2571 + $0xe8] sm:$0xf]
    %v8286 = vld [vmem:[%s2571 + $0xec] sm:$0xf]
    %v8287 = vld [vmem:[%s2571 + $0xf0] sm:$0xf]
    %v8288 = vld [vmem:[%s2571 + $0xf4] sm:$0xf]
    %v8289 = vld [vmem:[%s2571 + $0xf8] sm:$0xf]
    %v8290 = vld [vmem:[%s2571 + $0xfc] sm:$0xf]
    %v8355 = vunpack.c.l.b16 %v8227
    %v8356 = vunpack.c.l.b16 %v8228
    %v8357 = vunpack.c.l.b16 %v8229
    %v8358 = vunpack.c.l.b16 %v8230
    %v8359 = vunpack.c.l.b16 %v8231
    %v8360 = vunpack.c.l.b16 %v8232
    %v8361 = vunpack.c.l.b16 %v8233
    %v8362 = vunpack.c.l.b16 %v8234
    %v8363 = vunpack.c.l.b16 %v8235
    %v8364 = vunpack.c.l.b16 %v8236
    %v8365 = vunpack.c.l.b16 %v8237
    %v8366 = vunpack.c.l.b16 %v8238
    %v8367 = vunpack.c.l.b16 %v8239
    %v8368 = vunpack.c.l.b16 %v8240
    %v8369 = vunpack.c.l.b16 %v8241
    %v8370 = vunpack.c.l.b16 %v8242
    %v8371 = vunpack.c.l.b16 %v8243
    %v8372 = vunpack.c.l.b16 %v8244
    %v8373 = vunpack.c.l.b16 %v8245
    %v8374 = vunpack.c.l.b16 %v8246
    %v8375 = vunpack.c.l.b16 %v8247
    %v8376 = vunpack.c.l.b16 %v8248
    %v8377 = vunpack.c.l.b16 %v8249
    %v8378 = vunpack.c.l.b16 %v8250
    %v8379 = vunpack.c.l.b16 %v8251
    %v8380 = vunpack.c.l.b16 %v8252
    %v8381 = vunpack.c.l.b16 %v8253
    %v8382 = vunpack.c.l.b16 %v8254
    %v8383 = vunpack.c.l.b16 %v8255
    %v8384 = vunpack.c.l.b16 %v8256
    %v8385 = vunpack.c.l.b16 %v8257
    %v8386 = vunpack.c.l.b16 %v8258
    %v8387 = vunpack.c.l.b16 %v8259
    %v8388 = vunpack.c.l.b16 %v8260
    %v8389 = vunpack.c.l.b16 %v8261
    %v8390 = vunpack.c.l.b16 %v8262
    %v8391 = vunpack.c.l.b16 %v8263
    %v8392 = vunpack.c.l.b16 %v8264
    %v8393 = vunpack.c.l.b16 %v8265
    %v8394 = vunpack.c.l.b16 %v8266
    %v8395 = vunpack.c.l.b16 %v8267
    %v8396 = vunpack.c.l.b16 %v8268
    %v8397 = vunpack.c.l.b16 %v8269
    %v8398 = vunpack.c.l.b16 %v8270
    %v8399 = vunpack.c.l.b16 %v8271
    %v8400 = vunpack.c.l.b16 %v8272
    %v8401 = vunpack.c.l.b16 %v8273
    %v8402 = vunpack.c.l.b16 %v8274
    %v8403 = vunpack.c.l.b16 %v8275
    %v8404 = vunpack.c.l.b16 %v8276
    %v8405 = vunpack.c.l.b16 %v8277
    %v8406 = vunpack.c.l.b16 %v8278
    %v8407 = vunpack.c.l.b16 %v8279
    %v8408 = vunpack.c.l.b16 %v8280
    %v8409 = vunpack.c.l.b16 %v8281
    %v8410 = vunpack.c.l.b16 %v8282
    %v8411 = vunpack.c.l.b16 %v8283
    %v8412 = vunpack.c.l.b16 %v8284
    %v8413 = vunpack.c.l.b16 %v8285
    %v8414 = vunpack.c.l.b16 %v8286
    %v8415 = vunpack.c.l.b16 %v8287
    %v8416 = vunpack.c.l.b16 %v8288
    %v8417 = vunpack.c.l.b16 %v8289
    %v8418 = vunpack.c.l.b16 %v8290
    %v8419 = vpack.c.b16 %v8356, %v8355
    %v8420 = vpack.c.b16 %v8358, %v8357
    %v8421 = vpack.c.b16 %v8360, %v8359
    %v8422 = vpack.c.b16 %v8362, %v8361
    %v8423 = vpack.c.b16 %v8364, %v8363
    %v8424 = vpack.c.b16 %v8366, %v8365
    %v8425 = vpack.c.b16 %v8368, %v8367
    %v8426 = vpack.c.b16 %v8370, %v8369
    %v8427 = vpack.c.b16 %v8372, %v8371
    %v8428 = vpack.c.b16 %v8374, %v8373
    %v8429 = vpack.c.b16 %v8376, %v8375
    %v8430 = vpack.c.b16 %v8378, %v8377
    %v8431 = vpack.c.b16 %v8380, %v8379
    %v8432 = vpack.c.b16 %v8382, %v8381
    %v8433 = vpack.c.b16 %v8384, %v8383
    %v8434 = vpack.c.b16 %v8386, %v8385
    %v8435 = vpack.c.b16 %v8388, %v8387
    %v8436 = vpack.c.b16 %v8390, %v8389
    %v8437 = vpack.c.b16 %v8392, %v8391
    %v8438 = vpack.c.b16 %v8394, %v8393
    %v8439 = vpack.c.b16 %v8396, %v8395
    %v8440 = vpack.c.b16 %v8398, %v8397
    %v8441 = vpack.c.b16 %v8400, %v8399
    %v8442 = vpack.c.b16 %v8402, %v8401
    %v8443 = vpack.c.b16 %v8404, %v8403
    %v8444 = vpack.c.b16 %v8406, %v8405
    %v8445 = vpack.c.b16 %v8408, %v8407
    %v8446 = vpack.c.b16 %v8410, %v8409
    %v8447 = vpack.c.b16 %v8412, %v8411
    %v8448 = vpack.c.b16 %v8414, %v8413
    %v8449 = vpack.c.b16 %v8416, %v8415
    %v8450 = vpack.c.b16 %v8418, %v8417
    %v8483 = vmul.bf16 %v8195, %v8419
    %v8484 = vmul.bf16 %v8196, %v8420
    %v8485 = vmul.bf16 %v8197, %v8421
    %v8486 = vmul.bf16 %v8198, %v8422
    %v8487 = vmul.bf16 %v8199, %v8423
    %v8488 = vmul.bf16 %v8200, %v8424
    %v8489 = vmul.bf16 %v8201, %v8425
    %v8490 = vmul.bf16 %v8202, %v8426
    %v8491 = vmul.bf16 %v8203, %v8427
    %v8492 = vmul.bf16 %v8204, %v8428
    %v8493 = vmul.bf16 %v8205, %v8429
    %v8494 = vmul.bf16 %v8206, %v8430
    %v8495 = vmul.bf16 %v8207, %v8431
    %v8496 = vmul.bf16 %v8208, %v8432
    %v8497 = vmul.bf16 %v8209, %v8433
    %v8498 = vmul.bf16 %v8210, %v8434
    %v8499 = vmul.bf16 %v8211, %v8435
    %v8500 = vmul.bf16 %v8212, %v8436
    %v8501 = vmul.bf16 %v8213, %v8437
    %v8502 = vmul.bf16 %v8214, %v8438
    %v8503 = vmul.bf16 %v8215, %v8439
    %v8504 = vmul.bf16 %v8216, %v8440
    %v8505 = vmul.bf16 %v8217, %v8441
    %v8506 = vmul.bf16 %v8218, %v8442
    %v8507 = vmul.bf16 %v8219, %v8443
    %v8508 = vmul.bf16 %v8220, %v8444
    %v8509 = vmul.bf16 %v8221, %v8445
    %v8510 = vmul.bf16 %v8222, %v8446
    %v8511 = vmul.bf16 %v8223, %v8447
    %v8512 = vmul.bf16 %v8224, %v8448
    %v8513 = vmul.bf16 %v8225, %v8449
    %v8514 = vmul.bf16 %v8226, %v8450
    %8515 = vst [vmem:[#allocation2 + $0x8] sm:$0xff] %v8483
    %8516 = vst [vmem:[#allocation2 + $0x30] sm:$0xff] %v8484
    %8517 = vst [vmem:[#allocation2 + $0x58] sm:$0xff] %v8485
    %8518 = vst [vmem:[#allocation2 + $0x80] sm:$0xff] %v8486
    %8519 = vst [vmem:[#allocation2 + $0xa8] sm:$0xff] %v8487
    %8520 = vst [vmem:[#allocation2 + $0xd0] sm:$0xff] %v8488
    %8521 = vst [vmem:[#allocation2 + $0xf8] sm:$0xff] %v8489
    %8522 = vst [vmem:[#allocation2 + $0x120] sm:$0xff] %v8490
    %8523 = vst [vmem:[#allocation2 + $0x148] sm:$0xff] %v8491
    %8524 = vst [vmem:[#allocation2 + $0x170] sm:$0xff] %v8492
    %8525 = vst [vmem:[#allocation2 + $0x198] sm:$0xff] %v8493
    %8526 = vst [vmem:[#allocation2 + $0x1c0] sm:$0xff] %v8494
    %8527 = vst [vmem:[#allocation2 + $0x1e8] sm:$0xff] %v8495
    %8528 = vst [vmem:[#allocation2 + $0x210] sm:$0xff] %v8496
    %8529 = vst [vmem:[#allocation2 + $0x238] sm:$0xff] %v8497
    %8530 = vst [vmem:[#allocation2 + $0x260] sm:$0xff] %v8498
    %8531 = vst [vmem:[#allocation2 + $0x288] sm:$0xff] %v8499
    %8532 = vst [vmem:[#allocation2 + $0x2b0] sm:$0xff] %v8500
    %8533 = vst [vmem:[#allocation2 + $0x2d8] sm:$0xff] %v8501
    %8534 = vst [vmem:[#allocation2 + $0x300] sm:$0xff] %v8502
    %8535 = vst [vmem:[#allocation2 + $0x328] sm:$0xff] %v8503
    %8536 = vst [vmem:[#allocation2 + $0x350] sm:$0xff] %v8504
    %8537 = vst [vmem:[#allocation2 + $0x378] sm:$0xff] %v8505
    %8538 = vst [vmem:[#allocation2 + $0x3a0] sm:$0xff] %v8506
    %8539 = vst [vmem:[#allocation2 + $0x3c8] sm:$0xff] %v8507
    %8540 = vst [vmem:[#allocation2 + $0x3f0] sm:$0xff] %v8508
    %8541 = vst [vmem:[#allocation2 + $0x418] sm:$0xff] %v8509
    %8542 = vst [vmem:[#allocation2 + $0x440] sm:$0xff] %v8510
    %8543 = vst [vmem:[#allocation2 + $0x468] sm:$0xff] %v8511
    %8544 = vst [vmem:[#allocation2 + $0x490] sm:$0xff] %v8512
    %8545 = vst [vmem:[#allocation2 + $0x4b8] sm:$0xff] %v8513
    %8546 = vst [vmem:[#allocation2 + $0x4e0] sm:$0xff] %v8514
    %8611 = vrot.lane.b32.xlu0 %v7873, 64
    %v8612 = vpop.permute.xlu0 %8611
    %8613 = vrot.lane.b32.xlu0 %v7872, 64
    %v8614 = vpop.permute.xlu0 %8613
    %8615 = vrot.lane.b32.xlu0 %v7871, 64
    %v8616 = vpop.permute.xlu0 %8615
    %8617 = vrot.lane.b32.xlu0 %v7870, 64
    %v8618 = vpop.permute.xlu0 %8617
    %8619 = vrot.lane.b32.xlu0 %v7869, 64
    %v8620 = vpop.permute.xlu0 %8619
    %8621 = vrot.lane.b32.xlu0 %v7868, 64
    %v8622 = vpop.permute.xlu0 %8621
    %8623 = vrot.lane.b32.xlu0 %v7867, 64
    %v8624 = vpop.permute.xlu0 %8623
    %8625 = vrot.lane.b32.xlu0 %v7866, 64
    %v8626 = vpop.permute.xlu0 %8625
    %8627 = vrot.lane.b32.xlu0 %v7865, 64
    %v8628 = vpop.permute.xlu0 %8627
    %8629 = vrot.lane.b32.xlu0 %v7864, 64
    %v8630 = vpop.permute.xlu0 %8629
    %8631 = vrot.lane.b32.xlu0 %v7863, 64
    %v8632 = vpop.permute.xlu0 %8631
    %8633 = vrot.lane.b32.xlu0 %v7862, 64
    %v8634 = vpop.permute.xlu0 %8633
    %8635 = vrot.lane.b32.xlu0 %v7861, 64
    %v8636 = vpop.permute.xlu0 %8635
    %8637 = vrot.lane.b32.xlu0 %v7860, 64
    %v8638 = vpop.permute.xlu0 %8637
    %8639 = vrot.lane.b32.xlu0 %v7859, 64
    %v8640 = vpop.permute.xlu0 %8639
    %8641 = vrot.lane.b32.xlu0 %v7858, 64
    %v8642 = vpop.permute.xlu0 %8641
    %8643 = vrot.lane.b32.xlu0 %v7857, 64
    %v8644 = vpop.permute.xlu0 %8643
    %8645 = vrot.lane.b32.xlu0 %v7856, 64
    %v8646 = vpop.permute.xlu0 %8645
    %8647 = vrot.lane.b32.xlu0 %v7855, 64
    %v8648 = vpop.permute.xlu0 %8647
    %8649 = vrot.lane.b32.xlu0 %v7854, 64
    %v8650 = vpop.permute.xlu0 %8649
    %8651 = vrot.lane.b32.xlu0 %v7853, 64
    %v8652 = vpop.permute.xlu0 %8651
    %8653 = vrot.lane.b32.xlu0 %v7852, 64
    %v8654 = vpop.permute.xlu0 %8653
    %8655 = vrot.lane.b32.xlu0 %v7851, 64
    %v8656 = vpop.permute.xlu0 %8655
    %8657 = vrot.lane.b32.xlu0 %v7850, 64
    %v8658 = vpop.permute.xlu0 %8657
    %8659 = vrot.lane.b32.xlu0 %v7849, 64
    %v8660 = vpop.permute.xlu0 %8659
    %8661 = vrot.lane.b32.xlu0 %v7848, 64
    %v8662 = vpop.permute.xlu0 %8661
    %8663 = vrot.lane.b32.xlu0 %v7847, 64
    %v8664 = vpop.permute.xlu0 %8663
    %8665 = vrot.lane.b32.xlu0 %v7846, 64
    %v8666 = vpop.permute.xlu0 %8665
    %8667 = vrot.lane.b32.xlu0 %v7845, 64
    %v8668 = vpop.permute.xlu0 %8667
    %8669 = vrot.lane.b32.xlu0 %v7844, 64
    %v8670 = vpop.permute.xlu0 %8669
    %8671 = vrot.lane.b32.xlu0 %v7843, 64
    %v8672 = vpop.permute.xlu0 %8671
    %8673 = vrot.lane.b32.xlu0 %v7842, 64
    %v8674 = vpop.permute.xlu0 %8673
    %8675 = vrot.lane.b32.xlu0 %v7841, 64
    %v8676 = vpop.permute.xlu0 %8675
    %8677 = vrot.lane.b32.xlu0 %v7840, 64
    %v8678 = vpop.permute.xlu0 %8677
    %8679 = vrot.lane.b32.xlu0 %v7839, 64
    %v8680 = vpop.permute.xlu0 %8679
    %8681 = vrot.lane.b32.xlu0 %v7838, 64
    %v8682 = vpop.permute.xlu0 %8681
    %8683 = vrot.lane.b32.xlu0 %v7837, 64
    %v8684 = vpop.permute.xlu0 %8683
    %8685 = vrot.lane.b32.xlu0 %v7836, 64
    %v8686 = vpop.permute.xlu0 %8685
    %8687 = vrot.lane.b32.xlu0 %v7835, 64
    %v8688 = vpop.permute.xlu0 %8687
    %8689 = vrot.lane.b32.xlu0 %v7834, 64
    %v8690 = vpop.permute.xlu0 %8689
    %8691 = vrot.lane.b32.xlu0 %v7833, 64
    %v8692 = vpop.permute.xlu0 %8691
    %8693 = vrot.lane.b32.xlu0 %v7832, 64
    %v8694 = vpop.permute.xlu0 %8693
    %8695 = vrot.lane.b32.xlu0 %v7831, 64
    %v8696 = vpop.permute.xlu0 %8695
    %8697 = vrot.lane.b32.xlu0 %v7830, 64
    %v8698 = vpop.permute.xlu0 %8697
    %8699 = vrot.lane.b32.xlu0 %v7829, 64
    %v8700 = vpop.permute.xlu0 %8699
    %8701 = vrot.lane.b32.xlu0 %v7828, 64
    %v8702 = vpop.permute.xlu0 %8701
    %8703 = vrot.lane.b32.xlu0 %v7827, 64
    %v8704 = vpop.permute.xlu0 %8703
    %8705 = vrot.lane.b32.xlu0 %v7826, 64
    %v8706 = vpop.permute.xlu0 %8705
    %8707 = vrot.lane.b32.xlu0 %v7825, 64
    %v8708 = vpop.permute.xlu0 %8707
    %8709 = vrot.lane.b32.xlu0 %v7824, 64
    %v8710 = vpop.permute.xlu0 %8709
    %8711 = vrot.lane.b32.xlu0 %v7823, 64
    %v8712 = vpop.permute.xlu0 %8711
    %8713 = vrot.lane.b32.xlu0 %v7822, 64
    %v8714 = vpop.permute.xlu0 %8713
    %8715 = vrot.lane.b32.xlu0 %v7821, 64
    %v8716 = vpop.permute.xlu0 %8715
    %8717 = vrot.lane.b32.xlu0 %v7820, 64
    %v8718 = vpop.permute.xlu0 %8717
    %8719 = vrot.lane.b32.xlu0 %v7819, 64
    %v8720 = vpop.permute.xlu0 %8719
    %8721 = vrot.lane.b32.xlu0 %v7818, 64
    %v8722 = vpop.permute.xlu0 %8721
    %8723 = vrot.lane.b32.xlu0 %v7817, 64
    %v8724 = vpop.permute.xlu0 %8723
    %8725 = vrot.lane.b32.xlu0 %v7816, 64
    %v8726 = vpop.permute.xlu0 %8725
    %8727 = vrot.lane.b32.xlu0 %v7815, 64
    %v8728 = vpop.permute.xlu0 %8727
    %8729 = vrot.lane.b32.xlu0 %v7814, 64
    %v8730 = vpop.permute.xlu0 %8729
    %8731 = vrot.lane.b32.xlu0 %v7813, 64
    %v8732 = vpop.permute.xlu0 %8731
    %8733 = vrot.lane.b32.xlu0 %v7812, 64
    %v8734 = vpop.permute.xlu0 %8733
    %8735 = vrot.lane.b32.xlu0 %v7811, 64
    %v8736 = vpop.permute.xlu0 %8735
    %8737 = vrot.lane.b32.xlu0 %v7874, 64
    %v8738 = vpop.permute.xlu0 %8737
    %v8803 = vsel %vm183, %v6882, %v8612
    %v8804 = vsel %vm183, %v6883, %v8614
    %v8805 = vsel %vm183, %v6884, %v8616
    %v8806 = vsel %vm183, %v6885, %v8618
    %v8807 = vsel %vm183, %v6886, %v8620
    %v8808 = vsel %vm183, %v6887, %v8622
    %v8809 = vsel %vm183, %v6888, %v8624
    %v8810 = vsel %vm183, %v6889, %v8626
    %v8811 = vsel %vm183, %v6890, %v8628
    %v8812 = vsel %vm183, %v6891, %v8630
    %v8813 = vsel %vm183, %v6892, %v8632
    %v8814 = vsel %vm183, %v6893, %v8634
    %v8815 = vsel %vm183, %v6894, %v8636
    %v8816 = vsel %vm183, %v6895, %v8638
    %v8817 = vsel %vm183, %v6896, %v8640
    %v8818 = vsel %vm183, %v6897, %v8642
    %v8819 = vsel %vm183, %v6898, %v8644
    %v8820 = vsel %vm183, %v6899, %v8646
    %v8821 = vsel %vm183, %v6900, %v8648
    %v8822 = vsel %vm183, %v6901, %v8650
    %v8823 = vsel %vm183, %v6902, %v8652
    %v8824 = vsel %vm183, %v6903, %v8654
    %v8825 = vsel %vm183, %v6904, %v8656
    %v8826 = vsel %vm183, %v6905, %v8658
    %v8827 = vsel %vm183, %v6906, %v8660
    %v8828 = vsel %vm183, %v6907, %v8662
    %v8829 = vsel %vm183, %v6908, %v8664
    %v8830 = vsel %vm183, %v6909, %v8666
    %v8831 = vsel %vm183, %v6910, %v8668
    %v8832 = vsel %vm183, %v6911, %v8670
    %v8833 = vsel %vm183, %v6912, %v8672
    %v8834 = vsel %vm183, %v6913, %v8674
    %v8835 = vsel %vm183, %v6914, %v8676
    %v8836 = vsel %vm183, %v6915, %v8678
    %v8837 = vsel %vm183, %v6916, %v8680
    %v8838 = vsel %vm183, %v6917, %v8682
    %v8839 = vsel %vm183, %v6918, %v8684
    %v8840 = vsel %vm183, %v6919, %v8686
    %v8841 = vsel %vm183, %v6920, %v8688
    %v8842 = vsel %vm183, %v6921, %v8690
    %v8843 = vsel %vm183, %v6922, %v8692
    %v8844 = vsel %vm183, %v6923, %v8694
    %v8845 = vsel %vm183, %v6924, %v8696
    %v8846 = vsel %vm183, %v6925, %v8698
    %v8847 = vsel %vm183, %v6926, %v8700
    %v8848 = vsel %vm183, %v6927, %v8702
    %v8849 = vsel %vm183, %v6928, %v8704
    %v8850 = vsel %vm183, %v6929, %v8706
    %v8851 = vsel %vm183, %v6930, %v8708
    %v8852 = vsel %vm183, %v6931, %v8710
    %v8853 = vsel %vm183, %v6932, %v8712
    %v8854 = vsel %vm183, %v6933, %v8714
    %v8855 = vsel %vm183, %v6934, %v8716
    %v8856 = vsel %vm183, %v6935, %v8718
    %v8857 = vsel %vm183, %v6936, %v8720
    %v8858 = vsel %vm183, %v6937, %v8722
    %v8859 = vsel %vm183, %v6938, %v8724
    %v8860 = vsel %vm183, %v6939, %v8726
    %v8861 = vsel %vm183, %v6940, %v8728
    %v8862 = vsel %vm183, %v6941, %v8730
    %v8863 = vsel %vm183, %v6942, %v8732
    %v8864 = vsel %vm183, %v6943, %v8734
    %v8865 = vsel %vm183, %v6944, %v8736
    %v8866 = vsel %vm183, %v6945, %v8738
    %v8867 = vpack.c.bf16 %v8804, %v8803
    %v8868 = vpack.c.bf16 %v8806, %v8805
    %v8869 = vpack.c.bf16 %v8808, %v8807
    %v8870 = vpack.c.bf16 %v8810, %v8809
    %v8871 = vpack.c.bf16 %v8812, %v8811
    %v8872 = vpack.c.bf16 %v8814, %v8813
    %v8873 = vpack.c.bf16 %v8816, %v8815
    %v8874 = vpack.c.bf16 %v8818, %v8817
    %v8875 = vpack.c.bf16 %v8820, %v8819
    %v8876 = vpack.c.bf16 %v8822, %v8821
    %v8877 = vpack.c.bf16 %v8824, %v8823
    %v8878 = vpack.c.bf16 %v8826, %v8825
    %v8879 = vpack.c.bf16 %v8828, %v8827
    %v8880 = vpack.c.bf16 %v8830, %v8829
    %v8881 = vpack.c.bf16 %v8832, %v8831
    %v8882 = vpack.c.bf16 %v8834, %v8833
    %v8883 = vpack.c.bf16 %v8836, %v8835
    %v8884 = vpack.c.bf16 %v8838, %v8837
    %v8885 = vpack.c.bf16 %v8840, %v8839
    %v8886 = vpack.c.bf16 %v8842, %v8841
    %v8887 = vpack.c.bf16 %v8844, %v8843
    %v8888 = vpack.c.bf16 %v8846, %v8845
    %v8889 = vpack.c.bf16 %v8848, %v8847
    %v8890 = vpack.c.bf16 %v8850, %v8849
    %v8891 = vpack.c.bf16 %v8852, %v8851
    %v8892 = vpack.c.bf16 %v8854, %v8853
    %v8893 = vpack.c.bf16 %v8856, %v8855
    %v8894 = vpack.c.bf16 %v8858, %v8857
    %v8895 = vpack.c.bf16 %v8860, %v8859
    %v8896 = vpack.c.bf16 %v8862, %v8861
    %v8897 = vpack.c.bf16 %v8864, %v8863
    %v8898 = vpack.c.bf16 %v8866, %v8865
    %v8899 = vld [vmem:[%s3244] sm:$0xf]
    %v8900 = vld [vmem:[%s3244 + $0x4] sm:$0xf]
    %v8901 = vld [vmem:[%s3244 + $0x8] sm:$0xf]
    %v8902 = vld [vmem:[%s3244 + $0xc] sm:$0xf]
    %v8903 = vld [vmem:[%s3244 + $0x10] sm:$0xf]
    %v8904 = vld [vmem:[%s3244 + $0x14] sm:$0xf]
    %v8905 = vld [vmem:[%s3244 + $0x18] sm:$0xf]
    %v8906 = vld [vmem:[%s3244 + $0x1c] sm:$0xf]
    %v8907 = vld [vmem:[%s3244 + $0x20] sm:$0xf]
    %v8908 = vld [vmem:[%s3244 + $0x24] sm:$0xf]
    %v8909 = vld [vmem:[%s3244 + $0x28] sm:$0xf]
    %v8910 = vld [vmem:[%s3244 + $0x2c] sm:$0xf]
    %v8911 = vld [vmem:[%s3244 + $0x30] sm:$0xf]
    %v8912 = vld [vmem:[%s3244 + $0x34] sm:$0xf]
    %v8913 = vld [vmem:[%s3244 + $0x38] sm:$0xf]
    %v8914 = vld [vmem:[%s3244 + $0x3c] sm:$0xf]
    %v8915 = vld [vmem:[%s3244 + $0x40] sm:$0xf]
    %v8916 = vld [vmem:[%s3244 + $0x44] sm:$0xf]
    %v8917 = vld [vmem:[%s3244 + $0x48] sm:$0xf]
    %v8918 = vld [vmem:[%s3244 + $0x4c] sm:$0xf]
    %v8919 = vld [vmem:[%s3244 + $0x50] sm:$0xf]
    %v8920 = vld [vmem:[%s3244 + $0x54] sm:$0xf]
    %v8921 = vld [vmem:[%s3244 + $0x58] sm:$0xf]
    %v8922 = vld [vmem:[%s3244 + $0x5c] sm:$0xf]
    %v8923 = vld [vmem:[%s3244 + $0x60] sm:$0xf]
    %v8924 = vld [vmem:[%s3244 + $0x64] sm:$0xf]
    %v8925 = vld [vmem:[%s3244 + $0x68] sm:$0xf]
    %v8926 = vld [vmem:[%s3244 + $0x6c] sm:$0xf]
    %v8927 = vld [vmem:[%s3244 + $0x70] sm:$0xf]
    %v8928 = vld [vmem:[%s3244 + $0x74] sm:$0xf]
    %v8929 = vld [vmem:[%s3244 + $0x78] sm:$0xf]
    %v8930 = vld [vmem:[%s3244 + $0x7c] sm:$0xf]
    %v8931 = vld [vmem:[%s3244 + $0x80] sm:$0xf]
    %v8932 = vld [vmem:[%s3244 + $0x84] sm:$0xf]
    %v8933 = vld [vmem:[%s3244 + $0x88] sm:$0xf]
    %v8934 = vld [vmem:[%s3244 + $0x8c] sm:$0xf]
    %v8935 = vld [vmem:[%s3244 + $0x90] sm:$0xf]
    %v8936 = vld [vmem:[%s3244 + $0x94] sm:$0xf]
    %v8937 = vld [vmem:[%s3244 + $0x98] sm:$0xf]
    %v8938 = vld [vmem:[%s3244 + $0x9c] sm:$0xf]
    %v8939 = vld [vmem:[%s3244 + $0xa0] sm:$0xf]
    %v8940 = vld [vmem:[%s3244 + $0xa4] sm:$0xf]
    %v8941 = vld [vmem:[%s3244 + $0xa8] sm:$0xf]
    %v8942 = vld [vmem:[%s3244 + $0xac] sm:$0xf]
    %v8943 = vld [vmem:[%s3244 + $0xb0] sm:$0xf]
    %v8944 = vld [vmem:[%s3244 + $0xb4] sm:$0xf]
    %v8945 = vld [vmem:[%s3244 + $0xb8] sm:$0xf]
    %v8946 = vld [vmem:[%s3244 + $0xbc] sm:$0xf]
    %v8947 = vld [vmem:[%s3244 + $0xc0] sm:$0xf]
    %v8948 = vld [vmem:[%s3244 + $0xc4] sm:$0xf]
    %v8949 = vld [vmem:[%s3244 + $0xc8] sm:$0xf]
    %v8950 = vld [vmem:[%s3244 + $0xcc] sm:$0xf]
    %v8951 = vld [vmem:[%s3244 + $0xd0] sm:$0xf]
    %v8952 = vld [vmem:[%s3244 + $0xd4] sm:$0xf]
    %v8953 = vld [vmem:[%s3244 + $0xd8] sm:$0xf]
    %v8954 = vld [vmem:[%s3244 + $0xdc] sm:$0xf]
    %v8955 = vld [vmem:[%s3244 + $0xe0] sm:$0xf]
    %v8956 = vld [vmem:[%s3244 + $0xe4] sm:$0xf]
    %v8957 = vld [vmem:[%s3244 + $0xe8] sm:$0xf]
    %v8958 = vld [vmem:[%s3244 + $0xec] sm:$0xf]
    %v8959 = vld [vmem:[%s3244 + $0xf0] sm:$0xf]
    %v8960 = vld [vmem:[%s3244 + $0xf4] sm:$0xf]
    %v8961 = vld [vmem:[%s3244 + $0xf8] sm:$0xf]
    %v8962 = vld [vmem:[%s3244 + $0xfc] sm:$0xf]
    %v9027 = vunpack.c.l.b16 %v8899
    %v9028 = vunpack.c.l.b16 %v8900
    %v9029 = vunpack.c.l.b16 %v8901
    %v9030 = vunpack.c.l.b16 %v8902
    %v9031 = vunpack.c.l.b16 %v8903
    %v9032 = vunpack.c.l.b16 %v8904
    %v9033 = vunpack.c.l.b16 %v8905
    %v9034 = vunpack.c.l.b16 %v8906
    %v9035 = vunpack.c.l.b16 %v8907
    %v9036 = vunpack.c.l.b16 %v8908
    %v9037 = vunpack.c.l.b16 %v8909
    %v9038 = vunpack.c.l.b16 %v8910
    %v9039 = vunpack.c.l.b16 %v8911
    %v9040 = vunpack.c.l.b16 %v8912
    %v9041 = vunpack.c.l.b16 %v8913
    %v9042 = vunpack.c.l.b16 %v8914
    %v9043 = vunpack.c.l.b16 %v8915
    %v9044 = vunpack.c.l.b16 %v8916
    %v9045 = vunpack.c.l.b16 %v8917
    %v9046 = vunpack.c.l.b16 %v8918
    %v9047 = vunpack.c.l.b16 %v8919
    %v9048 = vunpack.c.l.b16 %v8920
    %v9049 = vunpack.c.l.b16 %v8921
    %v9050 = vunpack.c.l.b16 %v8922
    %v9051 = vunpack.c.l.b16 %v8923
    %v9052 = vunpack.c.l.b16 %v8924
    %v9053 = vunpack.c.l.b16 %v8925
    %v9054 = vunpack.c.l.b16 %v8926
    %v9055 = vunpack.c.l.b16 %v8927
    %v9056 = vunpack.c.l.b16 %v8928
    %v9057 = vunpack.c.l.b16 %v8929
    %v9058 = vunpack.c.l.b16 %v8930
    %v9059 = vunpack.c.l.b16 %v8931
    %v9060 = vunpack.c.l.b16 %v8932
    %v9061 = vunpack.c.l.b16 %v8933
    %v9062 = vunpack.c.l.b16 %v8934
    %v9063 = vunpack.c.l.b16 %v8935
    %v9064 = vunpack.c.l.b16 %v8936
    %v9065 = vunpack.c.l.b16 %v8937
    %v9066 = vunpack.c.l.b16 %v8938
    %v9067 = vunpack.c.l.b16 %v8939
    %v9068 = vunpack.c.l.b16 %v8940
    %v9069 = vunpack.c.l.b16 %v8941
    %v9070 = vunpack.c.l.b16 %v8942
    %v9071 = vunpack.c.l.b16 %v8943
    %v9072 = vunpack.c.l.b16 %v8944
    %v9073 = vunpack.c.l.b16 %v8945
    %v9074 = vunpack.c.l.b16 %v8946
    %v9075 = vunpack.c.l.b16 %v8947
    %v9076 = vunpack.c.l.b16 %v8948
    %v9077 = vunpack.c.l.b16 %v8949
    %v9078 = vunpack.c.l.b16 %v8950
    %v9079 = vunpack.c.l.b16 %v8951
    %v9080 = vunpack.c.l.b16 %v8952
    %v9081 = vunpack.c.l.b16 %v8953
    %v9082 = vunpack.c.l.b16 %v8954
    %v9083 = vunpack.c.l.b16 %v8955
    %v9084 = vunpack.c.l.b16 %v8956
    %v9085 = vunpack.c.l.b16 %v8957
    %v9086 = vunpack.c.l.b16 %v8958
    %v9087 = vunpack.c.l.b16 %v8959
    %v9088 = vunpack.c.l.b16 %v8960
    %v9089 = vunpack.c.l.b16 %v8961
    %v9090 = vunpack.c.l.b16 %v8962
    %v9091 = vpack.c.b16 %v9028, %v9027
    %v9092 = vpack.c.b16 %v9030, %v9029
    %v9093 = vpack.c.b16 %v9032, %v9031
    %v9094 = vpack.c.b16 %v9034, %v9033
    %v9095 = vpack.c.b16 %v9036, %v9035
    %v9096 = vpack.c.b16 %v9038, %v9037
    %v9097 = vpack.c.b16 %v9040, %v9039
    %v9098 = vpack.c.b16 %v9042, %v9041
    %v9099 = vpack.c.b16 %v9044, %v9043
    %v9100 = vpack.c.b16 %v9046, %v9045
    %v9101 = vpack.c.b16 %v9048, %v9047
    %v9102 = vpack.c.b16 %v9050, %v9049
    %v9103 = vpack.c.b16 %v9052, %v9051
    %v9104 = vpack.c.b16 %v9054, %v9053
    %v9105 = vpack.c.b16 %v9056, %v9055
    %v9106 = vpack.c.b16 %v9058, %v9057
    %v9107 = vpack.c.b16 %v9060, %v9059
    %v9108 = vpack.c.b16 %v9062, %v9061
    %v9109 = vpack.c.b16 %v9064, %v9063
    %v9110 = vpack.c.b16 %v9066, %v9065
    %v9111 = vpack.c.b16 %v9068, %v9067
    %v9112 = vpack.c.b16 %v9070, %v9069
    %v9113 = vpack.c.b16 %v9072, %v9071
    %v9114 = vpack.c.b16 %v9074, %v9073
    %v9115 = vpack.c.b16 %v9076, %v9075
    %v9116 = vpack.c.b16 %v9078, %v9077
    %v9117 = vpack.c.b16 %v9080, %v9079
    %v9118 = vpack.c.b16 %v9082, %v9081
    %v9119 = vpack.c.b16 %v9084, %v9083
    %v9120 = vpack.c.b16 %v9086, %v9085
    %v9121 = vpack.c.b16 %v9088, %v9087
    %v9122 = vpack.c.b16 %v9090, %v9089
    %v9155 = vmul.bf16 %v8867, %v9091
    %v9156 = vmul.bf16 %v8868, %v9092
    %v9157 = vmul.bf16 %v8869, %v9093
    %v9158 = vmul.bf16 %v8870, %v9094
    %v9159 = vmul.bf16 %v8871, %v9095
    %v9160 = vmul.bf16 %v8872, %v9096
    %v9161 = vmul.bf16 %v8873, %v9097
    %v9162 = vmul.bf16 %v8874, %v9098
    %v9163 = vmul.bf16 %v8875, %v9099
    %v9164 = vmul.bf16 %v8876, %v9100
    %v9165 = vmul.bf16 %v8877, %v9101
    %v9166 = vmul.bf16 %v8878, %v9102
    %v9167 = vmul.bf16 %v8879, %v9103
    %v9168 = vmul.bf16 %v8880, %v9104
    %v9169 = vmul.bf16 %v8881, %v9105
    %v9170 = vmul.bf16 %v8882, %v9106
    %v9171 = vmul.bf16 %v8883, %v9107
    %v9172 = vmul.bf16 %v8884, %v9108
    %v9173 = vmul.bf16 %v8885, %v9109
    %v9174 = vmul.bf16 %v8886, %v9110
    %v9175 = vmul.bf16 %v8887, %v9111
    %v9176 = vmul.bf16 %v8888, %v9112
    %v9177 = vmul.bf16 %v8889, %v9113
    %v9178 = vmul.bf16 %v8890, %v9114
    %v9179 = vmul.bf16 %v8891, %v9115
    %v9180 = vmul.bf16 %v8892, %v9116
    %v9181 = vmul.bf16 %v8893, %v9117
    %v9182 = vmul.bf16 %v8894, %v9118
    %v9183 = vmul.bf16 %v8895, %v9119
    %v9184 = vmul.bf16 %v8896, %v9120
    %v9185 = vmul.bf16 %v8897, %v9121
    %v9186 = vmul.bf16 %v8898, %v9122
    %9187 = vst [vmem:[#allocation2 + $0x10] sm:$0xff] %v9155
    %9188 = vst [vmem:[#allocation2 + $0x38] sm:$0xff] %v9156
    %9189 = vst [vmem:[#allocation2 + $0x60] sm:$0xff] %v9157
    %9190 = vst [vmem:[#allocation2 + $0x88] sm:$0xff] %v9158
    %9191 = vst [vmem:[#allocation2 + $0xb0] sm:$0xff] %v9159
    %9192 = vst [vmem:[#allocation2 + $0xd8] sm:$0xff] %v9160
    %9193 = vst [vmem:[#allocation2 + $0x100] sm:$0xff] %v9161
    %9194 = vst [vmem:[#allocation2 + $0x128] sm:$0xff] %v9162
    %9195 = vst [vmem:[#allocation2 + $0x150] sm:$0xff] %v9163
    %9196 = vst [vmem:[#allocation2 + $0x178] sm:$0xff] %v9164
    %9197 = vst [vmem:[#allocation2 + $0x1a0] sm:$0xff] %v9165
    %9198 = vst [vmem:[#allocation2 + $0x1c8] sm:$0xff] %v9166
    %9199 = vst [vmem:[#allocation2 + $0x1f0] sm:$0xff] %v9167
    %9200 = vst [vmem:[#allocation2 + $0x218] sm:$0xff] %v9168
    %9201 = vst [vmem:[#allocation2 + $0x240] sm:$0xff] %v9169
    %9202 = vst [vmem:[#allocation2 + $0x268] sm:$0xff] %v9170
    %9203 = vst [vmem:[#allocation2 + $0x290] sm:$0xff] %v9171
    %9204 = vst [vmem:[#allocation2 + $0x2b8] sm:$0xff] %v9172
    %9205 = vst [vmem:[#allocation2 + $0x2e0] sm:$0xff] %v9173
    %9206 = vst [vmem:[#allocation2 + $0x308] sm:$0xff] %v9174
    %9207 = vst [vmem:[#allocation2 + $0x330] sm:$0xff] %v9175
    %9208 = vst [vmem:[#allocation2 + $0x358] sm:$0xff] %v9176
    %9209 = vst [vmem:[#allocation2 + $0x380] sm:$0xff] %v9177
    %9210 = vst [vmem:[#allocation2 + $0x3a8] sm:$0xff] %v9178
    %9211 = vst [vmem:[#allocation2 + $0x3d0] sm:$0xff] %v9179
    %9212 = vst [vmem:[#allocation2 + $0x3f8] sm:$0xff] %v9180
    %9213 = vst [vmem:[#allocation2 + $0x420] sm:$0xff] %v9181
    %9214 = vst [vmem:[#allocation2 + $0x448] sm:$0xff] %v9182
    %9215 = vst [vmem:[#allocation2 + $0x470] sm:$0xff] %v9183
    %9216 = vst [vmem:[#allocation2 + $0x498] sm:$0xff] %v9184
    %9217 = vst [vmem:[#allocation2 + $0x4c0] sm:$0xff] %v9185
    %9218 = vst [vmem:[#allocation2 + $0x4e8] sm:$0xff] %v9186
    %v9219 = vld [vmem:[%s3565] sm:$0xf]
    %v9220 = vld [vmem:[%s3565 + $0x4] sm:$0xf]
    %v9221 = vld [vmem:[%s3565 + $0x8] sm:$0xf]
    %v9222 = vld [vmem:[%s3565 + $0xc] sm:$0xf]
    %v9223 = vld [vmem:[%s3565 + $0x10] sm:$0xf]
    %v9224 = vld [vmem:[%s3565 + $0x14] sm:$0xf]
    %v9225 = vld [vmem:[%s3565 + $0x18] sm:$0xf]
    %v9226 = vld [vmem:[%s3565 + $0x1c] sm:$0xf]
    %v9227 = vld [vmem:[%s3565 + $0x20] sm:$0xf]
    %v9228 = vld [vmem:[%s3565 + $0x24] sm:$0xf]
    %v9229 = vld [vmem:[%s3565 + $0x28] sm:$0xf]
    %v9230 = vld [vmem:[%s3565 + $0x2c] sm:$0xf]
    %v9231 = vld [vmem:[%s3565 + $0x30] sm:$0xf]
    %v9232 = vld [vmem:[%s3565 + $0x34] sm:$0xf]
    %v9233 = vld [vmem:[%s3565 + $0x38] sm:$0xf]
    %v9234 = vld [vmem:[%s3565 + $0x3c] sm:$0xf]
    %v9235 = vld [vmem:[%s3565 + $0x40] sm:$0xf]
    %v9236 = vld [vmem:[%s3565 + $0x44] sm:$0xf]
    %v9237 = vld [vmem:[%s3565 + $0x48] sm:$0xf]
    %v9238 = vld [vmem:[%s3565 + $0x4c] sm:$0xf]
    %v9239 = vld [vmem:[%s3565 + $0x50] sm:$0xf]
    %v9240 = vld [vmem:[%s3565 + $0x54] sm:$0xf]
    %v9241 = vld [vmem:[%s3565 + $0x58] sm:$0xf]
    %v9242 = vld [vmem:[%s3565 + $0x5c] sm:$0xf]
    %v9243 = vld [vmem:[%s3565 + $0x60] sm:$0xf]
    %v9244 = vld [vmem:[%s3565 + $0x64] sm:$0xf]
    %v9245 = vld [vmem:[%s3565 + $0x68] sm:$0xf]
    %v9246 = vld [vmem:[%s3565 + $0x6c] sm:$0xf]
    %v9247 = vld [vmem:[%s3565 + $0x70] sm:$0xf]
    %v9248 = vld [vmem:[%s3565 + $0x74] sm:$0xf]
    %v9249 = vld [vmem:[%s3565 + $0x78] sm:$0xf]
    %v9250 = vld [vmem:[%s3565 + $0x7c] sm:$0xf]
    %v9251 = vld [vmem:[%s3565 + $0x80] sm:$0xf]
    %v9252 = vld [vmem:[%s3565 + $0x84] sm:$0xf]
    %v9253 = vld [vmem:[%s3565 + $0x88] sm:$0xf]
    %v9254 = vld [vmem:[%s3565 + $0x8c] sm:$0xf]
    %v9255 = vld [vmem:[%s3565 + $0x90] sm:$0xf]
    %v9256 = vld [vmem:[%s3565 + $0x94] sm:$0xf]
    %v9257 = vld [vmem:[%s3565 + $0x98] sm:$0xf]
    %v9258 = vld [vmem:[%s3565 + $0x9c] sm:$0xf]
    %v9259 = vld [vmem:[%s3565 + $0xa0] sm:$0xf]
    %v9260 = vld [vmem:[%s3565 + $0xa4] sm:$0xf]
    %v9261 = vld [vmem:[%s3565 + $0xa8] sm:$0xf]
    %v9262 = vld [vmem:[%s3565 + $0xac] sm:$0xf]
    %v9263 = vld [vmem:[%s3565 + $0xb0] sm:$0xf]
    %v9264 = vld [vmem:[%s3565 + $0xb4] sm:$0xf]
    %v9265 = vld [vmem:[%s3565 + $0xb8] sm:$0xf]
    %v9266 = vld [vmem:[%s3565 + $0xbc] sm:$0xf]
    %v9267 = vld [vmem:[%s3565 + $0xc0] sm:$0xf]
    %v9268 = vld [vmem:[%s3565 + $0xc4] sm:$0xf]
    %v9269 = vld [vmem:[%s3565 + $0xc8] sm:$0xf]
    %v9270 = vld [vmem:[%s3565 + $0xcc] sm:$0xf]
    %v9271 = vld [vmem:[%s3565 + $0xd0] sm:$0xf]
    %v9272 = vld [vmem:[%s3565 + $0xd4] sm:$0xf]
    %v9273 = vld [vmem:[%s3565 + $0xd8] sm:$0xf]
    %v9274 = vld [vmem:[%s3565 + $0xdc] sm:$0xf]
    %v9275 = vld [vmem:[%s3565 + $0xe0] sm:$0xf]
    %v9276 = vld [vmem:[%s3565 + $0xe4] sm:$0xf]
    %v9277 = vld [vmem:[%s3565 + $0xe8] sm:$0xf]
    %v9278 = vld [vmem:[%s3565 + $0xec] sm:$0xf]
    %v9279 = vld [vmem:[%s3565 + $0xf0] sm:$0xf]
    %v9280 = vld [vmem:[%s3565 + $0xf4] sm:$0xf]
    %v9281 = vld [vmem:[%s3565 + $0xf8] sm:$0xf]
    %v9282 = vld [vmem:[%s3565 + $0xfc] sm:$0xf]
    %v9347 = vunpack.c.l.b16 %v9219
    %v9348 = vunpack.c.l.b16 %v9220
    %v9349 = vunpack.c.l.b16 %v9221
    %v9350 = vunpack.c.l.b16 %v9222
    %v9351 = vunpack.c.l.b16 %v9223
    %v9352 = vunpack.c.l.b16 %v9224
    %v9353 = vunpack.c.l.b16 %v9225
    %v9354 = vunpack.c.l.b16 %v9226
    %v9355 = vunpack.c.l.b16 %v9227
    %v9356 = vunpack.c.l.b16 %v9228
    %v9357 = vunpack.c.l.b16 %v9229
    %v9358 = vunpack.c.l.b16 %v9230
    %v9359 = vunpack.c.l.b16 %v9231
    %v9360 = vunpack.c.l.b16 %v9232
    %v9361 = vunpack.c.l.b16 %v9233
    %v9362 = vunpack.c.l.b16 %v9234
    %v9363 = vunpack.c.l.b16 %v9235
    %v9364 = vunpack.c.l.b16 %v9236
    %v9365 = vunpack.c.l.b16 %v9237
    %v9366 = vunpack.c.l.b16 %v9238
    %v9367 = vunpack.c.l.b16 %v9239
    %v9368 = vunpack.c.l.b16 %v9240
    %v9369 = vunpack.c.l.b16 %v9241
    %v9370 = vunpack.c.l.b16 %v9242
    %v9371 = vunpack.c.l.b16 %v9243
    %v9372 = vunpack.c.l.b16 %v9244
    %v9373 = vunpack.c.l.b16 %v9245
    %v9374 = vunpack.c.l.b16 %v9246
    %v9375 = vunpack.c.l.b16 %v9247
    %v9376 = vunpack.c.l.b16 %v9248
    %v9377 = vunpack.c.l.b16 %v9249
    %v9378 = vunpack.c.l.b16 %v9250
    %v9379 = vunpack.c.l.b16 %v9251
    %v9380 = vunpack.c.l.b16 %v9252
    %v9381 = vunpack.c.l.b16 %v9253
    %v9382 = vunpack.c.l.b16 %v9254
    %v9383 = vunpack.c.l.b16 %v9255
    %v9384 = vunpack.c.l.b16 %v9256
    %v9385 = vunpack.c.l.b16 %v9257
    %v9386 = vunpack.c.l.b16 %v9258
    %v9387 = vunpack.c.l.b16 %v9259
    %v9388 = vunpack.c.l.b16 %v9260
    %v9389 = vunpack.c.l.b16 %v9261
    %v9390 = vunpack.c.l.b16 %v9262
    %v9391 = vunpack.c.l.b16 %v9263
    %v9392 = vunpack.c.l.b16 %v9264
    %v9393 = vunpack.c.l.b16 %v9265
    %v9394 = vunpack.c.l.b16 %v9266
    %v9395 = vunpack.c.l.b16 %v9267
    %v9396 = vunpack.c.l.b16 %v9268
    %v9397 = vunpack.c.l.b16 %v9269
    %v9398 = vunpack.c.l.b16 %v9270
    %v9399 = vunpack.c.l.b16 %v9271
    %v9400 = vunpack.c.l.b16 %v9272
    %v9401 = vunpack.c.l.b16 %v9273
    %v9402 = vunpack.c.l.b16 %v9274
    %v9403 = vunpack.c.l.b16 %v9275
    %v9404 = vunpack.c.l.b16 %v9276
    %v9405 = vunpack.c.l.b16 %v9277
    %v9406 = vunpack.c.l.b16 %v9278
    %v9407 = vunpack.c.l.b16 %v9279
    %v9408 = vunpack.c.l.b16 %v9280
    %v9409 = vunpack.c.l.b16 %v9281
    %v9410 = vunpack.c.l.b16 %v9282
    %v9411 = vpack.c.b16 %v9348, %v9347
    %v9412 = vpack.c.b16 %v9350, %v9349
    %v9413 = vpack.c.b16 %v9352, %v9351
    %v9414 = vpack.c.b16 %v9354, %v9353
    %v9415 = vpack.c.b16 %v9356, %v9355
    %v9416 = vpack.c.b16 %v9358, %v9357
    %v9417 = vpack.c.b16 %v9360, %v9359
    %v9418 = vpack.c.b16 %v9362, %v9361
    %v9419 = vpack.c.b16 %v9364, %v9363
    %v9420 = vpack.c.b16 %v9366, %v9365
    %v9421 = vpack.c.b16 %v9368, %v9367
    %v9422 = vpack.c.b16 %v9370, %v9369
    %v9423 = vpack.c.b16 %v9372, %v9371
    %v9424 = vpack.c.b16 %v9374, %v9373
    %v9425 = vpack.c.b16 %v9376, %v9375
    %v9426 = vpack.c.b16 %v9378, %v9377
    %v9427 = vpack.c.b16 %v9380, %v9379
    %v9428 = vpack.c.b16 %v9382, %v9381
    %v9429 = vpack.c.b16 %v9384, %v9383
    %v9430 = vpack.c.b16 %v9386, %v9385
    %v9431 = vpack.c.b16 %v9388, %v9387
    %v9432 = vpack.c.b16 %v9390, %v9389
    %v9433 = vpack.c.b16 %v9392, %v9391
    %v9434 = vpack.c.b16 %v9394, %v9393
    %v9435 = vpack.c.b16 %v9396, %v9395
    %v9436 = vpack.c.b16 %v9398, %v9397
    %v9437 = vpack.c.b16 %v9400, %v9399
    %v9438 = vpack.c.b16 %v9402, %v9401
    %v9439 = vpack.c.b16 %v9404, %v9403
    %v9440 = vpack.c.b16 %v9406, %v9405
    %v9441 = vpack.c.b16 %v9408, %v9407
    %v9442 = vpack.c.b16 %v9410, %v9409
    %v9475 = vmul.bf16 %v7397, %v9411
    %v9476 = vmul.bf16 %v7398, %v9412
    %v9477 = vmul.bf16 %v7399, %v9413
    %v9478 = vmul.bf16 %v7400, %v9414
    %v9479 = vmul.bf16 %v7401, %v9415
    %v9480 = vmul.bf16 %v7402, %v9416
    %v9481 = vmul.bf16 %v7403, %v9417
    %v9482 = vmul.bf16 %v7404, %v9418
    %v9483 = vmul.bf16 %v7405, %v9419
    %v9484 = vmul.bf16 %v7406, %v9420
    %v9485 = vmul.bf16 %v7407, %v9421
    %v9486 = vmul.bf16 %v7408, %v9422
    %v9487 = vmul.bf16 %v7409, %v9423
    %v9488 = vmul.bf16 %v7410, %v9424
    %v9489 = vmul.bf16 %v7411, %v9425
    %v9490 = vmul.bf16 %v7412, %v9426
    %v9491 = vmul.bf16 %v7413, %v9427
    %v9492 = vmul.bf16 %v7414, %v9428
    %v9493 = vmul.bf16 %v7415, %v9429
    %v9494 = vmul.bf16 %v7416, %v9430
    %v9495 = vmul.bf16 %v7417, %v9431
    %v9496 = vmul.bf16 %v7418, %v9432
    %v9497 = vmul.bf16 %v7419, %v9433
    %v9498 = vmul.bf16 %v7420, %v9434
    %v9499 = vmul.bf16 %v7421, %v9435
    %v9500 = vmul.bf16 %v7422, %v9436
    %v9501 = vmul.bf16 %v7423, %v9437
    %v9502 = vmul.bf16 %v7424, %v9438
    %v9503 = vmul.bf16 %v7425, %v9439
    %v9504 = vmul.bf16 %v7426, %v9440
    %v9505 = vmul.bf16 %v7395, %v9441
    %v9506 = vmul.bf16 %v7396, %v9442
    %9507 = vst [vmem:[#allocation2 + $0x18] sm:$0xff] %v9475
    %9508 = vst [vmem:[#allocation2 + $0x40] sm:$0xff] %v9476
    %9509 = vst [vmem:[#allocation2 + $0x68] sm:$0xff] %v9477
    %9510 = vst [vmem:[#allocation2 + $0x90] sm:$0xff] %v9478
    %9511 = vst [vmem:[#allocation2 + $0xb8] sm:$0xff] %v9479
    %9512 = vst [vmem:[#allocation2 + $0xe0] sm:$0xff] %v9480
    %9513 = vst [vmem:[#allocation2 + $0x108] sm:$0xff] %v9481
    %9514 = vst [vmem:[#allocation2 + $0x130] sm:$0xff] %v9482
    %9515 = vst [vmem:[#allocation2 + $0x158] sm:$0xff] %v9483
    %9516 = vst [vmem:[#allocation2 + $0x180] sm:$0xff] %v9484
    %9517 = vst [vmem:[#allocation2 + $0x1a8] sm:$0xff] %v9485
    %9518 = vst [vmem:[#allocation2 + $0x1d0] sm:$0xff] %v9486
    %9519 = vst [vmem:[#allocation2 + $0x1f8] sm:$0xff] %v9487
    %9520 = vst [vmem:[#allocation2 + $0x220] sm:$0xff] %v9488
    %9521 = vst [vmem:[#allocation2 + $0x248] sm:$0xff] %v9489
    %9522 = vst [vmem:[#allocation2 + $0x270] sm:$0xff] %v9490
    %9523 = vst [vmem:[#allocation2 + $0x298] sm:$0xff] %v9491
    %9524 = vst [vmem:[#allocation2 + $0x2c0] sm:$0xff] %v9492
    %9525 = vst [vmem:[#allocation2 + $0x2e8] sm:$0xff] %v9493
    %9526 = vst [vmem:[#allocation2 + $0x310] sm:$0xff] %v9494
    %9527 = vst [vmem:[#allocation2 + $0x338] sm:$0xff] %v9495
    %9528 = vst [vmem:[#allocation2 + $0x360] sm:$0xff] %v9496
    %9529 = vst [vmem:[#allocation2 + $0x388] sm:$0xff] %v9497
    %9530 = vst [vmem:[#allocation2 + $0x3b0] sm:$0xff] %v9498
    %9531 = vst [vmem:[#allocation2 + $0x3d8] sm:$0xff] %v9499
    %9532 = vst [vmem:[#allocation2 + $0x400] sm:$0xff] %v9500
    %9533 = vst [vmem:[#allocation2 + $0x428] sm:$0xff] %v9501
    %9534 = vst [vmem:[#allocation2 + $0x450] sm:$0xff] %v9502
    %9535 = vst [vmem:[#allocation2 + $0x478] sm:$0xff] %v9503
    %9536 = vst [vmem:[#allocation2 + $0x4a0] sm:$0xff] %v9504
    %9537 = vst [vmem:[#allocation2 + $0x4c8] sm:$0xff] %v9505
    %9538 = vst [vmem:[#allocation2 + $0x4f0] sm:$0xff] %v9506
    %v9539 = vsel %vm183, %v7871, %v8616
    %v9540 = vsel %vm183, %v7870, %v8618
    %v9541 = vsel %vm183, %v7869, %v8620
    %v9542 = vsel %vm183, %v7868, %v8622
    %v9543 = vsel %vm183, %v7867, %v8624
    %v9544 = vsel %vm183, %v7866, %v8626
    %v9545 = vsel %vm183, %v7865, %v8628
    %v9546 = vsel %vm183, %v7864, %v8630
    %v9547 = vsel %vm183, %v7863, %v8632
    %v9548 = vsel %vm183, %v7862, %v8634
    %v9549 = vsel %vm183, %v7861, %v8636
    %v9550 = vsel %vm183, %v7860, %v8638
    %v9551 = vsel %vm183, %v7859, %v8640
    %v9552 = vsel %vm183, %v7858, %v8642
    %v9553 = vsel %vm183, %v7857, %v8644
    %v9554 = vsel %vm183, %v7856, %v8646
    %v9555 = vsel %vm183, %v7855, %v8648
    %v9556 = vsel %vm183, %v7854, %v8650
    %v9557 = vsel %vm183, %v7853, %v8652
    %v9558 = vsel %vm183, %v7852, %v8654
    %v9559 = vsel %vm183, %v7851, %v8656
    %v9560 = vsel %vm183, %v7850, %v8658
    %v9561 = vsel %vm183, %v7849, %v8660
    %v9562 = vsel %vm183, %v7848, %v8662
    %v9563 = vsel %vm183, %v7847, %v8664
    %v9564 = vsel %vm183, %v7846, %v8666
    %v9565 = vsel %vm183, %v7845, %v8668
    %v9566 = vsel %vm183, %v7844, %v8670
    %v9567 = vsel %vm183, %v7843, %v8672
    %v9568 = vsel %vm183, %v7842, %v8674
    %v9569 = vsel %vm183, %v7841, %v8676
    %v9570 = vsel %vm183, %v7840, %v8678
    %v9571 = vsel %vm183, %v7839, %v8680
    %v9572 = vsel %vm183, %v7838, %v8682
    %v9573 = vsel %vm183, %v7837, %v8684
    %v9574 = vsel %vm183, %v7836, %v8686
    %v9575 = vsel %vm183, %v7835, %v8688
    %v9576 = vsel %vm183, %v7834, %v8690
    %v9577 = vsel %vm183, %v7833, %v8692
    %v9578 = vsel %vm183, %v7832, %v8694
    %v9579 = vsel %vm183, %v7831, %v8696
    %v9580 = vsel %vm183, %v7830, %v8698
    %v9581 = vsel %vm183, %v7829, %v8700
    %v9582 = vsel %vm183, %v7828, %v8702
    %v9583 = vsel %vm183, %v7827, %v8704
    %v9584 = vsel %vm183, %v7826, %v8706
    %v9585 = vsel %vm183, %v7825, %v8708
    %v9586 = vsel %vm183, %v7824, %v8710
    %v9587 = vsel %vm183, %v7823, %v8712
    %v9588 = vsel %vm183, %v7822, %v8714
    %v9589 = vsel %vm183, %v7821, %v8716
    %v9590 = vsel %vm183, %v7820, %v8718
    %v9591 = vsel %vm183, %v7819, %v8720
    %v9592 = vsel %vm183, %v7818, %v8722
    %v9593 = vsel %vm183, %v7817, %v8724
    %v9594 = vsel %vm183, %v7816, %v8726
    %v9595 = vsel %vm183, %v7815, %v8728
    %v9596 = vsel %vm183, %v7814, %v8730
    %v9597 = vsel %vm183, %v7813, %v8732
    %v9598 = vsel %vm183, %v7812, %v8734
    %v9599 = vsel %vm183, %v7811, %v8736
    %v9600 = vsel %vm183, %v7874, %v8738
    %v9601 = vsel %vm183, %v7873, %v8612
    %v9602 = vsel %vm183, %v7872, %v8614
    %v9603 = vpack.c.bf16 %v9540, %v9539
    %v9604 = vpack.c.bf16 %v9542, %v9541
    %v9605 = vpack.c.bf16 %v9544, %v9543
    %v9606 = vpack.c.bf16 %v9546, %v9545
    %v9607 = vpack.c.bf16 %v9548, %v9547
    %v9608 = vpack.c.bf16 %v9550, %v9549
    %v9609 = vpack.c.bf16 %v9552, %v9551
    %v9610 = vpack.c.bf16 %v9554, %v9553
    %v9611 = vpack.c.bf16 %v9556, %v9555
    %v9612 = vpack.c.bf16 %v9558, %v9557
    %v9613 = vpack.c.bf16 %v9560, %v9559
    %v9614 = vpack.c.bf16 %v9562, %v9561
    %v9615 = vpack.c.bf16 %v9564, %v9563
    %v9616 = vpack.c.bf16 %v9566, %v9565
    %v9617 = vpack.c.bf16 %v9568, %v9567
    %v9618 = vpack.c.bf16 %v9570, %v9569
    %v9619 = vpack.c.bf16 %v9572, %v9571
    %v9620 = vpack.c.bf16 %v9574, %v9573
    %v9621 = vpack.c.bf16 %v9576, %v9575
    %v9622 = vpack.c.bf16 %v9578, %v9577
    %v9623 = vpack.c.bf16 %v9580, %v9579
    %v9624 = vpack.c.bf16 %v9582, %v9581
    %v9625 = vpack.c.bf16 %v9584, %v9583
    %v9626 = vpack.c.bf16 %v9586, %v9585
    %v9627 = vpack.c.bf16 %v9588, %v9587
    %v9628 = vpack.c.bf16 %v9590, %v9589
    %v9629 = vpack.c.bf16 %v9592, %v9591
    %v9630 = vpack.c.bf16 %v9594, %v9593
    %v9631 = vpack.c.bf16 %v9596, %v9595
    %v9632 = vpack.c.bf16 %v9598, %v9597
    %v9633 = vpack.c.bf16 %v9600, %v9599
    %v9634 = vpack.c.bf16 %v9602, %v9601
    %v9635 = vld [vmem:[%s3982] sm:$0xf]
    %v9636 = vld [vmem:[%s3982 + $0x4] sm:$0xf]
    %v9637 = vld [vmem:[%s3982 + $0x8] sm:$0xf]
    %v9638 = vld [vmem:[%s3982 + $0xc] sm:$0xf]
    %v9639 = vld [vmem:[%s3982 + $0x10] sm:$0xf]
    %v9640 = vld [vmem:[%s3982 + $0x14] sm:$0xf]
    %v9641 = vld [vmem:[%s3982 + $0x18] sm:$0xf]
    %v9642 = vld [vmem:[%s3982 + $0x1c] sm:$0xf]
    %v9643 = vld [vmem:[%s3982 + $0x20] sm:$0xf]
    %v9644 = vld [vmem:[%s3982 + $0x24] sm:$0xf]
    %v9645 = vld [vmem:[%s3982 + $0x28] sm:$0xf]
    %v9646 = vld [vmem:[%s3982 + $0x2c] sm:$0xf]
    %v9647 = vld [vmem:[%s3982 + $0x30] sm:$0xf]
    %v9648 = vld [vmem:[%s3982 + $0x34] sm:$0xf]
    %v9649 = vld [vmem:[%s3982 + $0x38] sm:$0xf]
    %v9650 = vld [vmem:[%s3982 + $0x3c] sm:$0xf]
    %v9651 = vld [vmem:[%s3982 + $0x40] sm:$0xf]
    %v9652 = vld [vmem:[%s3982 + $0x44] sm:$0xf]
    %v9653 = vld [vmem:[%s3982 + $0x48] sm:$0xf]
    %v9654 = vld [vmem:[%s3982 + $0x4c] sm:$0xf]
    %v9655 = vld [vmem:[%s3982 + $0x50] sm:$0xf]
    %v9656 = vld [vmem:[%s3982 + $0x54] sm:$0xf]
    %v9657 = vld [vmem:[%s3982 + $0x58] sm:$0xf]
    %v9658 = vld [vmem:[%s3982 + $0x5c] sm:$0xf]
    %v9659 = vld [vmem:[%s3982 + $0x60] sm:$0xf]
    %v9660 = vld [vmem:[%s3982 + $0x64] sm:$0xf]
    %v9661 = vld [vmem:[%s3982 + $0x68] sm:$0xf]
    %v9662 = vld [vmem:[%s3982 + $0x6c] sm:$0xf]
    %v9663 = vld [vmem:[%s3982 + $0x70] sm:$0xf]
    %v9664 = vld [vmem:[%s3982 + $0x74] sm:$0xf]
    %v9665 = vld [vmem:[%s3982 + $0x78] sm:$0xf]
    %v9666 = vld [vmem:[%s3982 + $0x7c] sm:$0xf]
    %v9667 = vld [vmem:[%s3982 + $0x80] sm:$0xf]
    %v9668 = vld [vmem:[%s3982 + $0x84] sm:$0xf]
    %v9669 = vld [vmem:[%s3982 + $0x88] sm:$0xf]
    %v9670 = vld [vmem:[%s3982 + $0x8c] sm:$0xf]
    %v9671 = vld [vmem:[%s3982 + $0x90] sm:$0xf]
    %v9672 = vld [vmem:[%s3982 + $0x94] sm:$0xf]
    %v9673 = vld [vmem:[%s3982 + $0x98] sm:$0xf]
    %v9674 = vld [vmem:[%s3982 + $0x9c] sm:$0xf]
    %v9675 = vld [vmem:[%s3982 + $0xa0] sm:$0xf]
    %v9676 = vld [vmem:[%s3982 + $0xa4] sm:$0xf]
    %v9677 = vld [vmem:[%s3982 + $0xa8] sm:$0xf]
    %v9678 = vld [vmem:[%s3982 + $0xac] sm:$0xf]
    %v9679 = vld [vmem:[%s3982 + $0xb0] sm:$0xf]
    %v9680 = vld [vmem:[%s3982 + $0xb4] sm:$0xf]
    %v9681 = vld [vmem:[%s3982 + $0xb8] sm:$0xf]
    %v9682 = vld [vmem:[%s3982 + $0xbc] sm:$0xf]
    %v9683 = vld [vmem:[%s3982 + $0xc0] sm:$0xf]
    %v9684 = vld [vmem:[%s3982 + $0xc4] sm:$0xf]
    %v9685 = vld [vmem:[%s3982 + $0xc8] sm:$0xf]
    %v9686 = vld [vmem:[%s3982 + $0xcc] sm:$0xf]
    %v9687 = vld [vmem:[%s3982 + $0xd0] sm:$0xf]
    %v9688 = vld [vmem:[%s3982 + $0xd4] sm:$0xf]
    %v9689 = vld [vmem:[%s3982 + $0xd8] sm:$0xf]
    %v9690 = vld [vmem:[%s3982 + $0xdc] sm:$0xf]
    %v9691 = vld [vmem:[%s3982 + $0xe0] sm:$0xf]
    %v9692 = vld [vmem:[%s3982 + $0xe4] sm:$0xf]
    %v9693 = vld [vmem:[%s3982 + $0xe8] sm:$0xf]
    %v9694 = vld [vmem:[%s3982 + $0xec] sm:$0xf]
    %v9695 = vld [vmem:[%s3982 + $0xf0] sm:$0xf]
    %v9696 = vld [vmem:[%s3982 + $0xf4] sm:$0xf]
    %v9697 = vld [vmem:[%s3982 + $0xf8] sm:$0xf]
    %v9698 = vld [vmem:[%s3982 + $0xfc] sm:$0xf]
    %v9763 = vunpack.c.l.b16 %v9635
    %v9764 = vunpack.c.l.b16 %v9636
    %v9765 = vunpack.c.l.b16 %v9637
    %v9766 = vunpack.c.l.b16 %v9638
    %v9767 = vunpack.c.l.b16 %v9639
    %v9768 = vunpack.c.l.b16 %v9640
    %v9769 = vunpack.c.l.b16 %v9641
    %v9770 = vunpack.c.l.b16 %v9642
    %v9771 = vunpack.c.l.b16 %v9643
    %v9772 = vunpack.c.l.b16 %v9644
    %v9773 = vunpack.c.l.b16 %v9645
    %v9774 = vunpack.c.l.b16 %v9646
    %v9775 = vunpack.c.l.b16 %v9647
    %v9776 = vunpack.c.l.b16 %v9648
    %v9777 = vunpack.c.l.b16 %v9649
    %v9778 = vunpack.c.l.b16 %v9650
    %v9779 = vunpack.c.l.b16 %v9651
    %v9780 = vunpack.c.l.b16 %v9652
    %v9781 = vunpack.c.l.b16 %v9653
    %v9782 = vunpack.c.l.b16 %v9654
    %v9783 = vunpack.c.l.b16 %v9655
    %v9784 = vunpack.c.l.b16 %v9656
    %v9785 = vunpack.c.l.b16 %v9657
    %v9786 = vunpack.c.l.b16 %v9658
    %v9787 = vunpack.c.l.b16 %v9659
    %v9788 = vunpack.c.l.b16 %v9660
    %v9789 = vunpack.c.l.b16 %v9661
    %v9790 = vunpack.c.l.b16 %v9662
    %v9791 = vunpack.c.l.b16 %v9663
    %v9792 = vunpack.c.l.b16 %v9664
    %v9793 = vunpack.c.l.b16 %v9665
    %v9794 = vunpack.c.l.b16 %v9666
    %v9795 = vunpack.c.l.b16 %v9667
    %v9796 = vunpack.c.l.b16 %v9668
    %v9797 = vunpack.c.l.b16 %v9669
    %v9798 = vunpack.c.l.b16 %v9670
    %v9799 = vunpack.c.l.b16 %v9671
    %v9800 = vunpack.c.l.b16 %v9672
    %v9801 = vunpack.c.l.b16 %v9673
    %v9802 = vunpack.c.l.b16 %v9674
    %v9803 = vunpack.c.l.b16 %v9675
    %v9804 = vunpack.c.l.b16 %v9676
    %v9805 = vunpack.c.l.b16 %v9677
    %v9806 = vunpack.c.l.b16 %v9678
    %v9807 = vunpack.c.l.b16 %v9679
    %v9808 = vunpack.c.l.b16 %v9680
    %v9809 = vunpack.c.l.b16 %v9681
    %v9810 = vunpack.c.l.b16 %v9682
    %v9811 = vunpack.c.l.b16 %v9683
    %v9812 = vunpack.c.l.b16 %v9684
    %v9813 = vunpack.c.l.b16 %v9685
    %v9814 = vunpack.c.l.b16 %v9686
    %v9815 = vunpack.c.l.b16 %v9687
    %v9816 = vunpack.c.l.b16 %v9688
    %v9817 = vunpack.c.l.b16 %v9689
    %v9818 = vunpack.c.l.b16 %v9690
    %v9819 = vunpack.c.l.b16 %v9691
    %v9820 = vunpack.c.l.b16 %v9692
    %v9821 = vunpack.c.l.b16 %v9693
    %v9822 = vunpack.c.l.b16 %v9694
    %v9823 = vunpack.c.l.b16 %v9695
    %v9824 = vunpack.c.l.b16 %v9696
    %v9825 = vunpack.c.l.b16 %v9697
    %v9826 = vunpack.c.l.b16 %v9698
    %v9827 = vpack.c.b16 %v9764, %v9763
    %v9828 = vpack.c.b16 %v9766, %v9765
    %v9829 = vpack.c.b16 %v9768, %v9767
    %v9830 = vpack.c.b16 %v9770, %v9769
    %v9831 = vpack.c.b16 %v9772, %v9771
    %v9832 = vpack.c.b16 %v9774, %v9773
    %v9833 = vpack.c.b16 %v9776, %v9775
    %v9834 = vpack.c.b16 %v9778, %v9777
    %v9835 = vpack.c.b16 %v9780, %v9779
    %v9836 = vpack.c.b16 %v9782, %v9781
    %v9837 = vpack.c.b16 %v9784, %v9783
    %v9838 = vpack.c.b16 %v9786, %v9785
    %v9839 = vpack.c.b16 %v9788, %v9787
    %v9840 = vpack.c.b16 %v9790, %v9789
    %v9841 = vpack.c.b16 %v9792, %v9791
    %v9842 = vpack.c.b16 %v9794, %v9793
    %v9843 = vpack.c.b16 %v9796, %v9795
    %v9844 = vpack.c.b16 %v9798, %v9797
    %v9845 = vpack.c.b16 %v9800, %v9799
    %v9846 = vpack.c.b16 %v9802, %v9801
    %v9847 = vpack.c.b16 %v9804, %v9803
    %v9848 = vpack.c.b16 %v9806, %v9805
    %v9849 = vpack.c.b16 %v9808, %v9807
    %v9850 = vpack.c.b16 %v9810, %v9809
    %v9851 = vpack.c.b16 %v9812, %v9811
    %v9852 = vpack.c.b16 %v9814, %v9813
    %v9853 = vpack.c.b16 %v9816, %v9815
    %v9854 = vpack.c.b16 %v9818, %v9817
    %v9855 = vpack.c.b16 %v9820, %v9819
    %v9856 = vpack.c.b16 %v9822, %v9821
    %v9857 = vpack.c.b16 %v9824, %v9823
    %v9858 = vpack.c.b16 %v9826, %v9825
    %v9891 = vmul.bf16 %v9603, %v9827
    %v9892 = vmul.bf16 %v9604, %v9828
    %v9893 = vmul.bf16 %v9605, %v9829
    %v9894 = vmul.bf16 %v9606, %v9830
    %v9895 = vmul.bf16 %v9607, %v9831
    %v9896 = vmul.bf16 %v9608, %v9832
    %v9897 = vmul.bf16 %v9609, %v9833
    %v9898 = vmul.bf16 %v9610, %v9834
    %v9899 = vmul.bf16 %v9611, %v9835
    %v9900 = vmul.bf16 %v9612, %v9836
    %v9901 = vmul.bf16 %v9613, %v9837
    %v9902 = vmul.bf16 %v9614, %v9838
    %v9903 = vmul.bf16 %v9615, %v9839
    %v9904 = vmul.bf16 %v9616, %v9840
    %v9905 = vmul.bf16 %v9617, %v9841
    %v9906 = vmul.bf16 %v9618, %v9842
    %v9907 = vmul.bf16 %v9619, %v9843
    %v9908 = vmul.bf16 %v9620, %v9844
    %v9909 = vmul.bf16 %v9621, %v9845
    %v9910 = vmul.bf16 %v9622, %v9846
    %v9911 = vmul.bf16 %v9623, %v9847
    %v9912 = vmul.bf16 %v9624, %v9848
    %v9913 = vmul.bf16 %v9625, %v9849
    %v9914 = vmul.bf16 %v9626, %v9850
    %v9915 = vmul.bf16 %v9627, %v9851
    %v9916 = vmul.bf16 %v9628, %v9852
    %v9917 = vmul.bf16 %v9629, %v9853
    %v9918 = vmul.bf16 %v9630, %v9854
    %v9919 = vmul.bf16 %v9631, %v9855
    %v9920 = vmul.bf16 %v9632, %v9856
    %v9921 = vmul.bf16 %v9633, %v9857
    %v9922 = vmul.bf16 %v9634, %v9858
    %9923 = vst [vmem:[#allocation2 + $0x20] sm:$0xff] %v9891
    %9924 = vst [vmem:[#allocation2 + $0x48] sm:$0xff] %v9892
    %9925 = vst [vmem:[#allocation2 + $0x70] sm:$0xff] %v9893
    %9926 = vst [vmem:[#allocation2 + $0x98] sm:$0xff] %v9894
    %9927 = vst [vmem:[#allocation2 + $0xc0] sm:$0xff] %v9895
    %9928 = vst [vmem:[#allocation2 + $0xe8] sm:$0xff] %v9896
    %9929 = vst [vmem:[#allocation2 + $0x110] sm:$0xff] %v9897
    %9930 = vst [vmem:[#allocation2 + $0x138] sm:$0xff] %v9898
    %9931 = vst [vmem:[#allocation2 + $0x160] sm:$0xff] %v9899
    %9932 = vst [vmem:[#allocation2 + $0x188] sm:$0xff] %v9900
    %9933 = vst [vmem:[#allocation2 + $0x1b0] sm:$0xff] %v9901
    %9934 = vst [vmem:[#allocation2 + $0x1d8] sm:$0xff] %v9902
    %9935 = vst [vmem:[#allocation2 + $0x200] sm:$0xff] %v9903
    %9936 = vst [vmem:[#allocation2 + $0x228] sm:$0xff] %v9904
    %9937 = vst [vmem:[#allocation2 + $0x250] sm:$0xff] %v9905
    %9938 = vst [vmem:[#allocation2 + $0x278] sm:$0xff] %v9906
    %9939 = vst [vmem:[#allocation2 + $0x2a0] sm:$0xff] %v9907
    %9940 = vst [vmem:[#allocation2 + $0x2c8] sm:$0xff] %v9908
    %9941 = vst [vmem:[#allocation2 + $0x2f0] sm:$0xff] %v9909
    %9942 = vst [vmem:[#allocation2 + $0x318] sm:$0xff] %v9910
    %9943 = vst [vmem:[#allocation2 + $0x340] sm:$0xff] %v9911
    %9944 = vst [vmem:[#allocation2 + $0x368] sm:$0xff] %v9912
    %9945 = vst [vmem:[#allocation2 + $0x390] sm:$0xff] %v9913
    %9946 = vst [vmem:[#allocation2 + $0x3b8] sm:$0xff] %v9914
    %9947 = vst [vmem:[#allocation2 + $0x3e0] sm:$0xff] %v9915
    %9948 = vst [vmem:[#allocation2 + $0x408] sm:$0xff] %v9916
    %9949 = vst [vmem:[#allocation2 + $0x430] sm:$0xff] %v9917
    %9950 = vst [vmem:[#allocation2 + $0x458] sm:$0xff] %v9918
    %9951 = vst [vmem:[#allocation2 + $0x480] sm:$0xff] %v9919
    %9952 = vst [vmem:[#allocation2 + $0x4a8] sm:$0xff] %v9920
    %9953 = vst [vmem:[#allocation2 + $0x4d0] sm:$0xff] %v9921
    %9954 = vst [vmem:[#allocation2 + $0x4f8] sm:$0xff] %v9922
    %v9955 = vld [vmem:[#allocation2] sm:$0xff]
    %v9956 = vld [vmem:[#allocation2 + $0x8] sm:$0xff]
    %v9957 = vld [vmem:[#allocation2 + $0x10] sm:$0xff]
    %v9958 = vld [vmem:[#allocation2 + $0x18] sm:$0xff]
    %v9959 = vld [vmem:[#allocation2 + $0x20] sm:$0xff]
    %v9960 = vld [vmem:[#allocation2 + $0x28] sm:$0xff]
    %v9961 = vld [vmem:[#allocation2 + $0x30] sm:$0xff]
    %v9962 = vld [vmem:[#allocation2 + $0x38] sm:$0xff]
    %v9963 = vld [vmem:[#allocation2 + $0x40] sm:$0xff]
    %v9964 = vld [vmem:[#allocation2 + $0x48] sm:$0xff]
    %v9965 = vld [vmem:[#allocation2 + $0x50] sm:$0xff]
    %v9966 = vld [vmem:[#allocation2 + $0x58] sm:$0xff]
    %v9967 = vld [vmem:[#allocation2 + $0x60] sm:$0xff]
    %v9968 = vld [vmem:[#allocation2 + $0x68] sm:$0xff]
    %v9969 = vld [vmem:[#allocation2 + $0x70] sm:$0xff]
    %v9970 = vld [vmem:[#allocation2 + $0x78] sm:$0xff]
    %v9971 = vld [vmem:[#allocation2 + $0x80] sm:$0xff]
    %v9972 = vld [vmem:[#allocation2 + $0x88] sm:$0xff]
    %v9973 = vld [vmem:[#allocation2 + $0x90] sm:$0xff]
    %v9974 = vld [vmem:[#allocation2 + $0x98] sm:$0xff]
    %v9975 = vld [vmem:[#allocation2 + $0xa0] sm:$0xff]
    %v9976 = vld [vmem:[#allocation2 + $0xa8] sm:$0xff]
    %v9977 = vld [vmem:[#allocation2 + $0xb0] sm:$0xff]
    %v9978 = vld [vmem:[#allocation2 + $0xb8] sm:$0xff]
    %v9979 = vld [vmem:[#allocation2 + $0xc0] sm:$0xff]
    %v9980 = vld [vmem:[#allocation2 + $0xc8] sm:$0xff]
    %v9981 = vld [vmem:[#allocation2 + $0xd0] sm:$0xff]
    %v9982 = vld [vmem:[#allocation2 + $0xd8] sm:$0xff]
    %v9983 = vld [vmem:[#allocation2 + $0xe0] sm:$0xff]
    %v9984 = vld [vmem:[#allocation2 + $0xe8] sm:$0xff]
    %v9985 = vld [vmem:[#allocation2 + $0xf0] sm:$0xff]
    %v9986 = vld [vmem:[#allocation2 + $0xf8] sm:$0xff]
    %v9987 = vld [vmem:[#allocation2 + $0x100] sm:$0xff]
    %v9988 = vld [vmem:[#allocation2 + $0x108] sm:$0xff]
    %v9989 = vld [vmem:[#allocation2 + $0x110] sm:$0xff]
    %v9990 = vld [vmem:[#allocation2 + $0x118] sm:$0xff]
    %v9991 = vld [vmem:[#allocation2 + $0x120] sm:$0xff]
    %v9992 = vld [vmem:[#allocation2 + $0x128] sm:$0xff]
    %v9993 = vld [vmem:[#allocation2 + $0x130] sm:$0xff]
    %v9994 = vld [vmem:[#allocation2 + $0x138] sm:$0xff]
    %v9995 = vld [vmem:[#allocation2 + $0x140] sm:$0xff]
    %v9996 = vld [vmem:[#allocation2 + $0x148] sm:$0xff]
    %v9997 = vld [vmem:[#allocation2 + $0x150] sm:$0xff]
    %v9998 = vld [vmem:[#allocation2 + $0x158] sm:$0xff]
    %v9999 = vld [vmem:[#allocation2 + $0x160] sm:$0xff]
    %v10000 = vld [vmem:[#allocation2 + $0x168] sm:$0xff]
    %v10001 = vld [vmem:[#allocation2 + $0x170] sm:$0xff]
    %v10002 = vld [vmem:[#allocation2 + $0x178] sm:$0xff]
    %v10003 = vld [vmem:[#allocation2 + $0x180] sm:$0xff]
    %v10004 = vld [vmem:[#allocation2 + $0x188] sm:$0xff]
    %v10005 = vld [vmem:[#allocation2 + $0x190] sm:$0xff]
    %v10006 = vld [vmem:[#allocation2 + $0x198] sm:$0xff]
    %v10007 = vld [vmem:[#allocation2 + $0x1a0] sm:$0xff]
    %v10008 = vld [vmem:[#allocation2 + $0x1a8] sm:$0xff]
    %v10009 = vld [vmem:[#allocation2 + $0x1b0] sm:$0xff]
    %v10010 = vld [vmem:[#allocation2 + $0x1b8] sm:$0xff]
    %v10011 = vld [vmem:[#allocation2 + $0x1c0] sm:$0xff]
    %v10012 = vld [vmem:[#allocation2 + $0x1c8] sm:$0xff]
    %v10013 = vld [vmem:[#allocation2 + $0x1d0] sm:$0xff]
    %v10014 = vld [vmem:[#allocation2 + $0x1d8] sm:$0xff]
    %v10015 = vld [vmem:[#allocation2 + $0x1e0] sm:$0xff]
    %v10016 = vld [vmem:[#allocation2 + $0x1e8] sm:$0xff]
    %v10017 = vld [vmem:[#allocation2 + $0x1f0] sm:$0xff]
    %v10018 = vld [vmem:[#allocation2 + $0x1f8] sm:$0xff]
    %v10019 = vld [vmem:[#allocation2 + $0x200] sm:$0xff]
    %v10020 = vld [vmem:[#allocation2 + $0x208] sm:$0xff]
    %v10021 = vld [vmem:[#allocation2 + $0x210] sm:$0xff]
    %v10022 = vld [vmem:[#allocation2 + $0x218] sm:$0xff]
    %v10023 = vld [vmem:[#allocation2 + $0x220] sm:$0xff]
    %v10024 = vld [vmem:[#allocation2 + $0x228] sm:$0xff]
    %v10025 = vld [vmem:[#allocation2 + $0x230] sm:$0xff]
    %v10026 = vld [vmem:[#allocation2 + $0x238] sm:$0xff]
    %v10027 = vld [vmem:[#allocation2 + $0x240] sm:$0xff]
    %v10028 = vld [vmem:[#allocation2 + $0x248] sm:$0xff]
    %v10029 = vld [vmem:[#allocation2 + $0x250] sm:$0xff]
    %v10030 = vld [vmem:[#allocation2 + $0x258] sm:$0xff]
    %v10031 = vld [vmem:[#allocation2 + $0x260] sm:$0xff]
    %v10032 = vld [vmem:[#allocation2 + $0x268] sm:$0xff]
    %v10033 = vld [vmem:[#allocation2 + $0x270] sm:$0xff]
    %v10034 = vld [vmem:[#allocation2 + $0x278] sm:$0xff]
    %v10035 = vld [vmem:[#allocation2 + $0x280] sm:$0xff]
    %v10036 = vld [vmem:[#allocation2 + $0x288] sm:$0xff]
    %v10037 = vld [vmem:[#allocation2 + $0x290] sm:$0xff]
    %v10038 = vld [vmem:[#allocation2 + $0x298] sm:$0xff]
    %v10039 = vld [vmem:[#allocation2 + $0x2a0] sm:$0xff]
    %v10040 = vld [vmem:[#allocation2 + $0x2a8] sm:$0xff]
    %v10041 = vld [vmem:[#allocation2 + $0x2b0] sm:$0xff]
    %v10042 = vld [vmem:[#allocation2 + $0x2b8] sm:$0xff]
    %v10043 = vld [vmem:[#allocation2 + $0x2c0] sm:$0xff]
    %v10044 = vld [vmem:[#allocation2 + $0x2c8] sm:$0xff]
    %v10045 = vld [vmem:[#allocation2 + $0x2d0] sm:$0xff]
    %v10046 = vld [vmem:[#allocation2 + $0x2d8] sm:$0xff]
    %v10047 = vld [vmem:[#allocation2 + $0x2e0] sm:$0xff]
    %v10048 = vld [vmem:[#allocation2 + $0x2e8] sm:$0xff]
    %v10049 = vld [vmem:[#allocation2 + $0x2f0] sm:$0xff]
    %v10050 = vld [vmem:[#allocation2 + $0x2f8] sm:$0xff]
    %v10051 = vld [vmem:[#allocation2 + $0x300] sm:$0xff]
    %v10052 = vld [vmem:[#allocation2 + $0x308] sm:$0xff]
    %v10053 = vld [vmem:[#allocation2 + $0x310] sm:$0xff]
    %v10054 = vld [vmem:[#allocation2 + $0x318] sm:$0xff]
    %v10055 = vld [vmem:[#allocation2 + $0x320] sm:$0xff]
    %v10056 = vld [vmem:[#allocation2 + $0x328] sm:$0xff]
    %v10057 = vld [vmem:[#allocation2 + $0x330] sm:$0xff]
    %v10058 = vld [vmem:[#allocation2 + $0x338] sm:$0xff]
    %v10059 = vld [vmem:[#allocation2 + $0x340] sm:$0xff]
    %v10060 = vld [vmem:[#allocation2 + $0x348] sm:$0xff]
    %v10061 = vld [vmem:[#allocation2 + $0x350] sm:$0xff]
    %v10062 = vld [vmem:[#allocation2 + $0x358] sm:$0xff]
    %v10063 = vld [vmem:[#allocation2 + $0x360] sm:$0xff]
    %v10064 = vld [vmem:[#allocation2 + $0x368] sm:$0xff]
    %v10065 = vld [vmem:[#allocation2 + $0x370] sm:$0xff]
    %v10066 = vld [vmem:[#allocation2 + $0x378] sm:$0xff]
    %v10067 = vld [vmem:[#allocation2 + $0x380] sm:$0xff]
    %v10068 = vld [vmem:[#allocation2 + $0x388] sm:$0xff]
    %v10069 = vld [vmem:[#allocation2 + $0x390] sm:$0xff]
    %v10070 = vld [vmem:[#allocation2 + $0x398] sm:$0xff]
    %v10071 = vld [vmem:[#allocation2 + $0x3a0] sm:$0xff]
    %v10072 = vld [vmem:[#allocation2 + $0x3a8] sm:$0xff]
    %v10073 = vld [vmem:[#allocation2 + $0x3b0] sm:$0xff]
    %v10074 = vld [vmem:[#allocation2 + $0x3b8] sm:$0xff]
    %v10075 = vld [vmem:[#allocation2 + $0x3c0] sm:$0xff]
    %v10076 = vld [vmem:[#allocation2 + $0x3c8] sm:$0xff]
    %v10077 = vld [vmem:[#allocation2 + $0x3d0] sm:$0xff]
    %v10078 = vld [vmem:[#allocation2 + $0x3d8] sm:$0xff]
    %v10079 = vld [vmem:[#allocation2 + $0x3e0] sm:$0xff]
    %v10080 = vld [vmem:[#allocation2 + $0x3e8] sm:$0xff]
    %v10081 = vld [vmem:[#allocation2 + $0x3f0] sm:$0xff]
    %v10082 = vld [vmem:[#allocation2 + $0x3f8] sm:$0xff]
    %v10083 = vld [vmem:[#allocation2 + $0x400] sm:$0xff]
    %v10084 = vld [vmem:[#allocation2 + $0x408] sm:$0xff]
    %v10085 = vld [vmem:[#allocation2 + $0x410] sm:$0xff]
    %v10086 = vld [vmem:[#allocation2 + $0x418] sm:$0xff]
    %v10087 = vld [vmem:[#allocation2 + $0x420] sm:$0xff]
    %v10088 = vld [vmem:[#allocation2 + $0x428] sm:$0xff]
    %v10089 = vld [vmem:[#allocation2 + $0x430] sm:$0xff]
    %v10090 = vld [vmem:[#allocation2 + $0x438] sm:$0xff]
    %v10091 = vld [vmem:[#allocation2 + $0x440] sm:$0xff]
    %v10092 = vld [vmem:[#allocation2 + $0x448] sm:$0xff]
    %v10093 = vld [vmem:[#allocation2 + $0x450] sm:$0xff]
    %v10094 = vld [vmem:[#allocation2 + $0x458] sm:$0xff]
    %v10095 = vld [vmem:[#allocation2 + $0x460] sm:$0xff]
    %v10096 = vld [vmem:[#allocation2 + $0x468] sm:$0xff]
    %v10097 = vld [vmem:[#allocation2 + $0x470] sm:$0xff]
    %v10098 = vld [vmem:[#allocation2 + $0x478] sm:$0xff]
    %v10099 = vld [vmem:[#allocation2 + $0x480] sm:$0xff]
    %v10100 = vld [vmem:[#allocation2 + $0x488] sm:$0xff]
    %v10101 = vld [vmem:[#allocation2 + $0x490] sm:$0xff]
    %v10102 = vld [vmem:[#allocation2 + $0x498] sm:$0xff]
    %v10103 = vld [vmem:[#allocation2 + $0x4a0] sm:$0xff]
    %v10104 = vld [vmem:[#allocation2 + $0x4a8] sm:$0xff]
    %v10105 = vld [vmem:[#allocation2 + $0x4b0] sm:$0xff]
    %v10106 = vld [vmem:[#allocation2 + $0x4b8] sm:$0xff]
    %v10107 = vld [vmem:[#allocation2 + $0x4c0] sm:$0xff]
    %v10108 = vld [vmem:[#allocation2 + $0x4c8] sm:$0xff]
    %v10109 = vld [vmem:[#allocation2 + $0x4d0] sm:$0xff]
    %v10110 = vld [vmem:[#allocation2 + $0x4d8] sm:$0xff]
    %v10111 = vld [vmem:[#allocation2 + $0x4e0] sm:$0xff]
    %v10112 = vld [vmem:[#allocation2 + $0x4e8] sm:$0xff]
    %v10113 = vld [vmem:[#allocation2 + $0x4f0] sm:$0xff]
    %v10114 = vld [vmem:[#allocation2 + $0x4f8] sm:$0xff]
    %v10115 = vld [vmem:[#allocation11] sm:$0xf]
    %v10116 = vld [vmem:[#allocation11 + $0x4] sm:$0xf]
    %v10117 = vld [vmem:[#allocation11 + $0x8] sm:$0xf]
    %v10118 = vld [vmem:[#allocation11 + $0xc] sm:$0xf]
    %v10119 = vld [vmem:[#allocation11 + $0x10] sm:$0xf]
    %v10120 = vld [vmem:[#allocation11 + $0x14] sm:$0xf]
    %v10121 = vld [vmem:[#allocation11 + $0x18] sm:$0xf]
    %v10122 = vld [vmem:[#allocation11 + $0x1c] sm:$0xf]
    %v10123 = vld [vmem:[#allocation11 + $0x20] sm:$0xf]
    %v10124 = vld [vmem:[#allocation11 + $0x24] sm:$0xf]
    %v10125 = vld [vmem:[#allocation11 + $0x28] sm:$0xf]
    %v10126 = vld [vmem:[#allocation11 + $0x2c] sm:$0xf]
    %v10127 = vld [vmem:[#allocation11 + $0x30] sm:$0xf]
    %v10128 = vld [vmem:[#allocation11 + $0x34] sm:$0xf]
    %v10129 = vld [vmem:[#allocation11 + $0x38] sm:$0xf]
    %v10130 = vld [vmem:[#allocation11 + $0x3c] sm:$0xf]
    %v10131 = vld [vmem:[#allocation11 + $0x40] sm:$0xf]
    %v10132 = vld [vmem:[#allocation11 + $0x44] sm:$0xf]
    %v10133 = vld [vmem:[#allocation11 + $0x48] sm:$0xf]
    %v10134 = vld [vmem:[#allocation11 + $0x4c] sm:$0xf]
    %v10135 = vld [vmem:[#allocation11 + $0x50] sm:$0xf]
    %v10136 = vld [vmem:[#allocation11 + $0x54] sm:$0xf]
    %v10137 = vld [vmem:[#allocation11 + $0x58] sm:$0xf]
    %v10138 = vld [vmem:[#allocation11 + $0x5c] sm:$0xf]
    %v10139 = vld [vmem:[#allocation11 + $0x60] sm:$0xf]
    %v10140 = vld [vmem:[#allocation11 + $0x64] sm:$0xf]
    %v10141 = vld [vmem:[#allocation11 + $0x68] sm:$0xf]
    %v10142 = vld [vmem:[#allocation11 + $0x6c] sm:$0xf]
    %v10143 = vld [vmem:[#allocation11 + $0x70] sm:$0xf]
    %v10144 = vld [vmem:[#allocation11 + $0x74] sm:$0xf]
    %v10145 = vld [vmem:[#allocation11 + $0x78] sm:$0xf]
    %v10146 = vld [vmem:[#allocation11 + $0x7c] sm:$0xf]
    %v10147 = vld [vmem:[#allocation11 + $0x80] sm:$0xf]
    %v10148 = vld [vmem:[#allocation11 + $0x84] sm:$0xf]
    %v10149 = vld [vmem:[#allocation11 + $0x88] sm:$0xf]
    %v10150 = vld [vmem:[#allocation11 + $0x8c] sm:$0xf]
    %v10151 = vld [vmem:[#allocation11 + $0x90] sm:$0xf]
    %v10152 = vld [vmem:[#allocation11 + $0x94] sm:$0xf]
    %v10153 = vld [vmem:[#allocation11 + $0x98] sm:$0xf]
    %v10154 = vld [vmem:[#allocation11 + $0x9c] sm:$0xf]
    %v10155 = vld [vmem:[#allocation11 + $0xa0] sm:$0xf]
    %v10156 = vld [vmem:[#allocation11 + $0xa4] sm:$0xf]
    %v10157 = vld [vmem:[#allocation11 + $0xa8] sm:$0xf]
    %v10158 = vld [vmem:[#allocation11 + $0xac] sm:$0xf]
    %v10159 = vld [vmem:[#allocation11 + $0xb0] sm:$0xf]
    %v10160 = vld [vmem:[#allocation11 + $0xb4] sm:$0xf]
    %v10161 = vld [vmem:[#allocation11 + $0xb8] sm:$0xf]
    %v10162 = vld [vmem:[#allocation11 + $0xbc] sm:$0xf]
    %v10163 = vld [vmem:[#allocation11 + $0xc0] sm:$0xf]
    %v10164 = vld [vmem:[#allocation11 + $0xc4] sm:$0xf]
    %v10165 = vld [vmem:[#allocation11 + $0xc8] sm:$0xf]
    %v10166 = vld [vmem:[#allocation11 + $0xcc] sm:$0xf]
    %v10167 = vld [vmem:[#allocation11 + $0xd0] sm:$0xf]
    %v10168 = vld [vmem:[#allocation11 + $0xd4] sm:$0xf]
    %v10169 = vld [vmem:[#allocation11 + $0xd8] sm:$0xf]
    %v10170 = vld [vmem:[#allocation11 + $0xdc] sm:$0xf]
    %v10171 = vld [vmem:[#allocation11 + $0xe0] sm:$0xf]
    %v10172 = vld [vmem:[#allocation11 + $0xe4] sm:$0xf]
    %v10173 = vld [vmem:[#allocation11 + $0xe8] sm:$0xf]
    %v10174 = vld [vmem:[#allocation11 + $0xec] sm:$0xf]
    %v10175 = vld [vmem:[#allocation11 + $0xf0] sm:$0xf]
    %v10176 = vld [vmem:[#allocation11 + $0xf4] sm:$0xf]
    %v10177 = vld [vmem:[#allocation11 + $0xf8] sm:$0xf]
    %v10178 = vld [vmem:[#allocation11 + $0xfc] sm:$0xf]
    %v10179 = vld [vmem:[#allocation11 + $0x100] sm:$0xf]
    %v10180 = vld [vmem:[#allocation11 + $0x104] sm:$0xf]
    %v10181 = vld [vmem:[#allocation11 + $0x108] sm:$0xf]
    %v10182 = vld [vmem:[#allocation11 + $0x10c] sm:$0xf]
    %v10183 = vld [vmem:[#allocation11 + $0x110] sm:$0xf]
    %v10184 = vld [vmem:[#allocation11 + $0x114] sm:$0xf]
    %v10185 = vld [vmem:[#allocation11 + $0x118] sm:$0xf]
    %v10186 = vld [vmem:[#allocation11 + $0x11c] sm:$0xf]
    %v10187 = vld [vmem:[#allocation11 + $0x120] sm:$0xf]
    %v10188 = vld [vmem:[#allocation11 + $0x124] sm:$0xf]
    %v10189 = vld [vmem:[#allocation11 + $0x128] sm:$0xf]
    %v10190 = vld [vmem:[#allocation11 + $0x12c] sm:$0xf]
    %v10191 = vld [vmem:[#allocation11 + $0x130] sm:$0xf]
    %v10192 = vld [vmem:[#allocation11 + $0x134] sm:$0xf]
    %v10193 = vld [vmem:[#allocation11 + $0x138] sm:$0xf]
    %v10194 = vld [vmem:[#allocation11 + $0x13c] sm:$0xf]
    %v10196 = vlaneseq
    %v10197 = vshrl.u32 %v10196, 7
    %v10198 = vsub.s32 0, %v10197
    %v10199 = vrot.slane %v6946, %v10198
    %v10281 = vunpack.c.l.b16 %v10115
    %v10282 = vunpack.c.l.b16 %v10116
    %v10283 = vunpack.c.l.b16 %v10117
    %v10284 = vunpack.c.l.b16 %v10118
    %v10285 = vunpack.c.l.b16 %v10119
    %v10286 = vunpack.c.l.b16 %v10120
    %v10287 = vunpack.c.l.b16 %v10121
    %v10288 = vunpack.c.l.b16 %v10122
    %v10289 = vunpack.c.l.b16 %v10123
    %v10290 = vunpack.c.l.b16 %v10124
    %v10291 = vunpack.c.l.b16 %v10125
    %v10292 = vunpack.c.l.b16 %v10126
    %v10293 = vunpack.c.l.b16 %v10127
    %v10294 = vunpack.c.l.b16 %v10128
    %v10295 = vunpack.c.l.b16 %v10129
    %v10296 = vunpack.c.l.b16 %v10130
    %v10297 = vunpack.c.l.b16 %v10131
    %v10298 = vunpack.c.l.b16 %v10132
    %v10299 = vunpack.c.l.b16 %v10133
    %v10300 = vunpack.c.l.b16 %v10134
    %v10301 = vunpack.c.l.b16 %v10135
    %v10302 = vunpack.c.l.b16 %v10136
    %v10303 = vunpack.c.l.b16 %v10137
    %v10304 = vunpack.c.l.b16 %v10138
    %v10305 = vunpack.c.l.b16 %v10139
    %v10306 = vunpack.c.l.b16 %v10140
    %v10307 = vunpack.c.l.b16 %v10141
    %v10308 = vunpack.c.l.b16 %v10142
    %v10309 = vunpack.c.l.b16 %v10143
    %v10310 = vunpack.c.l.b16 %v10144
    %v10311 = vunpack.c.l.b16 %v10145
    %v10312 = vunpack.c.l.b16 %v10146
    %v10313 = vunpack.c.l.b16 %v10147
    %v10314 = vunpack.c.l.b16 %v10148
    %v10315 = vunpack.c.l.b16 %v10149
    %v10316 = vunpack.c.l.b16 %v10150
    %v10317 = vunpack.c.l.b16 %v10151
    %v10318 = vunpack.c.l.b16 %v10152
    %v10319 = vunpack.c.l.b16 %v10153
    %v10320 = vunpack.c.l.b16 %v10154
    %v10321 = vunpack.c.l.b16 %v10155
    %v10322 = vunpack.c.l.b16 %v10156
    %v10323 = vunpack.c.l.b16 %v10157
    %v10324 = vunpack.c.l.b16 %v10158
    %v10325 = vunpack.c.l.b16 %v10159
    %v10326 = vunpack.c.l.b16 %v10160
    %v10327 = vunpack.c.l.b16 %v10161
    %v10328 = vunpack.c.l.b16 %v10162
    %v10329 = vunpack.c.l.b16 %v10163
    %v10330 = vunpack.c.l.b16 %v10164
    %v10331 = vunpack.c.l.b16 %v10165
    %v10332 = vunpack.c.l.b16 %v10166
    %v10333 = vunpack.c.l.b16 %v10167
    %v10334 = vunpack.c.l.b16 %v10168
    %v10335 = vunpack.c.l.b16 %v10169
    %v10336 = vunpack.c.l.b16 %v10170
    %v10337 = vunpack.c.l.b16 %v10171
    %v10338 = vunpack.c.l.b16 %v10172
    %v10339 = vunpack.c.l.b16 %v10173
    %v10340 = vunpack.c.l.b16 %v10174
    %v10341 = vunpack.c.l.b16 %v10175
    %v10342 = vunpack.c.l.b16 %v10176
    %v10343 = vunpack.c.l.b16 %v10177
    %v10344 = vunpack.c.l.b16 %v10178
    %v10345 = vunpack.c.l.b16 %v10179
    %v10346 = vunpack.c.l.b16 %v10180
    %v10347 = vunpack.c.l.b16 %v10181
    %v10348 = vunpack.c.l.b16 %v10182
    %v10349 = vunpack.c.l.b16 %v10183
    %v10350 = vunpack.c.l.b16 %v10184
    %v10351 = vunpack.c.l.b16 %v10185
    %v10352 = vunpack.c.l.b16 %v10186
    %v10353 = vunpack.c.l.b16 %v10187
    %v10354 = vunpack.c.l.b16 %v10188
    %v10355 = vunpack.c.l.b16 %v10189
    %v10356 = vunpack.c.l.b16 %v10190
    %v10357 = vunpack.c.l.b16 %v10191
    %v10358 = vunpack.c.l.b16 %v10192
    %v10359 = vunpack.c.l.b16 %v10193
    %v10360 = vunpack.c.l.b16 %v10194
    %v10361 = vpack.c.b16 %v10282, %v10281
    %v10362 = vpack.c.b16 %v10284, %v10283
    %v10363 = vpack.c.b16 %v10286, %v10285
    %v10364 = vpack.c.b16 %v10288, %v10287
    %v10365 = vpack.c.b16 %v10290, %v10289
    %v10366 = vpack.c.b16 %v10292, %v10291
    %v10367 = vpack.c.b16 %v10294, %v10293
    %v10368 = vpack.c.b16 %v10296, %v10295
    %v10369 = vpack.c.b16 %v10298, %v10297
    %v10370 = vpack.c.b16 %v10300, %v10299
    %v10371 = vpack.c.b16 %v10302, %v10301
    %v10372 = vpack.c.b16 %v10304, %v10303
    %v10373 = vpack.c.b16 %v10306, %v10305
    %v10374 = vpack.c.b16 %v10308, %v10307
    %v10375 = vpack.c.b16 %v10310, %v10309
    %v10376 = vpack.c.b16 %v10312, %v10311
    %v10377 = vpack.c.b16 %v10314, %v10313
    %v10378 = vpack.c.b16 %v10316, %v10315
    %v10379 = vpack.c.b16 %v10318, %v10317
    %v10380 = vpack.c.b16 %v10320, %v10319
    %v10381 = vpack.c.b16 %v10322, %v10321
    %v10382 = vpack.c.b16 %v10324, %v10323
    %v10383 = vpack.c.b16 %v10326, %v10325
    %v10384 = vpack.c.b16 %v10328, %v10327
    %v10385 = vpack.c.b16 %v10330, %v10329
    %v10386 = vpack.c.b16 %v10332, %v10331
    %v10387 = vpack.c.b16 %v10334, %v10333
    %v10388 = vpack.c.b16 %v10336, %v10335
    %v10389 = vpack.c.b16 %v10338, %v10337
    %v10390 = vpack.c.b16 %v10340, %v10339
    %v10391 = vpack.c.b16 %v10342, %v10341
    %v10392 = vpack.c.b16 %v10344, %v10343
    %v10393 = vpack.c.b16 %v10346, %v10345
    %v10394 = vpack.c.b16 %v10348, %v10347
    %v10395 = vpack.c.b16 %v10350, %v10349
    %v10396 = vpack.c.b16 %v10352, %v10351
    %v10397 = vpack.c.b16 %v10354, %v10353
    %v10398 = vpack.c.b16 %v10356, %v10355
    %v10399 = vpack.c.b16 %v10358, %v10357
    %v10400 = vpack.c.b16 %v10360, %v10359
    %10441 = vmatprep.subr.bf16.mxu0 0
    %10442 = vmatpush1.bf16.msra.mxu0 %v10361
    %10443 = vmatprep.subr.bf16.mxu0 0
    %10444 = vmatpush1.bf16.msra.mxu0 %v10362
    %10445 = vmatprep.subr.bf16.mxu0 0
    %10446 = vmatpush1.bf16.msra.mxu0 %v10363
    %10447 = vmatprep.subr.bf16.mxu0 0
    %10448 = vmatpush1.bf16.msra.mxu0 %v10364
    %10449 = vmatprep.subr.bf16.mxu0 0
    %10450 = vmatpush1.bf16.msra.mxu0 %v10365
    %10451 = vmatprep.subr.bf16.mxu0 0
    %10452 = vmatpush1.bf16.msra.mxu0 %v10366
    %10453 = vmatprep.subr.bf16.mxu0 0
    %10454 = vmatpush1.bf16.msra.mxu0 %v10367
    %10455 = vmatprep.subr.bf16.mxu0 0
    %10456 = vmatpush1.bf16.msra.mxu0 %v10368
    %10457 = vmatprep.subr.bf16.mxu0 0
    %10458 = vmatpush1.bf16.msra.mxu0 %v10369
    %10459 = vmatprep.subr.bf16.mxu0 0
    %10460 = vmatpush1.bf16.msra.mxu0 %v10370
    %10461 = vmatprep.subr.bf16.mxu0 0
    %10462 = vmatpush1.bf16.msra.mxu0 %v10371
    %10463 = vmatprep.subr.bf16.mxu0 0
    %10464 = vmatpush1.bf16.msra.mxu0 %v10372
    %10465 = vmatprep.subr.bf16.mxu0 0
    %10466 = vmatpush1.bf16.msra.mxu0 %v10373
    %10467 = vmatprep.subr.bf16.mxu0 0
    %10468 = vmatpush1.bf16.msra.mxu0 %v10374
    %10469 = vmatprep.subr.bf16.mxu0 0
    %10470 = vmatpush1.bf16.msra.mxu0 %v10375
    %10471 = vmatprep.subr.bf16.mxu0 0
    %10472 = vmatpush1.bf16.msra.mxu0 %v10376
    %10473 = vmatprep.mubr.bf16.mxu0 %v9956
    %10474 = vmatmul.mubr.bf16.gmra.mrb[0].mxu0 %v9955
    %v10475 = vpop.f32.mrb[0].mxu0
    %v10476 = vadd.f32 %v10199, %v10475
    %v10477 = vpop.f32.mrb[0].mxu0
    %v10478 = vpop.f32.mrb[0].mxu0
    %v10479 = vadd.f32 %v10199, %v10478
    %v10480 = vpop.f32.mrb[0].mxu0
    %10481 = vmatprep.mubr.bf16.mxu0 %v9961
    %10482 = vmatmul.mubr.bf16.gmra.mrb[0].mxu0 %v9960
    %v10483 = vpop.f32.mrb[0].mxu0
    %v10484 = vadd.f32 %v10199, %v10483
    %v10485 = vpop.f32.mrb[0].mxu0
    %v10486 = vpop.f32.mrb[0].mxu0
    %v10487 = vadd.f32 %v10199, %v10486
    %v10488 = vpop.f32.mrb[0].mxu0
    %10489 = vmatprep.mubr.bf16.mxu0 %v9966
    %10490 = vmatmul.mubr.bf16.gmra.mrb[0].mxu0 %v9965
    %v10491 = vpop.f32.mrb[0].mxu0
    %v10492 = vadd.f32 %v10199, %v10491
    %v10493 = vpop.f32.mrb[0].mxu0
    %v10494 = vpop.f32.mrb[0].mxu0
    %v10495 = vadd.f32 %v10199, %v10494
    %v10496 = vpop.f32.mrb[0].mxu0
    %10497 = vmatprep.mubr.bf16.mxu0 %v9971
    %10498 = vmatmul.mubr.bf16.gmra.mrb[0].mxu0 %v9970
    %v10499 = vpop.f32.mrb[0].mxu0
    %v10500 = vadd.f32 %v10199, %v10499
    %v10501 = vpop.f32.mrb[0].mxu0
    %v10502 = vpop.f32.mrb[0].mxu0
    %v10503 = vadd.f32 %v10199, %v10502
    %v10504 = vpop.f32.mrb[0].mxu0
    %10505 = vmatprep.mubr.bf16.mxu0 %v9976
    %10506 = vmatmul.mubr.bf16.gmra.mrb[0].mxu0 %v9975
    %v10507 = vpop.f32.mrb[0].mxu0
    %v10508 = vadd.f32 %v10199, %v10507
    %v10509 = vpop.f32.mrb[0].mxu0
    %v10510 = vpop.f32.mrb[0].mxu0
    %v10511 = vadd.f32 %v10199, %v10510
    %v10512 = vpop.f32.mrb[0].mxu0
    %10513 = vmatprep.mubr.bf16.mxu0 %v9981
    %10514 = vmatmul.mubr.bf16.gmra.mrb[0].mxu0 %v9980
    %v10515 = vpop.f32.mrb[0].mxu0
    %v10516 = vadd.f32 %v10199, %v10515
    %v10517 = vpop.f32.mrb[0].mxu0
    %v10518 = vpop.f32.mrb[0].mxu0
    %v10519 = vadd.f32 %v10199, %v10518
    %v10520 = vpop.f32.mrb[0].mxu0
    %10521 = vmatprep.mubr.bf16.mxu0 %v9986
    %10522 = vmatmul.mubr.bf16.gmra.mrb[0].mxu0 %v9985
    %v10523 = vpop.f32.mrb[0].mxu0
    %v10524 = vadd.f32 %v10199, %v10523
    %v10525 = vpop.f32.mrb[0].mxu0
    %v10526 = vpop.f32.mrb[0].mxu0
    %v10527 = vadd.f32 %v10199, %v10526
    %v10528 = vpop.f32.mrb[0].mxu0
    %10529 = vmatprep.mubr.bf16.mxu0 %v9991
    %10530 = vmatmul.mubr.bf16.gmra.mrb[0].mxu0 %v9990
    %v10531 = vpop.f32.mrb[0].mxu0
    %v10532 = vadd.f32 %v10199, %v10531
    %v10533 = vpop.f32.mrb[0].mxu0
    %v10534 = vpop.f32.mrb[0].mxu0
    %v10535 = vadd.f32 %v10199, %v10534
    %v10536 = vpop.f32.mrb[0].mxu0
    %10537 = vmatprep.mubr.bf16.mxu0 %v9996
    %10538 = vmatmul.mubr.bf16.gmra.mrb[0].mxu0 %v9995
    %v10539 = vpop.f32.mrb[0].mxu0
    %v10540 = vadd.f32 %v10199, %v10539
    %v10541 = vpop.f32.mrb[0].mxu0
    %v10542 = vpop.f32.mrb[0].mxu0
    %v10543 = vadd.f32 %v10199, %v10542
    %v10544 = vpop.f32.mrb[0].mxu0
    %10545 = vmatprep.mubr.bf16.mxu0 %v10001
    %10546 = vmatmul.mubr.bf16.gmra.mrb[0].mxu0 %v10000
    %v10547 = vpop.f32.mrb[0].mxu0
    %v10548 = vadd.f32 %v10199, %v10547
    %v10549 = vpop.f32.mrb[0].mxu0
    %v10550 = vpop.f32.mrb[0].mxu0
    %v10551 = vadd.f32 %v10199, %v10550
    %v10552 = vpop.f32.mrb[0].mxu0
    %10553 = vmatprep.mubr.bf16.mxu0 %v10006
    %10554 = vmatmul.mubr.bf16.gmra.mrb[0].mxu0 %v10005
    %v10555 = vpop.f32.mrb[0].mxu0
    %v10556 = vadd.f32 %v10199, %v10555
    %v10557 = vpop.f32.mrb[0].mxu0
    %v10558 = vpop.f32.mrb[0].mxu0
    %v10559 = vadd.f32 %v10199, %v10558
    %v10560 = vpop.f32.mrb[0].mxu0
    %10561 = vmatprep.mubr.bf16.mxu0 %v10011
    %10562 = vmatmul.mubr.bf16.gmra.mrb[0].mxu0 %v10010
    %v10563 = vpop.f32.mrb[0].mxu0
    %v10564 = vadd.f32 %v10199, %v10563
    %v10565 = vpop.f32.mrb[0].mxu0
    %v10566 = vpop.f32.mrb[0].mxu0
    %v10567 = vadd.f32 %v10199, %v10566
    %v10568 = vpop.f32.mrb[0].mxu0
    %10569 = vmatprep.mubr.bf16.mxu0 %v10016
    %10570 = vmatmul.mubr.bf16.gmra.mrb[0].mxu0 %v10015
    %v10571 = vpop.f32.mrb[0].mxu0
    %v10572 = vadd.f32 %v10199, %v10571
    %v10573 = vpop.f32.mrb[0].mxu0
    %v10574 = vpop.f32.mrb[0].mxu0
    %v10575 = vadd.f32 %v10199, %v10574
    %v10576 = vpop.f32.mrb[0].mxu0
    %10577 = vmatprep.mubr.bf16.mxu0 %v10021
    %10578 = vmatmul.mubr.bf16.gmra.mrb[0].mxu0 %v10020
    %v10579 = vpop.f32.mrb[0].mxu0
    %v10580 = vadd.f32 %v10199, %v10579
    %v10581 = vpop.f32.mrb[0].mxu0
    %v10582 = vpop.f32.mrb[0].mxu0
    %v10583 = vadd.f32 %v10199, %v10582
    %v10584 = vpop.f32.mrb[0].mxu0
    %10585 = vmatprep.mubr.bf16.mxu0 %v10026
    %10586 = vmatmul.mubr.bf16.gmra.mrb[0].mxu0 %v10025
    %v10587 = vpop.f32.mrb[0].mxu0
    %v10588 = vadd.f32 %v10199, %v10587
    %v10589 = vpop.f32.mrb[0].mxu0
    %v10590 = vpop.f32.mrb[0].mxu0
    %v10591 = vadd.f32 %v10199, %v10590
    %v10592 = vpop.f32.mrb[0].mxu0
    %10593 = vmatprep.mubr.bf16.mxu0 %v10031
    %10594 = vmatmul.mubr.bf16.gmra.mrb[0].mxu0 %v10030
    %v10595 = vpop.f32.mrb[0].mxu0
    %v10596 = vadd.f32 %v10199, %v10595
    %v10597 = vpop.f32.mrb[0].mxu0
    %v10598 = vpop.f32.mrb[0].mxu0
    %v10599 = vadd.f32 %v10199, %v10598
    %v10600 = vpop.f32.mrb[0].mxu0
    %10601 = vmatprep.mubr.bf16.mxu0 %v10036
    %10602 = vmatmul.mubr.bf16.gmra.mrb[0].mxu0 %v10035
    %v10603 = vpop.f32.mrb[0].mxu0
    %v10604 = vadd.f32 %v10199, %v10603
    %v10605 = vpop.f32.mrb[0].mxu0
    %v10606 = vpop.f32.mrb[0].mxu0
    %v10607 = vadd.f32 %v10199, %v10606
    %v10608 = vpop.f32.mrb[0].mxu0
    %10609 = vmatprep.mubr.bf16.mxu0 %v10041
    %10610 = vmatmul.mubr.bf16.gmra.mrb[0].mxu0 %v10040
    %v10611 = vpop.f32.mrb[0].mxu0
    %v10612 = vadd.f32 %v10199, %v10611
    %v10613 = vpop.f32.mrb[0].mxu0
    %v10614 = vpop.f32.mrb[0].mxu0
    %v10615 = vadd.f32 %v10199, %v10614
    %v10616 = vpop.f32.mrb[0].mxu0
    %10617 = vmatprep.mubr.bf16.mxu0 %v10046
    %10618 = vmatmul.mubr.bf16.gmra.mrb[0].mxu0 %v10045
    %v10619 = vpop.f32.mrb[0].mxu0
    %v10620 = vadd.f32 %v10199, %v10619
    %v10621 = vpop.f32.mrb[0].mxu0
    %v10622 = vpop.f32.mrb[0].mxu0
    %v10623 = vadd.f32 %v10199, %v10622
    %v10624 = vpop.f32.mrb[0].mxu0
    %10625 = vmatprep.mubr.bf16.mxu0 %v10051
    %10626 = vmatmul.mubr.bf16.gmra.mrb[0].mxu0 %v10050
    %v10627 = vpop.f32.mrb[0].mxu0
    %v10628 = vadd.f32 %v10199, %v10627
    %v10629 = vpop.f32.mrb[0].mxu0
    %v10630 = vpop.f32.mrb[0].mxu0
    %v10631 = vadd.f32 %v10199, %v10630
    %v10632 = vpop.f32.mrb[0].mxu0
    %10633 = vmatprep.mubr.bf16.mxu0 %v10056
    %10634 = vmatmul.mubr.bf16.gmra.mrb[0].mxu0 %v10055
    %v10635 = vpop.f32.mrb[0].mxu0
    %v10636 = vadd.f32 %v10199, %v10635
    %v10637 = vpop.f32.mrb[0].mxu0
    %v10638 = vpop.f32.mrb[0].mxu0
    %v10639 = vadd.f32 %v10199, %v10638
    %v10640 = vpop.f32.mrb[0].mxu0
    %10641 = vmatprep.mubr.bf16.mxu0 %v10061
    %10642 = vmatmul.mubr.bf16.gmra.mrb[0].mxu0 %v10060
    %v10643 = vpop.f32.mrb[0].mxu0
    %v10644 = vadd.f32 %v10199, %v10643
    %v10645 = vpop.f32.mrb[0].mxu0
    %v10646 = vpop.f32.mrb[0].mxu0
    %v10647 = vadd.f32 %v10199, %v10646
    %v10648 = vpop.f32.mrb[0].mxu0
    %10649 = vmatprep.mubr.bf16.mxu0 %v10066
    %10650 = vmatmul.mubr.bf16.gmra.mrb[0].mxu0 %v10065
    %v10651 = vpop.f32.mrb[0].mxu0
    %v10652 = vadd.f32 %v10199, %v10651
    %v10653 = vpop.f32.mrb[0].mxu0
    %v10654 = vpop.f32.mrb[0].mxu0
    %v10655 = vadd.f32 %v10199, %v10654
    %v10656 = vpop.f32.mrb[0].mxu0
    %10657 = vmatprep.mubr.bf16.mxu0 %v10071
    %10658 = vmatmul.mubr.bf16.gmra.mrb[0].mxu0 %v10070
    %v10659 = vpop.f32.mrb[0].mxu0
    %v10660 = vadd.f32 %v10199, %v10659
    %v10661 = vpop.f32.mrb[0].mxu0
    %v10662 = vpop.f32.mrb[0].mxu0
    %v10663 = vadd.f32 %v10199, %v10662
    %v10664 = vpop.f32.mrb[0].mxu0
    %10665 = vmatprep.mubr.bf16.mxu0 %v10076
    %10666 = vmatmul.mubr.bf16.gmra.mrb[0].mxu0 %v10075
    %v10667 = vpop.f32.mrb[0].mxu0
    %v10668 = vadd.f32 %v10199, %v10667
    %v10669 = vpop.f32.mrb[0].mxu0
    %v10670 = vpop.f32.mrb[0].mxu0
    %v10671 = vadd.f32 %v10199, %v10670
    %v10672 = vpop.f32.mrb[0].mxu0
    %10673 = vmatprep.mubr.bf16.mxu0 %v10081
    %10674 = vmatmul.mubr.bf16.gmra.mrb[0].mxu0 %v10080
    %v10675 = vpop.f32.mrb[0].mxu0
    %v10676 = vadd.f32 %v10199, %v10675
    %v10677 = vpop.f32.mrb[0].mxu0
    %v10678 = vpop.f32.mrb[0].mxu0
    %v10679 = vadd.f32 %v10199, %v10678
    %v10680 = vpop.f32.mrb[0].mxu0
    %10681 = vmatprep.mubr.bf16.mxu0 %v10086
    %10682 = vmatmul.mubr.bf16.gmra.mrb[0].mxu0 %v10085
    %v10683 = vpop.f32.mrb[0].mxu0
    %v10684 = vadd.f32 %v10199, %v10683
    %v10685 = vpop.f32.mrb[0].mxu0
    %v10686 = vpop.f32.mrb[0].mxu0
    %v10687 = vadd.f32 %v10199, %v10686
    %v10688 = vpop.f32.mrb[0].mxu0
    %10689 = vmatprep.mubr.bf16.mxu0 %v10091
    %10690 = vmatmul.mubr.bf16.gmra.mrb[0].mxu0 %v10090
    %v10691 = vpop.f32.mrb[0].mxu0
    %v10692 = vadd.f32 %v10199, %v10691
    %v10693 = vpop.f32.mrb[0].mxu0
    %v10694 = vpop.f32.mrb[0].mxu0
    %v10695 = vadd.f32 %v10199, %v10694
    %v10696 = vpop.f32.mrb[0].mxu0
    %10697 = vmatprep.mubr.bf16.mxu0 %v10096
    %10698 = vmatmul.mubr.bf16.gmra.mrb[0].mxu0 %v10095
    %v10699 = vpop.f32.mrb[0].mxu0
    %v10700 = vadd.f32 %v10199, %v10699
    %v10701 = vpop.f32.mrb[0].mxu0
    %v10702 = vpop.f32.mrb[0].mxu0
    %v10703 = vadd.f32 %v10199, %v10702
    %v10704 = vpop.f32.mrb[0].mxu0
    %10705 = vmatprep.mubr.bf16.mxu0 %v10101
    %10706 = vmatmul.mubr.bf16.gmra.mrb[0].mxu0 %v10100
    %v10707 = vpop.f32.mrb[0].mxu0
    %v10708 = vadd.f32 %v10199, %v10707
    %v10709 = vpop.f32.mrb[0].mxu0
    %v10710 = vpop.f32.mrb[0].mxu0
    %v10711 = vadd.f32 %v10199, %v10710
    %v10712 = vpop.f32.mrb[0].mxu0
    %10713 = vmatprep.mubr.bf16.mxu0 %v10106
    %10714 = vmatmul.mubr.bf16.gmra.mrb[0].mxu0 %v10105
    %v10715 = vpop.f32.mrb[0].mxu0
    %v10716 = vadd.f32 %v10199, %v10715
    %v10717 = vpop.f32.mrb[0].mxu0
    %v10718 = vpop.f32.mrb[0].mxu0
    %v10719 = vadd.f32 %v10199, %v10718
    %v10720 = vpop.f32.mrb[0].mxu0
    %10721 = vmatprep.mubr.bf16.mxu0 %v10111
    %10722 = vmatmul.mubr.bf16.gmra.mrb[0].mxu0 %v10110
    %v10723 = vpop.f32.mrb[0].mxu0
    %v10724 = vadd.f32 %v10199, %v10723
    %v10725 = vpop.f32.mrb[0].mxu0
    %v10726 = vpop.f32.mrb[0].mxu0
    %v10727 = vadd.f32 %v10199, %v10726
    %v10728 = vpop.f32.mrb[0].mxu0
    %10729 = vdwg.mxu0
    %10730 = vmatprep.subr.bf16.mxu0 0
    %10731 = vmatpush1.bf16.msra.mxu0 %v10377
    %10732 = vmatprep.subr.bf16.mxu0 0
    %10733 = vmatpush1.bf16.msra.mxu0 %v10378
    %10734 = vmatprep.subr.bf16.mxu0 0
    %10735 = vmatpush1.bf16.msra.mxu0 %v10379
    %10736 = vmatprep.subr.bf16.mxu0 0
    %10737 = vmatpush1.bf16.msra.mxu0 %v10380
    %10738 = vmatprep.subr.bf16.mxu0 0
    %10739 = vmatpush1.bf16.msra.mxu0 %v10381
    %10740 = vmatprep.subr.bf16.mxu0 0
    %10741 = vmatpush1.bf16.msra.mxu0 %v10382
    %10742 = vmatprep.subr.bf16.mxu0 0
    %10743 = vmatpush1.bf16.msra.mxu0 %v10383
    %10744 = vmatprep.subr.bf16.mxu0 0
    %10745 = vmatpush1.bf16.msra.mxu0 %v10384
    %10746 = vmatprep.subr.bf16.mxu0 0
    %10747 = vmatpush1.bf16.msra.mxu0 %v10385
    %10748 = vmatprep.subr.bf16.mxu0 0
    %10749 = vmatpush1.bf16.msra.mxu0 %v10386
    %10750 = vmatprep.subr.bf16.mxu0 0
    %10751 = vmatpush1.bf16.msra.mxu0 %v10387
    %10752 = vmatprep.subr.bf16.mxu0 0
    %10753 = vmatpush1.bf16.msra.mxu0 %v10388
    %10754 = vmatprep.subr.bf16.mxu0 0
    %10755 = vmatpush1.bf16.msra.mxu0 %v10389
    %10756 = vmatprep.subr.bf16.mxu0 0
    %10757 = vmatpush1.bf16.msra.mxu0 %v10390
    %10758 = vmatprep.subr.bf16.mxu0 0
    %10759 = vmatpush1.bf16.msra.mxu0 %v10391
    %10760 = vmatprep.subr.bf16.mxu0 0
    %10761 = vmatpush1.bf16.msra.mxu0 %v10392
    %10762 = vmatprep.mubr.bf16.mxu0 %v9958
    %10763 = vmatmul.mubr.bf16.gmra.mrb[0].mxu0 %v9957
    %v10764 = vpop.f32.mrb[0].mxu0
    %v10765 = vadd.f32 %v10476, %v10764
    %v10766 = vpop.f32.mrb[0].mxu0
    %v10767 = vpop.f32.mrb[0].mxu0
    %v10768 = vadd.f32 %v10479, %v10767
    %v10769 = vpop.f32.mrb[0].mxu0
    %10770 = vmatprep.mubr.bf16.mxu0 %v9963
    %10771 = vmatmul.mubr.bf16.gmra.mrb[0].mxu0 %v9962
    %v10772 = vpop.f32.mrb[0].mxu0
    %v10773 = vadd.f32 %v10484, %v10772
    %v10774 = vpop.f32.mrb[0].mxu0
    %v10775 = vpop.f32.mrb[0].mxu0
    %v10776 = vadd.f32 %v10487, %v10775
    %v10777 = vpop.f32.mrb[0].mxu0
    %10778 = vmatprep.mubr.bf16.mxu0 %v9968
    %10779 = vmatmul.mubr.bf16.gmra.mrb[0].mxu0 %v9967
    %v10780 = vpop.f32.mrb[0].mxu0
    %v10781 = vadd.f32 %v10492, %v10780
    %v10782 = vpop.f32.mrb[0].mxu0
    %v10783 = vpop.f32.mrb[0].mxu0
    %v10784 = vadd.f32 %v10495, %v10783
    %v10785 = vpop.f32.mrb[0].mxu0
    %10786 = vmatprep.mubr.bf16.mxu0 %v9973
    %10787 = vmatmul.mubr.bf16.gmra.mrb[0].mxu0 %v9972
    %v10788 = vpop.f32.mrb[0].mxu0
    %v10789 = vadd.f32 %v10500, %v10788
    %v10790 = vpop.f32.mrb[0].mxu0
    %v10791 = vpop.f32.mrb[0].mxu0
    %v10792 = vadd.f32 %v10503, %v10791
    %v10793 = vpop.f32.mrb[0].mxu0
    %10794 = vmatprep.mubr.bf16.mxu0 %v9978
    %10795 = vmatmul.mubr.bf16.gmra.mrb[0].mxu0 %v9977
    %v10796 = vpop.f32.mrb[0].mxu0
    %v10797 = vadd.f32 %v10508, %v10796
    %v10798 = vpop.f32.mrb[0].mxu0
    %v10799 = vpop.f32.mrb[0].mxu0
    %v10800 = vadd.f32 %v10511, %v10799
    %v10801 = vpop.f32.mrb[0].mxu0
    %10802 = vmatprep.mubr.bf16.mxu0 %v9983
    %10803 = vmatmul.mubr.bf16.gmra.mrb[0].mxu0 %v9982
    %v10804 = vpop.f32.mrb[0].mxu0
    %v10805 = vadd.f32 %v10516, %v10804
    %v10806 = vpop.f32.mrb[0].mxu0
    %v10807 = vpop.f32.mrb[0].mxu0
    %v10808 = vadd.f32 %v10519, %v10807
    %v10809 = vpop.f32.mrb[0].mxu0
    %10810 = vmatprep.mubr.bf16.mxu0 %v9988
    %10811 = vmatmul.mubr.bf16.gmra.mrb[0].mxu0 %v9987
    %v10812 = vpop.f32.mrb[0].mxu0
    %v10813 = vadd.f32 %v10524, %v10812
    %v10814 = vpop.f32.mrb[0].mxu0
    %v10815 = vpop.f32.mrb[0].mxu0
    %v10816 = vadd.f32 %v10527, %v10815
    %v10817 = vpop.f32.mrb[0].mxu0
    %10818 = vmatprep.mubr.bf16.mxu0 %v9993
    %10819 = vmatmul.mubr.bf16.gmra.mrb[0].mxu0 %v9992
    %v10820 = vpop.f32.mrb[0].mxu0
    %v10821 = vadd.f32 %v10532, %v10820
    %v10822 = vpop.f32.mrb[0].mxu0
    %v10823 = vpop.f32.mrb[0].mxu0
    %v10824 = vadd.f32 %v10535, %v10823
    %v10825 = vpop.f32.mrb[0].mxu0
    %10826 = vmatprep.mubr.bf16.mxu0 %v9998
    %10827 = vmatmul.mubr.bf16.gmra.mrb[0].mxu0 %v9997
    %v10828 = vpop.f32.mrb[0].mxu0
    %v10829 = vadd.f32 %v10540, %v10828
    %v10830 = vpop.f32.mrb[0].mxu0
    %v10831 = vpop.f32.mrb[0].mxu0
    %v10832 = vadd.f32 %v10543, %v10831
    %v10833 = vpop.f32.mrb[0].mxu0
    %10834 = vmatprep.mubr.bf16.mxu0 %v10003
    %10835 = vmatmul.mubr.bf16.gmra.mrb[0].mxu0 %v10002
    %v10836 = vpop.f32.mrb[0].mxu0
    %v10837 = vadd.f32 %v10548, %v10836
    %v10838 = vpop.f32.mrb[0].mxu0
    %v10839 = vpop.f32.mrb[0].mxu0
    %v10840 = vadd.f32 %v10551, %v10839
    %v10841 = vpop.f32.mrb[0].mxu0
    %10842 = vmatprep.mubr.bf16.mxu0 %v10008
    %10843 = vmatmul.mubr.bf16.gmra.mrb[0].mxu0 %v10007
    %v10844 = vpop.f32.mrb[0].mxu0
    %v10845 = vadd.f32 %v10556, %v10844
    %v10846 = vpop.f32.mrb[0].mxu0
    %v10847 = vpop.f32.mrb[0].mxu0
    %v10848 = vadd.f32 %v10559, %v10847
    %v10849 = vpop.f32.mrb[0].mxu0
    %10850 = vmatprep.mubr.bf16.mxu0 %v10013
    %10851 = vmatmul.mubr.bf16.gmra.mrb[0].mxu0 %v10012
    %v10852 = vpop.f32.mrb[0].mxu0
    %v10853 = vadd.f32 %v10564, %v10852
    %v10854 = vpop.f32.mrb[0].mxu0
    %v10855 = vpop.f32.mrb[0].mxu0
    %v10856 = vadd.f32 %v10567, %v10855
    %v10857 = vpop.f32.mrb[0].mxu0
    %10858 = vmatprep.mubr.bf16.mxu0 %v10018
    %10859 = vmatmul.mubr.bf16.gmra.mrb[0].mxu0 %v10017
    %v10860 = vpop.f32.mrb[0].mxu0
    %v10861 = vadd.f32 %v10572, %v10860
    %v10862 = vpop.f32.mrb[0].mxu0
    %v10863 = vpop.f32.mrb[0].mxu0
    %v10864 = vadd.f32 %v10575, %v10863
    %v10865 = vpop.f32.mrb[0].mxu0
    %10866 = vmatprep.mubr.bf16.mxu0 %v10023
    %10867 = vmatmul.mubr.bf16.gmra.mrb[0].mxu0 %v10022
    %v10868 = vpop.f32.mrb[0].mxu0
    %v10869 = vadd.f32 %v10580, %v10868
    %v10870 = vpop.f32.mrb[0].mxu0
    %v10871 = vpop.f32.mrb[0].mxu0
    %v10872 = vadd.f32 %v10583, %v10871
    %v10873 = vpop.f32.mrb[0].mxu0
    %10874 = vmatprep.mubr.bf16.mxu0 %v10028
    %10875 = vmatmul.mubr.bf16.gmra.mrb[0].mxu0 %v10027
    %v10876 = vpop.f32.mrb[0].mxu0
    %v10877 = vadd.f32 %v10588, %v10876
    %v10878 = vpop.f32.mrb[0].mxu0
    %v10879 = vpop.f32.mrb[0].mxu0
    %v10880 = vadd.f32 %v10591, %v10879
    %v10881 = vpop.f32.mrb[0].mxu0
    %10882 = vmatprep.mubr.bf16.mxu0 %v10033
    %10883 = vmatmul.mubr.bf16.gmra.mrb[0].mxu0 %v10032
    %v10884 = vpop.f32.mrb[0].mxu0
    %v10885 = vadd.f32 %v10596, %v10884
    %v10886 = vpop.f32.mrb[0].mxu0
    %v10887 = vpop.f32.mrb[0].mxu0
    %v10888 = vadd.f32 %v10599, %v10887
    %v10889 = vpop.f32.mrb[0].mxu0
    %10890 = vmatprep.mubr.bf16.mxu0 %v10038
    %10891 = vmatmul.mubr.bf16.gmra.mrb[0].mxu0 %v10037
    %v10892 = vpop.f32.mrb[0].mxu0
    %v10893 = vadd.f32 %v10604, %v10892
    %v10894 = vpop.f32.mrb[0].mxu0
    %v10895 = vpop.f32.mrb[0].mxu0
    %v10896 = vadd.f32 %v10607, %v10895
    %v10897 = vpop.f32.mrb[0].mxu0
    %10898 = vmatprep.mubr.bf16.mxu0 %v10043
    %10899 = vmatmul.mubr.bf16.gmra.mrb[0].mxu0 %v10042
    %v10900 = vpop.f32.mrb[0].mxu0
    %v10901 = vadd.f32 %v10612, %v10900
    %v10902 = vpop.f32.mrb[0].mxu0
    %v10903 = vpop.f32.mrb[0].mxu0
    %v10904 = vadd.f32 %v10615, %v10903
    %v10905 = vpop.f32.mrb[0].mxu0
    %10906 = vmatprep.mubr.bf16.mxu0 %v10048
    %10907 = vmatmul.mubr.bf16.gmra.mrb[0].mxu0 %v10047
    %v10908 = vpop.f32.mrb[0].mxu0
    %v10909 = vadd.f32 %v10620, %v10908
    %v10910 = vpop.f32.mrb[0].mxu0
    %v10911 = vpop.f32.mrb[0].mxu0
    %v10912 = vadd.f32 %v10623, %v10911
    %v10913 = vpop.f32.mrb[0].mxu0
    %10914 = vmatprep.mubr.bf16.mxu0 %v10053
    %10915 = vmatmul.mubr.bf16.gmra.mrb[0].mxu0 %v10052
    %v10916 = vpop.f32.mrb[0].mxu0
    %v10917 = vadd.f32 %v10628, %v10916
    %v10918 = vpop.f32.mrb[0].mxu0
    %v10919 = vpop.f32.mrb[0].mxu0
    %v10920 = vadd.f32 %v10631, %v10919
    %v10921 = vpop.f32.mrb[0].mxu0
    %10922 = vmatprep.mubr.bf16.mxu0 %v10058
    %10923 = vmatmul.mubr.bf16.gmra.mrb[0].mxu0 %v10057
    %v10924 = vpop.f32.mrb[0].mxu0
    %v10925 = vadd.f32 %v10636, %v10924
    %v10926 = vpop.f32.mrb[0].mxu0
    %v10927 = vpop.f32.mrb[0].mxu0
    %v10928 = vadd.f32 %v10639, %v10927
    %v10929 = vpop.f32.mrb[0].mxu0
    %10930 = vmatprep.mubr.bf16.mxu0 %v10063
    %10931 = vmatmul.mubr.bf16.gmra.mrb[0].mxu0 %v10062
    %v10932 = vpop.f32.mrb[0].mxu0
    %v10933 = vadd.f32 %v10644, %v10932
    %v10934 = vpop.f32.mrb[0].mxu0
    %v10935 = vpop.f32.mrb[0].mxu0
    %v10936 = vadd.f32 %v10647, %v10935
    %v10937 = vpop.f32.mrb[0].mxu0
    %10938 = vmatprep.mubr.bf16.mxu0 %v10068
    %10939 = vmatmul.mubr.bf16.gmra.mrb[0].mxu0 %v10067
    %v10940 = vpop.f32.mrb[0].mxu0
    %v10941 = vadd.f32 %v10652, %v10940
    %v10942 = vpop.f32.mrb[0].mxu0
    %v10943 = vpop.f32.mrb[0].mxu0
    %v10944 = vadd.f32 %v10655, %v10943
    %v10945 = vpop.f32.mrb[0].mxu0
    %10946 = vmatprep.mubr.bf16.mxu0 %v10073
    %10947 = vmatmul.mubr.bf16.gmra.mrb[0].mxu0 %v10072
    %v10948 = vpop.f32.mrb[0].mxu0
    %v10949 = vadd.f32 %v10660, %v10948
    %v10950 = vpop.f32.mrb[0].mxu0
    %v10951 = vpop.f32.mrb[0].mxu0
    %v10952 = vadd.f32 %v10663, %v10951
    %v10953 = vpop.f32.mrb[0].mxu0
    %10954 = vmatprep.mubr.bf16.mxu0 %v10078
    %10955 = vmatmul.mubr.bf16.gmra.mrb[0].mxu0 %v10077
    %v10956 = vpop.f32.mrb[0].mxu0
    %v10957 = vadd.f32 %v10668, %v10956
    %v10958 = vpop.f32.mrb[0].mxu0
    %v10959 = vpop.f32.mrb[0].mxu0
    %v10960 = vadd.f32 %v10671, %v10959
    %v10961 = vpop.f32.mrb[0].mxu0
    %10962 = vmatprep.mubr.bf16.mxu0 %v10083
    %10963 = vmatmul.mubr.bf16.gmra.mrb[0].mxu0 %v10082
    %v10964 = vpop.f32.mrb[0].mxu0
    %v10965 = vadd.f32 %v10676, %v10964
    %v10966 = vpop.f32.mrb[0].mxu0
    %v10967 = vpop.f32.mrb[0].mxu0
    %v10968 = vadd.f32 %v10679, %v10967
    %v10969 = vpop.f32.mrb[0].mxu0
    %10970 = vmatprep.mubr.bf16.mxu0 %v10088
    %10971 = vmatmul.mubr.bf16.gmra.mrb[0].mxu0 %v10087
    %v10972 = vpop.f32.mrb[0].mxu0
    %v10973 = vadd.f32 %v10684, %v10972
    %v10974 = vpop.f32.mrb[0].mxu0
    %v10975 = vpop.f32.mrb[0].mxu0
    %v10976 = vadd.f32 %v10687, %v10975
    %v10977 = vpop.f32.mrb[0].mxu0
    %10978 = vmatprep.mubr.bf16.mxu0 %v10093
    %10979 = vmatmul.mubr.bf16.gmra.mrb[0].mxu0 %v10092
    %v10980 = vpop.f32.mrb[0].mxu0
    %v10981 = vadd.f32 %v10692, %v10980
    %v10982 = vpop.f32.mrb[0].mxu0
    %v10983 = vpop.f32.mrb[0].mxu0
    %v10984 = vadd.f32 %v10695, %v10983
    %v10985 = vpop.f32.mrb[0].mxu0
    %10986 = vmatprep.mubr.bf16.mxu0 %v10098
    %10987 = vmatmul.mubr.bf16.gmra.mrb[0].mxu0 %v10097
    %v10988 = vpop.f32.mrb[0].mxu0
    %v10989 = vadd.f32 %v10700, %v10988
    %v10990 = vpop.f32.mrb[0].mxu0
    %v10991 = vpop.f32.mrb[0].mxu0
    %v10992 = vadd.f32 %v10703, %v10991
    %v10993 = vpop.f32.mrb[0].mxu0
    %10994 = vmatprep.mubr.bf16.mxu0 %v10103
    %10995 = vmatmul.mubr.bf16.gmra.mrb[0].mxu0 %v10102
    %v10996 = vpop.f32.mrb[0].mxu0
    %v10997 = vadd.f32 %v10708, %v10996
    %v10998 = vpop.f32.mrb[0].mxu0
    %v10999 = vpop.f32.mrb[0].mxu0
    %v11000 = vadd.f32 %v10711, %v10999
    %v11001 = vpop.f32.mrb[0].mxu0
    %11002 = vmatprep.mubr.bf16.mxu0 %v10108
    %11003 = vmatmul.mubr.bf16.gmra.mrb[0].mxu0 %v10107
    %v11004 = vpop.f32.mrb[0].mxu0
    %v11005 = vadd.f32 %v10716, %v11004
    %v11006 = vpop.f32.mrb[0].mxu0
    %v11007 = vpop.f32.mrb[0].mxu0
    %v11008 = vadd.f32 %v10719, %v11007
    %v11009 = vpop.f32.mrb[0].mxu0
    %11010 = vmatprep.mubr.bf16.mxu0 %v10113
    %11011 = vmatmul.mubr.bf16.gmra.mrb[0].mxu0 %v10112
    %v11012 = vpop.f32.mrb[0].mxu0
    %v11013 = vadd.f32 %v10724, %v11012
    %v11014 = vpop.f32.mrb[0].mxu0
    %v11015 = vpop.f32.mrb[0].mxu0
    %v11016 = vadd.f32 %v10727, %v11015
    %v11017 = vpop.f32.mrb[0].mxu0
    %11018 = vdwg.mxu0
    %11019 = vmatprep.subr.bf16.mxu0 0
    %11020 = vmatpush1.bf16.msra.mxu0 %v10393
    %11021 = vmatprep.subr.bf16.mxu0 0
    %11022 = vmatpush1.bf16.msra.mxu0 %v10394
    %11023 = vmatprep.subr.bf16.mxu0 0
    %11024 = vmatpush1.bf16.msra.mxu0 %v10395
    %11025 = vmatprep.subr.bf16.mxu0 0
    %11026 = vmatpush1.bf16.msra.mxu0 %v10396
    %11027 = vmatprep.subr.bf16.mxu0 0
    %11028 = vmatpush1.bf16.msra.mxu0 %v10397
    %11029 = vmatprep.subr.bf16.mxu0 0
    %11030 = vmatpush1.bf16.msra.mxu0 %v10398
    %11031 = vmatprep.subr.bf16.mxu0 0
    %11032 = vmatpush1.bf16.msra.mxu0 %v10399
    %11033 = vmatprep.subr.bf16.mxu0 0
    %11034 = vmatpush1.bf16.msra.mxu0 %v10400
    %11035 = vmatprep.subr.bf16.mxu0 0
    %11036 = vmatpush1.bf16.msra.mxu0 0
    %11037 = vmatprep.subr.bf16.mxu0 0
    %11038 = vmatpush1.bf16.msra.mxu0 0
    %11039 = vmatprep.subr.bf16.mxu0 0
    %11040 = vmatpush1.bf16.msra.mxu0 0
    %11041 = vmatprep.subr.bf16.mxu0 0
    %11042 = vmatpush1.bf16.msra.mxu0 0
    %11043 = vmatprep.subr.bf16.mxu0 0
    %11044 = vmatpush1.bf16.msra.mxu0 0
    %11045 = vmatprep.subr.bf16.mxu0 0
    %11046 = vmatpush1.bf16.msra.mxu0 0
    %11047 = vmatprep.subr.bf16.mxu0 0
    %11048 = vmatpush1.bf16.msra.mxu0 0
    %11049 = vmatprep.subr.bf16.mxu0 0
    %11050 = vmatpush1.bf16.msra.mxu0 0
    %11051 = vmatprep.mubr.bf16.mxu0 0
    %11052 = vmatmul.mubr.bf16.gmra.mrb[0].mxu0 %v9959
    %v11053 = vpop.f32.mrb[0].mxu0
    %v11054 = vadd.f32 %v10765, %v11053
    %v11055 = vpop.f32.mrb[0].mxu0
    %v11056 = vpop.f32.mrb[0].mxu0
    %v11057 = vadd.f32 %v10768, %v11056
    %v11058 = vpop.f32.mrb[0].mxu0
    %11059 = vmatprep.mubr.bf16.mxu0 0
    %11060 = vmatmul.mubr.bf16.gmra.mrb[0].mxu0 %v9964
    %v11061 = vpop.f32.mrb[0].mxu0
    %v11062 = vadd.f32 %v10773, %v11061
    %v11063 = vpop.f32.mrb[0].mxu0
    %v11064 = vpop.f32.mrb[0].mxu0
    %v11065 = vadd.f32 %v10776, %v11064
    %v11066 = vpop.f32.mrb[0].mxu0
    %11067 = vmatprep.mubr.bf16.mxu0 0
    %11068 = vmatmul.mubr.bf16.gmra.mrb[0].mxu0 %v9969
    %v11069 = vpop.f32.mrb[0].mxu0
    %v11070 = vadd.f32 %v10781, %v11069
    %v11071 = vpop.f32.mrb[0].mxu0
    %v11072 = vpop.f32.mrb[0].mxu0
    %v11073 = vadd.f32 %v10784, %v11072
    %v11074 = vpop.f32.mrb[0].mxu0
    %11075 = vmatprep.mubr.bf16.mxu0 0
    %11076 = vmatmul.mubr.bf16.gmra.mrb[0].mxu0 %v9974
    %v11077 = vpop.f32.mrb[0].mxu0
    %v11078 = vadd.f32 %v10789, %v11077
    %v11079 = vpop.f32.mrb[0].mxu0
    %v11080 = vpop.f32.mrb[0].mxu0
    %v11081 = vadd.f32 %v10792, %v11080
    %v11082 = vpop.f32.mrb[0].mxu0
    %11083 = vmatprep.mubr.bf16.mxu0 0
    %11084 = vmatmul.mubr.bf16.gmra.mrb[0].mxu0 %v9979
    %v11085 = vpop.f32.mrb[0].mxu0
    %v11086 = vadd.f32 %v10797, %v11085
    %v11087 = vpop.f32.mrb[0].mxu0
    %v11088 = vpop.f32.mrb[0].mxu0
    %v11089 = vadd.f32 %v10800, %v11088
    %v11090 = vpop.f32.mrb[0].mxu0
    %11091 = vmatprep.mubr.bf16.mxu0 0
    %11092 = vmatmul.mubr.bf16.gmra.mrb[0].mxu0 %v9984
    %v11093 = vpop.f32.mrb[0].mxu0
    %v11094 = vadd.f32 %v10805, %v11093
    %v11095 = vpop.f32.mrb[0].mxu0
    %v11096 = vpop.f32.mrb[0].mxu0
    %v11097 = vadd.f32 %v10808, %v11096
    %v11098 = vpop.f32.mrb[0].mxu0
    %11099 = vmatprep.mubr.bf16.mxu0 0
    %11100 = vmatmul.mubr.bf16.gmra.mrb[0].mxu0 %v9989
    %v11101 = vpop.f32.mrb[0].mxu0
    %v11102 = vadd.f32 %v10813, %v11101
    %v11103 = vpop.f32.mrb[0].mxu0
    %v11104 = vpop.f32.mrb[0].mxu0
    %v11105 = vadd.f32 %v10816, %v11104
    %v11106 = vpop.f32.mrb[0].mxu0
    %11107 = vmatprep.mubr.bf16.mxu0 0
    %11108 = vmatmul.mubr.bf16.gmra.mrb[0].mxu0 %v9994
    %v11109 = vpop.f32.mrb[0].mxu0
    %v11110 = vadd.f32 %v10821, %v11109
    %v11111 = vpop.f32.mrb[0].mxu0
    %v11112 = vpop.f32.mrb[0].mxu0
    %v11113 = vadd.f32 %v10824, %v11112
    %v11114 = vpop.f32.mrb[0].mxu0
    %11115 = vmatprep.mubr.bf16.mxu0 0
    %11116 = vmatmul.mubr.bf16.gmra.mrb[0].mxu0 %v9999
    %v11117 = vpop.f32.mrb[0].mxu0
    %v11118 = vadd.f32 %v10829, %v11117
    %v11119 = vpop.f32.mrb[0].mxu0
    %v11120 = vpop.f32.mrb[0].mxu0
    %v11121 = vadd.f32 %v10832, %v11120
    %v11122 = vpop.f32.mrb[0].mxu0
    %11123 = vmatprep.mubr.bf16.mxu0 0
    %11124 = vmatmul.mubr.bf16.gmra.mrb[0].mxu0 %v10004
    %v11125 = vpop.f32.mrb[0].mxu0
    %v11126 = vadd.f32 %v10837, %v11125
    %v11127 = vpop.f32.mrb[0].mxu0
    %v11128 = vpop.f32.mrb[0].mxu0
    %v11129 = vadd.f32 %v10840, %v11128
    %v11130 = vpop.f32.mrb[0].mxu0
    %11131 = vmatprep.mubr.bf16.mxu0 0
    %11132 = vmatmul.mubr.bf16.gmra.mrb[0].mxu0 %v10009
    %v11133 = vpop.f32.mrb[0].mxu0
    %v11134 = vadd.f32 %v10845, %v11133
    %v11135 = vpop.f32.mrb[0].mxu0
    %v11136 = vpop.f32.mrb[0].mxu0
    %v11137 = vadd.f32 %v10848, %v11136
    %v11138 = vpop.f32.mrb[0].mxu0
    %11139 = vmatprep.mubr.bf16.mxu0 0
    %11140 = vmatmul.mubr.bf16.gmra.mrb[0].mxu0 %v10014
    %v11141 = vpop.f32.mrb[0].mxu0
    %v11142 = vadd.f32 %v10853, %v11141
    %v11143 = vpop.f32.mrb[0].mxu0
    %v11144 = vpop.f32.mrb[0].mxu0
    %v11145 = vadd.f32 %v10856, %v11144
    %v11146 = vpop.f32.mrb[0].mxu0
    %11147 = vmatprep.mubr.bf16.mxu0 0
    %11148 = vmatmul.mubr.bf16.gmra.mrb[0].mxu0 %v10019
    %v11149 = vpop.f32.mrb[0].mxu0
    %v11150 = vadd.f32 %v10861, %v11149
    %v11151 = vpop.f32.mrb[0].mxu0
    %v11152 = vpop.f32.mrb[0].mxu0
    %v11153 = vadd.f32 %v10864, %v11152
    %v11154 = vpop.f32.mrb[0].mxu0
    %11155 = vmatprep.mubr.bf16.mxu0 0
    %11156 = vmatmul.mubr.bf16.gmra.mrb[0].mxu0 %v10024
    %v11157 = vpop.f32.mrb[0].mxu0
    %v11158 = vadd.f32 %v10869, %v11157
    %v11159 = vpop.f32.mrb[0].mxu0
    %v11160 = vpop.f32.mrb[0].mxu0
    %v11161 = vadd.f32 %v10872, %v11160
    %v11162 = vpop.f32.mrb[0].mxu0
    %11163 = vmatprep.mubr.bf16.mxu0 0
    %11164 = vmatmul.mubr.bf16.gmra.mrb[0].mxu0 %v10029
    %v11165 = vpop.f32.mrb[0].mxu0
    %v11166 = vadd.f32 %v10877, %v11165
    %v11167 = vpop.f32.mrb[0].mxu0
    %v11168 = vpop.f32.mrb[0].mxu0
    %v11169 = vadd.f32 %v10880, %v11168
    %v11170 = vpop.f32.mrb[0].mxu0
    %11171 = vmatprep.mubr.bf16.mxu0 0
    %11172 = vmatmul.mubr.bf16.gmra.mrb[0].mxu0 %v10034
    %v11173 = vpop.f32.mrb[0].mxu0
    %v11174 = vadd.f32 %v10885, %v11173
    %v11175 = vpop.f32.mrb[0].mxu0
    %v11176 = vpop.f32.mrb[0].mxu0
    %v11177 = vadd.f32 %v10888, %v11176
    %v11178 = vpop.f32.mrb[0].mxu0
    %11179 = vmatprep.mubr.bf16.mxu0 0
    %11180 = vmatmul.mubr.bf16.gmra.mrb[0].mxu0 %v10039
    %v11181 = vpop.f32.mrb[0].mxu0
    %v11182 = vadd.f32 %v10893, %v11181
    %v11183 = vpop.f32.mrb[0].mxu0
    %v11184 = vpop.f32.mrb[0].mxu0
    %v11185 = vadd.f32 %v10896, %v11184
    %v11186 = vpop.f32.mrb[0].mxu0
    %11187 = vmatprep.mubr.bf16.mxu0 0
    %11188 = vmatmul.mubr.bf16.gmra.mrb[0].mxu0 %v10044
    %v11189 = vpop.f32.mrb[0].mxu0
    %v11190 = vadd.f32 %v10901, %v11189
    %v11191 = vpop.f32.mrb[0].mxu0
    %v11192 = vpop.f32.mrb[0].mxu0
    %v11193 = vadd.f32 %v10904, %v11192
    %v11194 = vpop.f32.mrb[0].mxu0
    %11195 = vmatprep.mubr.bf16.mxu0 0
    %11196 = vmatmul.mubr.bf16.gmra.mrb[0].mxu0 %v10049
    %v11197 = vpop.f32.mrb[0].mxu0
    %v11198 = vadd.f32 %v10909, %v11197
    %v11199 = vpop.f32.mrb[0].mxu0
    %v11200 = vpop.f32.mrb[0].mxu0
    %v11201 = vadd.f32 %v10912, %v11200
    %v11202 = vpop.f32.mrb[0].mxu0
    %11203 = vmatprep.mubr.bf16.mxu0 0
    %11204 = vmatmul.mubr.bf16.gmra.mrb[0].mxu0 %v10054
    %v11205 = vpop.f32.mrb[0].mxu0
    %v11206 = vadd.f32 %v10917, %v11205
    %v11207 = vpop.f32.mrb[0].mxu0
    %v11208 = vpop.f32.mrb[0].mxu0
    %v11209 = vadd.f32 %v10920, %v11208
    %v11210 = vpop.f32.mrb[0].mxu0
    %11211 = vmatprep.mubr.bf16.mxu0 0
    %11212 = vmatmul.mubr.bf16.gmra.mrb[0].mxu0 %v10059
    %v11213 = vpop.f32.mrb[0].mxu0
    %v11214 = vadd.f32 %v10925, %v11213
    %v11215 = vpop.f32.mrb[0].mxu0
    %v11216 = vpop.f32.mrb[0].mxu0
    %v11217 = vadd.f32 %v10928, %v11216
    %v11218 = vpop.f32.mrb[0].mxu0
    %11219 = vmatprep.mubr.bf16.mxu0 0
    %11220 = vmatmul.mubr.bf16.gmra.mrb[0].mxu0 %v10064
    %v11221 = vpop.f32.mrb[0].mxu0
    %v11222 = vadd.f32 %v10933, %v11221
    %v11223 = vpop.f32.mrb[0].mxu0
    %v11224 = vpop.f32.mrb[0].mxu0
    %v11225 = vadd.f32 %v10936, %v11224
    %v11226 = vpop.f32.mrb[0].mxu0
    %11227 = vmatprep.mubr.bf16.mxu0 0
    %11228 = vmatmul.mubr.bf16.gmra.mrb[0].mxu0 %v10069
    %v11229 = vpop.f32.mrb[0].mxu0
    %v11230 = vadd.f32 %v10941, %v11229
    %v11231 = vpop.f32.mrb[0].mxu0
    %v11232 = vpop.f32.mrb[0].mxu0
    %v11233 = vadd.f32 %v10944, %v11232
    %v11234 = vpop.f32.mrb[0].mxu0
    %11235 = vmatprep.mubr.bf16.mxu0 0
    %11236 = vmatmul.mubr.bf16.gmra.mrb[0].mxu0 %v10074
    %v11237 = vpop.f32.mrb[0].mxu0
    %v11238 = vadd.f32 %v10949, %v11237
    %v11239 = vpop.f32.mrb[0].mxu0
    %v11240 = vpop.f32.mrb[0].mxu0
    %v11241 = vadd.f32 %v10952, %v11240
    %v11242 = vpop.f32.mrb[0].mxu0
    %11243 = vmatprep.mubr.bf16.mxu0 0
    %11244 = vmatmul.mubr.bf16.gmra.mrb[0].mxu0 %v10079
    %v11245 = vpop.f32.mrb[0].mxu0
    %v11246 = vadd.f32 %v10957, %v11245
    %v11247 = vpop.f32.mrb[0].mxu0
    %v11248 = vpop.f32.mrb[0].mxu0
    %v11249 = vadd.f32 %v10960, %v11248
    %v11250 = vpop.f32.mrb[0].mxu0
    %11251 = vmatprep.mubr.bf16.mxu0 0
    %11252 = vmatmul.mubr.bf16.gmra.mrb[0].mxu0 %v10084
    %v11253 = vpop.f32.mrb[0].mxu0
    %v11254 = vadd.f32 %v10965, %v11253
    %v11255 = vpop.f32.mrb[0].mxu0
    %v11256 = vpop.f32.mrb[0].mxu0
    %v11257 = vadd.f32 %v10968, %v11256
    %v11258 = vpop.f32.mrb[0].mxu0
    %11259 = vmatprep.mubr.bf16.mxu0 0
    %11260 = vmatmul.mubr.bf16.gmra.mrb[0].mxu0 %v10089
    %v11261 = vpop.f32.mrb[0].mxu0
    %v11262 = vadd.f32 %v10973, %v11261
    %v11263 = vpop.f32.mrb[0].mxu0
    %v11264 = vpop.f32.mrb[0].mxu0
    %v11265 = vadd.f32 %v10976, %v11264
    %v11266 = vpop.f32.mrb[0].mxu0
    %11267 = vmatprep.mubr.bf16.mxu0 0
    %11268 = vmatmul.mubr.bf16.gmra.mrb[0].mxu0 %v10094
    %v11269 = vpop.f32.mrb[0].mxu0
    %v11270 = vadd.f32 %v10981, %v11269
    %v11271 = vpop.f32.mrb[0].mxu0
    %v11272 = vpop.f32.mrb[0].mxu0
    %v11273 = vadd.f32 %v10984, %v11272
    %v11274 = vpop.f32.mrb[0].mxu0
    %11275 = vmatprep.mubr.bf16.mxu0 0
    %11276 = vmatmul.mubr.bf16.gmra.mrb[0].mxu0 %v10099
    %v11277 = vpop.f32.mrb[0].mxu0
    %v11278 = vadd.f32 %v10989, %v11277
    %v11279 = vpop.f32.mrb[0].mxu0
    %v11280 = vpop.f32.mrb[0].mxu0
    %v11281 = vadd.f32 %v10992, %v11280
    %v11282 = vpop.f32.mrb[0].mxu0
    %11283 = vmatprep.mubr.bf16.mxu0 0
    %11284 = vmatmul.mubr.bf16.gmra.mrb[0].mxu0 %v10104
    %v11285 = vpop.f32.mrb[0].mxu0
    %v11286 = vadd.f32 %v10997, %v11285
    %v11287 = vpop.f32.mrb[0].mxu0
    %v11288 = vpop.f32.mrb[0].mxu0
    %v11289 = vadd.f32 %v11000, %v11288
    %v11290 = vpop.f32.mrb[0].mxu0
    %11291 = vmatprep.mubr.bf16.mxu0 0
    %11292 = vmatmul.mubr.bf16.gmra.mrb[0].mxu0 %v10109
    %v11293 = vpop.f32.mrb[0].mxu0
    %v11294 = vadd.f32 %v11005, %v11293
    %v11295 = vpop.f32.mrb[0].mxu0
    %v11296 = vpop.f32.mrb[0].mxu0
    %v11297 = vadd.f32 %v11008, %v11296
    %v11298 = vpop.f32.mrb[0].mxu0
    %11299 = vmatprep.mubr.bf16.mxu0 0
    %11300 = vmatmul.mubr.bf16.gmra.mrb[0].mxu0 %v10114
    %v11301 = vpop.f32.mrb[0].mxu0
    %v11302 = vadd.f32 %v11013, %v11301
    %v11303 = vpop.f32.mrb[0].mxu0
    %v11304 = vpop.f32.mrb[0].mxu0
    %v11305 = vadd.f32 %v11016, %v11304
    %v11306 = vpop.f32.mrb[0].mxu0
    %11307 = vdwg.mxu0
    %v11308 = vld [vmem:[#allocation3] sm:$0xff]
    %v11309 = vld [vmem:[#allocation3 + $0x8] sm:$0xff]
    %v11310 = vld [vmem:[#allocation3 + $0x10] sm:$0xff]
    %v11311 = vld [vmem:[#allocation3 + $0x18] sm:$0xff]
    %v11312 = vld [vmem:[#allocation3 + $0x20] sm:$0xff]
    %v11313 = vld [vmem:[#allocation3 + $0x28] sm:$0xff]
    %v11314 = vld [vmem:[#allocation3 + $0x30] sm:$0xff]
    %v11315 = vld [vmem:[#allocation3 + $0x38] sm:$0xff]
    %v11316 = vld [vmem:[#allocation3 + $0x40] sm:$0xff]
    %v11317 = vld [vmem:[#allocation3 + $0x48] sm:$0xff]
    %v11318 = vld [vmem:[#allocation3 + $0x50] sm:$0xff]
    %v11319 = vld [vmem:[#allocation3 + $0x58] sm:$0xff]
    %v11320 = vld [vmem:[#allocation3 + $0x60] sm:$0xff]
    %v11321 = vld [vmem:[#allocation3 + $0x68] sm:$0xff]
    %v11322 = vld [vmem:[#allocation3 + $0x70] sm:$0xff]
    %v11323 = vld [vmem:[#allocation3 + $0x78] sm:$0xff]
    %v11324 = vld [vmem:[#allocation3 + $0x80] sm:$0xff]
    %v11325 = vld [vmem:[#allocation3 + $0x88] sm:$0xff]
    %v11326 = vld [vmem:[#allocation3 + $0x90] sm:$0xff]
    %v11327 = vld [vmem:[#allocation3 + $0x98] sm:$0xff]
    %v11328 = vld [vmem:[#allocation3 + $0xa0] sm:$0xff]
    %v11329 = vld [vmem:[#allocation3 + $0xa8] sm:$0xff]
    %v11330 = vld [vmem:[#allocation3 + $0xb0] sm:$0xff]
    %v11331 = vld [vmem:[#allocation3 + $0xb8] sm:$0xff]
    %v11332 = vld [vmem:[#allocation3 + $0xc0] sm:$0xff]
    %v11333 = vld [vmem:[#allocation3 + $0xc8] sm:$0xff]
    %v11334 = vld [vmem:[#allocation3 + $0xd0] sm:$0xff]
    %v11335 = vld [vmem:[#allocation3 + $0xd8] sm:$0xff]
    %v11336 = vld [vmem:[#allocation3 + $0xe0] sm:$0xff]
    %v11337 = vld [vmem:[#allocation3 + $0xe8] sm:$0xff]
    %v11338 = vld [vmem:[#allocation3 + $0xf0] sm:$0xff]
    %v11339 = vld [vmem:[#allocation3 + $0xf8] sm:$0xff]
    %v11340 = vld [vmem:[#allocation3 + $0x100] sm:$0xff]
    %v11341 = vld [vmem:[#allocation3 + $0x108] sm:$0xff]
    %v11342 = vld [vmem:[#allocation3 + $0x110] sm:$0xff]
    %v11343 = vld [vmem:[#allocation3 + $0x118] sm:$0xff]
    %v11344 = vld [vmem:[#allocation3 + $0x120] sm:$0xff]
    %v11345 = vld [vmem:[#allocation3 + $0x128] sm:$0xff]
    %v11346 = vld [vmem:[#allocation3 + $0x130] sm:$0xff]
    %v11347 = vld [vmem:[#allocation3 + $0x138] sm:$0xff]
    %v11348 = vld [vmem:[#allocation3 + $0x140] sm:$0xff]
    %v11349 = vld [vmem:[#allocation3 + $0x148] sm:$0xff]
    %v11350 = vld [vmem:[#allocation3 + $0x150] sm:$0xff]
    %v11351 = vld [vmem:[#allocation3 + $0x158] sm:$0xff]
    %v11352 = vld [vmem:[#allocation3 + $0x160] sm:$0xff]
    %v11353 = vld [vmem:[#allocation3 + $0x168] sm:$0xff]
    %v11354 = vld [vmem:[#allocation3 + $0x170] sm:$0xff]
    %v11355 = vld [vmem:[#allocation3 + $0x178] sm:$0xff]
    %v11356 = vld [vmem:[#allocation3 + $0x180] sm:$0xff]
    %v11357 = vld [vmem:[#allocation3 + $0x188] sm:$0xff]
    %v11358 = vld [vmem:[#allocation3 + $0x190] sm:$0xff]
    %v11359 = vld [vmem:[#allocation3 + $0x198] sm:$0xff]
    %v11360 = vld [vmem:[#allocation3 + $0x1a0] sm:$0xff]
    %v11361 = vld [vmem:[#allocation3 + $0x1a8] sm:$0xff]
    %v11362 = vld [vmem:[#allocation3 + $0x1b0] sm:$0xff]
    %v11363 = vld [vmem:[#allocation3 + $0x1b8] sm:$0xff]
    %v11364 = vld [vmem:[#allocation3 + $0x1c0] sm:$0xff]
    %v11365 = vld [vmem:[#allocation3 + $0x1c8] sm:$0xff]
    %v11366 = vld [vmem:[#allocation3 + $0x1d0] sm:$0xff]
    %v11367 = vld [vmem:[#allocation3 + $0x1d8] sm:$0xff]
    %v11368 = vld [vmem:[#allocation3 + $0x1e0] sm:$0xff]
    %v11369 = vld [vmem:[#allocation3 + $0x1e8] sm:$0xff]
    %v11370 = vld [vmem:[#allocation3 + $0x1f0] sm:$0xff]
    %v11371 = vld [vmem:[#allocation3 + $0x1f8] sm:$0xff]
    %v11372 = vadd.f32 %v11308, %v11054
    %v11373 = vadd.f32 %v11309, %v11057
    %v11374 = vadd.f32 %v11310, %v11062
    %v11375 = vadd.f32 %v11311, %v11065
    %v11376 = vadd.f32 %v11312, %v11070
    %v11377 = vadd.f32 %v11313, %v11073
    %v11378 = vadd.f32 %v11314, %v11078
    %v11379 = vadd.f32 %v11315, %v11081
    %v11380 = vadd.f32 %v11316, %v11086
    %v11381 = vadd.f32 %v11317, %v11089
    %v11382 = vadd.f32 %v11318, %v11094
    %v11383 = vadd.f32 %v11319, %v11097
    %v11384 = vadd.f32 %v11320, %v11102
    %v11385 = vadd.f32 %v11321, %v11105
    %v11386 = vadd.f32 %v11322, %v11110
    %v11387 = vadd.f32 %v11323, %v11113
    %v11388 = vadd.f32 %v11324, %v11118
    %v11389 = vadd.f32 %v11325, %v11121
    %v11390 = vadd.f32 %v11326, %v11126
    %v11391 = vadd.f32 %v11327, %v11129
    %v11392 = vadd.f32 %v11328, %v11134
    %v11393 = vadd.f32 %v11329, %v11137
    %v11394 = vadd.f32 %v11330, %v11142
    %v11395 = vadd.f32 %v11331, %v11145
    %v11396 = vadd.f32 %v11332, %v11150
    %v11397 = vadd.f32 %v11333, %v11153
    %v11398 = vadd.f32 %v11334, %v11158
    %v11399 = vadd.f32 %v11335, %v11161
    %v11400 = vadd.f32 %v11336, %v11166
    %v11401 = vadd.f32 %v11337, %v11169
    %v11402 = vadd.f32 %v11338, %v11174
    %v11403 = vadd.f32 %v11339, %v11177
    %v11404 = vadd.f32 %v11340, %v11182
    %v11405 = vadd.f32 %v11341, %v11185
    %v11406 = vadd.f32 %v11342, %v11190
    %v11407 = vadd.f32 %v11343, %v11193
    %v11408 = vadd.f32 %v11344, %v11198
    %v11409 = vadd.f32 %v11345, %v11201
    %v11410 = vadd.f32 %v11346, %v11206
    %v11411 = vadd.f32 %v11347, %v11209
    %v11412 = vadd.f32 %v11348, %v11214
    %v11413 = vadd.f32 %v11349, %v11217
    %v11414 = vadd.f32 %v11350, %v11222
    %v11415 = vadd.f32 %v11351, %v11225
    %v11416 = vadd.f32 %v11352, %v11230
    %v11417 = vadd.f32 %v11353, %v11233
    %v11418 = vadd.f32 %v11354, %v11238
    %v11419 = vadd.f32 %v11355, %v11241
    %v11420 = vadd.f32 %v11356, %v11246
    %v11421 = vadd.f32 %v11357, %v11249
    %v11422 = vadd.f32 %v11358, %v11254
    %v11423 = vadd.f32 %v11359, %v11257
    %v11424 = vadd.f32 %v11360, %v11262
    %v11425 = vadd.f32 %v11361, %v11265
    %v11426 = vadd.f32 %v11362, %v11270
    %v11427 = vadd.f32 %v11363, %v11273
    %v11428 = vadd.f32 %v11364, %v11278
    %v11429 = vadd.f32 %v11365, %v11281
    %v11430 = vadd.f32 %v11366, %v11286
    %v11431 = vadd.f32 %v11367, %v11289
    %v11432 = vadd.f32 %v11368, %v11294
    %v11433 = vadd.f32 %v11369, %v11297
    %v11434 = vadd.f32 %v11370, %v11302
    %v11435 = vadd.f32 %v11371, %v11305
    %11436 = vst.msk [vmem:[#allocation12] sm:$0xff] %vm183, %v11372
    %11437 = vst.msk [vmem:[#allocation12 + $0x8] sm:$0xff] %vm183, %v11373
    %11438 = vst.msk [vmem:[#allocation12 + $0x10] sm:$0xff] %vm183, %v11374
    %11439 = vst.msk [vmem:[#allocation12 + $0x18] sm:$0xff] %vm183, %v11375
    %11440 = vst.msk [vmem:[#allocation12 + $0x20] sm:$0xff] %vm183, %v11376
    %11441 = vst.msk [vmem:[#allocation12 + $0x28] sm:$0xff] %vm183, %v11377
    %11442 = vst.msk [vmem:[#allocation12 + $0x30] sm:$0xff] %vm183, %v11378
    %11443 = vst.msk [vmem:[#allocation12 + $0x38] sm:$0xff] %vm183, %v11379
    %11444 = vst.msk [vmem:[#allocation12 + $0x40] sm:$0xff] %vm183, %v11380
    %11445 = vst.msk [vmem:[#allocation12 + $0x48] sm:$0xff] %vm183, %v11381
    %11446 = vst.msk [vmem:[#allocation12 + $0x50] sm:$0xff] %vm183, %v11382
    %11447 = vst.msk [vmem:[#allocation12 + $0x58] sm:$0xff] %vm183, %v11383
    %11448 = vst.msk [vmem:[#allocation12 + $0x60] sm:$0xff] %vm183, %v11384
    %11449 = vst.msk [vmem:[#allocation12 + $0x68] sm:$0xff] %vm183, %v11385
    %11450 = vst.msk [vmem:[#allocation12 + $0x70] sm:$0xff] %vm183, %v11386
    %11451 = vst.msk [vmem:[#allocation12 + $0x78] sm:$0xff] %vm183, %v11387
    %11452 = vst.msk [vmem:[#allocation12 + $0x80] sm:$0xff] %vm183, %v11388
    %11453 = vst.msk [vmem:[#allocation12 + $0x88] sm:$0xff] %vm183, %v11389
    %11454 = vst.msk [vmem:[#allocation12 + $0x90] sm:$0xff] %vm183, %v11390
    %11455 = vst.msk [vmem:[#allocation12 + $0x98] sm:$0xff] %vm183, %v11391
    %11456 = vst.msk [vmem:[#allocation12 + $0xa0] sm:$0xff] %vm183, %v11392
    %11457 = vst.msk [vmem:[#allocation12 + $0xa8] sm:$0xff] %vm183, %v11393
    %11458 = vst.msk [vmem:[#allocation12 + $0xb0] sm:$0xff] %vm183, %v11394
    %11459 = vst.msk [vmem:[#allocation12 + $0xb8] sm:$0xff] %vm183, %v11395
    %11460 = vst.msk [vmem:[#allocation12 + $0xc0] sm:$0xff] %vm183, %v11396
    %11461 = vst.msk [vmem:[#allocation12 + $0xc8] sm:$0xff] %vm183, %v11397
    %11462 = vst.msk [vmem:[#allocation12 + $0xd0] sm:$0xff] %vm183, %v11398
    %11463 = vst.msk [vmem:[#allocation12 + $0xd8] sm:$0xff] %vm183, %v11399
    %11464 = vst.msk [vmem:[#allocation12 + $0xe0] sm:$0xff] %vm183, %v11400
    %11465 = vst.msk [vmem:[#allocation12 + $0xe8] sm:$0xff] %vm183, %v11401
    %11466 = vst.msk [vmem:[#allocation12 + $0xf0] sm:$0xff] %vm183, %v11402
    %11467 = vst.msk [vmem:[#allocation12 + $0xf8] sm:$0xff] %vm183, %v11403
    %11468 = vst.msk [vmem:[#allocation12 + $0x100] sm:$0xff] %vm183, %v11404
    %11469 = vst.msk [vmem:[#allocation12 + $0x108] sm:$0xff] %vm183, %v11405
    %11470 = vst.msk [vmem:[#allocation12 + $0x110] sm:$0xff] %vm183, %v11406
    %11471 = vst.msk [vmem:[#allocation12 + $0x118] sm:$0xff] %vm183, %v11407
    %11472 = vst.msk [vmem:[#allocation12 + $0x120] sm:$0xff] %vm183, %v11408
    %11473 = vst.msk [vmem:[#allocation12 + $0x128] sm:$0xff] %vm183, %v11409
    %11474 = vst.msk [vmem:[#allocation12 + $0x130] sm:$0xff] %vm183, %v11410
    %11475 = vst.msk [vmem:[#allocation12 + $0x138] sm:$0xff] %vm183, %v11411
    %11476 = vst.msk [vmem:[#allocation12 + $0x140] sm:$0xff] %vm183, %v11412
    %11477 = vst.msk [vmem:[#allocation12 + $0x148] sm:$0xff] %vm183, %v11413
    %11478 = vst.msk [vmem:[#allocation12 + $0x150] sm:$0xff] %vm183, %v11414
    %11479 = vst.msk [vmem:[#allocation12 + $0x158] sm:$0xff] %vm183, %v11415
    %11480 = vst.msk [vmem:[#allocation12 + $0x160] sm:$0xff] %vm183, %v11416
    %11481 = vst.msk [vmem:[#allocation12 + $0x168] sm:$0xff] %vm183, %v11417
    %11482 = vst.msk [vmem:[#allocation12 + $0x170] sm:$0xff] %vm183, %v11418
    %11483 = vst.msk [vmem:[#allocation12 + $0x178] sm:$0xff] %vm183, %v11419
    %11484 = vst.msk [vmem:[#allocation12 + $0x180] sm:$0xff] %vm183, %v11420
    %11485 = vst.msk [vmem:[#allocation12 + $0x188] sm:$0xff] %vm183, %v11421
    %11486 = vst.msk [vmem:[#allocation12 + $0x190] sm:$0xff] %vm183, %v11422
    %11487 = vst.msk [vmem:[#allocation12 + $0x198] sm:$0xff] %vm183, %v11423
    %11488 = vst.msk [vmem:[#allocation12 + $0x1a0] sm:$0xff] %vm183, %v11424
    %11489 = vst.msk [vmem:[#allocation12 + $0x1a8] sm:$0xff] %vm183, %v11425
    %11490 = vst.msk [vmem:[#allocation12 + $0x1b0] sm:$0xff] %vm183, %v11426
    %11491 = vst.msk [vmem:[#allocation12 + $0x1b8] sm:$0xff] %vm183, %v11427
    %11492 = vst.msk [vmem:[#allocation12 + $0x1c0] sm:$0xff] %vm183, %v11428
    %11493 = vst.msk [vmem:[#allocation12 + $0x1c8] sm:$0xff] %vm183, %v11429
    %11494 = vst.msk [vmem:[#allocation12 + $0x1d0] sm:$0xff] %vm183, %v11430
    %11495 = vst.msk [vmem:[#allocation12 + $0x1d8] sm:$0xff] %vm183, %v11431
    %11496 = vst.msk [vmem:[#allocation12 + $0x1e0] sm:$0xff] %vm183, %v11432
    %11497 = vst.msk [vmem:[#allocation12 + $0x1e8] sm:$0xff] %vm183, %v11433
    %11498 = vst.msk [vmem:[#allocation12 + $0x1f0] sm:$0xff] %vm183, %v11434
    %11499 = vst.msk [vmem:[#allocation12 + $0x1f8] sm:$0xff] %vm183, %v11435
    // Predicated region
    $region78: #{forward_nhwc.1} parent=1 // pred_check
      _
    $region79: #{forward_nhwc.1} parent=1 // pred_check_branch
      %11501 = sbr.rel (0) target = $region81
    $region80: #{forward_nhwc.1} parent=1 // pred_region
      %s11503 = ssub.s32 8192, 8192
      %11504 = vsyncadd [#allocation5], %s11503
      %s11505 = sshll.u32 [#allocation12], 4
      %s11506 = int_to_ptr.vmem [resolvable:$true] %s11505
      %11511 = dma.vmem_to_hbm [thread:$0]  %s11506, 8192, %s14, [#allocation5], 128, 128, 8
    $region81: #{forward_nhwc.1} parent=1 // pred_fallthru
      _
    // Predicated region
    $region82: #{forward_nhwc.1} parent=1 // pred_check
      _
    $region83: #{forward_nhwc.1} parent=1 // pred_check_branch
      %11513 = sbr.rel (0) target = $region85
    $region84: #{forward_nhwc.1} parent=1 // pred_region
      %11514 = dma.done [#allocation5], 8192
    $region85: #{forward_nhwc.1} parent=1 // pred_fallthru
      _
    %11515 = vsyncpa [#allocation4], 1
    %11516 = vsyncpa [#allocation7], 1
    %11517 = vsyncpa [#allocation10], 1
    %11518 = vsyncpa [#allocation5], 1

</llo_original>
